<compile_context>
chip_gen: v7x
topology: tpu7x:2x2x1
jax: 0.10.0
libtpu: 0.0.40
codegen_flags: <defaults>
</compile_context>

<pallas_src>
import functools

import numpy as np
import jax
import jax.numpy as jnp
from jax.experimental import pallas as pl
from jax.experimental.pallas import tpu as pltpu

# ----------------------------- synthetic config -----------------------------
VOCAB       = 20                 # word ids 0..19, pad index = 0
BOS_IDX     = VOCAB              # len(vocab)
EOS_IDX     = VOCAB + 1          # len(vocab) + 1
MAX_CHARS   = 8                  # config['char_cnn']['max_characters_per_token']
CHAR_VOCAB  = 30                 # char ids 0..29; row CHAR_VOCAB is the zero padding row
CHAR_DIM    = 16                 # config['char_cnn']['embedding']['dim']
FILTERS     = ((1, 8), (2, 8), (3, 16))   # (width, num_filters)
N_FILTERS   = sum(n for _, n in FILTERS)  # 32
MAX_W       = max(w for w, _ in FILTERS)  # 3
N_HIGHWAY   = 2
PROJ_DIM    = 32                 # config['lstm']['projection_dim'] == output_dim
CELL_DIM    = 64                 # config['lstm']['dim']
N_LAYERS    = 2                  # config['lstm']['n_layers']
CELL_CLIP   = 3.0
PROJ_CLIP   = 3.0
K_PAD       = MAX_CHARS + MAX_W - 1      # char positions incl. window tail padding


def _round_up(x, m):
    return (x + m - 1) // m * m


# ------------------------- kernel 1: ConvTokenEmbedder ------------------------
def _token_embedder_kernel(ce_ref, wconv_ref, bconv_ref, posmask_ref,
                           hw_wnl_ref, hw_bnl_ref, hw_wg_ref, hw_bg_ref,
                           wp_ref, bp_ref, out_ref):
    """Char-CNN (fused filter bank) + max-pool + relu + highway + projection.

    ce_ref      : (K_PAD, TILE_N, Dc) bf16   char embeddings, char-position major
    wconv_ref   : (MAX_W, Dc, F)      bf16   fused filter bank (zero-padded widths)
    bconv_ref   : (1, F)              f32
    posmask_ref : (MAX_CHARS, 1, F)   f32    0 / -1e30 position-validity mask
    hw_*        : (N_HIGHWAY, F, F) bf16 weights, (N_HIGHWAY, 1, F) f32 biases
    wp/bp       : (F, H) bf16, (1, H) f32
    out_ref     : (TILE_N, H) f32
    """
    k_pad, tile_n, _ = ce_ref.shape

    # One matmul per filter width over *all* char positions at once.
    # (layout-preserving reshape: tile_n is a multiple of 16)
    ce_flat = ce_ref[...].reshape(k_pad * tile_n, CHAR_DIM)
    proj = []
    for k in range(MAX_W):
        pk = jnp.dot(ce_flat, wconv_ref[k], preferred_element_type=jnp.float32)
        proj.append(pk.reshape(k_pad, tile_n, N_FILTERS))

    bconv = bconv_ref[...]
    m = None
    for t in range(MAX_CHARS):                       # conv positions + running max
        s = bconv + posmask_ref[t]                   # -1e30 masks positions past end
        for k in range(MAX_W):
            s = s + proj[k][t + k]
        m = s if m is None else jnp.maximum(m, s)
    x = jnp.maximum(m, 0.0)                          # relu activation, (TILE_N, F)

    # Highway: out = gate*x + (1-gate)*relu(nonlinear); two lane-aligned matmuls.
    for j in range(N_HIGHWAY):
        xb = x.astype(jnp.bfloat16)
        nl = jnp.dot(xb, hw_wnl_ref[j],
                     preferred_element_type=jnp.float32) + hw_bnl_ref[j]
        nl = jnp.maximum(nl, 0.0)
        g = jax.nn.sigmoid(jnp.dot(xb, hw_wg_ref[j],
                                   preferred_element_type=jnp.float32) + hw_bg_ref[j])
        x = g * x + (1.0 - g) * nl

    out_ref[...] = (jnp.dot(x.astype(jnp.bfloat16), wp_ref[...],
                            preferred_element_type=jnp.float32) + bp_ref[...])


def token_embedder(char_embs, params):
    """char_embs: (N, MAX_CHARS, Dc) f32 -> (N, PROJ_DIM) f32."""
    n = char_embs.shape[0]
    n16 = _round_up(n, 16)
    tile_n = n16 if n16 <= 1024 else 1024
    n_pad = _round_up(n16, tile_n)

    # char-position major, zero padded along both char-position (window tail) and N
    ce = jnp.zeros((K_PAD, n_pad, CHAR_DIM), jnp.bfloat16)
    ce = ce.at[:MAX_CHARS, :n, :].set(
        jnp.transpose(char_embs, (1, 0, 2)).astype(jnp.bfloat16))

    # fused filter bank: each filter zero-padded to width MAX_W, concat along channels
    wconv = jnp.zeros((MAX_W, CHAR_DIM, N_FILTERS), jnp.float32)
    biases = []
    ch = 0
    for (w_t, b_t), (w, num) in zip(params["convs"], FILTERS):
        wk = jnp.transpose(w_t, (2, 1, 0))            # torch (num, Dc, w) -> (w, Dc, num)
        wconv = wconv.at[:w, :, ch:ch + num].set(wk)
        biases.append(b_t)
        ch += num
    wconv = wconv.astype(jnp.bfloat16)
    bconv = jnp.concatenate(biases).reshape(1, N_FILTERS)

    # positions past (MAX_CHARS - width) are not valid conv outputs -> mask from max
    pm = np.zeros((MAX_CHARS, 1, N_FILTERS), np.float32)
    ch = 0
    for (w, num) in FILTERS:
        pm[MAX_CHARS - w + 1:, 0, ch:ch + num] = -1e30
        ch += num
    posmask = jnp.asarray(pm)

    hw_wnl = jnp.stack([w[:N_FILTERS, :].T for (w, _) in params["highway"]]).astype(jnp.bfloat16)
    hw_wg = jnp.stack([w[N_FILTERS:, :].T for (w, _) in params["highway"]]).astype(jnp.bfloat16)
    hw_bnl = jnp.stack([b[:N_FILTERS].reshape(1, N_FILTERS) for (_, b) in params["highway"]])
    hw_bg = jnp.stack([b[N_FILTERS:].reshape(1, N_FILTERS) for (_, b) in params["highway"]])

    wp = params["proj_W"].T.astype(jnp.bfloat16)      # (F, H)
    bp = params["proj_b"].reshape(1, PROJ_DIM)

    grid = (n_pad // tile_n,)
    out = pl.pallas_call(
        _token_embedder_kernel,
        out_shape=jax.ShapeDtypeStruct((n_pad, PROJ_DIM), jnp.float32),
        grid_spec=pltpu.PrefetchScalarGridSpec(
            num_scalar_prefetch=0,
            grid=grid,
            in_specs=[
                pl.BlockSpec((K_PAD, tile_n, CHAR_DIM), lambda i: (0, i, 0)),
                pl.BlockSpec((MAX_W, CHAR_DIM, N_FILTERS), lambda i: (0, 0, 0)),
                pl.BlockSpec((1, N_FILTERS), lambda i: (0, 0)),
                pl.BlockSpec((MAX_CHARS, 1, N_FILTERS), lambda i: (0, 0, 0)),
                pl.BlockSpec((N_HIGHWAY, N_FILTERS, N_FILTERS), lambda i: (0, 0, 0)),
                pl.BlockSpec((N_HIGHWAY, 1, N_FILTERS), lambda i: (0, 0, 0)),
                pl.BlockSpec((N_HIGHWAY, N_FILTERS, N_FILTERS), lambda i: (0, 0, 0)),
                pl.BlockSpec((N_HIGHWAY, 1, N_FILTERS), lambda i: (0, 0, 0)),
                pl.BlockSpec((N_FILTERS, PROJ_DIM), lambda i: (0, 0)),
                pl.BlockSpec((1, PROJ_DIM), lambda i: (0, 0)),
            ],
            out_specs=pl.BlockSpec((tile_n, PROJ_DIM), lambda i: (i, 0)),
        ),
        compiler_params=pltpu.CompilerParams(
            dimension_semantics=("parallel",),
            vmem_limit_bytes=32 * 1024 * 1024),
    )(ce, wconv, bconv, posmask, hw_wnl, hw_bnl, hw_wg, hw_bg, wp, bp)
    return out[:n]


# ------------------------------ kernel 2: ElmobiLm ----------------------------
def _bilm_kernel(x_ref, nz_ref, mh_ref, mc_ref,
                 winf_ref, winb_ref, wst_ref, bias_ref, wpr_ref,
                 out_ref,
                 seqf, seqb, xf, xb, outf, outb):
    """2-layer bi-LSTM with projection, fwd/bwd fused into one time loop.

    x_ref   : (T, BB, H)   token embeddings, time-major (BB padded to 8 sublanes)
    nz_ref  : (T, BB, 1)   1.0 where expanded_words != 0 (masked_fill mask)
    mh_ref  : (T, BB, 2H)  per-step validity mask: [:H]=fwd @ t, [H:]=bwd @ T-1-t
    mc_ref  : (T, BB, 2C)  same, cell width
    winf/winb : (L, H, 8C) bf16  input linearity scattered into fwd/bwd gate columns
    wst     : (L, 2H, 8C)  bf16  state linearity, per-direction row blocks
    bias    : (L, 1, 8C)   f32
    wpr     : (L, 2C, 2H)  bf16  block-diagonal state projection
    out_ref : (L+1, T, BB, 2H)
    gate column layout: [i_f i_b | f_f f_b | g_f g_b | o_f o_b], each pair = 128 lanes.
    """
    t_len, bb, h_dim = x_ref.shape
    c2 = 2 * CELL_DIM            # fused fwd+bwd cell width (one 128-lane vreg)
    g8 = 8 * CELL_DIM            # fused gate width
    h2 = 2 * h_dim

    x = x_ref[...]
    xm = x * nz_ref[...]                                  # token_embedding.masked_fill
    out_ref[0] = jnp.concatenate([xm, xm], axis=-1)       # torch.cat((emb, emb), dim=2)

    seqf[...] = x
    seqb[...] = x

    for layer in range(N_LAYERS):
        w_in_f = winf_ref[layer]          # (H, 8C) bf16
        w_in_b = winb_ref[layer]
        w_st = wst_ref[layer]             # (2H, 8C) bf16
        w_pr = wpr_ref[layer]             # (2C, 2H) bf16
        bias = bias_ref[layer]            # (1, 8C) f32

        # Hoisted input projections: one big matmul per direction per layer
        # (layout-preserving reshape: bb is a multiple of 8).
        f_flat = seqf[...].reshape(t_len * bb, h_dim).astype(jnp.bfloat16)
        b_flat = seqb[...].reshape(t_len * bb, h_dim).astype(jnp.bfloat16)
        xf[...] = (jnp.dot(f_flat, w_in_f, preferred_element_type=jnp.float32)
                   + bias).reshape(t_len, bb, g8)
        xb[...] = jnp.dot(b_flat, w_in_b,
                          preferred_element_type=jnp.float32).reshape(t_len, bb, g8)

        def step(s, carry):
            h_all, c_all = carry          # (bb, 2H) f32, (bb, 2C) f32
            tf = s                        # forward walks left->right
            tb = t_len - 1 - s            # backward walks right->left
            gates = (xf[tf] + xb[tb]
                     + jnp.dot(h_all.astype(jnp.bfloat16), w_st,
                               preferred_element_type=jnp.float32))   # (bb, 8C)
            i_g = jax.nn.sigmoid(gates[:, 0 * c2:1 * c2])   # 128-lane aligned slices
            f_g = jax.nn.sigmoid(gates[:, 1 * c2:2 * c2])
            g_g = jnp.tanh(gates[:, 2 * c2:3 * c2])
            o_g = jax.nn.sigmoid(gates[:, 3 * c2:4 * c2])
            c_new = jnp.clip(i_g * g_g + f_g * c_all, -CELL_CLIP, CELL_CLIP)
            h_new = jnp.dot((o_g * jnp.tanh(c_new)).astype(jnp.bfloat16), w_pr,
                            preferred_element_type=jnp.float32)       # (bb, 2H)
            h_new = jnp.clip(h_new, -PROJ_CLIP, PROJ_CLIP)
            mh = mh_ref[s]                 # precomputed per-step masks (no in-loop
            mc = mc_ref[s]                 # broadcast rebuilds)
            hm = mh * h_new
            outf[tf] = hm[:, 0:h_dim]      # padded positions stay 0
            outb[tb] = hm[:, h_dim:h2]
            h_keep = hm + (1.0 - mh) * h_all     # frozen state on padded steps
            c_keep = mc * c_new + (1.0 - mc) * c_all
            return (h_keep, c_keep)

        init = (jnp.zeros((bb, h2), jnp.float32), jnp.zeros((bb, c2), jnp.float32))
        jax.lax.fori_loop(0, t_len, step, init, unroll=True)

        new_f = outf[...]
        new_b = outb[...]
        if layer > 0:                                # residual between layers
            new_f = new_f + seqf[...]
            new_b = new_b + seqb[...]
        out_ref[layer + 1] = jnp.concatenate([new_f, new_b], axis=-1)
        seqf[...] = new_f
        seqb[...] = new_b


def _gate_interleave(w4, direction):
    """(R, 4C) gate-order [i,f,g,o] -> (R, 8C) with gate g at cols [2g*C + d*C, ...)."""
    r = w4.shape[0]
    w = w4.reshape(r, 4, CELL_DIM)
    z = jnp.zeros_like(w)
    pair = jnp.stack([w, z] if direction == 0 else [z, w], axis=2)   # (R, 4, 2, C)
    return pair.reshape(r, 8 * CELL_DIM)


def bilm(token_emb, valid_mask, nz_mask, params):
    """token_emb (B, T, H), masks (B, T) -> (L+1, T, B_pad, 2H)."""
    batch, t_len, h_dim = token_emb.shape
    c_dim = CELL_DIM

    bp = _round_up(batch, 8)              # pad batch block to full sublanes
    bb = bp if bp <= 64 else 64
    bp = _round_up(bp, bb)

    x = jnp.zeros((bp, t_len, h_dim), jnp.float32).at[:batch].set(token_emb)
    vm = jnp.zeros((bp, t_len), jnp.float32).at[:batch].set(valid_mask)
    nz = jnp.zeros((bp, t_len), jnp.float32).at[:batch].set(nz_mask)

    x_tm = jnp.transpose(x, (1, 0, 2))                       # (T, Bp, H)
    vm_tm = jnp.transpose(vm, (1, 0))                        # (T, Bp)
    nz_tm = jnp.transpose(nz, (1, 0))[:, :, None]            # (T, Bp, 1)
    vm_rev = vm_tm[::-1]                                     # backward walk order

    mh = jnp.concatenate(
        [jnp.broadcast_to(vm_tm[:, :, None], (t_len, bp, h_dim)),
         jnp.broadcast_to(vm_rev[:, :, None], (t_len, bp, h_dim))], axis=-1)
    mc = jnp.concatenate(
        [jnp.broadcast_to(vm_tm[:, :, None], (t_len, bp, c_dim)),
         jnp.broadcast_to(vm_rev[:, :, None], (t_len, bp, c_dim))], axis=-1)

    winf, winb, wst, bias, wpr = [], [], [], [], []
    for layer in range(N_LAYERS):
        w_in_f, w_st_f, b_f, w_pr_f = params["lstm"][2 * layer + 0]
        w_in_b, w_st_b, b_b, w_pr_b = params["lstm"][2 * layer + 1]
        winf.append(_gate_interleave(w_in_f.T, 0))
        winb.append(_gate_interleave(w_in_b.T, 1))
        wst.append(jnp.concatenate([_gate_interleave(w_st_f.T, 0),
                                    _gate_interleave(w_st_b.T, 1)], axis=0))
        bias.append(_gate_interleave(b_f.reshape(1, -1), 0)
                    + _gate_interleave(b_b.reshape(1, -1), 1))
        blk = jnp.zeros((2 * c_dim, 2 * h_dim), jnp.float32)
        blk = blk.at[:c_dim, :h_dim].set(w_pr_f.T)
        blk = blk.at[c_dim:, h_dim:].set(w_pr_b.T)
        wpr.append(blk)
    winf = jnp.stack(winf).astype(jnp.bfloat16)              # (L, H, 8C)
    winb = jnp.stack(winb).astype(jnp.bfloat16)
    wst = jnp.stack(wst).astype(jnp.bfloat16)                # (L, 2H, 8C)
    bias = jnp.stack(bias)                                   # (L, 1, 8C) f32
    wpr = jnp.stack(wpr).astype(jnp.bfloat16)                # (L, 2C, 2H)

    grid = (bp // bb,)
    return pl.pallas_call(
        _bilm_kernel,
        out_shape=jax.ShapeDtypeStruct((N_LAYERS + 1, t_len, bp, 2 * h_dim),
                                       jnp.float32),
        grid_spec=pltpu.PrefetchScalarGridSpec(
            num_scalar_prefetch=0,
            grid=grid,
            in_specs=[
                pl.BlockSpec((t_len, bb, h_dim), lambda i: (0, i, 0)),
                pl.BlockSpec((t_len, bb, 1), lambda i: (0, i, 0)),
                pl.BlockSpec((t_len, bb, 2 * h_dim), lambda i: (0, i, 0)),
                pl.BlockSpec((t_len, bb, 2 * c_dim), lambda i: (0, i, 0)),
                pl.BlockSpec((N_LAYERS, h_dim, 8 * c_dim), lambda i: (0, 0, 0)),
                pl.BlockSpec((N_LAYERS, h_dim, 8 * c_dim), lambda i: (0, 0, 0)),
                pl.BlockSpec((N_LAYERS, 2 * h_dim, 8 * c_dim), lambda i: (0, 0, 0)),
                pl.BlockSpec((N_LAYERS, 1, 8 * c_dim), lambda i: (0, 0, 0)),
                pl.BlockSpec((N_LAYERS, 2 * c_dim, 2 * h_dim), lambda i: (0, 0, 0)),
            ],
            out_specs=pl.BlockSpec((N_LAYERS + 1, t_len, bb, 2 * h_dim),
                                   lambda i: (0, 0, i, 0)),
            scratch_shapes=[
                pltpu.VMEM((t_len, bb, h_dim), jnp.float32),       # seqf
                pltpu.VMEM((t_len, bb, h_dim), jnp.float32),       # seqb
                pltpu.VMEM((t_len, bb, 8 * c_dim), jnp.float32),   # xf (hoisted proj)
                pltpu.VMEM((t_len, bb, 8 * c_dim), jnp.float32),   # xb
                pltpu.VMEM((t_len, bb, h_dim), jnp.float32),       # outf
                pltpu.VMEM((t_len, bb, h_dim), jnp.float32),       # outb
            ]),
        compiler_params=pltpu.CompilerParams(
            dimension_semantics=("parallel",),
            vmem_limit_bytes=32 * 1024 * 1024),
    )(x_tm, nz_tm, mh, mc, winf, winb, wst, bias, wpr)


# ------------------------------- forward wrapper ------------------------------
def elmo_forward(words, params):
    """words: (B, max_len) int32 -> (num_layers+1, B, max_len, 2*PROJ_DIM) f32."""
    batch, max_len = words.shape
    pad_index = 0
    seq_len = jnp.sum((words != pad_index).astype(jnp.int32), axis=-1)

    t_len = max_len + 2
    expanded = jnp.zeros((batch, t_len), dtype=words.dtype)
    expanded = expanded.at[:, 1:-1].set(words)
    expanded = expanded.at[:, 0].set(BOS_IDX)
    expanded = expanded.at[jnp.arange(batch), seq_len + 1].set(EOS_IDX)
    seq_len = seq_len + 2

    nz_mask = (expanded != 0).astype(jnp.float32)                            # (B, T)
    valid_mask = (jnp.arange(t_len)[None, :] < seq_len[:, None]).astype(jnp.float32)

    # TODO(synk): embedding-table gathers stay in plain JAX (no clean Pallas gather).
    chars = params["words_to_chars"][expanded]                               # (B, T, K)
    char_embs = params["char_emb"][chars]                                    # (B, T, K, Dc)
    char_embs = char_embs.reshape(batch * t_len, MAX_CHARS, CHAR_DIM)

    token_emb = token_embedder(char_embs, params)                            # (N, H)
    token_emb = token_emb.reshape(batch, t_len, PROJ_DIM)

    out_tm = bilm(token_emb, valid_mask, nz_mask, params)                    # (3, T, Bp, 2H)
    out_tm = out_tm[:, :, :batch, :]
    # TODO(synk): final transpose + BOS/EOS slice kept in XLA; emitting (L+1,B,T,2H)
    # directly would need an in-kernel 3-D transpose (risky lowering at these shapes).
    out = jnp.transpose(out_tm, (0, 2, 1, 3))                                # (3, B, T, 2H)
    return out[:, :, 1:-1, :]                                                # drop BOS/EOS


# ------------------------------ parameter setup -------------------------------
def init_params(key):
    keys = iter(jax.random.split(key, 64))
    nrm = lambda shape: 0.1 * jax.random.normal(next(keys), shape, jnp.float32)

    p = {}
    char_emb = nrm((CHAR_VOCAB + 1, CHAR_DIM))
    p["char_emb"] = char_emb.at[CHAR_VOCAB].set(0.0)           # padding_idx row

    p["convs"] = [(nrm((num, CHAR_DIM, w)), nrm((num,))) for (w, num) in FILTERS]

    hw = []
    for _ in range(N_HIGHWAY):
        w = nrm((2 * N_FILTERS, N_FILTERS))
        b = jnp.concatenate([nrm((N_FILTERS,)), jnp.ones((N_FILTERS,), jnp.float32)])
        hw.append((w, b))
    p["highway"] = hw

    p["proj_W"] = nrm((PROJ_DIM, N_FILTERS))
    p["proj_b"] = nrm((PROJ_DIM,))

    lstm = []
    for _layer in range(N_LAYERS):
        for _direction in range(2):
            w_in = nrm((4 * CELL_DIM, PROJ_DIM))      # input_linearity (no bias)
            w_st = nrm((4 * CELL_DIM, PROJ_DIM))      # state_linearity (bias)
            b_st = nrm((4 * CELL_DIM,))
            w_pr = nrm((PROJ_DIM, CELL_DIM))          # state_projection (no bias)
            lstm.append((w_in, w_st, b_st, w_pr))
    p["lstm"] = lstm

    # words_to_chars_embedding: (VOCAB+2, MAX_CHARS), filled with char pad row id
    pad_ch, bow_ch, eow_ch = 0, 2, 3
    rows = []
    for i in range(VOCAB + 2):
        if i == 0:                                    # word pad index: untouched fill
            rows.append([CHAR_VOCAB] * MAX_CHARS)
            continue
        if i >= VOCAB:                                # BOS / EOS: single pseudo-char
            body = [4 + (i % 10)]
        else:
            body = [4 + (i % 10), 4 + ((3 * i) % 10), 4 + ((7 * i) % 10)]
        ids = [bow_ch] + body + [eow_ch]
        ids += [pad_ch] * (MAX_CHARS - len(ids))
        rows.append(ids)
    p["words_to_chars"] = jnp.array(rows, dtype=jnp.int32)
    return p


# ------------------------------------ main -------------------------------------
if __name__ == "__main__":
    key = jax.random.PRNGKey(0)
    pkey, wkey = jax.random.split(key)
    params = init_params(pkey)

    batch, max_len = 2, 8
    words = jax.random.randint(wkey, (batch, max_len), 1, VOCAB, dtype=jnp.int32)
    words = words.at[1, 5:].set(0)   # second sequence has 3 padding positions

    fwd = jax.jit(functools.partial(elmo_forward, params=params))
    out = fwd(words)
    jax.block_until_ready(out)

    assert out.shape == (N_LAYERS + 1, batch, max_len, 2 * PROJ_DIM), out.shape
    assert out.dtype == jnp.float32
    print("KERNEL_OK")
</pallas_src>

<mosaic_0001>
module attributes {stable_mosaic.version = 11 : i64} {
  func.func @_token_embedder_kernel(%arg0: i32, %arg1: memref<10x32x16xbf16, #tpu.memory_space<vmem>>, %arg2: memref<3x16x32xbf16, #tpu.memory_space<vmem>>, %arg3: memref<1x32xf32, #tpu.memory_space<vmem>>, %arg4: memref<8x1x32xf32, #tpu.memory_space<vmem>>, %arg5: memref<2x32x32xbf16, #tpu.memory_space<vmem>>, %arg6: memref<2x1x32xf32, #tpu.memory_space<vmem>>, %arg7: memref<2x32x32xbf16, #tpu.memory_space<vmem>>, %arg8: memref<2x1x32xf32, #tpu.memory_space<vmem>>, %arg9: memref<32x32xbf16, #tpu.memory_space<vmem>>, %arg10: memref<1x32xf32, #tpu.memory_space<vmem>>, %arg11: memref<32x32xf32, #tpu.memory_space<vmem>>) attributes {dimension_semantics = [#tpu.dimension_semantics<parallel>], iteration_bounds = array<i64: 1>, scalar_prefetch = 0 : i64, scratch_operands = 0 : i64, tpu.core_type = #tpu.core_type<tc>, window_params = [{transform_indices = @transform_0, window_bounds = array<i64: 10, 32, 16>}, {pipeline_mode = #tpu.pipeline_mode<synchronous>, transform_indices = @transform_1, window_bounds = array<i64: 3, 16, 32>}, {pipeline_mode = #tpu.pipeline_mode<synchronous>, transform_indices = @transform_2, window_bounds = array<i64: 1, 32>}, {pipeline_mode = #tpu.pipeline_mode<synchronous>, transform_indices = @transform_3, window_bounds = array<i64: 8, 1, 32>}, {pipeline_mode = #tpu.pipeline_mode<synchronous>, transform_indices = @transform_4, window_bounds = array<i64: 2, 32, 32>}, {pipeline_mode = #tpu.pipeline_mode<synchronous>, transform_indices = @transform_5, window_bounds = array<i64: 2, 1, 32>}, {pipeline_mode = #tpu.pipeline_mode<synchronous>, transform_indices = @transform_6, window_bounds = array<i64: 2, 32, 32>}, {pipeline_mode = #tpu.pipeline_mode<synchronous>, transform_indices = @transform_7, window_bounds = array<i64: 2, 1, 32>}, {pipeline_mode = #tpu.pipeline_mode<synchronous>, transform_indices = @transform_8, window_bounds = array<i64: 32, 32>}, {pipeline_mode = #tpu.pipeline_mode<synchronous>, transform_indices = @transform_9, window_bounds = array<i64: 1, 32>}, {transform_indices = @transform_10, window_bounds = array<i64: 32, 32>}]} {
    %c0 = arith.constant 0 : index
    %c0_0 = arith.constant 0 : index
    %c0_1 = arith.constant 0 : index
    %0 = vector.load %arg1[%c0, %c0_0, %c0_1] : memref<10x32x16xbf16, #tpu.memory_space<vmem>>, vector<10x32x16xbf16>
    %1 = vector.shape_cast %0 : vector<10x32x16xbf16> to vector<320x16xbf16>
    %c0_2 = arith.constant 0 : index
    %c0_3 = arith.constant 0 : index
    %c0_4 = arith.constant 0 : index
    %2 = vector.load %arg2[%c0_2, %c0_3, %c0_4] : memref<3x16x32xbf16, #tpu.memory_space<vmem>>, vector<1x16x32xbf16>
    %3 = vector.shape_cast %2 : vector<1x16x32xbf16> to vector<16x32xbf16>
    %cst = arith.constant dense<0.000000e+00> : vector<320x32xf32>
    %4 = tpu.matmul %1, %3, %cst {dimension_numbers = #tpu.dot_dimension_numbers<[1], [0], [0], [1], [0, 0, 1, 1], [], []>} : vector<320x16xbf16>, vector<16x32xbf16>, vector<320x32xf32> -> vector<320x32xf32>
    %5 = vector.shape_cast %4 : vector<320x32xf32> to vector<10x32x32xf32>
    %c1 = arith.constant 1 : index
    %c0_5 = arith.constant 0 : index
    %c0_6 = arith.constant 0 : index
    %6 = vector.load %arg2[%c1, %c0_5, %c0_6] : memref<3x16x32xbf16, #tpu.memory_space<vmem>>, vector<1x16x32xbf16>
    %7 = vector.shape_cast %6 : vector<1x16x32xbf16> to vector<16x32xbf16>
    %cst_7 = arith.constant dense<0.000000e+00> : vector<320x32xf32>
    %8 = tpu.matmul %1, %7, %cst_7 {dimension_numbers = #tpu.dot_dimension_numbers<[1], [0], [0], [1], [0, 0, 1, 1], [], []>} : vector<320x16xbf16>, vector<16x32xbf16>, vector<320x32xf32> -> vector<320x32xf32>
    %9 = vector.shape_cast %8 : vector<320x32xf32> to vector<10x32x32xf32>
    %c2 = arith.constant 2 : index
    %c0_8 = arith.constant 0 : index
    %c0_9 = arith.constant 0 : index
    %10 = vector.load %arg2[%c2, %c0_8, %c0_9] : memref<3x16x32xbf16, #tpu.memory_space<vmem>>, vector<1x16x32xbf16>
    %11 = vector.shape_cast %10 : vector<1x16x32xbf16> to vector<16x32xbf16>
    %cst_10 = arith.constant dense<0.000000e+00> : vector<320x32xf32>
    %12 = tpu.matmul %1, %11, %cst_10 {dimension_numbers = #tpu.dot_dimension_numbers<[1], [0], [0], [1], [0, 0, 1, 1], [], []>} : vector<320x16xbf16>, vector<16x32xbf16>, vector<320x32xf32> -> vector<320x32xf32>
    %13 = vector.shape_cast %12 : vector<320x32xf32> to vector<10x32x32xf32>
    %c0_11 = arith.constant 0 : index
    %c0_12 = arith.constant 0 : index
    %14 = vector.load %arg3[%c0_11, %c0_12] : memref<1x32xf32, #tpu.memory_space<vmem>>, vector<1x32xf32>
    %c0_13 = arith.constant 0 : index
    %c0_14 = arith.constant 0 : index
    %c0_15 = arith.constant 0 : index
    %15 = vector.load %arg4[%c0_13, %c0_14, %c0_15] : memref<8x1x32xf32, #tpu.memory_space<vmem>>, vector<1x1x32xf32>
    %16 = vector.shape_cast %15 : vector<1x1x32xf32> to vector<1x32xf32>
    %17 = arith.addf %14, %16 : vector<1x32xf32>
    %18 = vector.extract_strided_slice %5 {offsets = [0, 0, 0], sizes = [1, 32, 32], strides = [1, 1, 1]} : vector<10x32x32xf32> to vector<1x32x32xf32>
    %19 = vector.shape_cast %18 : vector<1x32x32xf32> to vector<32x32xf32>
    %20 = vector.broadcast %17 : vector<1x32xf32> to vector<32x32xf32>
    %21 = arith.addf %20, %19 : vector<32x32xf32>
    %22 = vector.extract_strided_slice %9 {offsets = [1, 0, 0], sizes = [1, 32, 32], strides = [1, 1, 1]} : vector<10x32x32xf32> to vector<1x32x32xf32>
    %23 = vector.shape_cast %22 : vector<1x32x32xf32> to vector<32x32xf32>
    %24 = arith.addf %21, %23 : vector<32x32xf32>
    %25 = vector.extract_strided_slice %13 {offsets = [2, 0, 0], sizes = [1, 32, 32], strides = [1, 1, 1]} : vector<10x32x32xf32> to vector<1x32x32xf32>
    %26 = vector.shape_cast %25 : vector<1x32x32xf32> to vector<32x32xf32>
    %27 = arith.addf %24, %26 : vector<32x32xf32>
    %c1_16 = arith.constant 1 : index
    %c0_17 = arith.constant 0 : index
    %c0_18 = arith.constant 0 : index
    %28 = vector.load %arg4[%c1_16, %c0_17, %c0_18] : memref<8x1x32xf32, #tpu.memory_space<vmem>>, vector<1x1x32xf32>
    %29 = vector.shape_cast %28 : vector<1x1x32xf32> to vector<1x32xf32>
    %30 = arith.addf %14, %29 : vector<1x32xf32>
    %31 = vector.extract_strided_slice %5 {offsets = [1, 0, 0], sizes = [1, 32, 32], strides = [1, 1, 1]} : vector<10x32x32xf32> to vector<1x32x32xf32>
    %32 = vector.shape_cast %31 : vector<1x32x32xf32> to vector<32x32xf32>
    %33 = vector.broadcast %30 : vector<1x32xf32> to vector<32x32xf32>
    %34 = arith.addf %33, %32 : vector<32x32xf32>
    %35 = vector.extract_strided_slice %9 {offsets = [2, 0, 0], sizes = [1, 32, 32], strides = [1, 1, 1]} : vector<10x32x32xf32> to vector<1x32x32xf32>
    %36 = vector.shape_cast %35 : vector<1x32x32xf32> to vector<32x32xf32>
    %37 = arith.addf %34, %36 : vector<32x32xf32>
    %38 = vector.extract_strided_slice %13 {offsets = [3, 0, 0], sizes = [1, 32, 32], strides = [1, 1, 1]} : vector<10x32x32xf32> to vector<1x32x32xf32>
    %39 = vector.shape_cast %38 : vector<1x32x32xf32> to vector<32x32xf32>
    %40 = arith.addf %37, %39 : vector<32x32xf32>
    %41 = arith.maximumf %27, %40 : vector<32x32xf32>
    %c2_19 = arith.constant 2 : index
    %c0_20 = arith.constant 0 : index
    %c0_21 = arith.constant 0 : index
    %42 = vector.load %arg4[%c2_19, %c0_20, %c0_21] : memref<8x1x32xf32, #tpu.memory_space<vmem>>, vector<1x1x32xf32>
    %43 = vector.shape_cast %42 : vector<1x1x32xf32> to vector<1x32xf32>
    %44 = arith.addf %14, %43 : vector<1x32xf32>
    %45 = vector.extract_strided_slice %5 {offsets = [2, 0, 0], sizes = [1, 32, 32], strides = [1, 1, 1]} : vector<10x32x32xf32> to vector<1x32x32xf32>
    %46 = vector.shape_cast %45 : vector<1x32x32xf32> to vector<32x32xf32>
    %47 = vector.broadcast %44 : vector<1x32xf32> to vector<32x32xf32>
    %48 = arith.addf %47, %46 : vector<32x32xf32>
    %49 = vector.extract_strided_slice %9 {offsets = [3, 0, 0], sizes = [1, 32, 32], strides = [1, 1, 1]} : vector<10x32x32xf32> to vector<1x32x32xf32>
    %50 = vector.shape_cast %49 : vector<1x32x32xf32> to vector<32x32xf32>
    %51 = arith.addf %48, %50 : vector<32x32xf32>
    %52 = vector.extract_strided_slice %13 {offsets = [4, 0, 0], sizes = [1, 32, 32], strides = [1, 1, 1]} : vector<10x32x32xf32> to vector<1x32x32xf32>
    %53 = vector.shape_cast %52 : vector<1x32x32xf32> to vector<32x32xf32>
    %54 = arith.addf %51, %53 : vector<32x32xf32>
    %55 = arith.maximumf %41, %54 : vector<32x32xf32>
    %c3 = arith.constant 3 : index
    %c0_22 = arith.constant 0 : index
    %c0_23 = arith.constant 0 : index
    %56 = vector.load %arg4[%c3, %c0_22, %c0_23] : memref<8x1x32xf32, #tpu.memory_space<vmem>>, vector<1x1x32xf32>
    %57 = vector.shape_cast %56 : vector<1x1x32xf32> to vector<1x32xf32>
    %58 = arith.addf %14, %57 : vector<1x32xf32>
    %59 = vector.extract_strided_slice %5 {offsets = [3, 0, 0], sizes = [1, 32, 32], strides = [1, 1, 1]} : vector<10x32x32xf32> to vector<1x32x32xf32>
    %60 = vector.shape_cast %59 : vector<1x32x32xf32> to vector<32x32xf32>
    %61 = vector.broadcast %58 : vector<1x32xf32> to vector<32x32xf32>
    %62 = arith.addf %61, %60 : vector<32x32xf32>
    %63 = vector.extract_strided_slice %9 {offsets = [4, 0, 0], sizes = [1, 32, 32], strides = [1, 1, 1]} : vector<10x32x32xf32> to vector<1x32x32xf32>
    %64 = vector.shape_cast %63 : vector<1x32x32xf32> to vector<32x32xf32>
    %65 = arith.addf %62, %64 : vector<32x32xf32>
    %66 = vector.extract_strided_slice %13 {offsets = [5, 0, 0], sizes = [1, 32, 32], strides = [1, 1, 1]} : vector<10x32x32xf32> to vector<1x32x32xf32>
    %67 = vector.shape_cast %66 : vector<1x32x32xf32> to vector<32x32xf32>
    %68 = arith.addf %65, %67 : vector<32x32xf32>
    %69 = arith.maximumf %55, %68 : vector<32x32xf32>
    %c4 = arith.constant 4 : index
    %c0_24 = arith.constant 0 : index
    %c0_25 = arith.constant 0 : index
    %70 = vector.load %arg4[%c4, %c0_24, %c0_25] : memref<8x1x32xf32, #tpu.memory_space<vmem>>, vector<1x1x32xf32>
    %71 = vector.shape_cast %70 : vector<1x1x32xf32> to vector<1x32xf32>
    %72 = arith.addf %14, %71 : vector<1x32xf32>
    %73 = vector.extract_strided_slice %5 {offsets = [4, 0, 0], sizes = [1, 32, 32], strides = [1, 1, 1]} : vector<10x32x32xf32> to vector<1x32x32xf32>
    %74 = vector.shape_cast %73 : vector<1x32x32xf32> to vector<32x32xf32>
    %75 = vector.broadcast %72 : vector<1x32xf32> to vector<32x32xf32>
    %76 = arith.addf %75, %74 : vector<32x32xf32>
    %77 = vector.extract_strided_slice %9 {offsets = [5, 0, 0], sizes = [1, 32, 32], strides = [1, 1, 1]} : vector<10x32x32xf32> to vector<1x32x32xf32>
    %78 = vector.shape_cast %77 : vector<1x32x32xf32> to vector<32x32xf32>
    %79 = arith.addf %76, %78 : vector<32x32xf32>
    %80 = vector.extract_strided_slice %13 {offsets = [6, 0, 0], sizes = [1, 32, 32], strides = [1, 1, 1]} : vector<10x32x32xf32> to vector<1x32x32xf32>
    %81 = vector.shape_cast %80 : vector<1x32x32xf32> to vector<32x32xf32>
    %82 = arith.addf %79, %81 : vector<32x32xf32>
    %83 = arith.maximumf %69, %82 : vector<32x32xf32>
    %c5 = arith.constant 5 : index
    %c0_26 = arith.constant 0 : index
    %c0_27 = arith.constant 0 : index
    %84 = vector.load %arg4[%c5, %c0_26, %c0_27] : memref<8x1x32xf32, #tpu.memory_space<vmem>>, vector<1x1x32xf32>
    %85 = vector.shape_cast %84 : vector<1x1x32xf32> to vector<1x32xf32>
    %86 = arith.addf %14, %85 : vector<1x32xf32>
    %87 = vector.extract_strided_slice %5 {offsets = [5, 0, 0], sizes = [1, 32, 32], strides = [1, 1, 1]} : vector<10x32x32xf32> to vector<1x32x32xf32>
    %88 = vector.shape_cast %87 : vector<1x32x32xf32> to vector<32x32xf32>
    %89 = vector.broadcast %86 : vector<1x32xf32> to vector<32x32xf32>
    %90 = arith.addf %89, %88 : vector<32x32xf32>
    %91 = vector.extract_strided_slice %9 {offsets = [6, 0, 0], sizes = [1, 32, 32], strides = [1, 1, 1]} : vector<10x32x32xf32> to vector<1x32x32xf32>
    %92 = vector.shape_cast %91 : vector<1x32x32xf32> to vector<32x32xf32>
    %93 = arith.addf %90, %92 : vector<32x32xf32>
    %94 = vector.extract_strided_slice %13 {offsets = [7, 0, 0], sizes = [1, 32, 32], strides = [1, 1, 1]} : vector<10x32x32xf32> to vector<1x32x32xf32>
    %95 = vector.shape_cast %94 : vector<1x32x32xf32> to vector<32x32xf32>
    %96 = arith.addf %93, %95 : vector<32x32xf32>
    %97 = arith.maximumf %83, %96 : vector<32x32xf32>
    %c6 = arith.constant 6 : index
    %c0_28 = arith.constant 0 : index
    %c0_29 = arith.constant 0 : index
    %98 = vector.load %arg4[%c6, %c0_28, %c0_29] : memref<8x1x32xf32, #tpu.memory_space<vmem>>, vector<1x1x32xf32>
    %99 = vector.shape_cast %98 : vector<1x1x32xf32> to vector<1x32xf32>
    %100 = arith.addf %14, %99 : vector<1x32xf32>
    %101 = vector.extract_strided_slice %5 {offsets = [6, 0, 0], sizes = [1, 32, 32], strides = [1, 1, 1]} : vector<10x32x32xf32> to vector<1x32x32xf32>
    %102 = vector.shape_cast %101 : vector<1x32x32xf32> to vector<32x32xf32>
    %103 = vector.broadcast %100 : vector<1x32xf32> to vector<32x32xf32>
    %104 = arith.addf %103, %102 : vector<32x32xf32>
    %105 = vector.extract_strided_slice %9 {offsets = [7, 0, 0], sizes = [1, 32, 32], strides = [1, 1, 1]} : vector<10x32x32xf32> to vector<1x32x32xf32>
    %106 = vector.shape_cast %105 : vector<1x32x32xf32> to vector<32x32xf32>
    %107 = arith.addf %104, %106 : vector<32x32xf32>
    %108 = vector.extract_strided_slice %13 {offsets = [8, 0, 0], sizes = [1, 32, 32], strides = [1, 1, 1]} : vector<10x32x32xf32> to vector<1x32x32xf32>
    %109 = vector.shape_cast %108 : vector<1x32x32xf32> to vector<32x32xf32>
    %110 = arith.addf %107, %109 : vector<32x32xf32>
    %111 = arith.maximumf %97, %110 : vector<32x32xf32>
    %c7 = arith.constant 7 : index
    %c0_30 = arith.constant 0 : index
    %c0_31 = arith.constant 0 : index
    %112 = vector.load %arg4[%c7, %c0_30, %c0_31] : memref<8x1x32xf32, #tpu.memory_space<vmem>>, vector<1x1x32xf32>
    %113 = vector.shape_cast %112 : vector<1x1x32xf32> to vector<1x32xf32>
    %114 = arith.addf %14, %113 : vector<1x32xf32>
    %115 = vector.extract_strided_slice %5 {offsets = [7, 0, 0], sizes = [1, 32, 32], strides = [1, 1, 1]} : vector<10x32x32xf32> to vector<1x32x32xf32>
    %116 = vector.shape_cast %115 : vector<1x32x32xf32> to vector<32x32xf32>
    %117 = vector.broadcast %114 : vector<1x32xf32> to vector<32x32xf32>
    %118 = arith.addf %117, %116 : vector<32x32xf32>
    %119 = vector.extract_strided_slice %9 {offsets = [8, 0, 0], sizes = [1, 32, 32], strides = [1, 1, 1]} : vector<10x32x32xf32> to vector<1x32x32xf32>
    %120 = vector.shape_cast %119 : vector<1x32x32xf32> to vector<32x32xf32>
    %121 = arith.addf %118, %120 : vector<32x32xf32>
    %122 = vector.extract_strided_slice %13 {offsets = [9, 0, 0], sizes = [1, 32, 32], strides = [1, 1, 1]} : vector<10x32x32xf32> to vector<1x32x32xf32>
    %123 = vector.shape_cast %122 : vector<1x32x32xf32> to vector<32x32xf32>
    %124 = arith.addf %121, %123 : vector<32x32xf32>
    %125 = arith.maximumf %111, %124 : vector<32x32xf32>
    %cst_32 = arith.constant 0.000000e+00 : f32
    %126 = vector.broadcast %cst_32 : f32 to vector<32x32xf32>
    %127 = arith.maximumf %125, %126 : vector<32x32xf32>
    %128 = arith.truncf %127 : vector<32x32xf32> to vector<32x32xbf16>
    %c0_33 = arith.constant 0 : index
    %c0_34 = arith.constant 0 : index
    %c0_35 = arith.constant 0 : index
    %129 = vector.load %arg5[%c0_33, %c0_34, %c0_35] : memref<2x32x32xbf16, #tpu.memory_space<vmem>>, vector<1x32x32xbf16>
    %130 = vector.shape_cast %129 : vector<1x32x32xbf16> to vector<32x32xbf16>
    %cst_36 = arith.constant dense<0.000000e+00> : vector<32x32xf32>
    %131 = tpu.matmul %128, %130, %cst_36 {dimension_numbers = #tpu.dot_dimension_numbers<[1], [0], [0], [1], [0, 0, 1, 1], [], []>} : vector<32x32xbf16>, vector<32x32xbf16>, vector<32x32xf32> -> vector<32x32xf32>
    %c0_37 = arith.constant 0 : index
    %c0_38 = arith.constant 0 : index
    %c0_39 = arith.constant 0 : index
    %132 = vector.load %arg6[%c0_37, %c0_38, %c0_39] : memref<2x1x32xf32, #tpu.memory_space<vmem>>, vector<1x1x32xf32>
    %133 = vector.shape_cast %132 : vector<1x1x32xf32> to vector<1x32xf32>
    %134 = vector.broadcast %133 : vector<1x32xf32> to vector<32x32xf32>
    %135 = arith.addf %131, %134 : vector<32x32xf32>
    %cst_40 = arith.constant 0.000000e+00 : f32
    %136 = vector.broadcast %cst_40 : f32 to vector<32x32xf32>
    %137 = arith.maximumf %135, %136 : vector<32x32xf32>
    %c0_41 = arith.constant 0 : index
    %c0_42 = arith.constant 0 : index
    %c0_43 = arith.constant 0 : index
    %138 = vector.load %arg7[%c0_41, %c0_42, %c0_43] : memref<2x32x32xbf16, #tpu.memory_space<vmem>>, vector<1x32x32xbf16>
    %139 = vector.shape_cast %138 : vector<1x32x32xbf16> to vector<32x32xbf16>
    %cst_44 = arith.constant dense<0.000000e+00> : vector<32x32xf32>
    %140 = tpu.matmul %128, %139, %cst_44 {dimension_numbers = #tpu.dot_dimension_numbers<[1], [0], [0], [1], [0, 0, 1, 1], [], []>} : vector<32x32xbf16>, vector<32x32xbf16>, vector<32x32xf32> -> vector<32x32xf32>
    %c0_45 = arith.constant 0 : index
    %c0_46 = arith.constant 0 : index
    %c0_47 = arith.constant 0 : index
    %141 = vector.load %arg8[%c0_45, %c0_46, %c0_47] : memref<2x1x32xf32, #tpu.memory_space<vmem>>, vector<1x1x32xf32>
    %142 = vector.shape_cast %141 : vector<1x1x32xf32> to vector<1x32xf32>
    %143 = vector.broadcast %142 : vector<1x32xf32> to vector<32x32xf32>
    %144 = arith.addf %140, %143 : vector<32x32xf32>
    %145 = arith.negf %144 : vector<32x32xf32>
    %146 = math.exp %145 : vector<32x32xf32>
    %cst_48 = arith.constant 1.000000e+00 : f32
    %147 = vector.broadcast %cst_48 : f32 to vector<32x32xf32>
    %148 = arith.addf %147, %146 : vector<32x32xf32>
    %149 = arith.divf %147, %148 : vector<32x32xf32>
    %150 = arith.mulf %149, %127 : vector<32x32xf32>
    %cst_49 = arith.constant 1.000000e+00 : f32
    %151 = vector.broadcast %cst_49 : f32 to vector<32x32xf32>
    %152 = arith.subf %151, %149 : vector<32x32xf32>
    %153 = arith.mulf %152, %137 : vector<32x32xf32>
    %154 = arith.addf %150, %153 : vector<32x32xf32>
    %155 = arith.truncf %154 : vector<32x32xf32> to vector<32x32xbf16>
    %c1_50 = arith.constant 1 : index
    %c0_51 = arith.constant 0 : index
    %c0_52 = arith.constant 0 : index
    %156 = vector.load %arg5[%c1_50, %c0_51, %c0_52] : memref<2x32x32xbf16, #tpu.memory_space<vmem>>, vector<1x32x32xbf16>
    %157 = vector.shape_cast %156 : vector<1x32x32xbf16> to vector<32x32xbf16>
    %cst_53 = arith.constant dense<0.000000e+00> : vector<32x32xf32>
    %158 = tpu.matmul %155, %157, %cst_53 {dimension_numbers = #tpu.dot_dimension_numbers<[1], [0], [0], [1], [0, 0, 1, 1], [], []>} : vector<32x32xbf16>, vector<32x32xbf16>, vector<32x32xf32> -> vector<32x32xf32>
    %c1_54 = arith.constant 1 : index
    %c0_55 = arith.constant 0 : index
    %c0_56 = arith.constant 0 : index
    %159 = vector.load %arg6[%c1_54, %c0_55, %c0_56] : memref<2x1x32xf32, #tpu.memory_space<vmem>>, vector<1x1x32xf32>
    %160 = vector.shape_cast %159 : vector<1x1x32xf32> to vector<1x32xf32>
    %161 = vector.broadcast %160 : vector<1x32xf32> to vector<32x32xf32>
    %162 = arith.addf %158, %161 : vector<32x32xf32>
    %cst_57 = arith.constant 0.000000e+00 : f32
    %163 = vector.broadcast %cst_57 : f32 to vector<32x32xf32>
    %164 = arith.maximumf %162, %163 : vector<32x32xf32>
    %c1_58 = arith.constant 1 : index
    %c0_59 = arith.constant 0 : index
    %c0_60 = arith.constant 0 : index
    %165 = vector.load %arg7[%c1_58, %c0_59, %c0_60] : memref<2x32x32xbf16, #tpu.memory_space<vmem>>, vector<1x32x32xbf16>
    %166 = vector.shape_cast %165 : vector<1x32x32xbf16> to vector<32x32xbf16>
    %cst_61 = arith.constant dense<0.000000e+00> : vector<32x32xf32>
    %167 = tpu.matmul %155, %166, %cst_61 {dimension_numbers = #tpu.dot_dimension_numbers<[1], [0], [0], [1], [0, 0, 1, 1], [], []>} : vector<32x32xbf16>, vector<32x32xbf16>, vector<32x32xf32> -> vector<32x32xf32>
    %c1_62 = arith.constant 1 : index
    %c0_63 = arith.constant 0 : index
    %c0_64 = arith.constant 0 : index
    %168 = vector.load %arg8[%c1_62, %c0_63, %c0_64] : memref<2x1x32xf32, #tpu.memory_space<vmem>>, vector<1x1x32xf32>
    %169 = vector.shape_cast %168 : vector<1x1x32xf32> to vector<1x32xf32>
    %170 = vector.broadcast %169 : vector<1x32xf32> to vector<32x32xf32>
    %171 = arith.addf %167, %170 : vector<32x32xf32>
    %172 = arith.negf %171 : vector<32x32xf32>
    %173 = math.exp %172 : vector<32x32xf32>
    %cst_65 = arith.constant 1.000000e+00 : f32
    %174 = vector.broadcast %cst_65 : f32 to vector<32x32xf32>
    %175 = arith.addf %174, %173 : vector<32x32xf32>
    %176 = arith.divf %174, %175 : vector<32x32xf32>
    %177 = arith.mulf %176, %154 : vector<32x32xf32>
    %cst_66 = arith.constant 1.000000e+00 : f32
    %178 = vector.broadcast %cst_66 : f32 to vector<32x32xf32>
    %179 = arith.subf %178, %176 : vector<32x32xf32>
    %180 = arith.mulf %179, %164 : vector<32x32xf32>
    %181 = arith.addf %177, %180 : vector<32x32xf32>
    %182 = arith.truncf %181 : vector<32x32xf32> to vector<32x32xbf16>
    %c0_67 = arith.constant 0 : index
    %c0_68 = arith.constant 0 : index
    %183 = vector.load %arg9[%c0_67, %c0_68] : memref<32x32xbf16, #tpu.memory_space<vmem>>, vector<32x32xbf16>
    %cst_69 = arith.constant dense<0.000000e+00> : vector<32x32xf32>
    %184 = tpu.matmul %182, %183, %cst_69 {dimension_numbers = #tpu.dot_dimension_numbers<[1], [0], [0], [1], [0, 0, 1, 1], [], []>} : vector<32x32xbf16>, vector<32x32xbf16>, vector<32x32xf32> -> vector<32x32xf32>
    %c0_70 = arith.constant 0 : index
    %c0_71 = arith.constant 0 : index
    %185 = vector.load %arg10[%c0_70, %c0_71] : memref<1x32xf32, #tpu.memory_space<vmem>>, vector<1x32xf32>
    %186 = vector.broadcast %185 : vector<1x32xf32> to vector<32x32xf32>
    %187 = arith.addf %184, %186 : vector<32x32xf32>
    %c0_72 = arith.constant 0 : index
    %c0_73 = arith.constant 0 : index
    %188 = vector.load %arg11[%c0_72, %c0_73] : memref<32x32xf32, #tpu.memory_space<vmem>>, vector<32x32xf32>
    tpu.vector_store %arg11[%c0_72, %c0_73], %187 {strides = array<i32>} : memref<32x32xf32, #tpu.memory_space<vmem>>, vector<32x32xf32>,
    return
  }
  func.func @transform_0(%arg0: i32) -> (i32, i32, i32) {
    %c0_i32 = arith.constant 0 : i32
    %c0_i32_0 = arith.constant 0 : i32
    %c0_i32_1 = arith.constant 0 : i32
    return %c0_i32, %arg0, %c0_i32_0 : i32, i32, i32
  }
  func.func @transform_1(%arg0: i32) -> (i32, i32, i32) {
    %c0_i32 = arith.constant 0 : i32
    %c0_i32_0 = arith.constant 0 : i32
    %c0_i32_1 = arith.constant 0 : i32
    %c0_i32_2 = arith.constant 0 : i32
    return %c0_i32, %c0_i32_0, %c0_i32_1 : i32, i32, i32
  }
  func.func @transform_2(%arg0: i32) -> (i32, i32) {
    %c0_i32 = arith.constant 0 : i32
    %c0_i32_0 = arith.constant 0 : i32
    %c0_i32_1 = arith.constant 0 : i32
    return %c0_i32, %c0_i32_0 : i32, i32
  }
  func.func @transform_3(%arg0: i32) -> (i32, i32, i32) {
    %c0_i32 = arith.constant 0 : i32
    %c0_i32_0 = arith.constant 0 : i32
    %c0_i32_1 = arith.constant 0 : i32
    %c0_i32_2 = arith.constant 0 : i32
    return %c0_i32, %c0_i32_0, %c0_i32_1 : i32, i32, i32
  }
  func.func @transform_4(%arg0: i32) -> (i32, i32, i32) {
    %c0_i32 = arith.constant 0 : i32
    %c0_i32_0 = arith.constant 0 : i32
    %c0_i32_1 = arith.constant 0 : i32
    %c0_i32_2 = arith.constant 0 : i32
    return %c0_i32, %c0_i32_0, %c0_i32_1 : i32, i32, i32
  }
  func.func @transform_5(%arg0: i32) -> (i32, i32, i32) {
    %c0_i32 = arith.constant 0 : i32
    %c0_i32_0 = arith.constant 0 : i32
    %c0_i32_1 = arith.constant 0 : i32
    %c0_i32_2 = arith.constant 0 : i32
    return %c0_i32, %c0_i32_0, %c0_i32_1 : i32, i32, i32
  }
  func.func @transform_6(%arg0: i32) -> (i32, i32, i32) {
    %c0_i32 = arith.constant 0 : i32
    %c0_i32_0 = arith.constant 0 : i32
    %c0_i32_1 = arith.constant 0 : i32
    %c0_i32_2 = arith.constant 0 : i32
    return %c0_i32, %c0_i32_0, %c0_i32_1 : i32, i32, i32
  }
  func.func @transform_7(%arg0: i32) -> (i32, i32, i32) {
    %c0_i32 = arith.constant 0 : i32
    %c0_i32_0 = arith.constant 0 : i32
    %c0_i32_1 = arith.constant 0 : i32
    %c0_i32_2 = arith.constant 0 : i32
    return %c0_i32, %c0_i32_0, %c0_i32_1 : i32, i32, i32
  }
  func.func @transform_8(%arg0: i32) -> (i32, i32) {
    %c0_i32 = arith.constant 0 : i32
    %c0_i32_0 = arith.constant 0 : i32
    %c0_i32_1 = arith.constant 0 : i32
    return %c0_i32, %c0_i32_0 : i32, i32
  }
  func.func @transform_9(%arg0: i32) -> (i32, i32) {
    %c0_i32 = arith.constant 0 : i32
    %c0_i32_0 = arith.constant 0 : i32
    %c0_i32_1 = arith.constant 0 : i32
    return %c0_i32, %c0_i32_0 : i32, i32
  }
  func.func @transform_10(%arg0: i32) -> (i32, i32) {
    %c0_i32 = arith.constant 0 : i32
    %c0_i32_0 = arith.constant 0 : i32
    return %arg0, %c0_i32 : i32, i32
  }
}

module attributes {stable_mosaic.version = 11 : i64} {
  func.func @_bilm_kernel(%arg0: i32, %arg1: memref<10x8x32xf32, #tpu.memory_space<vmem>>, %arg2: memref<10x8x1xf32, #tpu.memory_space<vmem>>, %arg3: memref<10x8x64xf32, #tpu.memory_space<vmem>>, %arg4: memref<10x8x128xf32, #tpu.memory_space<vmem>>, %arg5: memref<2x32x512xbf16, #tpu.memory_space<vmem>>, %arg6: memref<2x32x512xbf16, #tpu.memory_space<vmem>>, %arg7: memref<2x64x512xbf16, #tpu.memory_space<vmem>>, %arg8: memref<2x1x512xf32, #tpu.memory_space<vmem>>, %arg9: memref<2x128x64xbf16, #tpu.memory_space<vmem>>, %arg10: memref<3x10x8x64xf32, #tpu.memory_space<vmem>>, %arg11: memref<10x8x32xf32, #tpu.memory_space<vmem>>, %arg12: memref<10x8x32xf32, #tpu.memory_space<vmem>>, %arg13: memref<10x8x512xf32, #tpu.memory_space<vmem>>, %arg14: memref<10x8x512xf32, #tpu.memory_space<vmem>>, %arg15: memref<10x8x32xf32, #tpu.memory_space<vmem>>, %arg16: memref<10x8x32xf32, #tpu.memory_space<vmem>>) attributes {dimension_semantics = [#tpu.dimension_semantics<parallel>], iteration_bounds = array<i64: 1>, scalar_prefetch = 0 : i64, scratch_operands = 6 : i64, tpu.core_type = #tpu.core_type<tc>, window_params = [{transform_indices = @transform_0, window_bounds = array<i64: 10, 8, 32>}, {transform_indices = @transform_1, window_bounds = array<i64: 10, 8, 1>}, {transform_indices = @transform_2, window_bounds = array<i64: 10, 8, 64>}, {transform_indices = @transform_3, window_bounds = array<i64: 10, 8, 128>}, {pipeline_mode = #tpu.pipeline_mode<synchronous>, transform_indices = @transform_4, window_bounds = array<i64: 2, 32, 512>}, {pipeline_mode = #tpu.pipeline_mode<synchronous>, transform_indices = @transform_5, window_bounds = array<i64: 2, 32, 512>}, {pipeline_mode = #tpu.pipeline_mode<synchronous>, transform_indices = @transform_6, window_bounds = array<i64: 2, 64, 512>}, {pipeline_mode = #tpu.pipeline_mode<synchronous>, transform_indices = @transform_7, window_bounds = array<i64: 2, 1, 512>}, {pipeline_mode = #tpu.pipeline_mode<synchronous>, transform_indices = @transform_8, window_bounds = array<i64: 2, 128, 64>}, {transform_indices = @transform_9, window_bounds = array<i64: 3, 10, 8, 64>}]} {
    %c0 = arith.constant 0 : index
    %c0_0 = arith.constant 0 : index
    %c0_1 = arith.constant 0 : index
    %0 = vector.load %arg1[%c0, %c0_0, %c0_1] : memref<10x8x32xf32, #tpu.memory_space<vmem>>, vector<10x8x32xf32>
    %c0_2 = arith.constant 0 : index
    %c0_3 = arith.constant 0 : index
    %c0_4 = arith.constant 0 : index
    %1 = vector.load %arg2[%c0_2, %c0_3, %c0_4] : memref<10x8x1xf32, #tpu.memory_space<vmem>>, vector<10x8x1xf32>
    %2 = vector.broadcast %1 : vector<10x8x1xf32> to vector<10x8x32xf32>
    %3 = arith.mulf %0, %2 : vector<10x8x32xf32>
    %4 = tpu.concatenate %3, %3 in 2 : vector<10x8x32xf32>, vector<10x8x32xf32> -> vector<10x8x64xf32>
    %c0_5 = arith.constant 0 : index
    %c0_6 = arith.constant 0 : index
    %c0_7 = arith.constant 0 : index
    %c0_8 = arith.constant 0 : index
    %5 = vector.load %arg10[%c0_5, %c0_6, %c0_7, %c0_8] : memref<3x10x8x64xf32, #tpu.memory_space<vmem>>, vector<1x10x8x64xf32>
    %6 = vector.shape_cast %5 : vector<1x10x8x64xf32> to vector<10x8x64xf32>
    %7 = vector.shape_cast %4 : vector<10x8x64xf32> to vector<1x10x8x64xf32>
    tpu.vector_store %arg10[%c0_5, %c0_6, %c0_7, %c0_8], %7 {strides = array<i32>} : memref<3x10x8x64xf32, #tpu.memory_space<vmem>>, vector<1x10x8x64xf32>,
    %c0_9 = arith.constant 0 : index
    %c0_10 = arith.constant 0 : index
    %c0_11 = arith.constant 0 : index
    %8 = vector.load %arg11[%c0_9, %c0_10, %c0_11] : memref<10x8x32xf32, #tpu.memory_space<vmem>>, vector<10x8x32xf32>
    tpu.vector_store %arg11[%c0_9, %c0_10, %c0_11], %0 {strides = array<i32>} : memref<10x8x32xf32, #tpu.memory_space<vmem>>, vector<10x8x32xf32>,
    %c0_12 = arith.constant 0 : index
    %c0_13 = arith.constant 0 : index
    %c0_14 = arith.constant 0 : index
    %9 = vector.load %arg12[%c0_12, %c0_13, %c0_14] : memref<10x8x32xf32, #tpu.memory_space<vmem>>, vector<10x8x32xf32>
    tpu.vector_store %arg12[%c0_12, %c0_13, %c0_14], %0 {strides = array<i32>} : memref<10x8x32xf32, #tpu.memory_space<vmem>>, vector<10x8x32xf32>,
    %c0_15 = arith.constant 0 : index
    %c0_16 = arith.constant 0 : index
    %c0_17 = arith.constant 0 : index
    %10 = vector.load %arg5[%c0_15, %c0_16, %c0_17] : memref<2x32x512xbf16, #tpu.memory_space<vmem>>, vector<1x32x512xbf16>
    %11 = vector.shape_cast %10 : vector<1x32x512xbf16> to vector<32x512xbf16>
    %c0_18 = arith.constant 0 : index
    %c0_19 = arith.constant 0 : index
    %c0_20 = arith.constant 0 : index
    %12 = vector.load %arg6[%c0_18, %c0_19, %c0_20] : memref<2x32x512xbf16, #tpu.memory_space<vmem>>, vector<1x32x512xbf16>
    %13 = vector.shape_cast %12 : vector<1x32x512xbf16> to vector<32x512xbf16>
    %c0_21 = arith.constant 0 : index
    %c0_22 = arith.constant 0 : index
    %c0_23 = arith.constant 0 : index
    %14 = vector.load %arg7[%c0_21, %c0_22, %c0_23] : memref<2x64x512xbf16, #tpu.memory_space<vmem>>, vector<1x64x512xbf16>
    %15 = vector.shape_cast %14 : vector<1x64x512xbf16> to vector<64x512xbf16>
    %c0_24 = arith.constant 0 : index
    %c0_25 = arith.constant 0 : index
    %c0_26 = arith.constant 0 : index
    %16 = vector.load %arg9[%c0_24, %c0_25, %c0_26] : memref<2x128x64xbf16, #tpu.memory_space<vmem>>, vector<1x128x64xbf16>
    %17 = vector.shape_cast %16 : vector<1x128x64xbf16> to vector<128x64xbf16>
    %c0_27 = arith.constant 0 : index
    %c0_28 = arith.constant 0 : index
    %c0_29 = arith.constant 0 : index
    %18 = vector.load %arg8[%c0_27, %c0_28, %c0_29] : memref<2x1x512xf32, #tpu.memory_space<vmem>>, vector<1x1x512xf32>
    %19 = vector.shape_cast %18 : vector<1x1x512xf32> to vector<1x512xf32>
    %c0_30 = arith.constant 0 : index
    %c0_31 = arith.constant 0 : index
    %c0_32 = arith.constant 0 : index
    %20 = vector.load %arg11[%c0_30, %c0_31, %c0_32] : memref<10x8x32xf32, #tpu.memory_space<vmem>>, vector<10x8x32xf32>
    %21 = vector.shape_cast %20 : vector<10x8x32xf32> to vector<80x32xf32>
    %22 = arith.truncf %21 : vector<80x32xf32> to vector<80x32xbf16>
    %c0_33 = arith.constant 0 : index
    %c0_34 = arith.constant 0 : index
    %c0_35 = arith.constant 0 : index
    %23 = vector.load %arg12[%c0_33, %c0_34, %c0_35] : memref<10x8x32xf32, #tpu.memory_space<vmem>>, vector<10x8x32xf32>
    %24 = vector.shape_cast %23 : vector<10x8x32xf32> to vector<80x32xf32>
    %25 = arith.truncf %24 : vector<80x32xf32> to vector<80x32xbf16>
    %cst = arith.constant dense<0.000000e+00> : vector<80x512xf32>
    %26 = tpu.matmul %22, %11, %cst {dimension_numbers = #tpu.dot_dimension_numbers<[1], [0], [0], [1], [0, 0, 1, 1], [], []>} : vector<80x32xbf16>, vector<32x512xbf16>, vector<80x512xf32> -> vector<80x512xf32>
    %27 = vector.broadcast %19 : vector<1x512xf32> to vector<80x512xf32>
    %28 = arith.addf %26, %27 : vector<80x512xf32>
    %29 = vector.shape_cast %28 : vector<80x512xf32> to vector<10x8x512xf32>
    %c0_36 = arith.constant 0 : index
    %c0_37 = arith.constant 0 : index
    %c0_38 = arith.constant 0 : index
    %30 = vector.load %arg13[%c0_36, %c0_37, %c0_38] : memref<10x8x512xf32, #tpu.memory_space<vmem>>, vector<10x8x512xf32>
    tpu.vector_store %arg13[%c0_36, %c0_37, %c0_38], %29 {strides = array<i32>} : memref<10x8x512xf32, #tpu.memory_space<vmem>>, vector<10x8x512xf32>,
    %cst_39 = arith.constant dense<0.000000e+00> : vector<80x512xf32>
    %31 = tpu.matmul %25, %13, %cst_39 {dimension_numbers = #tpu.dot_dimension_numbers<[1], [0], [0], [1], [0, 0, 1, 1], [], []>} : vector<80x32xbf16>, vector<32x512xbf16>, vector<80x512xf32> -> vector<80x512xf32>
    %32 = vector.shape_cast %31 : vector<80x512xf32> to vector<10x8x512xf32>
    %c0_40 = arith.constant 0 : index
    %c0_41 = arith.constant 0 : index
    %c0_42 = arith.constant 0 : index
    %33 = vector.load %arg14[%c0_40, %c0_41, %c0_42] : memref<10x8x512xf32, #tpu.memory_space<vmem>>, vector<10x8x512xf32>
    tpu.vector_store %arg14[%c0_40, %c0_41, %c0_42], %32 {strides = array<i32>} : memref<10x8x512xf32, #tpu.memory_space<vmem>>, vector<10x8x512xf32>,
    %cst_43 = arith.constant 0.000000e+00 : f32
    %34 = vector.broadcast %cst_43 : f32 to vector<8x64xf32>
    %cst_44 = arith.constant 0.000000e+00 : f32
    %35 = vector.broadcast %cst_44 : f32 to vector<8x128xf32>
    %c0_i32 = arith.constant 0 : i32
    %c9_i32 = arith.constant 9 : i32
    %36 = arith.subi %c9_i32, %c0_i32 : i32
    %37 = arith.index_cast %c0_i32 : i32 to index
    %c0_45 = arith.constant 0 : index
    %c0_46 = arith.constant 0 : index
    %38 = vector.load %arg13[%37, %c0_45, %c0_46] : memref<10x8x512xf32, #tpu.memory_space<vmem>>, vector<1x8x512xf32>
    %39 = vector.shape_cast %38 : vector<1x8x512xf32> to vector<8x512xf32>
    %40 = arith.index_cast %36 : i32 to index
    %c0_47 = arith.constant 0 : index
    %c0_48 = arith.constant 0 : index
    %41 = vector.load %arg14[%40, %c0_47, %c0_48] : memref<10x8x512xf32, #tpu.memory_space<vmem>>, vector<1x8x512xf32>
    %42 = vector.shape_cast %41 : vector<1x8x512xf32> to vector<8x512xf32>
    %43 = arith.addf %39, %42 : vector<8x512xf32>
    %44 = arith.truncf %34 : vector<8x64xf32> to vector<8x64xbf16>
    %cst_49 = arith.constant dense<0.000000e+00> : vector<8x512xf32>
    %45 = tpu.matmul %44, %15, %cst_49 {dimension_numbers = #tpu.dot_dimension_numbers<[1], [0], [0], [1], [0, 0, 1, 1], [], []>} : vector<8x64xbf16>, vector<64x512xbf16>, vector<8x512xf32> -> vector<8x512xf32>
    %46 = arith.addf %43, %45 : vector<8x512xf32>
    %47 = vector.extract_strided_slice %46 {offsets = [0, 0], sizes = [8, 128], strides = [1, 1]} : vector<8x512xf32> to vector<8x128xf32>
    %48 = arith.negf %47 : vector<8x128xf32>
    %49 = math.exp %48 : vector<8x128xf32>
    %cst_50 = arith.constant 1.000000e+00 : f32
    %50 = vector.broadcast %cst_50 : f32 to vector<8x128xf32>
    %51 = arith.addf %50, %49 : vector<8x128xf32>
    %52 = arith.divf %50, %51 : vector<8x128xf32>
    %53 = vector.extract_strided_slice %46 {offsets = [0, 128], sizes = [8, 128], strides = [1, 1]} : vector<8x512xf32> to vector<8x128xf32>
    %54 = arith.negf %53 : vector<8x128xf32>
    %55 = math.exp %54 : vector<8x128xf32>
    %cst_51 = arith.constant 1.000000e+00 : f32
    %56 = vector.broadcast %cst_51 : f32 to vector<8x128xf32>
    %57 = arith.addf %56, %55 : vector<8x128xf32>
    %58 = arith.divf %56, %57 : vector<8x128xf32>
    %59 = vector.extract_strided_slice %46 {offsets = [0, 256], sizes = [8, 128], strides = [1, 1]} : vector<8x512xf32> to vector<8x128xf32>
    %60 = math.tanh %59 : vector<8x128xf32>
    %61 = vector.extract_strided_slice %46 {offsets = [0, 384], sizes = [8, 128], strides = [1, 1]} : vector<8x512xf32> to vector<8x128xf32>
    %62 = arith.negf %61 : vector<8x128xf32>
    %63 = math.exp %62 : vector<8x128xf32>
    %cst_52 = arith.constant 1.000000e+00 : f32
    %64 = vector.broadcast %cst_52 : f32 to vector<8x128xf32>
    %65 = arith.addf %64, %63 : vector<8x128xf32>
    %66 = arith.divf %64, %65 : vector<8x128xf32>
    %67 = arith.mulf %52, %60 : vector<8x128xf32>
    %68 = arith.mulf %58, %35 : vector<8x128xf32>
    %69 = arith.addf %67, %68 : vector<8x128xf32>
    %cst_53 = arith.constant -3.000000e+00 : f32
    %cst_54 = arith.constant 3.000000e+00 : f32
    %70 = vector.broadcast %cst_53 : f32 to vector<8x128xf32>
    %71 = arith.maximumf %70, %69 : vector<8x128xf32>
    %72 = vector.broadcast %cst_54 : f32 to vector<8x128xf32>
    %73 = arith.minimumf %72, %71 : vector<8x128xf32>
    %74 = math.tanh %73 : vector<8x128xf32>
    %75 = arith.mulf %66, %74 : vector<8x128xf32>
    %76 = arith.truncf %75 : vector<8x128xf32> to vector<8x128xbf16>
    %cst_55 = arith.constant dense<0.000000e+00> : vector<8x64xf32>
    %77 = tpu.matmul %76, %17, %cst_55 {dimension_numbers = #tpu.dot_dimension_numbers<[1], [0], [0], [1], [0, 0, 1, 1], [], []>} : vector<8x128xbf16>, vector<128x64xbf16>, vector<8x64xf32> -> vector<8x64xf32>
    %cst_56 = arith.constant -3.000000e+00 : f32
    %cst_57 = arith.constant 3.000000e+00 : f32
    %78 = vector.broadcast %cst_56 : f32 to vector<8x64xf32>
    %79 = arith.maximumf %78, %77 : vector<8x64xf32>
    %80 = vector.broadcast %cst_57 : f32 to vector<8x64xf32>
    %81 = arith.minimumf %80, %79 : vector<8x64xf32>
    %82 = arith.index_cast %c0_i32 : i32 to index
    %c0_58 = arith.constant 0 : index
    %c0_59 = arith.constant 0 : index
    %83 = vector.load %arg3[%82, %c0_58, %c0_59] : memref<10x8x64xf32, #tpu.memory_space<vmem>>, vector<1x8x64xf32>
    %84 = vector.shape_cast %83 : vector<1x8x64xf32> to vector<8x64xf32>
    %85 = arith.index_cast %c0_i32 : i32 to index
    %c0_60 = arith.constant 0 : index
    %c0_61 = arith.constant 0 : index
    %86 = vector.load %arg4[%85, %c0_60, %c0_61] : memref<10x8x128xf32, #tpu.memory_space<vmem>>, vector<1x8x128xf32>
    %87 = vector.shape_cast %86 : vector<1x8x128xf32> to vector<8x128xf32>
    %88 = arith.mulf %84, %81 : vector<8x64xf32>
    %89 = vector.extract_strided_slice %88 {offsets = [0, 0], sizes = [8, 32], strides = [1, 1]} : vector<8x64xf32> to vector<8x32xf32>
    %90 = arith.index_cast %c0_i32 : i32 to index
    %c0_62 = arith.constant 0 : index
    %c0_63 = arith.constant 0 : index
    %91 = vector.load %arg15[%90, %c0_62, %c0_63] : memref<10x8x32xf32, #tpu.memory_space<vmem>>, vector<1x8x32xf32>
    %92 = vector.shape_cast %91 : vector<1x8x32xf32> to vector<8x32xf32>
    %93 = vector.shape_cast %89 : vector<8x32xf32> to vector<1x8x32xf32>
    tpu.vector_store %arg15[%90, %c0_62, %c0_63], %93 {strides = array<i32>} : memref<10x8x32xf32, #tpu.memory_space<vmem>>, vector<1x8x32xf32>,
    %94 = vector.extract_strided_slice %88 {offsets = [0, 32], sizes = [8, 32], strides = [1, 1]} : vector<8x64xf32> to vector<8x32xf32>
    %95 = arith.index_cast %36 : i32 to index
    %c0_64 = arith.constant 0 : index
    %c0_65 = arith.constant 0 : index
    %96 = vector.load %arg16[%95, %c0_64, %c0_65] : memref<10x8x32xf32, #tpu.memory_space<vmem>>, vector<1x8x32xf32>
    %97 = vector.shape_cast %96 : vector<1x8x32xf32> to vector<8x32xf32>
    %98 = vector.shape_cast %94 : vector<8x32xf32> to vector<1x8x32xf32>
    tpu.vector_store %arg16[%95, %c0_64, %c0_65], %98 {strides = array<i32>} : memref<10x8x32xf32, #tpu.memory_space<vmem>>, vector<1x8x32xf32>,
    %cst_66 = arith.constant 1.000000e+00 : f32
    %99 = vector.broadcast %cst_66 : f32 to vector<8x64xf32>
    %100 = arith.subf %99, %84 : vector<8x64xf32>
    %101 = arith.mulf %100, %34 : vector<8x64xf32>
    %102 = arith.addf %88, %101 : vector<8x64xf32>
    %103 = arith.mulf %87, %73 : vector<8x128xf32>
    %cst_67 = arith.constant 1.000000e+00 : f32
    %104 = vector.broadcast %cst_67 : f32 to vector<8x128xf32>
    %105 = arith.subf %104, %87 : vector<8x128xf32>
    %106 = arith.mulf %105, %35 : vector<8x128xf32>
    %107 = arith.addf %103, %106 : vector<8x128xf32>
    %c1_i32 = arith.constant 1 : i32
    %c9_i32_68 = arith.constant 9 : i32
    %108 = arith.subi %c9_i32_68, %c1_i32 : i32
    %109 = arith.index_cast %c1_i32 : i32 to index
    %c0_69 = arith.constant 0 : index
    %c0_70 = arith.constant 0 : index
    %110 = vector.load %arg13[%109, %c0_69, %c0_70] : memref<10x8x512xf32, #tpu.memory_space<vmem>>, vector<1x8x512xf32>
    %111 = vector.shape_cast %110 : vector<1x8x512xf32> to vector<8x512xf32>
    %112 = arith.index_cast %108 : i32 to index
    %c0_71 = arith.constant 0 : index
    %c0_72 = arith.constant 0 : index
    %113 = vector.load %arg14[%112, %c0_71, %c0_72] : memref<10x8x512xf32, #tpu.memory_space<vmem>>, vector<1x8x512xf32>
    %114 = vector.shape_cast %113 : vector<1x8x512xf32> to vector<8x512xf32>
    %115 = arith.addf %111, %114 : vector<8x512xf32>
    %116 = arith.truncf %102 : vector<8x64xf32> to vector<8x64xbf16>
    %cst_73 = arith.constant dense<0.000000e+00> : vector<8x512xf32>
    %117 = tpu.matmul %116, %15, %cst_73 {dimension_numbers = #tpu.dot_dimension_numbers<[1], [0], [0], [1], [0, 0, 1, 1], [], []>} : vector<8x64xbf16>, vector<64x512xbf16>, vector<8x512xf32> -> vector<8x512xf32>
    %118 = arith.addf %115, %117 : vector<8x512xf32>
    %119 = vector.extract_strided_slice %118 {offsets = [0, 0], sizes = [8, 128], strides = [1, 1]} : vector<8x512xf32> to vector<8x128xf32>
    %120 = arith.negf %119 : vector<8x128xf32>
    %121 = math.exp %120 : vector<8x128xf32>
    %cst_74 = arith.constant 1.000000e+00 : f32
    %122 = vector.broadcast %cst_74 : f32 to vector<8x128xf32>
    %123 = arith.addf %122, %121 : vector<8x128xf32>
    %124 = arith.divf %122, %123 : vector<8x128xf32>
    %125 = vector.extract_strided_slice %118 {offsets = [0, 128], sizes = [8, 128], strides = [1, 1]} : vector<8x512xf32> to vector<8x128xf32>
    %126 = arith.negf %125 : vector<8x128xf32>
    %127 = math.exp %126 : vector<8x128xf32>
    %cst_75 = arith.constant 1.000000e+00 : f32
    %128 = vector.broadcast %cst_75 : f32 to vector<8x128xf32>
    %129 = arith.addf %128, %127 : vector<8x128xf32>
    %130 = arith.divf %128, %129 : vector<8x128xf32>
    %131 = vector.extract_strided_slice %118 {offsets = [0, 256], sizes = [8, 128], strides = [1, 1]} : vector<8x512xf32> to vector<8x128xf32>
    %132 = math.tanh %131 : vector<8x128xf32>
    %133 = vector.extract_strided_slice %118 {offsets = [0, 384], sizes = [8, 128], strides = [1, 1]} : vector<8x512xf32> to vector<8x128xf32>
    %134 = arith.negf %133 : vector<8x128xf32>
    %135 = math.exp %134 : vector<8x128xf32>
    %cst_76 = arith.constant 1.000000e+00 : f32
    %136 = vector.broadcast %cst_76 : f32 to vector<8x128xf32>
    %137 = arith.addf %136, %135 : vector<8x128xf32>
    %138 = arith.divf %136, %137 : vector<8x128xf32>
    %139 = arith.mulf %124, %132 : vector<8x128xf32>
    %140 = arith.mulf %130, %107 : vector<8x128xf32>
    %141 = arith.addf %139, %140 : vector<8x128xf32>
    %cst_77 = arith.constant -3.000000e+00 : f32
    %cst_78 = arith.constant 3.000000e+00 : f32
    %142 = vector.broadcast %cst_77 : f32 to vector<8x128xf32>
    %143 = arith.maximumf %142, %141 : vector<8x128xf32>
    %144 = vector.broadcast %cst_78 : f32 to vector<8x128xf32>
    %145 = arith.minimumf %144, %143 : vector<8x128xf32>
    %146 = math.tanh %145 : vector<8x128xf32>
    %147 = arith.mulf %138, %146 : vector<8x128xf32>
    %148 = arith.truncf %147 : vector<8x128xf32> to vector<8x128xbf16>
    %cst_79 = arith.constant dense<0.000000e+00> : vector<8x64xf32>
    %149 = tpu.matmul %148, %17, %cst_79 {dimension_numbers = #tpu.dot_dimension_numbers<[1], [0], [0], [1], [0, 0, 1, 1], [], []>} : vector<8x128xbf16>, vector<128x64xbf16>, vector<8x64xf32> -> vector<8x64xf32>
    %cst_80 = arith.constant -3.000000e+00 : f32
    %cst_81 = arith.constant 3.000000e+00 : f32
    %150 = vector.broadcast %cst_80 : f32 to vector<8x64xf32>
    %151 = arith.maximumf %150, %149 : vector<8x64xf32>
    %152 = vector.broadcast %cst_81 : f32 to vector<8x64xf32>
    %153 = arith.minimumf %152, %151 : vector<8x64xf32>
    %154 = arith.index_cast %c1_i32 : i32 to index
    %c0_82 = arith.constant 0 : index
    %c0_83 = arith.constant 0 : index
    %155 = vector.load %arg3[%154, %c0_82, %c0_83] : memref<10x8x64xf32, #tpu.memory_space<vmem>>, vector<1x8x64xf32>
    %156 = vector.shape_cast %155 : vector<1x8x64xf32> to vector<8x64xf32>
    %157 = arith.index_cast %c1_i32 : i32 to index
    %c0_84 = arith.constant 0 : index
    %c0_85 = arith.constant 0 : index
    %158 = vector.load %arg4[%157, %c0_84, %c0_85] : memref<10x8x128xf32, #tpu.memory_space<vmem>>, vector<1x8x128xf32>
    %159 = vector.shape_cast %158 : vector<1x8x128xf32> to vector<8x128xf32>
    %160 = arith.mulf %156, %153 : vector<8x64xf32>
    %161 = vector.extract_strided_slice %160 {offsets = [0, 0], sizes = [8, 32], strides = [1, 1]} : vector<8x64xf32> to vector<8x32xf32>
    %162 = arith.index_cast %c1_i32 : i32 to index
    %c0_86 = arith.constant 0 : index
    %c0_87 = arith.constant 0 : index
    %163 = vector.load %arg15[%162, %c0_86, %c0_87] : memref<10x8x32xf32, #tpu.memory_space<vmem>>, vector<1x8x32xf32>
    %164 = vector.shape_cast %163 : vector<1x8x32xf32> to vector<8x32xf32>
    %165 = vector.shape_cast %161 : vector<8x32xf32> to vector<1x8x32xf32>
    tpu.vector_store %arg15[%162, %c0_86, %c0_87], %165 {strides = array<i32>} : memref<10x8x32xf32, #tpu.memory_space<vmem>>, vector<1x8x32xf32>,
    %166 = vector.extract_strided_slice %160 {offsets = [0, 32], sizes = [8, 32], strides = [1, 1]} : vector<8x64xf32> to vector<8x32xf32>
    %167 = arith.index_cast %108 : i32 to index
    %c0_88 = arith.constant 0 : index
    %c0_89 = arith.constant 0 : index
    %168 = vector.load %arg16[%167, %c0_88, %c0_89] : memref<10x8x32xf32, #tpu.memory_space<vmem>>, vector<1x8x32xf32>
    %169 = vector.shape_cast %168 : vector<1x8x32xf32> to vector<8x32xf32>
    %170 = vector.shape_cast %166 : vector<8x32xf32> to vector<1x8x32xf32>
    tpu.vector_store %arg16[%167, %c0_88, %c0_89], %170 {strides = array<i32>} : memref<10x8x32xf32, #tpu.memory_space<vmem>>, vector<1x8x32xf32>,
    %cst_90 = arith.constant 1.000000e+00 : f32
    %171 = vector.broadcast %cst_90 : f32 to vector<8x64xf32>
    %172 = arith.subf %171, %156 : vector<8x64xf32>
    %173 = arith.mulf %172, %102 : vector<8x64xf32>
    %174 = arith.addf %160, %173 : vector<8x64xf32>
    %175 = arith.mulf %159, %145 : vector<8x128xf32>
    %cst_91 = arith.constant 1.000000e+00 : f32
    %176 = vector.broadcast %cst_91 : f32 to vector<8x128xf32>
    %177 = arith.subf %176, %159 : vector<8x128xf32>
    %178 = arith.mulf %177, %107 : vector<8x128xf32>
    %179 = arith.addf %175, %178 : vector<8x128xf32>
    %c2_i32 = arith.constant 2 : i32
    %c9_i32_92 = arith.constant 9 : i32
    %180 = arith.subi %c9_i32_92, %c2_i32 : i32
    %181 = arith.index_cast %c2_i32 : i32 to index
    %c0_93 = arith.constant 0 : index
    %c0_94 = arith.constant 0 : index
    %182 = vector.load %arg13[%181, %c0_93, %c0_94] : memref<10x8x512xf32, #tpu.memory_space<vmem>>, vector<1x8x512xf32>
    %183 = vector.shape_cast %182 : vector<1x8x512xf32> to vector<8x512xf32>
    %184 = arith.index_cast %180 : i32 to index
    %c0_95 = arith.constant 0 : index
    %c0_96 = arith.constant 0 : index
    %185 = vector.load %arg14[%184, %c0_95, %c0_96] : memref<10x8x512xf32, #tpu.memory_space<vmem>>, vector<1x8x512xf32>
    %186 = vector.shape_cast %185 : vector<1x8x512xf32> to vector<8x512xf32>
    %187 = arith.addf %183, %186 : vector<8x512xf32>
    %188 = arith.truncf %174 : vector<8x64xf32> to vector<8x64xbf16>
    %cst_97 = arith.constant dense<0.000000e+00> : vector<8x512xf32>
    %189 = tpu.matmul %188, %15, %cst_97 {dimension_numbers = #tpu.dot_dimension_numbers<[1], [0], [0], [1], [0, 0, 1, 1], [], []>} : vector<8x64xbf16>, vector<64x512xbf16>, vector<8x512xf32> -> vector<8x512xf32>
    %190 = arith.addf %187, %189 : vector<8x512xf32>
    %191 = vector.extract_strided_slice %190 {offsets = [0, 0], sizes = [8, 128], strides = [1, 1]} : vector<8x512xf32> to vector<8x128xf32>
    %192 = arith.negf %191 : vector<8x128xf32>
    %193 = math.exp %192 : vector<8x128xf32>
    %cst_98 = arith.constant 1.000000e+00 : f32
    %194 = vector.broadcast %cst_98 : f32 to vector<8x128xf32>
    %195 = arith.addf %194, %193 : vector<8x128xf32>
    %196 = arith.divf %194, %195 : vector<8x128xf32>
    %197 = vector.extract_strided_slice %190 {offsets = [0, 128], sizes = [8, 128], strides = [1, 1]} : vector<8x512xf32> to vector<8x128xf32>
    %198 = arith.negf %197 : vector<8x128xf32>
    %199 = math.exp %198 : vector<8x128xf32>
    %cst_99 = arith.constant 1.000000e+00 : f32
    %200 = vector.broadcast %cst_99 : f32 to vector<8x128xf32>
    %201 = arith.addf %200, %199 : vector<8x128xf32>
    %202 = arith.divf %200, %201 : vector<8x128xf32>
    %203 = vector.extract_strided_slice %190 {offsets = [0, 256], sizes = [8, 128], strides = [1, 1]} : vector<8x512xf32> to vector<8x128xf32>
    %204 = math.tanh %203 : vector<8x128xf32>
    %205 = vector.extract_strided_slice %190 {offsets = [0, 384], sizes = [8, 128], strides = [1, 1]} : vector<8x512xf32> to vector<8x128xf32>
    %206 = arith.negf %205 : vector<8x128xf32>
    %207 = math.exp %206 : vector<8x128xf32>
    %cst_100 = arith.constant 1.000000e+00 : f32
    %208 = vector.broadcast %cst_100 : f32 to vector<8x128xf32>
    %209 = arith.addf %208, %207 : vector<8x128xf32>
    %210 = arith.divf %208, %209 : vector<8x128xf32>
    %211 = arith.mulf %196, %204 : vector<8x128xf32>
    %212 = arith.mulf %202, %179 : vector<8x128xf32>
    %213 = arith.addf %211, %212 : vector<8x128xf32>
    %cst_101 = arith.constant -3.000000e+00 : f32
    %cst_102 = arith.constant 3.000000e+00 : f32
    %214 = vector.broadcast %cst_101 : f32 to vector<8x128xf32>
    %215 = arith.maximumf %214, %213 : vector<8x128xf32>
    %216 = vector.broadcast %cst_102 : f32 to vector<8x128xf32>
    %217 = arith.minimumf %216, %215 : vector<8x128xf32>
    %218 = math.tanh %217 : vector<8x128xf32>
    %219 = arith.mulf %210, %218 : vector<8x128xf32>
    %220 = arith.truncf %219 : vector<8x128xf32> to vector<8x128xbf16>
    %cst_103 = arith.constant dense<0.000000e+00> : vector<8x64xf32>
    %221 = tpu.matmul %220, %17, %cst_103 {dimension_numbers = #tpu.dot_dimension_numbers<[1], [0], [0], [1], [0, 0, 1, 1], [], []>} : vector<8x128xbf16>, vector<128x64xbf16>, vector<8x64xf32> -> vector<8x64xf32>
    %cst_104 = arith.constant -3.000000e+00 : f32
    %cst_105 = arith.constant 3.000000e+00 : f32
    %222 = vector.broadcast %cst_104 : f32 to vector<8x64xf32>
    %223 = arith.maximumf %222, %221 : vector<8x64xf32>
    %224 = vector.broadcast %cst_105 : f32 to vector<8x64xf32>
    %225 = arith.minimumf %224, %223 : vector<8x64xf32>
    %226 = arith.index_cast %c2_i32 : i32 to index
    %c0_106 = arith.constant 0 : index
    %c0_107 = arith.constant 0 : index
    %227 = vector.load %arg3[%226, %c0_106, %c0_107] : memref<10x8x64xf32, #tpu.memory_space<vmem>>, vector<1x8x64xf32>
    %228 = vector.shape_cast %227 : vector<1x8x64xf32> to vector<8x64xf32>
    %229 = arith.index_cast %c2_i32 : i32 to index
    %c0_108 = arith.constant 0 : index
    %c0_109 = arith.constant 0 : index
    %230 = vector.load %arg4[%229, %c0_108, %c0_109] : memref<10x8x128xf32, #tpu.memory_space<vmem>>, vector<1x8x128xf32>
    %231 = vector.shape_cast %230 : vector<1x8x128xf32> to vector<8x128xf32>
    %232 = arith.mulf %228, %225 : vector<8x64xf32>
    %233 = vector.extract_strided_slice %232 {offsets = [0, 0], sizes = [8, 32], strides = [1, 1]} : vector<8x64xf32> to vector<8x32xf32>
    %234 = arith.index_cast %c2_i32 : i32 to index
    %c0_110 = arith.constant 0 : index
    %c0_111 = arith.constant 0 : index
    %235 = vector.load %arg15[%234, %c0_110, %c0_111] : memref<10x8x32xf32, #tpu.memory_space<vmem>>, vector<1x8x32xf32>
    %236 = vector.shape_cast %235 : vector<1x8x32xf32> to vector<8x32xf32>
    %237 = vector.shape_cast %233 : vector<8x32xf32> to vector<1x8x32xf32>
    tpu.vector_store %arg15[%234, %c0_110, %c0_111], %237 {strides = array<i32>} : memref<10x8x32xf32, #tpu.memory_space<vmem>>, vector<1x8x32xf32>,
    %238 = vector.extract_strided_slice %232 {offsets = [0, 32], sizes = [8, 32], strides = [1, 1]} : vector<8x64xf32> to vector<8x32xf32>
    %239 = arith.index_cast %180 : i32 to index
    %c0_112 = arith.constant 0 : index
    %c0_113 = arith.constant 0 : index
    %240 = vector.load %arg16[%239, %c0_112, %c0_113] : memref<10x8x32xf32, #tpu.memory_space<vmem>>, vector<1x8x32xf32>
    %241 = vector.shape_cast %240 : vector<1x8x32xf32> to vector<8x32xf32>
    %242 = vector.shape_cast %238 : vector<8x32xf32> to vector<1x8x32xf32>
    tpu.vector_store %arg16[%239, %c0_112, %c0_113], %242 {strides = array<i32>} : memref<10x8x32xf32, #tpu.memory_space<vmem>>, vector<1x8x32xf32>,
    %cst_114 = arith.constant 1.000000e+00 : f32
    %243 = vector.broadcast %cst_114 : f32 to vector<8x64xf32>
    %244 = arith.subf %243, %228 : vector<8x64xf32>
    %245 = arith.mulf %244, %174 : vector<8x64xf32>
    %246 = arith.addf %232, %245 : vector<8x64xf32>
    %247 = arith.mulf %231, %217 : vector<8x128xf32>
    %cst_115 = arith.constant 1.000000e+00 : f32
    %248 = vector.broadcast %cst_115 : f32 to vector<8x128xf32>
    %249 = arith.subf %248, %231 : vector<8x128xf32>
    %250 = arith.mulf %249, %179 : vector<8x128xf32>
    %251 = arith.addf %247, %250 : vector<8x128xf32>
    %c3_i32 = arith.constant 3 : i32
    %c9_i32_116 = arith.constant 9 : i32
    %252 = arith.subi %c9_i32_116, %c3_i32 : i32
    %253 = arith.index_cast %c3_i32 : i32 to index
    %c0_117 = arith.constant 0 : index
    %c0_118 = arith.constant 0 : index
    %254 = vector.load %arg13[%253, %c0_117, %c0_118] : memref<10x8x512xf32, #tpu.memory_space<vmem>>, vector<1x8x512xf32>
    %255 = vector.shape_cast %254 : vector<1x8x512xf32> to vector<8x512xf32>
    %256 = arith.index_cast %252 : i32 to index
    %c0_119 = arith.constant 0 : index
    %c0_120 = arith.constant 0 : index
    %257 = vector.load %arg14[%256, %c0_119, %c0_120] : memref<10x8x512xf32, #tpu.memory_space<vmem>>, vector<1x8x512xf32>
    %258 = vector.shape_cast %257 : vector<1x8x512xf32> to vector<8x512xf32>
    %259 = arith.addf %255, %258 : vector<8x512xf32>
    %260 = arith.truncf %246 : vector<8x64xf32> to vector<8x64xbf16>
    %cst_121 = arith.constant dense<0.000000e+00> : vector<8x512xf32>
    %261 = tpu.matmul %260, %15, %cst_121 {dimension_numbers = #tpu.dot_dimension_numbers<[1], [0], [0], [1], [0, 0, 1, 1], [], []>} : vector<8x64xbf16>, vector<64x512xbf16>, vector<8x512xf32> -> vector<8x512xf32>
    %262 = arith.addf %259, %261 : vector<8x512xf32>
    %263 = vector.extract_strided_slice %262 {offsets = [0, 0], sizes = [8, 128], strides = [1, 1]} : vector<8x512xf32> to vector<8x128xf32>
    %264 = arith.negf %263 : vector<8x128xf32>
    %265 = math.exp %264 : vector<8x128xf32>
    %cst_122 = arith.constant 1.000000e+00 : f32
    %266 = vector.broadcast %cst_122 : f32 to vector<8x128xf32>
    %267 = arith.addf %266, %265 : vector<8x128xf32>
    %268 = arith.divf %266, %267 : vector<8x128xf32>
    %269 = vector.extract_strided_slice %262 {offsets = [0, 128], sizes = [8, 128], strides = [1, 1]} : vector<8x512xf32> to vector<8x128xf32>
    %270 = arith.negf %269 : vector<8x128xf32>
    %271 = math.exp %270 : vector<8x128xf32>
    %cst_123 = arith.constant 1.000000e+00 : f32
    %272 = vector.broadcast %cst_123 : f32 to vector<8x128xf32>
    %273 = arith.addf %272, %271 : vector<8x128xf32>
    %274 = arith.divf %272, %273 : vector<8x128xf32>
    %275 = vector.extract_strided_slice %262 {offsets = [0, 256], sizes = [8, 128], strides = [1, 1]} : vector<8x512xf32> to vector<8x128xf32>
    %276 = math.tanh %275 : vector<8x128xf32>
    %277 = vector.extract_strided_slice %262 {offsets = [0, 384], sizes = [8, 128], strides = [1, 1]} : vector<8x512xf32> to vector<8x128xf32>
    %278 = arith.negf %277 : vector<8x128xf32>
    %279 = math.exp %278 : vector<8x128xf32>
    %cst_124 = arith.constant 1.000000e+00 : f32
    %280 = vector.broadcast %cst_124 : f32 to vector<8x128xf32>
    %281 = arith.addf %280, %279 : vector<8x128xf32>
    %282 = arith.divf %280, %281 : vector<8x128xf32>
    %283 = arith.mulf %268, %276 : vector<8x128xf32>
    %284 = arith.mulf %274, %251 : vector<8x128xf32>
    %285 = arith.addf %283, %284 : vector<8x128xf32>
    %cst_125 = arith.constant -3.000000e+00 : f32
    %cst_126 = arith.constant 3.000000e+00 : f32
    %286 = vector.broadcast %cst_125 : f32 to vector<8x128xf32>
    %287 = arith.maximumf %286, %285 : vector<8x128xf32>
    %288 = vector.broadcast %cst_126 : f32 to vector<8x128xf32>
    %289 = arith.minimumf %288, %287 : vector<8x128xf32>
    %290 = math.tanh %289 : vector<8x128xf32>
    %291 = arith.mulf %282, %290 : vector<8x128xf32>
    %292 = arith.truncf %291 : vector<8x128xf32> to vector<8x128xbf16>
    %cst_127 = arith.constant dense<0.000000e+00> : vector<8x64xf32>
    %293 = tpu.matmul %292, %17, %cst_127 {dimension_numbers = #tpu.dot_dimension_numbers<[1], [0], [0], [1], [0, 0, 1, 1], [], []>} : vector<8x128xbf16>, vector<128x64xbf16>, vector<8x64xf32> -> vector<8x64xf32>
    %cst_128 = arith.constant -3.000000e+00 : f32
    %cst_129 = arith.constant 3.000000e+00 : f32
    %294 = vector.broadcast %cst_128 : f32 to vector<8x64xf32>
    %295 = arith.maximumf %294, %293 : vector<8x64xf32>
    %296 = vector.broadcast %cst_129 : f32 to vector<8x64xf32>
    %297 = arith.minimumf %296, %295 : vector<8x64xf32>
    %298 = arith.index_cast %c3_i32 : i32 to index
    %c0_130 = arith.constant 0 : index
    %c0_131 = arith.constant 0 : index
    %299 = vector.load %arg3[%298, %c0_130, %c0_131] : memref<10x8x64xf32, #tpu.memory_space<vmem>>, vector<1x8x64xf32>
    %300 = vector.shape_cast %299 : vector<1x8x64xf32> to vector<8x64xf32>
    %301 = arith.index_cast %c3_i32 : i32 to index
    %c0_132 = arith.constant 0 : index
    %c0_133 = arith.constant 0 : index
    %302 = vector.load %arg4[%301, %c0_132, %c0_133] : memref<10x8x128xf32, #tpu.memory_space<vmem>>, vector<1x8x128xf32>
    %303 = vector.shape_cast %302 : vector<1x8x128xf32> to vector<8x128xf32>
    %304 = arith.mulf %300, %297 : vector<8x64xf32>
    %305 = vector.extract_strided_slice %304 {offsets = [0, 0], sizes = [8, 32], strides = [1, 1]} : vector<8x64xf32> to vector<8x32xf32>
    %306 = arith.index_cast %c3_i32 : i32 to index
    %c0_134 = arith.constant 0 : index
    %c0_135 = arith.constant 0 : index
    %307 = vector.load %arg15[%306, %c0_134, %c0_135] : memref<10x8x32xf32, #tpu.memory_space<vmem>>, vector<1x8x32xf32>
    %308 = vector.shape_cast %307 : vector<1x8x32xf32> to vector<8x32xf32>
    %309 = vector.shape_cast %305 : vector<8x32xf32> to vector<1x8x32xf32>
    tpu.vector_store %arg15[%306, %c0_134, %c0_135], %309 {strides = array<i32>} : memref<10x8x32xf32, #tpu.memory_space<vmem>>, vector<1x8x32xf32>,
    %310 = vector.extract_strided_slice %304 {offsets = [0, 32], sizes = [8, 32], strides = [1, 1]} : vector<8x64xf32> to vector<8x32xf32>
    %311 = arith.index_cast %252 : i32 to index
    %c0_136 = arith.constant 0 : index
    %c0_137 = arith.constant 0 : index
    %312 = vector.load %arg16[%311, %c0_136, %c0_137] : memref<10x8x32xf32, #tpu.memory_space<vmem>>, vector<1x8x32xf32>
    %313 = vector.shape_cast %312 : vector<1x8x32xf32> to vector<8x32xf32>
    %314 = vector.shape_cast %310 : vector<8x32xf32> to vector<1x8x32xf32>
    tpu.vector_store %arg16[%311, %c0_136, %c0_137], %314 {strides = array<i32>} : memref<10x8x32xf32, #tpu.memory_space<vmem>>, vector<1x8x32xf32>,
    %cst_138 = arith.constant 1.000000e+00 : f32
    %315 = vector.broadcast %cst_138 : f32 to vector<8x64xf32>
    %316 = arith.subf %315, %300 : vector<8x64xf32>
    %317 = arith.mulf %316, %246 : vector<8x64xf32>
    %318 = arith.addf %304, %317 : vector<8x64xf32>
    %319 = arith.mulf %303, %289 : vector<8x128xf32>
    %cst_139 = arith.constant 1.000000e+00 : f32
    %320 = vector.broadcast %cst_139 : f32 to vector<8x128xf32>
    %321 = arith.subf %320, %303 : vector<8x128xf32>
    %322 = arith.mulf %321, %251 : vector<8x128xf32>
    %323 = arith.addf %319, %322 : vector<8x128xf32>
    %c4_i32 = arith.constant 4 : i32
    %c9_i32_140 = arith.constant 9 : i32
    %324 = arith.subi %c9_i32_140, %c4_i32 : i32
    %325 = arith.index_cast %c4_i32 : i32 to index
    %c0_141 = arith.constant 0 : index
    %c0_142 = arith.constant 0 : index
    %326 = vector.load %arg13[%325, %c0_141, %c0_142] : memref<10x8x512xf32, #tpu.memory_space<vmem>>, vector<1x8x512xf32>
    %327 = vector.shape_cast %326 : vector<1x8x512xf32> to vector<8x512xf32>
    %328 = arith.index_cast %324 : i32 to index
    %c0_143 = arith.constant 0 : index
    %c0_144 = arith.constant 0 : index
    %329 = vector.load %arg14[%328, %c0_143, %c0_144] : memref<10x8x512xf32, #tpu.memory_space<vmem>>, vector<1x8x512xf32>
    %330 = vector.shape_cast %329 : vector<1x8x512xf32> to vector<8x512xf32>
    %331 = arith.addf %327, %330 : vector<8x512xf32>
    %332 = arith.truncf %318 : vector<8x64xf32> to vector<8x64xbf16>
    %cst_145 = arith.constant dense<0.000000e+00> : vector<8x512xf32>
    %333 = tpu.matmul %332, %15, %cst_145 {dimension_numbers = #tpu.dot_dimension_numbers<[1], [0], [0], [1], [0, 0, 1, 1], [], []>} : vector<8x64xbf16>, vector<64x512xbf16>, vector<8x512xf32> -> vector<8x512xf32>
    %334 = arith.addf %331, %333 : vector<8x512xf32>
    %335 = vector.extract_strided_slice %334 {offsets = [0, 0], sizes = [8, 128], strides = [1, 1]} : vector<8x512xf32> to vector<8x128xf32>
    %336 = arith.negf %335 : vector<8x128xf32>
    %337 = math.exp %336 : vector<8x128xf32>
    %cst_146 = arith.constant 1.000000e+00 : f32
    %338 = vector.broadcast %cst_146 : f32 to vector<8x128xf32>
    %339 = arith.addf %338, %337 : vector<8x128xf32>
    %340 = arith.divf %338, %339 : vector<8x128xf32>
    %341 = vector.extract_strided_slice %334 {offsets = [0, 128], sizes = [8, 128], strides = [1, 1]} : vector<8x512xf32> to vector<8x128xf32>
    %342 = arith.negf %341 : vector<8x128xf32>
    %343 = math.exp %342 : vector<8x128xf32>
    %cst_147 = arith.constant 1.000000e+00 : f32
    %344 = vector.broadcast %cst_147 : f32 to vector<8x128xf32>
    %345 = arith.addf %344, %343 : vector<8x128xf32>
    %346 = arith.divf %344, %345 : vector<8x128xf32>
    %347 = vector.extract_strided_slice %334 {offsets = [0, 256], sizes = [8, 128], strides = [1, 1]} : vector<8x512xf32> to vector<8x128xf32>
    %348 = math.tanh %347 : vector<8x128xf32>
    %349 = vector.extract_strided_slice %334 {offsets = [0, 384], sizes = [8, 128], strides = [1, 1]} : vector<8x512xf32> to vector<8x128xf32>
    %350 = arith.negf %349 : vector<8x128xf32>
    %351 = math.exp %350 : vector<8x128xf32>
    %cst_148 = arith.constant 1.000000e+00 : f32
    %352 = vector.broadcast %cst_148 : f32 to vector<8x128xf32>
    %353 = arith.addf %352, %351 : vector<8x128xf32>
    %354 = arith.divf %352, %353 : vector<8x128xf32>
    %355 = arith.mulf %340, %348 : vector<8x128xf32>
    %356 = arith.mulf %346, %323 : vector<8x128xf32>
    %357 = arith.addf %355, %356 : vector<8x128xf32>
    %cst_149 = arith.constant -3.000000e+00 : f32
    %cst_150 = arith.constant 3.000000e+00 : f32
    %358 = vector.broadcast %cst_149 : f32 to vector<8x128xf32>
    %359 = arith.maximumf %358, %357 : vector<8x128xf32>
    %360 = vector.broadcast %cst_150 : f32 to vector<8x128xf32>
    %361 = arith.minimumf %360, %359 : vector<8x128xf32>
    %362 = math.tanh %361 : vector<8x128xf32>
    %363 = arith.mulf %354, %362 : vector<8x128xf32>
    %364 = arith.truncf %363 : vector<8x128xf32> to vector<8x128xbf16>
    %cst_151 = arith.constant dense<0.000000e+00> : vector<8x64xf32>
    %365 = tpu.matmul %364, %17, %cst_151 {dimension_numbers = #tpu.dot_dimension_numbers<[1], [0], [0], [1], [0, 0, 1, 1], [], []>} : vector<8x128xbf16>, vector<128x64xbf16>, vector<8x64xf32> -> vector<8x64xf32>
    %cst_152 = arith.constant -3.000000e+00 : f32
    %cst_153 = arith.constant 3.000000e+00 : f32
    %366 = vector.broadcast %cst_152 : f32 to vector<8x64xf32>
    %367 = arith.maximumf %366, %365 : vector<8x64xf32>
    %368 = vector.broadcast %cst_153 : f32 to vector<8x64xf32>
    %369 = arith.minimumf %368, %367 : vector<8x64xf32>
    %370 = arith.index_cast %c4_i32 : i32 to index
    %c0_154 = arith.constant 0 : index
    %c0_155 = arith.constant 0 : index
    %371 = vector.load %arg3[%370, %c0_154, %c0_155] : memref<10x8x64xf32, #tpu.memory_space<vmem>>, vector<1x8x64xf32>
    %372 = vector.shape_cast %371 : vector<1x8x64xf32> to vector<8x64xf32>
    %373 = arith.index_cast %c4_i32 : i32 to index
    %c0_156 = arith.constant 0 : index
    %c0_157 = arith.constant 0 : index
    %374 = vector.load %arg4[%373, %c0_156, %c0_157] : memref<10x8x128xf32, #tpu.memory_space<vmem>>, vector<1x8x128xf32>
    %375 = vector.shape_cast %374 : vector<1x8x128xf32> to vector<8x128xf32>
    %376 = arith.mulf %372, %369 : vector<8x64xf32>
    %377 = vector.extract_strided_slice %376 {offsets = [0, 0], sizes = [8, 32], strides = [1, 1]} : vector<8x64xf32> to vector<8x32xf32>
    %378 = arith.index_cast %c4_i32 : i32 to index
    %c0_158 = arith.constant 0 : index
    %c0_159 = arith.constant 0 : index
    %379 = vector.load %arg15[%378, %c0_158, %c0_159] : memref<10x8x32xf32, #tpu.memory_space<vmem>>, vector<1x8x32xf32>
    %380 = vector.shape_cast %379 : vector<1x8x32xf32> to vector<8x32xf32>
    %381 = vector.shape_cast %377 : vector<8x32xf32> to vector<1x8x32xf32>
    tpu.vector_store %arg15[%378, %c0_158, %c0_159], %381 {strides = array<i32>} : memref<10x8x32xf32, #tpu.memory_space<vmem>>, vector<1x8x32xf32>,
    %382 = vector.extract_strided_slice %376 {offsets = [0, 32], sizes = [8, 32], strides = [1, 1]} : vector<8x64xf32> to vector<8x32xf32>
    %383 = arith.index_cast %324 : i32 to index
    %c0_160 = arith.constant 0 : index
    %c0_161 = arith.constant 0 : index
    %384 = vector.load %arg16[%383, %c0_160, %c0_161] : memref<10x8x32xf32, #tpu.memory_space<vmem>>, vector<1x8x32xf32>
    %385 = vector.shape_cast %384 : vector<1x8x32xf32> to vector<8x32xf32>
    %386 = vector.shape_cast %382 : vector<8x32xf32> to vector<1x8x32xf32>
    tpu.vector_store %arg16[%383, %c0_160, %c0_161], %386 {strides = array<i32>} : memref<10x8x32xf32, #tpu.memory_space<vmem>>, vector<1x8x32xf32>,
    %cst_162 = arith.constant 1.000000e+00 : f32
    %387 = vector.broadcast %cst_162 : f32 to vector<8x64xf32>
    %388 = arith.subf %387, %372 : vector<8x64xf32>
    %389 = arith.mulf %388, %318 : vector<8x64xf32>
    %390 = arith.addf %376, %389 : vector<8x64xf32>
    %391 = arith.mulf %375, %361 : vector<8x128xf32>
    %cst_163 = arith.constant 1.000000e+00 : f32
    %392 = vector.broadcast %cst_163 : f32 to vector<8x128xf32>
    %393 = arith.subf %392, %375 : vector<8x128xf32>
    %394 = arith.mulf %393, %323 : vector<8x128xf32>
    %395 = arith.addf %391, %394 : vector<8x128xf32>
    %c5_i32 = arith.constant 5 : i32
    %c9_i32_164 = arith.constant 9 : i32
    %396 = arith.subi %c9_i32_164, %c5_i32 : i32
    %397 = arith.index_cast %c5_i32 : i32 to index
    %c0_165 = arith.constant 0 : index
    %c0_166 = arith.constant 0 : index
    %398 = vector.load %arg13[%397, %c0_165, %c0_166] : memref<10x8x512xf32, #tpu.memory_space<vmem>>, vector<1x8x512xf32>
    %399 = vector.shape_cast %398 : vector<1x8x512xf32> to vector<8x512xf32>
    %400 = arith.index_cast %396 : i32 to index
    %c0_167 = arith.constant 0 : index
    %c0_168 = arith.constant 0 : index
    %401 = vector.load %arg14[%400, %c0_167, %c0_168] : memref<10x8x512xf32, #tpu.memory_space<vmem>>, vector<1x8x512xf32>
    %402 = vector.shape_cast %401 : vector<1x8x512xf32> to vector<8x512xf32>
    %403 = arith.addf %399, %402 : vector<8x512xf32>
    %404 = arith.truncf %390 : vector<8x64xf32> to vector<8x64xbf16>
    %cst_169 = arith.constant dense<0.000000e+00> : vector<8x512xf32>
    %405 = tpu.matmul %404, %15, %cst_169 {dimension_numbers = #tpu.dot_dimension_numbers<[1], [0], [0], [1], [0, 0, 1, 1], [], []>} : vector<8x64xbf16>, vector<64x512xbf16>, vector<8x512xf32> -> vector<8x512xf32>
    %406 = arith.addf %403, %405 : vector<8x512xf32>
    %407 = vector.extract_strided_slice %406 {offsets = [0, 0], sizes = [8, 128], strides = [1, 1]} : vector<8x512xf32> to vector<8x128xf32>
    %408 = arith.negf %407 : vector<8x128xf32>
    %409 = math.exp %408 : vector<8x128xf32>
    %cst_170 = arith.constant 1.000000e+00 : f32
    %410 = vector.broadcast %cst_170 : f32 to vector<8x128xf32>
    %411 = arith.addf %410, %409 : vector<8x128xf32>
    %412 = arith.divf %410, %411 : vector<8x128xf32>
    %413 = vector.extract_strided_slice %406 {offsets = [0, 128], sizes = [8, 128], strides = [1, 1]} : vector<8x512xf32> to vector<8x128xf32>
    %414 = arith.negf %413 : vector<8x128xf32>
    %415 = math.exp %414 : vector<8x128xf32>
    %cst_171 = arith.constant 1.000000e+00 : f32
    %416 = vector.broadcast %cst_171 : f32 to vector<8x128xf32>
    %417 = arith.addf %416, %415 : vector<8x128xf32>
    %418 = arith.divf %416, %417 : vector<8x128xf32>
    %419 = vector.extract_strided_slice %406 {offsets = [0, 256], sizes = [8, 128], strides = [1, 1]} : vector<8x512xf32> to vector<8x128xf32>
    %420 = math.tanh %419 : vector<8x128xf32>
    %421 = vector.extract_strided_slice %406 {offsets = [0, 384], sizes = [8, 128], strides = [1, 1]} : vector<8x512xf32> to vector<8x128xf32>
    %422 = arith.negf %421 : vector<8x128xf32>
    %423 = math.exp %422 : vector<8x128xf32>
    %cst_172 = arith.constant 1.000000e+00 : f32
    %424 = vector.broadcast %cst_172 : f32 to vector<8x128xf32>
    %425 = arith.addf %424, %423 : vector<8x128xf32>
    %426 = arith.divf %424, %425 : vector<8x128xf32>
    %427 = arith.mulf %412, %420 : vector<8x128xf32>
    %428 = arith.mulf %418, %395 : vector<8x128xf32>
    %429 = arith.addf %427, %428 : vector<8x128xf32>
    %cst_173 = arith.constant -3.000000e+00 : f32
    %cst_174 = arith.constant 3.000000e+00 : f32
    %430 = vector.broadcast %cst_173 : f32 to vector<8x128xf32>
    %431 = arith.maximumf %430, %429 : vector<8x128xf32>
    %432 = vector.broadcast %cst_174 : f32 to vector<8x128xf32>
    %433 = arith.minimumf %432, %431 : vector<8x128xf32>
    %434 = math.tanh %433 : vector<8x128xf32>
    %435 = arith.mulf %426, %434 : vector<8x128xf32>
    %436 = arith.truncf %435 : vector<8x128xf32> to vector<8x128xbf16>
    %cst_175 = arith.constant dense<0.000000e+00> : vector<8x64xf32>
    %437 = tpu.matmul %436, %17, %cst_175 {dimension_numbers = #tpu.dot_dimension_numbers<[1], [0], [0], [1], [0, 0, 1, 1], [], []>} : vector<8x128xbf16>, vector<128x64xbf16>, vector<8x64xf32> -> vector<8x64xf32>
    %cst_176 = arith.constant -3.000000e+00 : f32
    %cst_177 = arith.constant 3.000000e+00 : f32
    %438 = vector.broadcast %cst_176 : f32 to vector<8x64xf32>
    %439 = arith.maximumf %438, %437 : vector<8x64xf32>
    %440 = vector.broadcast %cst_177 : f32 to vector<8x64xf32>
    %441 = arith.minimumf %440, %439 : vector<8x64xf32>
    %442 = arith.index_cast %c5_i32 : i32 to index
    %c0_178 = arith.constant 0 : index
    %c0_179 = arith.constant 0 : index
    %443 = vector.load %arg3[%442, %c0_178, %c0_179] : memref<10x8x64xf32, #tpu.memory_space<vmem>>, vector<1x8x64xf32>
    %444 = vector.shape_cast %443 : vector<1x8x64xf32> to vector<8x64xf32>
    %445 = arith.index_cast %c5_i32 : i32 to index
    %c0_180 = arith.constant 0 : index
    %c0_181 = arith.constant 0 : index
    %446 = vector.load %arg4[%445, %c0_180, %c0_181] : memref<10x8x128xf32, #tpu.memory_space<vmem>>, vector<1x8x128xf32>
    %447 = vector.shape_cast %446 : vector<1x8x128xf32> to vector<8x128xf32>
    %448 = arith.mulf %444, %441 : vector<8x64xf32>
    %449 = vector.extract_strided_slice %448 {offsets = [0, 0], sizes = [8, 32], strides = [1, 1]} : vector<8x64xf32> to vector<8x32xf32>
    %450 = arith.index_cast %c5_i32 : i32 to index
    %c0_182 = arith.constant 0 : index
    %c0_183 = arith.constant 0 : index
    %451 = vector.load %arg15[%450, %c0_182, %c0_183] : memref<10x8x32xf32, #tpu.memory_space<vmem>>, vector<1x8x32xf32>
    %452 = vector.shape_cast %451 : vector<1x8x32xf32> to vector<8x32xf32>
    %453 = vector.shape_cast %449 : vector<8x32xf32> to vector<1x8x32xf32>
    tpu.vector_store %arg15[%450, %c0_182, %c0_183], %453 {strides = array<i32>} : memref<10x8x32xf32, #tpu.memory_space<vmem>>, vector<1x8x32xf32>,
    %454 = vector.extract_strided_slice %448 {offsets = [0, 32], sizes = [8, 32], strides = [1, 1]} : vector<8x64xf32> to vector<8x32xf32>
    %455 = arith.index_cast %396 : i32 to index
    %c0_184 = arith.constant 0 : index
    %c0_185 = arith.constant 0 : index
    %456 = vector.load %arg16[%455, %c0_184, %c0_185] : memref<10x8x32xf32, #tpu.memory_space<vmem>>, vector<1x8x32xf32>
    %457 = vector.shape_cast %456 : vector<1x8x32xf32> to vector<8x32xf32>
    %458 = vector.shape_cast %454 : vector<8x32xf32> to vector<1x8x32xf32>
    tpu.vector_store %arg16[%455, %c0_184, %c0_185], %458 {strides = array<i32>} : memref<10x8x32xf32, #tpu.memory_space<vmem>>, vector<1x8x32xf32>,
    %cst_186 = arith.constant 1.000000e+00 : f32
    %459 = vector.broadcast %cst_186 : f32 to vector<8x64xf32>
    %460 = arith.subf %459, %444 : vector<8x64xf32>
    %461 = arith.mulf %460, %390 : vector<8x64xf32>
    %462 = arith.addf %448, %461 : vector<8x64xf32>
    %463 = arith.mulf %447, %433 : vector<8x128xf32>
    %cst_187 = arith.constant 1.000000e+00 : f32
    %464 = vector.broadcast %cst_187 : f32 to vector<8x128xf32>
    %465 = arith.subf %464, %447 : vector<8x128xf32>
    %466 = arith.mulf %465, %395 : vector<8x128xf32>
    %467 = arith.addf %463, %466 : vector<8x128xf32>
    %c6_i32 = arith.constant 6 : i32
    %c9_i32_188 = arith.constant 9 : i32
    %468 = arith.subi %c9_i32_188, %c6_i32 : i32
    %469 = arith.index_cast %c6_i32 : i32 to index
    %c0_189 = arith.constant 0 : index
    %c0_190 = arith.constant 0 : index
    %470 = vector.load %arg13[%469, %c0_189, %c0_190] : memref<10x8x512xf32, #tpu.memory_space<vmem>>, vector<1x8x512xf32>
    %471 = vector.shape_cast %470 : vector<1x8x512xf32> to vector<8x512xf32>
    %472 = arith.index_cast %468 : i32 to index
    %c0_191 = arith.constant 0 : index
    %c0_192 = arith.constant 0 : index
    %473 = vector.load %arg14[%472, %c0_191, %c0_192] : memref<10x8x512xf32, #tpu.memory_space<vmem>>, vector<1x8x512xf32>
    %474 = vector.shape_cast %473 : vector<1x8x512xf32> to vector<8x512xf32>
    %475 = arith.addf %471, %474 : vector<8x512xf32>
    %476 = arith.truncf %462 : vector<8x64xf32> to vector<8x64xbf16>
    %cst_193 = arith.constant dense<0.000000e+00> : vector<8x512xf32>
    %477 = tpu.matmul %476, %15, %cst_193 {dimension_numbers = #tpu.dot_dimension_numbers<[1], [0], [0], [1], [0, 0, 1, 1], [], []>} : vector<8x64xbf16>, vector<64x512xbf16>, vector<8x512xf32> -> vector<8x512xf32>
    %478 = arith.addf %475, %477 : vector<8x512xf32>
    %479 = vector.extract_strided_slice %478 {offsets = [0, 0], sizes = [8, 128], strides = [1, 1]} : vector<8x512xf32> to vector<8x128xf32>
    %480 = arith.negf %479 : vector<8x128xf32>
    %481 = math.exp %480 : vector<8x128xf32>
    %cst_194 = arith.constant 1.000000e+00 : f32
    %482 = vector.broadcast %cst_194 : f32 to vector<8x128xf32>
    %483 = arith.addf %482, %481 : vector<8x128xf32>
    %484 = arith.divf %482, %483 : vector<8x128xf32>
    %485 = vector.extract_strided_slice %478 {offsets = [0, 128], sizes = [8, 128], strides = [1, 1]} : vector<8x512xf32> to vector<8x128xf32>
    %486 = arith.negf %485 : vector<8x128xf32>
    %487 = math.exp %486 : vector<8x128xf32>
    %cst_195 = arith.constant 1.000000e+00 : f32
    %488 = vector.broadcast %cst_195 : f32 to vector<8x128xf32>
    %489 = arith.addf %488, %487 : vector<8x128xf32>
    %490 = arith.divf %488, %489 : vector<8x128xf32>
    %491 = vector.extract_strided_slice %478 {offsets = [0, 256], sizes = [8, 128], strides = [1, 1]} : vector<8x512xf32> to vector<8x128xf32>
    %492 = math.tanh %491 : vector<8x128xf32>
    %493 = vector.extract_strided_slice %478 {offsets = [0, 384], sizes = [8, 128], strides = [1, 1]} : vector<8x512xf32> to vector<8x128xf32>
    %494 = arith.negf %493 : vector<8x128xf32>
    %495 = math.exp %494 : vector<8x128xf32>
    %cst_196 = arith.constant 1.000000e+00 : f32
    %496 = vector.broadcast %cst_196 : f32 to vector<8x128xf32>
    %497 = arith.addf %496, %495 : vector<8x128xf32>
    %498 = arith.divf %496, %497 : vector<8x128xf32>
    %499 = arith.mulf %484, %492 : vector<8x128xf32>
    %500 = arith.mulf %490, %467 : vector<8x128xf32>
    %501 = arith.addf %499, %500 : vector<8x128xf32>
    %cst_197 = arith.constant -3.000000e+00 : f32
    %cst_198 = arith.constant 3.000000e+00 : f32
    %502 = vector.broadcast %cst_197 : f32 to vector<8x128xf32>
    %503 = arith.maximumf %502, %501 : vector<8x128xf32>
    %504 = vector.broadcast %cst_198 : f32 to vector<8x128xf32>
    %505 = arith.minimumf %504, %503 : vector<8x128xf32>
    %506 = math.tanh %505 : vector<8x128xf32>
    %507 = arith.mulf %498, %506 : vector<8x128xf32>
    %508 = arith.truncf %507 : vector<8x128xf32> to vector<8x128xbf16>
    %cst_199 = arith.constant dense<0.000000e+00> : vector<8x64xf32>
    %509 = tpu.matmul %508, %17, %cst_199 {dimension_numbers = #tpu.dot_dimension_numbers<[1], [0], [0], [1], [0, 0, 1, 1], [], []>} : vector<8x128xbf16>, vector<128x64xbf16>, vector<8x64xf32> -> vector<8x64xf32>
    %cst_200 = arith.constant -3.000000e+00 : f32
    %cst_201 = arith.constant 3.000000e+00 : f32
    %510 = vector.broadcast %cst_200 : f32 to vector<8x64xf32>
    %511 = arith.maximumf %510, %509 : vector<8x64xf32>
    %512 = vector.broadcast %cst_201 : f32 to vector<8x64xf32>
    %513 = arith.minimumf %512, %511 : vector<8x64xf32>
    %514 = arith.index_cast %c6_i32 : i32 to index
    %c0_202 = arith.constant 0 : index
    %c0_203 = arith.constant 0 : index
    %515 = vector.load %arg3[%514, %c0_202, %c0_203] : memref<10x8x64xf32, #tpu.memory_space<vmem>>, vector<1x8x64xf32>
    %516 = vector.shape_cast %515 : vector<1x8x64xf32> to vector<8x64xf32>
    %517 = arith.index_cast %c6_i32 : i32 to index
    %c0_204 = arith.constant 0 : index
    %c0_205 = arith.constant 0 : index
    %518 = vector.load %arg4[%517, %c0_204, %c0_205] : memref<10x8x128xf32, #tpu.memory_space<vmem>>, vector<1x8x128xf32>
    %519 = vector.shape_cast %518 : vector<1x8x128xf32> to vector<8x128xf32>
    %520 = arith.mulf %516, %513 : vector<8x64xf32>
    %521 = vector.extract_strided_slice %520 {offsets = [0, 0], sizes = [8, 32], strides = [1, 1]} : vector<8x64xf32> to vector<8x32xf32>
    %522 = arith.index_cast %c6_i32 : i32 to index
    %c0_206 = arith.constant 0 : index
    %c0_207 = arith.constant 0 : index
    %523 = vector.load %arg15[%522, %c0_206, %c0_207] : memref<10x8x32xf32, #tpu.memory_space<vmem>>, vector<1x8x32xf32>
    %524 = vector.shape_cast %523 : vector<1x8x32xf32> to vector<8x32xf32>
    %525 = vector.shape_cast %521 : vector<8x32xf32> to vector<1x8x32xf32>
    tpu.vector_store %arg15[%522, %c0_206, %c0_207], %525 {strides = array<i32>} : memref<10x8x32xf32, #tpu.memory_space<vmem>>, vector<1x8x32xf32>,
    %526 = vector.extract_strided_slice %520 {offsets = [0, 32], sizes = [8, 32], strides = [1, 1]} : vector<8x64xf32> to vector<8x32xf32>
    %527 = arith.index_cast %468 : i32 to index
    %c0_208 = arith.constant 0 : index
    %c0_209 = arith.constant 0 : index
    %528 = vector.load %arg16[%527, %c0_208, %c0_209] : memref<10x8x32xf32, #tpu.memory_space<vmem>>, vector<1x8x32xf32>
    %529 = vector.shape_cast %528 : vector<1x8x32xf32> to vector<8x32xf32>
    %530 = vector.shape_cast %526 : vector<8x32xf32> to vector<1x8x32xf32>
    tpu.vector_store %arg16[%527, %c0_208, %c0_209], %530 {strides = array<i32>} : memref<10x8x32xf32, #tpu.memory_space<vmem>>, vector<1x8x32xf32>,
    %cst_210 = arith.constant 1.000000e+00 : f32
    %531 = vector.broadcast %cst_210 : f32 to vector<8x64xf32>
    %532 = arith.subf %531, %516 : vector<8x64xf32>
    %533 = arith.mulf %532, %462 : vector<8x64xf32>
    %534 = arith.addf %520, %533 : vector<8x64xf32>
    %535 = arith.mulf %519, %505 : vector<8x128xf32>
    %cst_211 = arith.constant 1.000000e+00 : f32
    %536 = vector.broadcast %cst_211 : f32 to vector<8x128xf32>
    %537 = arith.subf %536, %519 : vector<8x128xf32>
    %538 = arith.mulf %537, %467 : vector<8x128xf32>
    %539 = arith.addf %535, %538 : vector<8x128xf32>
    %c7_i32 = arith.constant 7 : i32
    %c9_i32_212 = arith.constant 9 : i32
    %540 = arith.subi %c9_i32_212, %c7_i32 : i32
    %541 = arith.index_cast %c7_i32 : i32 to index
    %c0_213 = arith.constant 0 : index
    %c0_214 = arith.constant 0 : index
    %542 = vector.load %arg13[%541, %c0_213, %c0_214] : memref<10x8x512xf32, #tpu.memory_space<vmem>>, vector<1x8x512xf32>
    %543 = vector.shape_cast %542 : vector<1x8x512xf32> to vector<8x512xf32>
    %544 = arith.index_cast %540 : i32 to index
    %c0_215 = arith.constant 0 : index
    %c0_216 = arith.constant 0 : index
    %545 = vector.load %arg14[%544, %c0_215, %c0_216] : memref<10x8x512xf32, #tpu.memory_space<vmem>>, vector<1x8x512xf32>
    %546 = vector.shape_cast %545 : vector<1x8x512xf32> to vector<8x512xf32>
    %547 = arith.addf %543, %546 : vector<8x512xf32>
    %548 = arith.truncf %534 : vector<8x64xf32> to vector<8x64xbf16>
    %cst_217 = arith.constant dense<0.000000e+00> : vector<8x512xf32>
    %549 = tpu.matmul %548, %15, %cst_217 {dimension_numbers = #tpu.dot_dimension_numbers<[1], [0], [0], [1], [0, 0, 1, 1], [], []>} : vector<8x64xbf16>, vector<64x512xbf16>, vector<8x512xf32> -> vector<8x512xf32>
    %550 = arith.addf %547, %549 : vector<8x512xf32>
    %551 = vector.extract_strided_slice %550 {offsets = [0, 0], sizes = [8, 128], strides = [1, 1]} : vector<8x512xf32> to vector<8x128xf32>
    %552 = arith.negf %551 : vector<8x128xf32>
    %553 = math.exp %552 : vector<8x128xf32>
    %cst_218 = arith.constant 1.000000e+00 : f32
    %554 = vector.broadcast %cst_218 : f32 to vector<8x128xf32>
    %555 = arith.addf %554, %553 : vector<8x128xf32>
    %556 = arith.divf %554, %555 : vector<8x128xf32>
    %557 = vector.extract_strided_slice %550 {offsets = [0, 128], sizes = [8, 128], strides = [1, 1]} : vector<8x512xf32> to vector<8x128xf32>
    %558 = arith.negf %557 : vector<8x128xf32>
    %559 = math.exp %558 : vector<8x128xf32>
    %cst_219 = arith.constant 1.000000e+00 : f32
    %560 = vector.broadcast %cst_219 : f32 to vector<8x128xf32>
    %561 = arith.addf %560, %559 : vector<8x128xf32>
    %562 = arith.divf %560, %561 : vector<8x128xf32>
    %563 = vector.extract_strided_slice %550 {offsets = [0, 256], sizes = [8, 128], strides = [1, 1]} : vector<8x512xf32> to vector<8x128xf32>
    %564 = math.tanh %563 : vector<8x128xf32>
    %565 = vector.extract_strided_slice %550 {offsets = [0, 384], sizes = [8, 128], strides = [1, 1]} : vector<8x512xf32> to vector<8x128xf32>
    %566 = arith.negf %565 : vector<8x128xf32>
    %567 = math.exp %566 : vector<8x128xf32>
    %cst_220 = arith.constant 1.000000e+00 : f32
    %568 = vector.broadcast %cst_220 : f32 to vector<8x128xf32>
    %569 = arith.addf %568, %567 : vector<8x128xf32>
    %570 = arith.divf %568, %569 : vector<8x128xf32>
    %571 = arith.mulf %556, %564 : vector<8x128xf32>
    %572 = arith.mulf %562, %539 : vector<8x128xf32>
    %573 = arith.addf %571, %572 : vector<8x128xf32>
    %cst_221 = arith.constant -3.000000e+00 : f32
    %cst_222 = arith.constant 3.000000e+00 : f32
    %574 = vector.broadcast %cst_221 : f32 to vector<8x128xf32>
    %575 = arith.maximumf %574, %573 : vector<8x128xf32>
    %576 = vector.broadcast %cst_222 : f32 to vector<8x128xf32>
    %577 = arith.minimumf %576, %575 : vector<8x128xf32>
    %578 = math.tanh %577 : vector<8x128xf32>
    %579 = arith.mulf %570, %578 : vector<8x128xf32>
    %580 = arith.truncf %579 : vector<8x128xf32> to vector<8x128xbf16>
    %cst_223 = arith.constant dense<0.000000e+00> : vector<8x64xf32>
    %581 = tpu.matmul %580, %17, %cst_223 {dimension_numbers = #tpu.dot_dimension_numbers<[1], [0], [0], [1], [0, 0, 1, 1], [], []>} : vector<8x128xbf16>, vector<128x64xbf16>, vector<8x64xf32> -> vector<8x64xf32>
    %cst_224 = arith.constant -3.000000e+00 : f32
    %cst_225 = arith.constant 3.000000e+00 : f32
    %582 = vector.broadcast %cst_224 : f32 to vector<8x64xf32>
    %583 = arith.maximumf %582, %581 : vector<8x64xf32>
    %584 = vector.broadcast %cst_225 : f32 to vector<8x64xf32>
    %585 = arith.minimumf %584, %583 : vector<8x64xf32>
    %586 = arith.index_cast %c7_i32 : i32 to index
    %c0_226 = arith.constant 0 : index
    %c0_227 = arith.constant 0 : index
    %587 = vector.load %arg3[%586, %c0_226, %c0_227] : memref<10x8x64xf32, #tpu.memory_space<vmem>>, vector<1x8x64xf32>
    %588 = vector.shape_cast %587 : vector<1x8x64xf32> to vector<8x64xf32>
    %589 = arith.index_cast %c7_i32 : i32 to index
    %c0_228 = arith.constant 0 : index
    %c0_229 = arith.constant 0 : index
    %590 = vector.load %arg4[%589, %c0_228, %c0_229] : memref<10x8x128xf32, #tpu.memory_space<vmem>>, vector<1x8x128xf32>
    %591 = vector.shape_cast %590 : vector<1x8x128xf32> to vector<8x128xf32>
    %592 = arith.mulf %588, %585 : vector<8x64xf32>
    %593 = vector.extract_strided_slice %592 {offsets = [0, 0], sizes = [8, 32], strides = [1, 1]} : vector<8x64xf32> to vector<8x32xf32>
    %594 = arith.index_cast %c7_i32 : i32 to index
    %c0_230 = arith.constant 0 : index
    %c0_231 = arith.constant 0 : index
    %595 = vector.load %arg15[%594, %c0_230, %c0_231] : memref<10x8x32xf32, #tpu.memory_space<vmem>>, vector<1x8x32xf32>
    %596 = vector.shape_cast %595 : vector<1x8x32xf32> to vector<8x32xf32>
    %597 = vector.shape_cast %593 : vector<8x32xf32> to vector<1x8x32xf32>
    tpu.vector_store %arg15[%594, %c0_230, %c0_231], %597 {strides = array<i32>} : memref<10x8x32xf32, #tpu.memory_space<vmem>>, vector<1x8x32xf32>,
    %598 = vector.extract_strided_slice %592 {offsets = [0, 32], sizes = [8, 32], strides = [1, 1]} : vector<8x64xf32> to vector<8x32xf32>
    %599 = arith.index_cast %540 : i32 to index
    %c0_232 = arith.constant 0 : index
    %c0_233 = arith.constant 0 : index
    %600 = vector.load %arg16[%599, %c0_232, %c0_233] : memref<10x8x32xf32, #tpu.memory_space<vmem>>, vector<1x8x32xf32>
    %601 = vector.shape_cast %600 : vector<1x8x32xf32> to vector<8x32xf32>
    %602 = vector.shape_cast %598 : vector<8x32xf32> to vector<1x8x32xf32>
    tpu.vector_store %arg16[%599, %c0_232, %c0_233], %602 {strides = array<i32>} : memref<10x8x32xf32, #tpu.memory_space<vmem>>, vector<1x8x32xf32>,
    %cst_234 = arith.constant 1.000000e+00 : f32
    %603 = vector.broadcast %cst_234 : f32 to vector<8x64xf32>
    %604 = arith.subf %603, %588 : vector<8x64xf32>
    %605 = arith.mulf %604, %534 : vector<8x64xf32>
    %606 = arith.addf %592, %605 : vector<8x64xf32>
    %607 = arith.mulf %591, %577 : vector<8x128xf32>
    %cst_235 = arith.constant 1.000000e+00 : f32
    %608 = vector.broadcast %cst_235 : f32 to vector<8x128xf32>
    %609 = arith.subf %608, %591 : vector<8x128xf32>
    %610 = arith.mulf %609, %539 : vector<8x128xf32>
    %611 = arith.addf %607, %610 : vector<8x128xf32>
    %c8_i32 = arith.constant 8 : i32
    %c9_i32_236 = arith.constant 9 : i32
    %612 = arith.subi %c9_i32_236, %c8_i32 : i32
    %613 = arith.index_cast %c8_i32 : i32 to index
    %c0_237 = arith.constant 0 : index
    %c0_238 = arith.constant 0 : index
    %614 = vector.load %arg13[%613, %c0_237, %c0_238] : memref<10x8x512xf32, #tpu.memory_space<vmem>>, vector<1x8x512xf32>
    %615 = vector.shape_cast %614 : vector<1x8x512xf32> to vector<8x512xf32>
    %616 = arith.index_cast %612 : i32 to index
    %c0_239 = arith.constant 0 : index
    %c0_240 = arith.constant 0 : index
    %617 = vector.load %arg14[%616, %c0_239, %c0_240] : memref<10x8x512xf32, #tpu.memory_space<vmem>>, vector<1x8x512xf32>
    %618 = vector.shape_cast %617 : vector<1x8x512xf32> to vector<8x512xf32>
    %619 = arith.addf %615, %618 : vector<8x512xf32>
    %620 = arith.truncf %606 : vector<8x64xf32> to vector<8x64xbf16>
    %cst_241 = arith.constant dense<0.000000e+00> : vector<8x512xf32>
    %621 = tpu.matmul %620, %15, %cst_241 {dimension_numbers = #tpu.dot_dimension_numbers<[1], [0], [0], [1], [0, 0, 1, 1], [], []>} : vector<8x64xbf16>, vector<64x512xbf16>, vector<8x512xf32> -> vector<8x512xf32>
    %622 = arith.addf %619, %621 : vector<8x512xf32>
    %623 = vector.extract_strided_slice %622 {offsets = [0, 0], sizes = [8, 128], strides = [1, 1]} : vector<8x512xf32> to vector<8x128xf32>
    %624 = arith.negf %623 : vector<8x128xf32>
    %625 = math.exp %624 : vector<8x128xf32>
    %cst_242 = arith.constant 1.000000e+00 : f32
    %626 = vector.broadcast %cst_242 : f32 to vector<8x128xf32>
    %627 = arith.addf %626, %625 : vector<8x128xf32>
    %628 = arith.divf %626, %627 : vector<8x128xf32>
    %629 = vector.extract_strided_slice %622 {offsets = [0, 128], sizes = [8, 128], strides = [1, 1]} : vector<8x512xf32> to vector<8x128xf32>
    %630 = arith.negf %629 : vector<8x128xf32>
    %631 = math.exp %630 : vector<8x128xf32>
    %cst_243 = arith.constant 1.000000e+00 : f32
    %632 = vector.broadcast %cst_243 : f32 to vector<8x128xf32>
    %633 = arith.addf %632, %631 : vector<8x128xf32>
    %634 = arith.divf %632, %633 : vector<8x128xf32>
    %635 = vector.extract_strided_slice %622 {offsets = [0, 256], sizes = [8, 128], strides = [1, 1]} : vector<8x512xf32> to vector<8x128xf32>
    %636 = math.tanh %635 : vector<8x128xf32>
    %637 = vector.extract_strided_slice %622 {offsets = [0, 384], sizes = [8, 128], strides = [1, 1]} : vector<8x512xf32> to vector<8x128xf32>
    %638 = arith.negf %637 : vector<8x128xf32>
    %639 = math.exp %638 : vector<8x128xf32>
    %cst_244 = arith.constant 1.000000e+00 : f32
    %640 = vector.broadcast %cst_244 : f32 to vector<8x128xf32>
    %641 = arith.addf %640, %639 : vector<8x128xf32>
    %642 = arith.divf %640, %641 : vector<8x128xf32>
    %643 = arith.mulf %628, %636 : vector<8x128xf32>
    %644 = arith.mulf %634, %611 : vector<8x128xf32>
    %645 = arith.addf %643, %644 : vector<8x128xf32>
    %cst_245 = arith.constant -3.000000e+00 : f32
    %cst_246 = arith.constant 3.000000e+00 : f32
    %646 = vector.broadcast %cst_245 : f32 to vector<8x128xf32>
    %647 = arith.maximumf %646, %645 : vector<8x128xf32>
    %648 = vector.broadcast %cst_246 : f32 to vector<8x128xf32>
    %649 = arith.minimumf %648, %647 : vector<8x128xf32>
    %650 = math.tanh %649 : vector<8x128xf32>
    %651 = arith.mulf %642, %650 : vector<8x128xf32>
    %652 = arith.truncf %651 : vector<8x128xf32> to vector<8x128xbf16>
    %cst_247 = arith.constant dense<0.000000e+00> : vector<8x64xf32>
    %653 = tpu.matmul %652, %17, %cst_247 {dimension_numbers = #tpu.dot_dimension_numbers<[1], [0], [0], [1], [0, 0, 1, 1], [], []>} : vector<8x128xbf16>, vector<128x64xbf16>, vector<8x64xf32> -> vector<8x64xf32>
    %cst_248 = arith.constant -3.000000e+00 : f32
    %cst_249 = arith.constant 3.000000e+00 : f32
    %654 = vector.broadcast %cst_248 : f32 to vector<8x64xf32>
    %655 = arith.maximumf %654, %653 : vector<8x64xf32>
    %656 = vector.broadcast %cst_249 : f32 to vector<8x64xf32>
    %657 = arith.minimumf %656, %655 : vector<8x64xf32>
    %658 = arith.index_cast %c8_i32 : i32 to index
    %c0_250 = arith.constant 0 : index
    %c0_251 = arith.constant 0 : index
    %659 = vector.load %arg3[%658, %c0_250, %c0_251] : memref<10x8x64xf32, #tpu.memory_space<vmem>>, vector<1x8x64xf32>
    %660 = vector.shape_cast %659 : vector<1x8x64xf32> to vector<8x64xf32>
    %661 = arith.index_cast %c8_i32 : i32 to index
    %c0_252 = arith.constant 0 : index
    %c0_253 = arith.constant 0 : index
    %662 = vector.load %arg4[%661, %c0_252, %c0_253] : memref<10x8x128xf32, #tpu.memory_space<vmem>>, vector<1x8x128xf32>
    %663 = vector.shape_cast %662 : vector<1x8x128xf32> to vector<8x128xf32>
    %664 = arith.mulf %660, %657 : vector<8x64xf32>
    %665 = vector.extract_strided_slice %664 {offsets = [0, 0], sizes = [8, 32], strides = [1, 1]} : vector<8x64xf32> to vector<8x32xf32>
    %666 = arith.index_cast %c8_i32 : i32 to index
    %c0_254 = arith.constant 0 : index
    %c0_255 = arith.constant 0 : index
    %667 = vector.load %arg15[%666, %c0_254, %c0_255] : memref<10x8x32xf32, #tpu.memory_space<vmem>>, vector<1x8x32xf32>
    %668 = vector.shape_cast %667 : vector<1x8x32xf32> to vector<8x32xf32>
    %669 = vector.shape_cast %665 : vector<8x32xf32> to vector<1x8x32xf32>
    tpu.vector_store %arg15[%666, %c0_254, %c0_255], %669 {strides = array<i32>} : memref<10x8x32xf32, #tpu.memory_space<vmem>>, vector<1x8x32xf32>,
    %670 = vector.extract_strided_slice %664 {offsets = [0, 32], sizes = [8, 32], strides = [1, 1]} : vector<8x64xf32> to vector<8x32xf32>
    %671 = arith.index_cast %612 : i32 to index
    %c0_256 = arith.constant 0 : index
    %c0_257 = arith.constant 0 : index
    %672 = vector.load %arg16[%671, %c0_256, %c0_257] : memref<10x8x32xf32, #tpu.memory_space<vmem>>, vector<1x8x32xf32>
    %673 = vector.shape_cast %672 : vector<1x8x32xf32> to vector<8x32xf32>
    %674 = vector.shape_cast %670 : vector<8x32xf32> to vector<1x8x32xf32>
    tpu.vector_store %arg16[%671, %c0_256, %c0_257], %674 {strides = array<i32>} : memref<10x8x32xf32, #tpu.memory_space<vmem>>, vector<1x8x32xf32>,
    %cst_258 = arith.constant 1.000000e+00 : f32
    %675 = vector.broadcast %cst_258 : f32 to vector<8x64xf32>
    %676 = arith.subf %675, %660 : vector<8x64xf32>
    %677 = arith.mulf %676, %606 : vector<8x64xf32>
    %678 = arith.addf %664, %677 : vector<8x64xf32>
    %679 = arith.mulf %663, %649 : vector<8x128xf32>
    %cst_259 = arith.constant 1.000000e+00 : f32
    %680 = vector.broadcast %cst_259 : f32 to vector<8x128xf32>
    %681 = arith.subf %680, %663 : vector<8x128xf32>
    %682 = arith.mulf %681, %611 : vector<8x128xf32>
    %683 = arith.addf %679, %682 : vector<8x128xf32>
    %c9_i32_260 = arith.constant 9 : i32
    %c9_i32_261 = arith.constant 9 : i32
    %684 = arith.subi %c9_i32_261, %c9_i32_260 : i32
    %685 = arith.index_cast %c9_i32_260 : i32 to index
    %c0_262 = arith.constant 0 : index
    %c0_263 = arith.constant 0 : index
    %686 = vector.load %arg13[%685, %c0_262, %c0_263] : memref<10x8x512xf32, #tpu.memory_space<vmem>>, vector<1x8x512xf32>
    %687 = vector.shape_cast %686 : vector<1x8x512xf32> to vector<8x512xf32>
    %688 = arith.index_cast %684 : i32 to index
    %c0_264 = arith.constant 0 : index
    %c0_265 = arith.constant 0 : index
    %689 = vector.load %arg14[%688, %c0_264, %c0_265] : memref<10x8x512xf32, #tpu.memory_space<vmem>>, vector<1x8x512xf32>
    %690 = vector.shape_cast %689 : vector<1x8x512xf32> to vector<8x512xf32>
    %691 = arith.addf %687, %690 : vector<8x512xf32>
    %692 = arith.truncf %678 : vector<8x64xf32> to vector<8x64xbf16>
    %cst_266 = arith.constant dense<0.000000e+00> : vector<8x512xf32>
    %693 = tpu.matmul %692, %15, %cst_266 {dimension_numbers = #tpu.dot_dimension_numbers<[1], [0], [0], [1], [0, 0, 1, 1], [], []>} : vector<8x64xbf16>, vector<64x512xbf16>, vector<8x512xf32> -> vector<8x512xf32>
    %694 = arith.addf %691, %693 : vector<8x512xf32>
    %695 = vector.extract_strided_slice %694 {offsets = [0, 0], sizes = [8, 128], strides = [1, 1]} : vector<8x512xf32> to vector<8x128xf32>
    %696 = arith.negf %695 : vector<8x128xf32>
    %697 = math.exp %696 : vector<8x128xf32>
    %cst_267 = arith.constant 1.000000e+00 : f32
    %698 = vector.broadcast %cst_267 : f32 to vector<8x128xf32>
    %699 = arith.addf %698, %697 : vector<8x128xf32>
    %700 = arith.divf %698, %699 : vector<8x128xf32>
    %701 = vector.extract_strided_slice %694 {offsets = [0, 128], sizes = [8, 128], strides = [1, 1]} : vector<8x512xf32> to vector<8x128xf32>
    %702 = arith.negf %701 : vector<8x128xf32>
    %703 = math.exp %702 : vector<8x128xf32>
    %cst_268 = arith.constant 1.000000e+00 : f32
    %704 = vector.broadcast %cst_268 : f32 to vector<8x128xf32>
    %705 = arith.addf %704, %703 : vector<8x128xf32>
    %706 = arith.divf %704, %705 : vector<8x128xf32>
    %707 = vector.extract_strided_slice %694 {offsets = [0, 256], sizes = [8, 128], strides = [1, 1]} : vector<8x512xf32> to vector<8x128xf32>
    %708 = math.tanh %707 : vector<8x128xf32>
    %709 = vector.extract_strided_slice %694 {offsets = [0, 384], sizes = [8, 128], strides = [1, 1]} : vector<8x512xf32> to vector<8x128xf32>
    %710 = arith.negf %709 : vector<8x128xf32>
    %711 = math.exp %710 : vector<8x128xf32>
    %cst_269 = arith.constant 1.000000e+00 : f32
    %712 = vector.broadcast %cst_269 : f32 to vector<8x128xf32>
    %713 = arith.addf %712, %711 : vector<8x128xf32>
    %714 = arith.divf %712, %713 : vector<8x128xf32>
    %715 = arith.mulf %700, %708 : vector<8x128xf32>
    %716 = arith.mulf %706, %683 : vector<8x128xf32>
    %717 = arith.addf %715, %716 : vector<8x128xf32>
    %cst_270 = arith.constant -3.000000e+00 : f32
    %cst_271 = arith.constant 3.000000e+00 : f32
    %718 = vector.broadcast %cst_270 : f32 to vector<8x128xf32>
    %719 = arith.maximumf %718, %717 : vector<8x128xf32>
    %720 = vector.broadcast %cst_271 : f32 to vector<8x128xf32>
    %721 = arith.minimumf %720, %719 : vector<8x128xf32>
    %722 = math.tanh %721 : vector<8x128xf32>
    %723 = arith.mulf %714, %722 : vector<8x128xf32>
    %724 = arith.truncf %723 : vector<8x128xf32> to vector<8x128xbf16>
    %cst_272 = arith.constant dense<0.000000e+00> : vector<8x64xf32>
    %725 = tpu.matmul %724, %17, %cst_272 {dimension_numbers = #tpu.dot_dimension_numbers<[1], [0], [0], [1], [0, 0, 1, 1], [], []>} : vector<8x128xbf16>, vector<128x64xbf16>, vector<8x64xf32> -> vector<8x64xf32>
    %cst_273 = arith.constant -3.000000e+00 : f32
    %cst_274 = arith.constant 3.000000e+00 : f32
    %726 = vector.broadcast %cst_273 : f32 to vector<8x64xf32>
    %727 = arith.maximumf %726, %725 : vector<8x64xf32>
    %728 = vector.broadcast %cst_274 : f32 to vector<8x64xf32>
    %729 = arith.minimumf %728, %727 : vector<8x64xf32>
    %730 = arith.index_cast %c9_i32_260 : i32 to index
    %c0_275 = arith.constant 0 : index
    %c0_276 = arith.constant 0 : index
    %731 = vector.load %arg3[%730, %c0_275, %c0_276] : memref<10x8x64xf32, #tpu.memory_space<vmem>>, vector<1x8x64xf32>
    %732 = vector.shape_cast %731 : vector<1x8x64xf32> to vector<8x64xf32>
    %733 = arith.index_cast %c9_i32_260 : i32 to index
    %c0_277 = arith.constant 0 : index
    %c0_278 = arith.constant 0 : index
    %734 = vector.load %arg4[%733, %c0_277, %c0_278] : memref<10x8x128xf32, #tpu.memory_space<vmem>>, vector<1x8x128xf32>
    %735 = vector.shape_cast %734 : vector<1x8x128xf32> to vector<8x128xf32>
    %736 = arith.mulf %732, %729 : vector<8x64xf32>
    %737 = vector.extract_strided_slice %736 {offsets = [0, 0], sizes = [8, 32], strides = [1, 1]} : vector<8x64xf32> to vector<8x32xf32>
    %738 = arith.index_cast %c9_i32_260 : i32 to index
    %c0_279 = arith.constant 0 : index
    %c0_280 = arith.constant 0 : index
    %739 = vector.load %arg15[%738, %c0_279, %c0_280] : memref<10x8x32xf32, #tpu.memory_space<vmem>>, vector<1x8x32xf32>
    %740 = vector.shape_cast %739 : vector<1x8x32xf32> to vector<8x32xf32>
    %741 = vector.shape_cast %737 : vector<8x32xf32> to vector<1x8x32xf32>
    tpu.vector_store %arg15[%738, %c0_279, %c0_280], %741 {strides = array<i32>} : memref<10x8x32xf32, #tpu.memory_space<vmem>>, vector<1x8x32xf32>,
    %742 = vector.extract_strided_slice %736 {offsets = [0, 32], sizes = [8, 32], strides = [1, 1]} : vector<8x64xf32> to vector<8x32xf32>
    %743 = arith.index_cast %684 : i32 to index
    %c0_281 = arith.constant 0 : index
    %c0_282 = arith.constant 0 : index
    %744 = vector.load %arg16[%743, %c0_281, %c0_282] : memref<10x8x32xf32, #tpu.memory_space<vmem>>, vector<1x8x32xf32>
    %745 = vector.shape_cast %744 : vector<1x8x32xf32> to vector<8x32xf32>
    %746 = vector.shape_cast %742 : vector<8x32xf32> to vector<1x8x32xf32>
    tpu.vector_store %arg16[%743, %c0_281, %c0_282], %746 {strides = array<i32>} : memref<10x8x32xf32, #tpu.memory_space<vmem>>, vector<1x8x32xf32>,
    %cst_283 = arith.constant 1.000000e+00 : f32
    %747 = vector.broadcast %cst_283 : f32 to vector<8x64xf32>
    %748 = arith.subf %747, %732 : vector<8x64xf32>
    %749 = arith.mulf %748, %678 : vector<8x64xf32>
    %750 = arith.addf %736, %749 : vector<8x64xf32>
    %751 = arith.mulf %735, %721 : vector<8x128xf32>
    %cst_284 = arith.constant 1.000000e+00 : f32
    %752 = vector.broadcast %cst_284 : f32 to vector<8x128xf32>
    %753 = arith.subf %752, %735 : vector<8x128xf32>
    %754 = arith.mulf %753, %683 : vector<8x128xf32>
    %755 = arith.addf %751, %754 : vector<8x128xf32>
    %c10_i32 = arith.constant 10 : i32
    %c0_285 = arith.constant 0 : index
    %c0_286 = arith.constant 0 : index
    %c0_287 = arith.constant 0 : index
    %756 = vector.load %arg15[%c0_285, %c0_286, %c0_287] : memref<10x8x32xf32, #tpu.memory_space<vmem>>, vector<10x8x32xf32>
    %c0_288 = arith.constant 0 : index
    %c0_289 = arith.constant 0 : index
    %c0_290 = arith.constant 0 : index
    %757 = vector.load %arg16[%c0_288, %c0_289, %c0_290] : memref<10x8x32xf32, #tpu.memory_space<vmem>>, vector<10x8x32xf32>
    %758 = tpu.concatenate %756, %757 in 2 : vector<10x8x32xf32>, vector<10x8x32xf32> -> vector<10x8x64xf32>
    %c1 = arith.constant 1 : index
    %c0_291 = arith.constant 0 : index
    %c0_292 = arith.constant 0 : index
    %c0_293 = arith.constant 0 : index
    %759 = vector.load %arg10[%c1, %c0_291, %c0_292, %c0_293] : memref<3x10x8x64xf32, #tpu.memory_space<vmem>>, vector<1x10x8x64xf32>
    %760 = vector.shape_cast %759 : vector<1x10x8x64xf32> to vector<10x8x64xf32>
    %761 = vector.shape_cast %758 : vector<10x8x64xf32> to vector<1x10x8x64xf32>
    tpu.vector_store %arg10[%c1, %c0_291, %c0_292, %c0_293], %761 {strides = array<i32>} : memref<3x10x8x64xf32, #tpu.memory_space<vmem>>, vector<1x10x8x64xf32>,
    %c0_294 = arith.constant 0 : index
    %c0_295 = arith.constant 0 : index
    %c0_296 = arith.constant 0 : index
    %762 = vector.load %arg11[%c0_294, %c0_295, %c0_296] : memref<10x8x32xf32, #tpu.memory_space<vmem>>, vector<10x8x32xf32>
    tpu.vector_store %arg11[%c0_294, %c0_295, %c0_296], %756 {strides = array<i32>} : memref<10x8x32xf32, #tpu.memory_space<vmem>>, vector<10x8x32xf32>,
    %c0_297 = arith.constant 0 : index
    %c0_298 = arith.constant 0 : index
    %c0_299 = arith.constant 0 : index
    %763 = vector.load %arg12[%c0_297, %c0_298, %c0_299] : memref<10x8x32xf32, #tpu.memory_space<vmem>>, vector<10x8x32xf32>
    tpu.vector_store %arg12[%c0_297, %c0_298, %c0_299], %757 {strides = array<i32>} : memref<10x8x32xf32, #tpu.memory_space<vmem>>, vector<10x8x32xf32>,
    %c1_300 = arith.constant 1 : index
    %c0_301 = arith.constant 0 : index
    %c0_302 = arith.constant 0 : index
    %764 = vector.load %arg5[%c1_300, %c0_301, %c0_302] : memref<2x32x512xbf16, #tpu.memory_space<vmem>>, vector<1x32x512xbf16>
    %765 = vector.shape_cast %764 : vector<1x32x512xbf16> to vector<32x512xbf16>
    %c1_303 = arith.constant 1 : index
    %c0_304 = arith.constant 0 : index
    %c0_305 = arith.constant 0 : index
    %766 = vector.load %arg6[%c1_303, %c0_304, %c0_305] : memref<2x32x512xbf16, #tpu.memory_space<vmem>>, vector<1x32x512xbf16>
    %767 = vector.shape_cast %766 : vector<1x32x512xbf16> to vector<32x512xbf16>
    %c1_306 = arith.constant 1 : index
    %c0_307 = arith.constant 0 : index
    %c0_308 = arith.constant 0 : index
    %768 = vector.load %arg7[%c1_306, %c0_307, %c0_308] : memref<2x64x512xbf16, #tpu.memory_space<vmem>>, vector<1x64x512xbf16>
    %769 = vector.shape_cast %768 : vector<1x64x512xbf16> to vector<64x512xbf16>
    %c1_309 = arith.constant 1 : index
    %c0_310 = arith.constant 0 : index
    %c0_311 = arith.constant 0 : index
    %770 = vector.load %arg9[%c1_309, %c0_310, %c0_311] : memref<2x128x64xbf16, #tpu.memory_space<vmem>>, vector<1x128x64xbf16>
    %771 = vector.shape_cast %770 : vector<1x128x64xbf16> to vector<128x64xbf16>
    %c1_312 = arith.constant 1 : index
    %c0_313 = arith.constant 0 : index
    %c0_314 = arith.constant 0 : index
    %772 = vector.load %arg8[%c1_312, %c0_313, %c0_314] : memref<2x1x512xf32, #tpu.memory_space<vmem>>, vector<1x1x512xf32>
    %773 = vector.shape_cast %772 : vector<1x1x512xf32> to vector<1x512xf32>
    %c0_315 = arith.constant 0 : index
    %c0_316 = arith.constant 0 : index
    %c0_317 = arith.constant 0 : index
    %774 = vector.load %arg11[%c0_315, %c0_316, %c0_317] : memref<10x8x32xf32, #tpu.memory_space<vmem>>, vector<10x8x32xf32>
    %775 = vector.shape_cast %774 : vector<10x8x32xf32> to vector<80x32xf32>
    %776 = arith.truncf %775 : vector<80x32xf32> to vector<80x32xbf16>
    %c0_318 = arith.constant 0 : index
    %c0_319 = arith.constant 0 : index
    %c0_320 = arith.constant 0 : index
    %777 = vector.load %arg12[%c0_318, %c0_319, %c0_320] : memref<10x8x32xf32, #tpu.memory_space<vmem>>, vector<10x8x32xf32>
    %778 = vector.shape_cast %777 : vector<10x8x32xf32> to vector<80x32xf32>
    %779 = arith.truncf %778 : vector<80x32xf32> to vector<80x32xbf16>
    %cst_321 = arith.constant dense<0.000000e+00> : vector<80x512xf32>
    %780 = tpu.matmul %776, %765, %cst_321 {dimension_numbers = #tpu.dot_dimension_numbers<[1], [0], [0], [1], [0, 0, 1, 1], [], []>} : vector<80x32xbf16>, vector<32x512xbf16>, vector<80x512xf32> -> vector<80x512xf32>
    %781 = vector.broadcast %773 : vector<1x512xf32> to vector<80x512xf32>
    %782 = arith.addf %780, %781 : vector<80x512xf32>
    %783 = vector.shape_cast %782 : vector<80x512xf32> to vector<10x8x512xf32>
    %c0_322 = arith.constant 0 : index
    %c0_323 = arith.constant 0 : index
    %c0_324 = arith.constant 0 : index
    %784 = vector.load %arg13[%c0_322, %c0_323, %c0_324] : memref<10x8x512xf32, #tpu.memory_space<vmem>>, vector<10x8x512xf32>
    tpu.vector_store %arg13[%c0_322, %c0_323, %c0_324], %783 {strides = array<i32>} : memref<10x8x512xf32, #tpu.memory_space<vmem>>, vector<10x8x512xf32>,
    %cst_325 = arith.constant dense<0.000000e+00> : vector<80x512xf32>
    %785 = tpu.matmul %779, %767, %cst_325 {dimension_numbers = #tpu.dot_dimension_numbers<[1], [0], [0], [1], [0, 0, 1, 1], [], []>} : vector<80x32xbf16>, vector<32x512xbf16>, vector<80x512xf32> -> vector<80x512xf32>
    %786 = vector.shape_cast %785 : vector<80x512xf32> to vector<10x8x512xf32>
    %c0_326 = arith.constant 0 : index
    %c0_327 = arith.constant 0 : index
    %c0_328 = arith.constant 0 : index
    %787 = vector.load %arg14[%c0_326, %c0_327, %c0_328] : memref<10x8x512xf32, #tpu.memory_space<vmem>>, vector<10x8x512xf32>
    tpu.vector_store %arg14[%c0_326, %c0_327, %c0_328], %786 {strides = array<i32>} : memref<10x8x512xf32, #tpu.memory_space<vmem>>, vector<10x8x512xf32>,
    %cst_329 = arith.constant 0.000000e+00 : f32
    %788 = vector.broadcast %cst_329 : f32 to vector<8x64xf32>
    %cst_330 = arith.constant 0.000000e+00 : f32
    %789 = vector.broadcast %cst_330 : f32 to vector<8x128xf32>
    %c0_i32_331 = arith.constant 0 : i32
    %c9_i32_332 = arith.constant 9 : i32
    %790 = arith.subi %c9_i32_332, %c0_i32_331 : i32
    %791 = arith.index_cast %c0_i32_331 : i32 to index
    %c0_333 = arith.constant 0 : index
    %c0_334 = arith.constant 0 : index
    %792 = vector.load %arg13[%791, %c0_333, %c0_334] : memref<10x8x512xf32, #tpu.memory_space<vmem>>, vector<1x8x512xf32>
    %793 = vector.shape_cast %792 : vector<1x8x512xf32> to vector<8x512xf32>
    %794 = arith.index_cast %790 : i32 to index
    %c0_335 = arith.constant 0 : index
    %c0_336 = arith.constant 0 : index
    %795 = vector.load %arg14[%794, %c0_335, %c0_336] : memref<10x8x512xf32, #tpu.memory_space<vmem>>, vector<1x8x512xf32>
    %796 = vector.shape_cast %795 : vector<1x8x512xf32> to vector<8x512xf32>
    %797 = arith.addf %793, %796 : vector<8x512xf32>
    %798 = arith.truncf %788 : vector<8x64xf32> to vector<8x64xbf16>
    %cst_337 = arith.constant dense<0.000000e+00> : vector<8x512xf32>
    %799 = tpu.matmul %798, %769, %cst_337 {dimension_numbers = #tpu.dot_dimension_numbers<[1], [0], [0], [1], [0, 0, 1, 1], [], []>} : vector<8x64xbf16>, vector<64x512xbf16>, vector<8x512xf32> -> vector<8x512xf32>
    %800 = arith.addf %797, %799 : vector<8x512xf32>
    %801 = vector.extract_strided_slice %800 {offsets = [0, 0], sizes = [8, 128], strides = [1, 1]} : vector<8x512xf32> to vector<8x128xf32>
    %802 = arith.negf %801 : vector<8x128xf32>
    %803 = math.exp %802 : vector<8x128xf32>
    %cst_338 = arith.constant 1.000000e+00 : f32
    %804 = vector.broadcast %cst_338 : f32 to vector<8x128xf32>
    %805 = arith.addf %804, %803 : vector<8x128xf32>
    %806 = arith.divf %804, %805 : vector<8x128xf32>
    %807 = vector.extract_strided_slice %800 {offsets = [0, 128], sizes = [8, 128], strides = [1, 1]} : vector<8x512xf32> to vector<8x128xf32>
    %808 = arith.negf %807 : vector<8x128xf32>
    %809 = math.exp %808 : vector<8x128xf32>
    %cst_339 = arith.constant 1.000000e+00 : f32
    %810 = vector.broadcast %cst_339 : f32 to vector<8x128xf32>
    %811 = arith.addf %810, %809 : vector<8x128xf32>
    %812 = arith.divf %810, %811 : vector<8x128xf32>
    %813 = vector.extract_strided_slice %800 {offsets = [0, 256], sizes = [8, 128], strides = [1, 1]} : vector<8x512xf32> to vector<8x128xf32>
    %814 = math.tanh %813 : vector<8x128xf32>
    %815 = vector.extract_strided_slice %800 {offsets = [0, 384], sizes = [8, 128], strides = [1, 1]} : vector<8x512xf32> to vector<8x128xf32>
    %816 = arith.negf %815 : vector<8x128xf32>
    %817 = math.exp %816 : vector<8x128xf32>
    %cst_340 = arith.constant 1.000000e+00 : f32
    %818 = vector.broadcast %cst_340 : f32 to vector<8x128xf32>
    %819 = arith.addf %818, %817 : vector<8x128xf32>
    %820 = arith.divf %818, %819 : vector<8x128xf32>
    %821 = arith.mulf %806, %814 : vector<8x128xf32>
    %822 = arith.mulf %812, %789 : vector<8x128xf32>
    %823 = arith.addf %821, %822 : vector<8x128xf32>
    %cst_341 = arith.constant -3.000000e+00 : f32
    %cst_342 = arith.constant 3.000000e+00 : f32
    %824 = vector.broadcast %cst_341 : f32 to vector<8x128xf32>
    %825 = arith.maximumf %824, %823 : vector<8x128xf32>
    %826 = vector.broadcast %cst_342 : f32 to vector<8x128xf32>
    %827 = arith.minimumf %826, %825 : vector<8x128xf32>
    %828 = math.tanh %827 : vector<8x128xf32>
    %829 = arith.mulf %820, %828 : vector<8x128xf32>
    %830 = arith.truncf %829 : vector<8x128xf32> to vector<8x128xbf16>
    %cst_343 = arith.constant dense<0.000000e+00> : vector<8x64xf32>
    %831 = tpu.matmul %830, %771, %cst_343 {dimension_numbers = #tpu.dot_dimension_numbers<[1], [0], [0], [1], [0, 0, 1, 1], [], []>} : vector<8x128xbf16>, vector<128x64xbf16>, vector<8x64xf32> -> vector<8x64xf32>
    %cst_344 = arith.constant -3.000000e+00 : f32
    %cst_345 = arith.constant 3.000000e+00 : f32
    %832 = vector.broadcast %cst_344 : f32 to vector<8x64xf32>
    %833 = arith.maximumf %832, %831 : vector<8x64xf32>
    %834 = vector.broadcast %cst_345 : f32 to vector<8x64xf32>
    %835 = arith.minimumf %834, %833 : vector<8x64xf32>
    %836 = arith.index_cast %c0_i32_331 : i32 to index
    %c0_346 = arith.constant 0 : index
    %c0_347 = arith.constant 0 : index
    %837 = vector.load %arg3[%836, %c0_346, %c0_347] : memref<10x8x64xf32, #tpu.memory_space<vmem>>, vector<1x8x64xf32>
    %838 = vector.shape_cast %837 : vector<1x8x64xf32> to vector<8x64xf32>
    %839 = arith.index_cast %c0_i32_331 : i32 to index
    %c0_348 = arith.constant 0 : index
    %c0_349 = arith.constant 0 : index
    %840 = vector.load %arg4[%839, %c0_348, %c0_349] : memref<10x8x128xf32, #tpu.memory_space<vmem>>, vector<1x8x128xf32>
    %841 = vector.shape_cast %840 : vector<1x8x128xf32> to vector<8x128xf32>
    %842 = arith.mulf %838, %835 : vector<8x64xf32>
    %843 = vector.extract_strided_slice %842 {offsets = [0, 0], sizes = [8, 32], strides = [1, 1]} : vector<8x64xf32> to vector<8x32xf32>
    %844 = arith.index_cast %c0_i32_331 : i32 to index
    %c0_350 = arith.constant 0 : index
    %c0_351 = arith.constant 0 : index
    %845 = vector.load %arg15[%844, %c0_350, %c0_351] : memref<10x8x32xf32, #tpu.memory_space<vmem>>, vector<1x8x32xf32>
    %846 = vector.shape_cast %845 : vector<1x8x32xf32> to vector<8x32xf32>
    %847 = vector.shape_cast %843 : vector<8x32xf32> to vector<1x8x32xf32>
    tpu.vector_store %arg15[%844, %c0_350, %c0_351], %847 {strides = array<i32>} : memref<10x8x32xf32, #tpu.memory_space<vmem>>, vector<1x8x32xf32>,
    %848 = vector.extract_strided_slice %842 {offsets = [0, 32], sizes = [8, 32], strides = [1, 1]} : vector<8x64xf32> to vector<8x32xf32>
    %849 = arith.index_cast %790 : i32 to index
    %c0_352 = arith.constant 0 : index
    %c0_353 = arith.constant 0 : index
    %850 = vector.load %arg16[%849, %c0_352, %c0_353] : memref<10x8x32xf32, #tpu.memory_space<vmem>>, vector<1x8x32xf32>
    %851 = vector.shape_cast %850 : vector<1x8x32xf32> to vector<8x32xf32>
    %852 = vector.shape_cast %848 : vector<8x32xf32> to vector<1x8x32xf32>
    tpu.vector_store %arg16[%849, %c0_352, %c0_353], %852 {strides = array<i32>} : memref<10x8x32xf32, #tpu.memory_space<vmem>>, vector<1x8x32xf32>,
    %cst_354 = arith.constant 1.000000e+00 : f32
    %853 = vector.broadcast %cst_354 : f32 to vector<8x64xf32>
    %854 = arith.subf %853, %838 : vector<8x64xf32>
    %855 = arith.mulf %854, %788 : vector<8x64xf32>
    %856 = arith.addf %842, %855 : vector<8x64xf32>
    %857 = arith.mulf %841, %827 : vector<8x128xf32>
    %cst_355 = arith.constant 1.000000e+00 : f32
    %858 = vector.broadcast %cst_355 : f32 to vector<8x128xf32>
    %859 = arith.subf %858, %841 : vector<8x128xf32>
    %860 = arith.mulf %859, %789 : vector<8x128xf32>
    %861 = arith.addf %857, %860 : vector<8x128xf32>
    %c1_i32_356 = arith.constant 1 : i32
    %c9_i32_357 = arith.constant 9 : i32
    %862 = arith.subi %c9_i32_357, %c1_i32_356 : i32
    %863 = arith.index_cast %c1_i32_356 : i32 to index
    %c0_358 = arith.constant 0 : index
    %c0_359 = arith.constant 0 : index
    %864 = vector.load %arg13[%863, %c0_358, %c0_359] : memref<10x8x512xf32, #tpu.memory_space<vmem>>, vector<1x8x512xf32>
    %865 = vector.shape_cast %864 : vector<1x8x512xf32> to vector<8x512xf32>
    %866 = arith.index_cast %862 : i32 to index
    %c0_360 = arith.constant 0 : index
    %c0_361 = arith.constant 0 : index
    %867 = vector.load %arg14[%866, %c0_360, %c0_361] : memref<10x8x512xf32, #tpu.memory_space<vmem>>, vector<1x8x512xf32>
    %868 = vector.shape_cast %867 : vector<1x8x512xf32> to vector<8x512xf32>
    %869 = arith.addf %865, %868 : vector<8x512xf32>
    %870 = arith.truncf %856 : vector<8x64xf32> to vector<8x64xbf16>
    %cst_362 = arith.constant dense<0.000000e+00> : vector<8x512xf32>
    %871 = tpu.matmul %870, %769, %cst_362 {dimension_numbers = #tpu.dot_dimension_numbers<[1], [0], [0], [1], [0, 0, 1, 1], [], []>} : vector<8x64xbf16>, vector<64x512xbf16>, vector<8x512xf32> -> vector<8x512xf32>
    %872 = arith.addf %869, %871 : vector<8x512xf32>
    %873 = vector.extract_strided_slice %872 {offsets = [0, 0], sizes = [8, 128], strides = [1, 1]} : vector<8x512xf32> to vector<8x128xf32>
    %874 = arith.negf %873 : vector<8x128xf32>
    %875 = math.exp %874 : vector<8x128xf32>
    %cst_363 = arith.constant 1.000000e+00 : f32
    %876 = vector.broadcast %cst_363 : f32 to vector<8x128xf32>
    %877 = arith.addf %876, %875 : vector<8x128xf32>
    %878 = arith.divf %876, %877 : vector<8x128xf32>
    %879 = vector.extract_strided_slice %872 {offsets = [0, 128], sizes = [8, 128], strides = [1, 1]} : vector<8x512xf32> to vector<8x128xf32>
    %880 = arith.negf %879 : vector<8x128xf32>
    %881 = math.exp %880 : vector<8x128xf32>
    %cst_364 = arith.constant 1.000000e+00 : f32
    %882 = vector.broadcast %cst_364 : f32 to vector<8x128xf32>
    %883 = arith.addf %882, %881 : vector<8x128xf32>
    %884 = arith.divf %882, %883 : vector<8x128xf32>
    %885 = vector.extract_strided_slice %872 {offsets = [0, 256], sizes = [8, 128], strides = [1, 1]} : vector<8x512xf32> to vector<8x128xf32>
    %886 = math.tanh %885 : vector<8x128xf32>
    %887 = vector.extract_strided_slice %872 {offsets = [0, 384], sizes = [8, 128], strides = [1, 1]} : vector<8x512xf32> to vector<8x128xf32>
    %888 = arith.negf %887 : vector<8x128xf32>
    %889 = math.exp %888 : vector<8x128xf32>
    %cst_365 = arith.constant 1.000000e+00 : f32
    %890 = vector.broadcast %cst_365 : f32 to vector<8x128xf32>
    %891 = arith.addf %890, %889 : vector<8x128xf32>
    %892 = arith.divf %890, %891 : vector<8x128xf32>
    %893 = arith.mulf %878, %886 : vector<8x128xf32>
    %894 = arith.mulf %884, %861 : vector<8x128xf32>
    %895 = arith.addf %893, %894 : vector<8x128xf32>
    %cst_366 = arith.constant -3.000000e+00 : f32
    %cst_367 = arith.constant 3.000000e+00 : f32
    %896 = vector.broadcast %cst_366 : f32 to vector<8x128xf32>
    %897 = arith.maximumf %896, %895 : vector<8x128xf32>
    %898 = vector.broadcast %cst_367 : f32 to vector<8x128xf32>
    %899 = arith.minimumf %898, %897 : vector<8x128xf32>
    %900 = math.tanh %899 : vector<8x128xf32>
    %901 = arith.mulf %892, %900 : vector<8x128xf32>
    %902 = arith.truncf %901 : vector<8x128xf32> to vector<8x128xbf16>
    %cst_368 = arith.constant dense<0.000000e+00> : vector<8x64xf32>
    %903 = tpu.matmul %902, %771, %cst_368 {dimension_numbers = #tpu.dot_dimension_numbers<[1], [0], [0], [1], [0, 0, 1, 1], [], []>} : vector<8x128xbf16>, vector<128x64xbf16>, vector<8x64xf32> -> vector<8x64xf32>
    %cst_369 = arith.constant -3.000000e+00 : f32
    %cst_370 = arith.constant 3.000000e+00 : f32
    %904 = vector.broadcast %cst_369 : f32 to vector<8x64xf32>
    %905 = arith.maximumf %904, %903 : vector<8x64xf32>
    %906 = vector.broadcast %cst_370 : f32 to vector<8x64xf32>
    %907 = arith.minimumf %906, %905 : vector<8x64xf32>
    %908 = arith.index_cast %c1_i32_356 : i32 to index
    %c0_371 = arith.constant 0 : index
    %c0_372 = arith.constant 0 : index
    %909 = vector.load %arg3[%908, %c0_371, %c0_372] : memref<10x8x64xf32, #tpu.memory_space<vmem>>, vector<1x8x64xf32>
    %910 = vector.shape_cast %909 : vector<1x8x64xf32> to vector<8x64xf32>
    %911 = arith.index_cast %c1_i32_356 : i32 to index
    %c0_373 = arith.constant 0 : index
    %c0_374 = arith.constant 0 : index
    %912 = vector.load %arg4[%911, %c0_373, %c0_374] : memref<10x8x128xf32, #tpu.memory_space<vmem>>, vector<1x8x128xf32>
    %913 = vector.shape_cast %912 : vector<1x8x128xf32> to vector<8x128xf32>
    %914 = arith.mulf %910, %907 : vector<8x64xf32>
    %915 = vector.extract_strided_slice %914 {offsets = [0, 0], sizes = [8, 32], strides = [1, 1]} : vector<8x64xf32> to vector<8x32xf32>
    %916 = arith.index_cast %c1_i32_356 : i32 to index
    %c0_375 = arith.constant 0 : index
    %c0_376 = arith.constant 0 : index
    %917 = vector.load %arg15[%916, %c0_375, %c0_376] : memref<10x8x32xf32, #tpu.memory_space<vmem>>, vector<1x8x32xf32>
    %918 = vector.shape_cast %917 : vector<1x8x32xf32> to vector<8x32xf32>
    %919 = vector.shape_cast %915 : vector<8x32xf32> to vector<1x8x32xf32>
    tpu.vector_store %arg15[%916, %c0_375, %c0_376], %919 {strides = array<i32>} : memref<10x8x32xf32, #tpu.memory_space<vmem>>, vector<1x8x32xf32>,
    %920 = vector.extract_strided_slice %914 {offsets = [0, 32], sizes = [8, 32], strides = [1, 1]} : vector<8x64xf32> to vector<8x32xf32>
    %921 = arith.index_cast %862 : i32 to index
    %c0_377 = arith.constant 0 : index
    %c0_378 = arith.constant 0 : index
    %922 = vector.load %arg16[%921, %c0_377, %c0_378] : memref<10x8x32xf32, #tpu.memory_space<vmem>>, vector<1x8x32xf32>
    %923 = vector.shape_cast %922 : vector<1x8x32xf32> to vector<8x32xf32>
    %924 = vector.shape_cast %920 : vector<8x32xf32> to vector<1x8x32xf32>
    tpu.vector_store %arg16[%921, %c0_377, %c0_378], %924 {strides = array<i32>} : memref<10x8x32xf32, #tpu.memory_space<vmem>>, vector<1x8x32xf32>,
    %cst_379 = arith.constant 1.000000e+00 : f32
    %925 = vector.broadcast %cst_379 : f32 to vector<8x64xf32>
    %926 = arith.subf %925, %910 : vector<8x64xf32>
    %927 = arith.mulf %926, %856 : vector<8x64xf32>
    %928 = arith.addf %914, %927 : vector<8x64xf32>
    %929 = arith.mulf %913, %899 : vector<8x128xf32>
    %cst_380 = arith.constant 1.000000e+00 : f32
    %930 = vector.broadcast %cst_380 : f32 to vector<8x128xf32>
    %931 = arith.subf %930, %913 : vector<8x128xf32>
    %932 = arith.mulf %931, %861 : vector<8x128xf32>
    %933 = arith.addf %929, %932 : vector<8x128xf32>
    %c2_i32_381 = arith.constant 2 : i32
    %c9_i32_382 = arith.constant 9 : i32
    %934 = arith.subi %c9_i32_382, %c2_i32_381 : i32
    %935 = arith.index_cast %c2_i32_381 : i32 to index
    %c0_383 = arith.constant 0 : index
    %c0_384 = arith.constant 0 : index
    %936 = vector.load %arg13[%935, %c0_383, %c0_384] : memref<10x8x512xf32, #tpu.memory_space<vmem>>, vector<1x8x512xf32>
    %937 = vector.shape_cast %936 : vector<1x8x512xf32> to vector<8x512xf32>
    %938 = arith.index_cast %934 : i32 to index
    %c0_385 = arith.constant 0 : index
    %c0_386 = arith.constant 0 : index
    %939 = vector.load %arg14[%938, %c0_385, %c0_386] : memref<10x8x512xf32, #tpu.memory_space<vmem>>, vector<1x8x512xf32>
    %940 = vector.shape_cast %939 : vector<1x8x512xf32> to vector<8x512xf32>
    %941 = arith.addf %937, %940 : vector<8x512xf32>
    %942 = arith.truncf %928 : vector<8x64xf32> to vector<8x64xbf16>
    %cst_387 = arith.constant dense<0.000000e+00> : vector<8x512xf32>
    %943 = tpu.matmul %942, %769, %cst_387 {dimension_numbers = #tpu.dot_dimension_numbers<[1], [0], [0], [1], [0, 0, 1, 1], [], []>} : vector<8x64xbf16>, vector<64x512xbf16>, vector<8x512xf32> -> vector<8x512xf32>
    %944 = arith.addf %941, %943 : vector<8x512xf32>
    %945 = vector.extract_strided_slice %944 {offsets = [0, 0], sizes = [8, 128], strides = [1, 1]} : vector<8x512xf32> to vector<8x128xf32>
    %946 = arith.negf %945 : vector<8x128xf32>
    %947 = math.exp %946 : vector<8x128xf32>
    %cst_388 = arith.constant 1.000000e+00 : f32
    %948 = vector.broadcast %cst_388 : f32 to vector<8x128xf32>
    %949 = arith.addf %948, %947 : vector<8x128xf32>
    %950 = arith.divf %948, %949 : vector<8x128xf32>
    %951 = vector.extract_strided_slice %944 {offsets = [0, 128], sizes = [8, 128], strides = [1, 1]} : vector<8x512xf32> to vector<8x128xf32>
    %952 = arith.negf %951 : vector<8x128xf32>
    %953 = math.exp %952 : vector<8x128xf32>
    %cst_389 = arith.constant 1.000000e+00 : f32
    %954 = vector.broadcast %cst_389 : f32 to vector<8x128xf32>
    %955 = arith.addf %954, %953 : vector<8x128xf32>
    %956 = arith.divf %954, %955 : vector<8x128xf32>
    %957 = vector.extract_strided_slice %944 {offsets = [0, 256], sizes = [8, 128], strides = [1, 1]} : vector<8x512xf32> to vector<8x128xf32>
    %958 = math.tanh %957 : vector<8x128xf32>
    %959 = vector.extract_strided_slice %944 {offsets = [0, 384], sizes = [8, 128], strides = [1, 1]} : vector<8x512xf32> to vector<8x128xf32>
    %960 = arith.negf %959 : vector<8x128xf32>
    %961 = math.exp %960 : vector<8x128xf32>
    %cst_390 = arith.constant 1.000000e+00 : f32
    %962 = vector.broadcast %cst_390 : f32 to vector<8x128xf32>
    %963 = arith.addf %962, %961 : vector<8x128xf32>
    %964 = arith.divf %962, %963 : vector<8x128xf32>
    %965 = arith.mulf %950, %958 : vector<8x128xf32>
    %966 = arith.mulf %956, %933 : vector<8x128xf32>
    %967 = arith.addf %965, %966 : vector<8x128xf32>
    %cst_391 = arith.constant -3.000000e+00 : f32
    %cst_392 = arith.constant 3.000000e+00 : f32
    %968 = vector.broadcast %cst_391 : f32 to vector<8x128xf32>
    %969 = arith.maximumf %968, %967 : vector<8x128xf32>
    %970 = vector.broadcast %cst_392 : f32 to vector<8x128xf32>
    %971 = arith.minimumf %970, %969 : vector<8x128xf32>
    %972 = math.tanh %971 : vector<8x128xf32>
    %973 = arith.mulf %964, %972 : vector<8x128xf32>
    %974 = arith.truncf %973 : vector<8x128xf32> to vector<8x128xbf16>
    %cst_393 = arith.constant dense<0.000000e+00> : vector<8x64xf32>
    %975 = tpu.matmul %974, %771, %cst_393 {dimension_numbers = #tpu.dot_dimension_numbers<[1], [0], [0], [1], [0, 0, 1, 1], [], []>} : vector<8x128xbf16>, vector<128x64xbf16>, vector<8x64xf32> -> vector<8x64xf32>
    %cst_394 = arith.constant -3.000000e+00 : f32
    %cst_395 = arith.constant 3.000000e+00 : f32
    %976 = vector.broadcast %cst_394 : f32 to vector<8x64xf32>
    %977 = arith.maximumf %976, %975 : vector<8x64xf32>
    %978 = vector.broadcast %cst_395 : f32 to vector<8x64xf32>
    %979 = arith.minimumf %978, %977 : vector<8x64xf32>
    %980 = arith.index_cast %c2_i32_381 : i32 to index
    %c0_396 = arith.constant 0 : index
    %c0_397 = arith.constant 0 : index
    %981 = vector.load %arg3[%980, %c0_396, %c0_397] : memref<10x8x64xf32, #tpu.memory_space<vmem>>, vector<1x8x64xf32>
    %982 = vector.shape_cast %981 : vector<1x8x64xf32> to vector<8x64xf32>
    %983 = arith.index_cast %c2_i32_381 : i32 to index
    %c0_398 = arith.constant 0 : index
    %c0_399 = arith.constant 0 : index
    %984 = vector.load %arg4[%983, %c0_398, %c0_399] : memref<10x8x128xf32, #tpu.memory_space<vmem>>, vector<1x8x128xf32>
    %985 = vector.shape_cast %984 : vector<1x8x128xf32> to vector<8x128xf32>
    %986 = arith.mulf %982, %979 : vector<8x64xf32>
    %987 = vector.extract_strided_slice %986 {offsets = [0, 0], sizes = [8, 32], strides = [1, 1]} : vector<8x64xf32> to vector<8x32xf32>
    %988 = arith.index_cast %c2_i32_381 : i32 to index
    %c0_400 = arith.constant 0 : index
    %c0_401 = arith.constant 0 : index
    %989 = vector.load %arg15[%988, %c0_400, %c0_401] : memref<10x8x32xf32, #tpu.memory_space<vmem>>, vector<1x8x32xf32>
    %990 = vector.shape_cast %989 : vector<1x8x32xf32> to vector<8x32xf32>
    %991 = vector.shape_cast %987 : vector<8x32xf32> to vector<1x8x32xf32>
    tpu.vector_store %arg15[%988, %c0_400, %c0_401], %991 {strides = array<i32>} : memref<10x8x32xf32, #tpu.memory_space<vmem>>, vector<1x8x32xf32>,
    %992 = vector.extract_strided_slice %986 {offsets = [0, 32], sizes = [8, 32], strides = [1, 1]} : vector<8x64xf32> to vector<8x32xf32>
    %993 = arith.index_cast %934 : i32 to index
    %c0_402 = arith.constant 0 : index
    %c0_403 = arith.constant 0 : index
    %994 = vector.load %arg16[%993, %c0_402, %c0_403] : memref<10x8x32xf32, #tpu.memory_space<vmem>>, vector<1x8x32xf32>
    %995 = vector.shape_cast %994 : vector<1x8x32xf32> to vector<8x32xf32>
    %996 = vector.shape_cast %992 : vector<8x32xf32> to vector<1x8x32xf32>
    tpu.vector_store %arg16[%993, %c0_402, %c0_403], %996 {strides = array<i32>} : memref<10x8x32xf32, #tpu.memory_space<vmem>>, vector<1x8x32xf32>,
    %cst_404 = arith.constant 1.000000e+00 : f32
    %997 = vector.broadcast %cst_404 : f32 to vector<8x64xf32>
    %998 = arith.subf %997, %982 : vector<8x64xf32>
    %999 = arith.mulf %998, %928 : vector<8x64xf32>
    %1000 = arith.addf %986, %999 : vector<8x64xf32>
    %1001 = arith.mulf %985, %971 : vector<8x128xf32>
    %cst_405 = arith.constant 1.000000e+00 : f32
    %1002 = vector.broadcast %cst_405 : f32 to vector<8x128xf32>
    %1003 = arith.subf %1002, %985 : vector<8x128xf32>
    %1004 = arith.mulf %1003, %933 : vector<8x128xf32>
    %1005 = arith.addf %1001, %1004 : vector<8x128xf32>
    %c3_i32_406 = arith.constant 3 : i32
    %c9_i32_407 = arith.constant 9 : i32
    %1006 = arith.subi %c9_i32_407, %c3_i32_406 : i32
    %1007 = arith.index_cast %c3_i32_406 : i32 to index
    %c0_408 = arith.constant 0 : index
    %c0_409 = arith.constant 0 : index
    %1008 = vector.load %arg13[%1007, %c0_408, %c0_409] : memref<10x8x512xf32, #tpu.memory_space<vmem>>, vector<1x8x512xf32>
    %1009 = vector.shape_cast %1008 : vector<1x8x512xf32> to vector<8x512xf32>
    %1010 = arith.index_cast %1006 : i32 to index
    %c0_410 = arith.constant 0 : index
    %c0_411 = arith.constant 0 : index
    %1011 = vector.load %arg14[%1010, %c0_410, %c0_411] : memref<10x8x512xf32, #tpu.memory_space<vmem>>, vector<1x8x512xf32>
    %1012 = vector.shape_cast %1011 : vector<1x8x512xf32> to vector<8x512xf32>
    %1013 = arith.addf %1009, %1012 : vector<8x512xf32>
    %1014 = arith.truncf %1000 : vector<8x64xf32> to vector<8x64xbf16>
    %cst_412 = arith.constant dense<0.000000e+00> : vector<8x512xf32>
    %1015 = tpu.matmul %1014, %769, %cst_412 {dimension_numbers = #tpu.dot_dimension_numbers<[1], [0], [0], [1], [0, 0, 1, 1], [], []>} : vector<8x64xbf16>, vector<64x512xbf16>, vector<8x512xf32> -> vector<8x512xf32>
    %1016 = arith.addf %1013, %1015 : vector<8x512xf32>
    %1017 = vector.extract_strided_slice %1016 {offsets = [0, 0], sizes = [8, 128], strides = [1, 1]} : vector<8x512xf32> to vector<8x128xf32>
    %1018 = arith.negf %1017 : vector<8x128xf32>
    %1019 = math.exp %1018 : vector<8x128xf32>
    %cst_413 = arith.constant 1.000000e+00 : f32
    %1020 = vector.broadcast %cst_413 : f32 to vector<8x128xf32>
    %1021 = arith.addf %1020, %1019 : vector<8x128xf32>
    %1022 = arith.divf %1020, %1021 : vector<8x128xf32>
    %1023 = vector.extract_strided_slice %1016 {offsets = [0, 128], sizes = [8, 128], strides = [1, 1]} : vector<8x512xf32> to vector<8x128xf32>
    %1024 = arith.negf %1023 : vector<8x128xf32>
    %1025 = math.exp %1024 : vector<8x128xf32>
    %cst_414 = arith.constant 1.000000e+00 : f32
    %1026 = vector.broadcast %cst_414 : f32 to vector<8x128xf32>
    %1027 = arith.addf %1026, %1025 : vector<8x128xf32>
    %1028 = arith.divf %1026, %1027 : vector<8x128xf32>
    %1029 = vector.extract_strided_slice %1016 {offsets = [0, 256], sizes = [8, 128], strides = [1, 1]} : vector<8x512xf32> to vector<8x128xf32>
    %1030 = math.tanh %1029 : vector<8x128xf32>
    %1031 = vector.extract_strided_slice %1016 {offsets = [0, 384], sizes = [8, 128], strides = [1, 1]} : vector<8x512xf32> to vector<8x128xf32>
    %1032 = arith.negf %1031 : vector<8x128xf32>
    %1033 = math.exp %1032 : vector<8x128xf32>
    %cst_415 = arith.constant 1.000000e+00 : f32
    %1034 = vector.broadcast %cst_415 : f32 to vector<8x128xf32>
    %1035 = arith.addf %1034, %1033 : vector<8x128xf32>
    %1036 = arith.divf %1034, %1035 : vector<8x128xf32>
    %1037 = arith.mulf %1022, %1030 : vector<8x128xf32>
    %1038 = arith.mulf %1028, %1005 : vector<8x128xf32>
    %1039 = arith.addf %1037, %1038 : vector<8x128xf32>
    %cst_416 = arith.constant -3.000000e+00 : f32
    %cst_417 = arith.constant 3.000000e+00 : f32
    %1040 = vector.broadcast %cst_416 : f32 to vector<8x128xf32>
    %1041 = arith.maximumf %1040, %1039 : vector<8x128xf32>
    %1042 = vector.broadcast %cst_417 : f32 to vector<8x128xf32>
    %1043 = arith.minimumf %1042, %1041 : vector<8x128xf32>
    %1044 = math.tanh %1043 : vector<8x128xf32>
    %1045 = arith.mulf %1036, %1044 : vector<8x128xf32>
    %1046 = arith.truncf %1045 : vector<8x128xf32> to vector<8x128xbf16>
    %cst_418 = arith.constant dense<0.000000e+00> : vector<8x64xf32>
    %1047 = tpu.matmul %1046, %771, %cst_418 {dimension_numbers = #tpu.dot_dimension_numbers<[1], [0], [0], [1], [0, 0, 1, 1], [], []>} : vector<8x128xbf16>, vector<128x64xbf16>, vector<8x64xf32> -> vector<8x64xf32>
    %cst_419 = arith.constant -3.000000e+00 : f32
    %cst_420 = arith.constant 3.000000e+00 : f32
    %1048 = vector.broadcast %cst_419 : f32 to vector<8x64xf32>
    %1049 = arith.maximumf %1048, %1047 : vector<8x64xf32>
    %1050 = vector.broadcast %cst_420 : f32 to vector<8x64xf32>
    %1051 = arith.minimumf %1050, %1049 : vector<8x64xf32>
    %1052 = arith.index_cast %c3_i32_406 : i32 to index
    %c0_421 = arith.constant 0 : index
    %c0_422 = arith.constant 0 : index
    %1053 = vector.load %arg3[%1052, %c0_421, %c0_422] : memref<10x8x64xf32, #tpu.memory_space<vmem>>, vector<1x8x64xf32>
    %1054 = vector.shape_cast %1053 : vector<1x8x64xf32> to vector<8x64xf32>
    %1055 = arith.index_cast %c3_i32_406 : i32 to index
    %c0_423 = arith.constant 0 : index
    %c0_424 = arith.constant 0 : index
    %1056 = vector.load %arg4[%1055, %c0_423, %c0_424] : memref<10x8x128xf32, #tpu.memory_space<vmem>>, vector<1x8x128xf32>
    %1057 = vector.shape_cast %1056 : vector<1x8x128xf32> to vector<8x128xf32>
    %1058 = arith.mulf %1054, %1051 : vector<8x64xf32>
    %1059 = vector.extract_strided_slice %1058 {offsets = [0, 0], sizes = [8, 32], strides = [1, 1]} : vector<8x64xf32> to vector<8x32xf32>
    %1060 = arith.index_cast %c3_i32_406 : i32 to index
    %c0_425 = arith.constant 0 : index
    %c0_426 = arith.constant 0 : index
    %1061 = vector.load %arg15[%1060, %c0_425, %c0_426] : memref<10x8x32xf32, #tpu.memory_space<vmem>>, vector<1x8x32xf32>
    %1062 = vector.shape_cast %1061 : vector<1x8x32xf32> to vector<8x32xf32>
    %1063 = vector.shape_cast %1059 : vector<8x32xf32> to vector<1x8x32xf32>
    tpu.vector_store %arg15[%1060, %c0_425, %c0_426], %1063 {strides = array<i32>} : memref<10x8x32xf32, #tpu.memory_space<vmem>>, vector<1x8x32xf32>,
    %1064 = vector.extract_strided_slice %1058 {offsets = [0, 32], sizes = [8, 32], strides = [1, 1]} : vector<8x64xf32> to vector<8x32xf32>
    %1065 = arith.index_cast %1006 : i32 to index
    %c0_427 = arith.constant 0 : index
    %c0_428 = arith.constant 0 : index
    %1066 = vector.load %arg16[%1065, %c0_427, %c0_428] : memref<10x8x32xf32, #tpu.memory_space<vmem>>, vector<1x8x32xf32>
    %1067 = vector.shape_cast %1066 : vector<1x8x32xf32> to vector<8x32xf32>
    %1068 = vector.shape_cast %1064 : vector<8x32xf32> to vector<1x8x32xf32>
    tpu.vector_store %arg16[%1065, %c0_427, %c0_428], %1068 {strides = array<i32>} : memref<10x8x32xf32, #tpu.memory_space<vmem>>, vector<1x8x32xf32>,
    %cst_429 = arith.constant 1.000000e+00 : f32
    %1069 = vector.broadcast %cst_429 : f32 to vector<8x64xf32>
    %1070 = arith.subf %1069, %1054 : vector<8x64xf32>
    %1071 = arith.mulf %1070, %1000 : vector<8x64xf32>
    %1072 = arith.addf %1058, %1071 : vector<8x64xf32>
    %1073 = arith.mulf %1057, %1043 : vector<8x128xf32>
    %cst_430 = arith.constant 1.000000e+00 : f32
    %1074 = vector.broadcast %cst_430 : f32 to vector<8x128xf32>
    %1075 = arith.subf %1074, %1057 : vector<8x128xf32>
    %1076 = arith.mulf %1075, %1005 : vector<8x128xf32>
    %1077 = arith.addf %1073, %1076 : vector<8x128xf32>
    %c4_i32_431 = arith.constant 4 : i32
    %c9_i32_432 = arith.constant 9 : i32
    %1078 = arith.subi %c9_i32_432, %c4_i32_431 : i32
    %1079 = arith.index_cast %c4_i32_431 : i32 to index
    %c0_433 = arith.constant 0 : index
    %c0_434 = arith.constant 0 : index
    %1080 = vector.load %arg13[%1079, %c0_433, %c0_434] : memref<10x8x512xf32, #tpu.memory_space<vmem>>, vector<1x8x512xf32>
    %1081 = vector.shape_cast %1080 : vector<1x8x512xf32> to vector<8x512xf32>
    %1082 = arith.index_cast %1078 : i32 to index
    %c0_435 = arith.constant 0 : index
    %c0_436 = arith.constant 0 : index
    %1083 = vector.load %arg14[%1082, %c0_435, %c0_436] : memref<10x8x512xf32, #tpu.memory_space<vmem>>, vector<1x8x512xf32>
    %1084 = vector.shape_cast %1083 : vector<1x8x512xf32> to vector<8x512xf32>
    %1085 = arith.addf %1081, %1084 : vector<8x512xf32>
    %1086 = arith.truncf %1072 : vector<8x64xf32> to vector<8x64xbf16>
    %cst_437 = arith.constant dense<0.000000e+00> : vector<8x512xf32>
    %1087 = tpu.matmul %1086, %769, %cst_437 {dimension_numbers = #tpu.dot_dimension_numbers<[1], [0], [0], [1], [0, 0, 1, 1], [], []>} : vector<8x64xbf16>, vector<64x512xbf16>, vector<8x512xf32> -> vector<8x512xf32>
    %1088 = arith.addf %1085, %1087 : vector<8x512xf32>
    %1089 = vector.extract_strided_slice %1088 {offsets = [0, 0], sizes = [8, 128], strides = [1, 1]} : vector<8x512xf32> to vector<8x128xf32>
    %1090 = arith.negf %1089 : vector<8x128xf32>
    %1091 = math.exp %1090 : vector<8x128xf32>
    %cst_438 = arith.constant 1.000000e+00 : f32
    %1092 = vector.broadcast %cst_438 : f32 to vector<8x128xf32>
    %1093 = arith.addf %1092, %1091 : vector<8x128xf32>
    %1094 = arith.divf %1092, %1093 : vector<8x128xf32>
    %1095 = vector.extract_strided_slice %1088 {offsets = [0, 128], sizes = [8, 128], strides = [1, 1]} : vector<8x512xf32> to vector<8x128xf32>
    %1096 = arith.negf %1095 : vector<8x128xf32>
    %1097 = math.exp %1096 : vector<8x128xf32>
    %cst_439 = arith.constant 1.000000e+00 : f32
    %1098 = vector.broadcast %cst_439 : f32 to vector<8x128xf32>
    %1099 = arith.addf %1098, %1097 : vector<8x128xf32>
    %1100 = arith.divf %1098, %1099 : vector<8x128xf32>
    %1101 = vector.extract_strided_slice %1088 {offsets = [0, 256], sizes = [8, 128], strides = [1, 1]} : vector<8x512xf32> to vector<8x128xf32>
    %1102 = math.tanh %1101 : vector<8x128xf32>
    %1103 = vector.extract_strided_slice %1088 {offsets = [0, 384], sizes = [8, 128], strides = [1, 1]} : vector<8x512xf32> to vector<8x128xf32>
    %1104 = arith.negf %1103 : vector<8x128xf32>
    %1105 = math.exp %1104 : vector<8x128xf32>
    %cst_440 = arith.constant 1.000000e+00 : f32
    %1106 = vector.broadcast %cst_440 : f32 to vector<8x128xf32>
    %1107 = arith.addf %1106, %1105 : vector<8x128xf32>
    %1108 = arith.divf %1106, %1107 : vector<8x128xf32>
    %1109 = arith.mulf %1094, %1102 : vector<8x128xf32>
    %1110 = arith.mulf %1100, %1077 : vector<8x128xf32>
    %1111 = arith.addf %1109, %1110 : vector<8x128xf32>
    %cst_441 = arith.constant -3.000000e+00 : f32
    %cst_442 = arith.constant 3.000000e+00 : f32
    %1112 = vector.broadcast %cst_441 : f32 to vector<8x128xf32>
    %1113 = arith.maximumf %1112, %1111 : vector<8x128xf32>
    %1114 = vector.broadcast %cst_442 : f32 to vector<8x128xf32>
    %1115 = arith.minimumf %1114, %1113 : vector<8x128xf32>
    %1116 = math.tanh %1115 : vector<8x128xf32>
    %1117 = arith.mulf %1108, %1116 : vector<8x128xf32>
    %1118 = arith.truncf %1117 : vector<8x128xf32> to vector<8x128xbf16>
    %cst_443 = arith.constant dense<0.000000e+00> : vector<8x64xf32>
    %1119 = tpu.matmul %1118, %771, %cst_443 {dimension_numbers = #tpu.dot_dimension_numbers<[1], [0], [0], [1], [0, 0, 1, 1], [], []>} : vector<8x128xbf16>, vector<128x64xbf16>, vector<8x64xf32> -> vector<8x64xf32>
    %cst_444 = arith.constant -3.000000e+00 : f32
    %cst_445 = arith.constant 3.000000e+00 : f32
    %1120 = vector.broadcast %cst_444 : f32 to vector<8x64xf32>
    %1121 = arith.maximumf %1120, %1119 : vector<8x64xf32>
    %1122 = vector.broadcast %cst_445 : f32 to vector<8x64xf32>
    %1123 = arith.minimumf %1122, %1121 : vector<8x64xf32>
    %1124 = arith.index_cast %c4_i32_431 : i32 to index
    %c0_446 = arith.constant 0 : index
    %c0_447 = arith.constant 0 : index
    %1125 = vector.load %arg3[%1124, %c0_446, %c0_447] : memref<10x8x64xf32, #tpu.memory_space<vmem>>, vector<1x8x64xf32>
    %1126 = vector.shape_cast %1125 : vector<1x8x64xf32> to vector<8x64xf32>
    %1127 = arith.index_cast %c4_i32_431 : i32 to index
    %c0_448 = arith.constant 0 : index
    %c0_449 = arith.constant 0 : index
    %1128 = vector.load %arg4[%1127, %c0_448, %c0_449] : memref<10x8x128xf32, #tpu.memory_space<vmem>>, vector<1x8x128xf32>
    %1129 = vector.shape_cast %1128 : vector<1x8x128xf32> to vector<8x128xf32>
    %1130 = arith.mulf %1126, %1123 : vector<8x64xf32>
    %1131 = vector.extract_strided_slice %1130 {offsets = [0, 0], sizes = [8, 32], strides = [1, 1]} : vector<8x64xf32> to vector<8x32xf32>
    %1132 = arith.index_cast %c4_i32_431 : i32 to index
    %c0_450 = arith.constant 0 : index
    %c0_451 = arith.constant 0 : index
    %1133 = vector.load %arg15[%1132, %c0_450, %c0_451] : memref<10x8x32xf32, #tpu.memory_space<vmem>>, vector<1x8x32xf32>
    %1134 = vector.shape_cast %1133 : vector<1x8x32xf32> to vector<8x32xf32>
    %1135 = vector.shape_cast %1131 : vector<8x32xf32> to vector<1x8x32xf32>
    tpu.vector_store %arg15[%1132, %c0_450, %c0_451], %1135 {strides = array<i32>} : memref<10x8x32xf32, #tpu.memory_space<vmem>>, vector<1x8x32xf32>,
    %1136 = vector.extract_strided_slice %1130 {offsets = [0, 32], sizes = [8, 32], strides = [1, 1]} : vector<8x64xf32> to vector<8x32xf32>
    %1137 = arith.index_cast %1078 : i32 to index
    %c0_452 = arith.constant 0 : index
    %c0_453 = arith.constant 0 : index
    %1138 = vector.load %arg16[%1137, %c0_452, %c0_453] : memref<10x8x32xf32, #tpu.memory_space<vmem>>, vector<1x8x32xf32>
    %1139 = vector.shape_cast %1138 : vector<1x8x32xf32> to vector<8x32xf32>
    %1140 = vector.shape_cast %1136 : vector<8x32xf32> to vector<1x8x32xf32>
    tpu.vector_store %arg16[%1137, %c0_452, %c0_453], %1140 {strides = array<i32>} : memref<10x8x32xf32, #tpu.memory_space<vmem>>, vector<1x8x32xf32>,
    %cst_454 = arith.constant 1.000000e+00 : f32
    %1141 = vector.broadcast %cst_454 : f32 to vector<8x64xf32>
    %1142 = arith.subf %1141, %1126 : vector<8x64xf32>
    %1143 = arith.mulf %1142, %1072 : vector<8x64xf32>
    %1144 = arith.addf %1130, %1143 : vector<8x64xf32>
    %1145 = arith.mulf %1129, %1115 : vector<8x128xf32>
    %cst_455 = arith.constant 1.000000e+00 : f32
    %1146 = vector.broadcast %cst_455 : f32 to vector<8x128xf32>
    %1147 = arith.subf %1146, %1129 : vector<8x128xf32>
    %1148 = arith.mulf %1147, %1077 : vector<8x128xf32>
    %1149 = arith.addf %1145, %1148 : vector<8x128xf32>
    %c5_i32_456 = arith.constant 5 : i32
    %c9_i32_457 = arith.constant 9 : i32
    %1150 = arith.subi %c9_i32_457, %c5_i32_456 : i32
    %1151 = arith.index_cast %c5_i32_456 : i32 to index
    %c0_458 = arith.constant 0 : index
    %c0_459 = arith.constant 0 : index
    %1152 = vector.load %arg13[%1151, %c0_458, %c0_459] : memref<10x8x512xf32, #tpu.memory_space<vmem>>, vector<1x8x512xf32>
    %1153 = vector.shape_cast %1152 : vector<1x8x512xf32> to vector<8x512xf32>
    %1154 = arith.index_cast %1150 : i32 to index
    %c0_460 = arith.constant 0 : index
    %c0_461 = arith.constant 0 : index
    %1155 = vector.load %arg14[%1154, %c0_460, %c0_461] : memref<10x8x512xf32, #tpu.memory_space<vmem>>, vector<1x8x512xf32>
    %1156 = vector.shape_cast %1155 : vector<1x8x512xf32> to vector<8x512xf32>
    %1157 = arith.addf %1153, %1156 : vector<8x512xf32>
    %1158 = arith.truncf %1144 : vector<8x64xf32> to vector<8x64xbf16>
    %cst_462 = arith.constant dense<0.000000e+00> : vector<8x512xf32>
    %1159 = tpu.matmul %1158, %769, %cst_462 {dimension_numbers = #tpu.dot_dimension_numbers<[1], [0], [0], [1], [0, 0, 1, 1], [], []>} : vector<8x64xbf16>, vector<64x512xbf16>, vector<8x512xf32> -> vector<8x512xf32>
    %1160 = arith.addf %1157, %1159 : vector<8x512xf32>
    %1161 = vector.extract_strided_slice %1160 {offsets = [0, 0], sizes = [8, 128], strides = [1, 1]} : vector<8x512xf32> to vector<8x128xf32>
    %1162 = arith.negf %1161 : vector<8x128xf32>
    %1163 = math.exp %1162 : vector<8x128xf32>
    %cst_463 = arith.constant 1.000000e+00 : f32
    %1164 = vector.broadcast %cst_463 : f32 to vector<8x128xf32>
    %1165 = arith.addf %1164, %1163 : vector<8x128xf32>
    %1166 = arith.divf %1164, %1165 : vector<8x128xf32>
    %1167 = vector.extract_strided_slice %1160 {offsets = [0, 128], sizes = [8, 128], strides = [1, 1]} : vector<8x512xf32> to vector<8x128xf32>
    %1168 = arith.negf %1167 : vector<8x128xf32>
    %1169 = math.exp %1168 : vector<8x128xf32>
    %cst_464 = arith.constant 1.000000e+00 : f32
    %1170 = vector.broadcast %cst_464 : f32 to vector<8x128xf32>
    %1171 = arith.addf %1170, %1169 : vector<8x128xf32>
    %1172 = arith.divf %1170, %1171 : vector<8x128xf32>
    %1173 = vector.extract_strided_slice %1160 {offsets = [0, 256], sizes = [8, 128], strides = [1, 1]} : vector<8x512xf32> to vector<8x128xf32>
    %1174 = math.tanh %1173 : vector<8x128xf32>
    %1175 = vector.extract_strided_slice %1160 {offsets = [0, 384], sizes = [8, 128], strides = [1, 1]} : vector<8x512xf32> to vector<8x128xf32>
    %1176 = arith.negf %1175 : vector<8x128xf32>
    %1177 = math.exp %1176 : vector<8x128xf32>
    %cst_465 = arith.constant 1.000000e+00 : f32
    %1178 = vector.broadcast %cst_465 : f32 to vector<8x128xf32>
    %1179 = arith.addf %1178, %1177 : vector<8x128xf32>
    %1180 = arith.divf %1178, %1179 : vector<8x128xf32>
    %1181 = arith.mulf %1166, %1174 : vector<8x128xf32>
    %1182 = arith.mulf %1172, %1149 : vector<8x128xf32>
    %1183 = arith.addf %1181, %1182 : vector<8x128xf32>
    %cst_466 = arith.constant -3.000000e+00 : f32
    %cst_467 = arith.constant 3.000000e+00 : f32
    %1184 = vector.broadcast %cst_466 : f32 to vector<8x128xf32>
    %1185 = arith.maximumf %1184, %1183 : vector<8x128xf32>
    %1186 = vector.broadcast %cst_467 : f32 to vector<8x128xf32>
    %1187 = arith.minimumf %1186, %1185 : vector<8x128xf32>
    %1188 = math.tanh %1187 : vector<8x128xf32>
    %1189 = arith.mulf %1180, %1188 : vector<8x128xf32>
    %1190 = arith.truncf %1189 : vector<8x128xf32> to vector<8x128xbf16>
    %cst_468 = arith.constant dense<0.000000e+00> : vector<8x64xf32>
    %1191 = tpu.matmul %1190, %771, %cst_468 {dimension_numbers = #tpu.dot_dimension_numbers<[1], [0], [0], [1], [0, 0, 1, 1], [], []>} : vector<8x128xbf16>, vector<128x64xbf16>, vector<8x64xf32> -> vector<8x64xf32>
    %cst_469 = arith.constant -3.000000e+00 : f32
    %cst_470 = arith.constant 3.000000e+00 : f32
    %1192 = vector.broadcast %cst_469 : f32 to vector<8x64xf32>
    %1193 = arith.maximumf %1192, %1191 : vector<8x64xf32>
    %1194 = vector.broadcast %cst_470 : f32 to vector<8x64xf32>
    %1195 = arith.minimumf %1194, %1193 : vector<8x64xf32>
    %1196 = arith.index_cast %c5_i32_456 : i32 to index
    %c0_471 = arith.constant 0 : index
    %c0_472 = arith.constant 0 : index
    %1197 = vector.load %arg3[%1196, %c0_471, %c0_472] : memref<10x8x64xf32, #tpu.memory_space<vmem>>, vector<1x8x64xf32>
    %1198 = vector.shape_cast %1197 : vector<1x8x64xf32> to vector<8x64xf32>
    %1199 = arith.index_cast %c5_i32_456 : i32 to index
    %c0_473 = arith.constant 0 : index
    %c0_474 = arith.constant 0 : index
    %1200 = vector.load %arg4[%1199, %c0_473, %c0_474] : memref<10x8x128xf32, #tpu.memory_space<vmem>>, vector<1x8x128xf32>
    %1201 = vector.shape_cast %1200 : vector<1x8x128xf32> to vector<8x128xf32>
    %1202 = arith.mulf %1198, %1195 : vector<8x64xf32>
    %1203 = vector.extract_strided_slice %1202 {offsets = [0, 0], sizes = [8, 32], strides = [1, 1]} : vector<8x64xf32> to vector<8x32xf32>
    %1204 = arith.index_cast %c5_i32_456 : i32 to index
    %c0_475 = arith.constant 0 : index
    %c0_476 = arith.constant 0 : index
    %1205 = vector.load %arg15[%1204, %c0_475, %c0_476] : memref<10x8x32xf32, #tpu.memory_space<vmem>>, vector<1x8x32xf32>
    %1206 = vector.shape_cast %1205 : vector<1x8x32xf32> to vector<8x32xf32>
    %1207 = vector.shape_cast %1203 : vector<8x32xf32> to vector<1x8x32xf32>
    tpu.vector_store %arg15[%1204, %c0_475, %c0_476], %1207 {strides = array<i32>} : memref<10x8x32xf32, #tpu.memory_space<vmem>>, vector<1x8x32xf32>,
    %1208 = vector.extract_strided_slice %1202 {offsets = [0, 32], sizes = [8, 32], strides = [1, 1]} : vector<8x64xf32> to vector<8x32xf32>
    %1209 = arith.index_cast %1150 : i32 to index
    %c0_477 = arith.constant 0 : index
    %c0_478 = arith.constant 0 : index
    %1210 = vector.load %arg16[%1209, %c0_477, %c0_478] : memref<10x8x32xf32, #tpu.memory_space<vmem>>, vector<1x8x32xf32>
    %1211 = vector.shape_cast %1210 : vector<1x8x32xf32> to vector<8x32xf32>
    %1212 = vector.shape_cast %1208 : vector<8x32xf32> to vector<1x8x32xf32>
    tpu.vector_store %arg16[%1209, %c0_477, %c0_478], %1212 {strides = array<i32>} : memref<10x8x32xf32, #tpu.memory_space<vmem>>, vector<1x8x32xf32>,
    %cst_479 = arith.constant 1.000000e+00 : f32
    %1213 = vector.broadcast %cst_479 : f32 to vector<8x64xf32>
    %1214 = arith.subf %1213, %1198 : vector<8x64xf32>
    %1215 = arith.mulf %1214, %1144 : vector<8x64xf32>
    %1216 = arith.addf %1202, %1215 : vector<8x64xf32>
    %1217 = arith.mulf %1201, %1187 : vector<8x128xf32>
    %cst_480 = arith.constant 1.000000e+00 : f32
    %1218 = vector.broadcast %cst_480 : f32 to vector<8x128xf32>
    %1219 = arith.subf %1218, %1201 : vector<8x128xf32>
    %1220 = arith.mulf %1219, %1149 : vector<8x128xf32>
    %1221 = arith.addf %1217, %1220 : vector<8x128xf32>
    %c6_i32_481 = arith.constant 6 : i32
    %c9_i32_482 = arith.constant 9 : i32
    %1222 = arith.subi %c9_i32_482, %c6_i32_481 : i32
    %1223 = arith.index_cast %c6_i32_481 : i32 to index
    %c0_483 = arith.constant 0 : index
    %c0_484 = arith.constant 0 : index
    %1224 = vector.load %arg13[%1223, %c0_483, %c0_484] : memref<10x8x512xf32, #tpu.memory_space<vmem>>, vector<1x8x512xf32>
    %1225 = vector.shape_cast %1224 : vector<1x8x512xf32> to vector<8x512xf32>
    %1226 = arith.index_cast %1222 : i32 to index
    %c0_485 = arith.constant 0 : index
    %c0_486 = arith.constant 0 : index
    %1227 = vector.load %arg14[%1226, %c0_485, %c0_486] : memref<10x8x512xf32, #tpu.memory_space<vmem>>, vector<1x8x512xf32>
    %1228 = vector.shape_cast %1227 : vector<1x8x512xf32> to vector<8x512xf32>
    %1229 = arith.addf %1225, %1228 : vector<8x512xf32>
    %1230 = arith.truncf %1216 : vector<8x64xf32> to vector<8x64xbf16>
    %cst_487 = arith.constant dense<0.000000e+00> : vector<8x512xf32>
    %1231 = tpu.matmul %1230, %769, %cst_487 {dimension_numbers = #tpu.dot_dimension_numbers<[1], [0], [0], [1], [0, 0, 1, 1], [], []>} : vector<8x64xbf16>, vector<64x512xbf16>, vector<8x512xf32> -> vector<8x512xf32>
    %1232 = arith.addf %1229, %1231 : vector<8x512xf32>
    %1233 = vector.extract_strided_slice %1232 {offsets = [0, 0], sizes = [8, 128], strides = [1, 1]} : vector<8x512xf32> to vector<8x128xf32>
    %1234 = arith.negf %1233 : vector<8x128xf32>
    %1235 = math.exp %1234 : vector<8x128xf32>
    %cst_488 = arith.constant 1.000000e+00 : f32
    %1236 = vector.broadcast %cst_488 : f32 to vector<8x128xf32>
    %1237 = arith.addf %1236, %1235 : vector<8x128xf32>
    %1238 = arith.divf %1236, %1237 : vector<8x128xf32>
    %1239 = vector.extract_strided_slice %1232 {offsets = [0, 128], sizes = [8, 128], strides = [1, 1]} : vector<8x512xf32> to vector<8x128xf32>
    %1240 = arith.negf %1239 : vector<8x128xf32>
    %1241 = math.exp %1240 : vector<8x128xf32>
    %cst_489 = arith.constant 1.000000e+00 : f32
    %1242 = vector.broadcast %cst_489 : f32 to vector<8x128xf32>
    %1243 = arith.addf %1242, %1241 : vector<8x128xf32>
    %1244 = arith.divf %1242, %1243 : vector<8x128xf32>
    %1245 = vector.extract_strided_slice %1232 {offsets = [0, 256], sizes = [8, 128], strides = [1, 1]} : vector<8x512xf32> to vector<8x128xf32>
    %1246 = math.tanh %1245 : vector<8x128xf32>
    %1247 = vector.extract_strided_slice %1232 {offsets = [0, 384], sizes = [8, 128], strides = [1, 1]} : vector<8x512xf32> to vector<8x128xf32>
    %1248 = arith.negf %1247 : vector<8x128xf32>
    %1249 = math.exp %1248 : vector<8x128xf32>
    %cst_490 = arith.constant 1.000000e+00 : f32
    %1250 = vector.broadcast %cst_490 : f32 to vector<8x128xf32>
    %1251 = arith.addf %1250, %1249 : vector<8x128xf32>
    %1252 = arith.divf %1250, %1251 : vector<8x128xf32>
    %1253 = arith.mulf %1238, %1246 : vector<8x128xf32>
    %1254 = arith.mulf %1244, %1221 : vector<8x128xf32>
    %1255 = arith.addf %1253, %1254 : vector<8x128xf32>
    %cst_491 = arith.constant -3.000000e+00 : f32
    %cst_492 = arith.constant 3.000000e+00 : f32
    %1256 = vector.broadcast %cst_491 : f32 to vector<8x128xf32>
    %1257 = arith.maximumf %1256, %1255 : vector<8x128xf32>
    %1258 = vector.broadcast %cst_492 : f32 to vector<8x128xf32>
    %1259 = arith.minimumf %1258, %1257 : vector<8x128xf32>
    %1260 = math.tanh %1259 : vector<8x128xf32>
    %1261 = arith.mulf %1252, %1260 : vector<8x128xf32>
    %1262 = arith.truncf %1261 : vector<8x128xf32> to vector<8x128xbf16>
    %cst_493 = arith.constant dense<0.000000e+00> : vector<8x64xf32>
    %1263 = tpu.matmul %1262, %771, %cst_493 {dimension_numbers = #tpu.dot_dimension_numbers<[1], [0], [0], [1], [0, 0, 1, 1], [], []>} : vector<8x128xbf16>, vector<128x64xbf16>, vector<8x64xf32> -> vector<8x64xf32>
    %cst_494 = arith.constant -3.000000e+00 : f32
    %cst_495 = arith.constant 3.000000e+00 : f32
    %1264 = vector.broadcast %cst_494 : f32 to vector<8x64xf32>
    %1265 = arith.maximumf %1264, %1263 : vector<8x64xf32>
    %1266 = vector.broadcast %cst_495 : f32 to vector<8x64xf32>
    %1267 = arith.minimumf %1266, %1265 : vector<8x64xf32>
    %1268 = arith.index_cast %c6_i32_481 : i32 to index
    %c0_496 = arith.constant 0 : index
    %c0_497 = arith.constant 0 : index
    %1269 = vector.load %arg3[%1268, %c0_496, %c0_497] : memref<10x8x64xf32, #tpu.memory_space<vmem>>, vector<1x8x64xf32>
    %1270 = vector.shape_cast %1269 : vector<1x8x64xf32> to vector<8x64xf32>
    %1271 = arith.index_cast %c6_i32_481 : i32 to index
    %c0_498 = arith.constant 0 : index
    %c0_499 = arith.constant 0 : index
    %1272 = vector.load %arg4[%1271, %c0_498, %c0_499] : memref<10x8x128xf32, #tpu.memory_space<vmem>>, vector<1x8x128xf32>
    %1273 = vector.shape_cast %1272 : vector<1x8x128xf32> to vector<8x128xf32>
    %1274 = arith.mulf %1270, %1267 : vector<8x64xf32>
    %1275 = vector.extract_strided_slice %1274 {offsets = [0, 0], sizes = [8, 32], strides = [1, 1]} : vector<8x64xf32> to vector<8x32xf32>
    %1276 = arith.index_cast %c6_i32_481 : i32 to index
    %c0_500 = arith.constant 0 : index
    %c0_501 = arith.constant 0 : index
    %1277 = vector.load %arg15[%1276, %c0_500, %c0_501] : memref<10x8x32xf32, #tpu.memory_space<vmem>>, vector<1x8x32xf32>
    %1278 = vector.shape_cast %1277 : vector<1x8x32xf32> to vector<8x32xf32>
    %1279 = vector.shape_cast %1275 : vector<8x32xf32> to vector<1x8x32xf32>
    tpu.vector_store %arg15[%1276, %c0_500, %c0_501], %1279 {strides = array<i32>} : memref<10x8x32xf32, #tpu.memory_space<vmem>>, vector<1x8x32xf32>,
    %1280 = vector.extract_strided_slice %1274 {offsets = [0, 32], sizes = [8, 32], strides = [1, 1]} : vector<8x64xf32> to vector<8x32xf32>
    %1281 = arith.index_cast %1222 : i32 to index
    %c0_502 = arith.constant 0 : index
    %c0_503 = arith.constant 0 : index
    %1282 = vector.load %arg16[%1281, %c0_502, %c0_503] : memref<10x8x32xf32, #tpu.memory_space<vmem>>, vector<1x8x32xf32>
    %1283 = vector.shape_cast %1282 : vector<1x8x32xf32> to vector<8x32xf32>
    %1284 = vector.shape_cast %1280 : vector<8x32xf32> to vector<1x8x32xf32>
    tpu.vector_store %arg16[%1281, %c0_502, %c0_503], %1284 {strides = array<i32>} : memref<10x8x32xf32, #tpu.memory_space<vmem>>, vector<1x8x32xf32>,
    %cst_504 = arith.constant 1.000000e+00 : f32
    %1285 = vector.broadcast %cst_504 : f32 to vector<8x64xf32>
    %1286 = arith.subf %1285, %1270 : vector<8x64xf32>
    %1287 = arith.mulf %1286, %1216 : vector<8x64xf32>
    %1288 = arith.addf %1274, %1287 : vector<8x64xf32>
    %1289 = arith.mulf %1273, %1259 : vector<8x128xf32>
    %cst_505 = arith.constant 1.000000e+00 : f32
    %1290 = vector.broadcast %cst_505 : f32 to vector<8x128xf32>
    %1291 = arith.subf %1290, %1273 : vector<8x128xf32>
    %1292 = arith.mulf %1291, %1221 : vector<8x128xf32>
    %1293 = arith.addf %1289, %1292 : vector<8x128xf32>
    %c7_i32_506 = arith.constant 7 : i32
    %c9_i32_507 = arith.constant 9 : i32
    %1294 = arith.subi %c9_i32_507, %c7_i32_506 : i32
    %1295 = arith.index_cast %c7_i32_506 : i32 to index
    %c0_508 = arith.constant 0 : index
    %c0_509 = arith.constant 0 : index
    %1296 = vector.load %arg13[%1295, %c0_508, %c0_509] : memref<10x8x512xf32, #tpu.memory_space<vmem>>, vector<1x8x512xf32>
    %1297 = vector.shape_cast %1296 : vector<1x8x512xf32> to vector<8x512xf32>
    %1298 = arith.index_cast %1294 : i32 to index
    %c0_510 = arith.constant 0 : index
    %c0_511 = arith.constant 0 : index
    %1299 = vector.load %arg14[%1298, %c0_510, %c0_511] : memref<10x8x512xf32, #tpu.memory_space<vmem>>, vector<1x8x512xf32>
    %1300 = vector.shape_cast %1299 : vector<1x8x512xf32> to vector<8x512xf32>
    %1301 = arith.addf %1297, %1300 : vector<8x512xf32>
    %1302 = arith.truncf %1288 : vector<8x64xf32> to vector<8x64xbf16>
    %cst_512 = arith.constant dense<0.000000e+00> : vector<8x512xf32>
    %1303 = tpu.matmul %1302, %769, %cst_512 {dimension_numbers = #tpu.dot_dimension_numbers<[1], [0], [0], [1], [0, 0, 1, 1], [], []>} : vector<8x64xbf16>, vector<64x512xbf16>, vector<8x512xf32> -> vector<8x512xf32>
    %1304 = arith.addf %1301, %1303 : vector<8x512xf32>
    %1305 = vector.extract_strided_slice %1304 {offsets = [0, 0], sizes = [8, 128], strides = [1, 1]} : vector<8x512xf32> to vector<8x128xf32>
    %1306 = arith.negf %1305 : vector<8x128xf32>
    %1307 = math.exp %1306 : vector<8x128xf32>
    %cst_513 = arith.constant 1.000000e+00 : f32
    %1308 = vector.broadcast %cst_513 : f32 to vector<8x128xf32>
    %1309 = arith.addf %1308, %1307 : vector<8x128xf32>
    %1310 = arith.divf %1308, %1309 : vector<8x128xf32>
    %1311 = vector.extract_strided_slice %1304 {offsets = [0, 128], sizes = [8, 128], strides = [1, 1]} : vector<8x512xf32> to vector<8x128xf32>
    %1312 = arith.negf %1311 : vector<8x128xf32>
    %1313 = math.exp %1312 : vector<8x128xf32>
    %cst_514 = arith.constant 1.000000e+00 : f32
    %1314 = vector.broadcast %cst_514 : f32 to vector<8x128xf32>
    %1315 = arith.addf %1314, %1313 : vector<8x128xf32>
    %1316 = arith.divf %1314, %1315 : vector<8x128xf32>
    %1317 = vector.extract_strided_slice %1304 {offsets = [0, 256], sizes = [8, 128], strides = [1, 1]} : vector<8x512xf32> to vector<8x128xf32>
    %1318 = math.tanh %1317 : vector<8x128xf32>
    %1319 = vector.extract_strided_slice %1304 {offsets = [0, 384], sizes = [8, 128], strides = [1, 1]} : vector<8x512xf32> to vector<8x128xf32>
    %1320 = arith.negf %1319 : vector<8x128xf32>
    %1321 = math.exp %1320 : vector<8x128xf32>
    %cst_515 = arith.constant 1.000000e+00 : f32
    %1322 = vector.broadcast %cst_515 : f32 to vector<8x128xf32>
    %1323 = arith.addf %1322, %1321 : vector<8x128xf32>
    %1324 = arith.divf %1322, %1323 : vector<8x128xf32>
    %1325 = arith.mulf %1310, %1318 : vector<8x128xf32>
    %1326 = arith.mulf %1316, %1293 : vector<8x128xf32>
    %1327 = arith.addf %1325, %1326 : vector<8x128xf32>
    %cst_516 = arith.constant -3.000000e+00 : f32
    %cst_517 = arith.constant 3.000000e+00 : f32
    %1328 = vector.broadcast %cst_516 : f32 to vector<8x128xf32>
    %1329 = arith.maximumf %1328, %1327 : vector<8x128xf32>
    %1330 = vector.broadcast %cst_517 : f32 to vector<8x128xf32>
    %1331 = arith.minimumf %1330, %1329 : vector<8x128xf32>
    %1332 = math.tanh %1331 : vector<8x128xf32>
    %1333 = arith.mulf %1324, %1332 : vector<8x128xf32>
    %1334 = arith.truncf %1333 : vector<8x128xf32> to vector<8x128xbf16>
    %cst_518 = arith.constant dense<0.000000e+00> : vector<8x64xf32>
    %1335 = tpu.matmul %1334, %771, %cst_518 {dimension_numbers = #tpu.dot_dimension_numbers<[1], [0], [0], [1], [0, 0, 1, 1], [], []>} : vector<8x128xbf16>, vector<128x64xbf16>, vector<8x64xf32> -> vector<8x64xf32>
    %cst_519 = arith.constant -3.000000e+00 : f32
    %cst_520 = arith.constant 3.000000e+00 : f32
    %1336 = vector.broadcast %cst_519 : f32 to vector<8x64xf32>
    %1337 = arith.maximumf %1336, %1335 : vector<8x64xf32>
    %1338 = vector.broadcast %cst_520 : f32 to vector<8x64xf32>
    %1339 = arith.minimumf %1338, %1337 : vector<8x64xf32>
    %1340 = arith.index_cast %c7_i32_506 : i32 to index
    %c0_521 = arith.constant 0 : index
    %c0_522 = arith.constant 0 : index
    %1341 = vector.load %arg3[%1340, %c0_521, %c0_522] : memref<10x8x64xf32, #tpu.memory_space<vmem>>, vector<1x8x64xf32>
    %1342 = vector.shape_cast %1341 : vector<1x8x64xf32> to vector<8x64xf32>
    %1343 = arith.index_cast %c7_i32_506 : i32 to index
    %c0_523 = arith.constant 0 : index
    %c0_524 = arith.constant 0 : index
    %1344 = vector.load %arg4[%1343, %c0_523, %c0_524] : memref<10x8x128xf32, #tpu.memory_space<vmem>>, vector<1x8x128xf32>
    %1345 = vector.shape_cast %1344 : vector<1x8x128xf32> to vector<8x128xf32>
    %1346 = arith.mulf %1342, %1339 : vector<8x64xf32>
    %1347 = vector.extract_strided_slice %1346 {offsets = [0, 0], sizes = [8, 32], strides = [1, 1]} : vector<8x64xf32> to vector<8x32xf32>
    %1348 = arith.index_cast %c7_i32_506 : i32 to index
    %c0_525 = arith.constant 0 : index
    %c0_526 = arith.constant 0 : index
    %1349 = vector.load %arg15[%1348, %c0_525, %c0_526] : memref<10x8x32xf32, #tpu.memory_space<vmem>>, vector<1x8x32xf32>
    %1350 = vector.shape_cast %1349 : vector<1x8x32xf32> to vector<8x32xf32>
    %1351 = vector.shape_cast %1347 : vector<8x32xf32> to vector<1x8x32xf32>
    tpu.vector_store %arg15[%1348, %c0_525, %c0_526], %1351 {strides = array<i32>} : memref<10x8x32xf32, #tpu.memory_space<vmem>>, vector<1x8x32xf32>,
    %1352 = vector.extract_strided_slice %1346 {offsets = [0, 32], sizes = [8, 32], strides = [1, 1]} : vector<8x64xf32> to vector<8x32xf32>
    %1353 = arith.index_cast %1294 : i32 to index
    %c0_527 = arith.constant 0 : index
    %c0_528 = arith.constant 0 : index
    %1354 = vector.load %arg16[%1353, %c0_527, %c0_528] : memref<10x8x32xf32, #tpu.memory_space<vmem>>, vector<1x8x32xf32>
    %1355 = vector.shape_cast %1354 : vector<1x8x32xf32> to vector<8x32xf32>
    %1356 = vector.shape_cast %1352 : vector<8x32xf32> to vector<1x8x32xf32>
    tpu.vector_store %arg16[%1353, %c0_527, %c0_528], %1356 {strides = array<i32>} : memref<10x8x32xf32, #tpu.memory_space<vmem>>, vector<1x8x32xf32>,
    %cst_529 = arith.constant 1.000000e+00 : f32
    %1357 = vector.broadcast %cst_529 : f32 to vector<8x64xf32>
    %1358 = arith.subf %1357, %1342 : vector<8x64xf32>
    %1359 = arith.mulf %1358, %1288 : vector<8x64xf32>
    %1360 = arith.addf %1346, %1359 : vector<8x64xf32>
    %1361 = arith.mulf %1345, %1331 : vector<8x128xf32>
    %cst_530 = arith.constant 1.000000e+00 : f32
    %1362 = vector.broadcast %cst_530 : f32 to vector<8x128xf32>
    %1363 = arith.subf %1362, %1345 : vector<8x128xf32>
    %1364 = arith.mulf %1363, %1293 : vector<8x128xf32>
    %1365 = arith.addf %1361, %1364 : vector<8x128xf32>
    %c8_i32_531 = arith.constant 8 : i32
    %c9_i32_532 = arith.constant 9 : i32
    %1366 = arith.subi %c9_i32_532, %c8_i32_531 : i32
    %1367 = arith.index_cast %c8_i32_531 : i32 to index
    %c0_533 = arith.constant 0 : index
    %c0_534 = arith.constant 0 : index
    %1368 = vector.load %arg13[%1367, %c0_533, %c0_534] : memref<10x8x512xf32, #tpu.memory_space<vmem>>, vector<1x8x512xf32>
    %1369 = vector.shape_cast %1368 : vector<1x8x512xf32> to vector<8x512xf32>
    %1370 = arith.index_cast %1366 : i32 to index
    %c0_535 = arith.constant 0 : index
    %c0_536 = arith.constant 0 : index
    %1371 = vector.load %arg14[%1370, %c0_535, %c0_536] : memref<10x8x512xf32, #tpu.memory_space<vmem>>, vector<1x8x512xf32>
    %1372 = vector.shape_cast %1371 : vector<1x8x512xf32> to vector<8x512xf32>
    %1373 = arith.addf %1369, %1372 : vector<8x512xf32>
    %1374 = arith.truncf %1360 : vector<8x64xf32> to vector<8x64xbf16>
    %cst_537 = arith.constant dense<0.000000e+00> : vector<8x512xf32>
    %1375 = tpu.matmul %1374, %769, %cst_537 {dimension_numbers = #tpu.dot_dimension_numbers<[1], [0], [0], [1], [0, 0, 1, 1], [], []>} : vector<8x64xbf16>, vector<64x512xbf16>, vector<8x512xf32> -> vector<8x512xf32>
    %1376 = arith.addf %1373, %1375 : vector<8x512xf32>
    %1377 = vector.extract_strided_slice %1376 {offsets = [0, 0], sizes = [8, 128], strides = [1, 1]} : vector<8x512xf32> to vector<8x128xf32>
    %1378 = arith.negf %1377 : vector<8x128xf32>
    %1379 = math.exp %1378 : vector<8x128xf32>
    %cst_538 = arith.constant 1.000000e+00 : f32
    %1380 = vector.broadcast %cst_538 : f32 to vector<8x128xf32>
    %1381 = arith.addf %1380, %1379 : vector<8x128xf32>
    %1382 = arith.divf %1380, %1381 : vector<8x128xf32>
    %1383 = vector.extract_strided_slice %1376 {offsets = [0, 128], sizes = [8, 128], strides = [1, 1]} : vector<8x512xf32> to vector<8x128xf32>
    %1384 = arith.negf %1383 : vector<8x128xf32>
    %1385 = math.exp %1384 : vector<8x128xf32>
    %cst_539 = arith.constant 1.000000e+00 : f32
    %1386 = vector.broadcast %cst_539 : f32 to vector<8x128xf32>
    %1387 = arith.addf %1386, %1385 : vector<8x128xf32>
    %1388 = arith.divf %1386, %1387 : vector<8x128xf32>
    %1389 = vector.extract_strided_slice %1376 {offsets = [0, 256], sizes = [8, 128], strides = [1, 1]} : vector<8x512xf32> to vector<8x128xf32>
    %1390 = math.tanh %1389 : vector<8x128xf32>
    %1391 = vector.extract_strided_slice %1376 {offsets = [0, 384], sizes = [8, 128], strides = [1, 1]} : vector<8x512xf32> to vector<8x128xf32>
    %1392 = arith.negf %1391 : vector<8x128xf32>
    %1393 = math.exp %1392 : vector<8x128xf32>
    %cst_540 = arith.constant 1.000000e+00 : f32
    %1394 = vector.broadcast %cst_540 : f32 to vector<8x128xf32>
    %1395 = arith.addf %1394, %1393 : vector<8x128xf32>
    %1396 = arith.divf %1394, %1395 : vector<8x128xf32>
    %1397 = arith.mulf %1382, %1390 : vector<8x128xf32>
    %1398 = arith.mulf %1388, %1365 : vector<8x128xf32>
    %1399 = arith.addf %1397, %1398 : vector<8x128xf32>
    %cst_541 = arith.constant -3.000000e+00 : f32
    %cst_542 = arith.constant 3.000000e+00 : f32
    %1400 = vector.broadcast %cst_541 : f32 to vector<8x128xf32>
    %1401 = arith.maximumf %1400, %1399 : vector<8x128xf32>
    %1402 = vector.broadcast %cst_542 : f32 to vector<8x128xf32>
    %1403 = arith.minimumf %1402, %1401 : vector<8x128xf32>
    %1404 = math.tanh %1403 : vector<8x128xf32>
    %1405 = arith.mulf %1396, %1404 : vector<8x128xf32>
    %1406 = arith.truncf %1405 : vector<8x128xf32> to vector<8x128xbf16>
    %cst_543 = arith.constant dense<0.000000e+00> : vector<8x64xf32>
    %1407 = tpu.matmul %1406, %771, %cst_543 {dimension_numbers = #tpu.dot_dimension_numbers<[1], [0], [0], [1], [0, 0, 1, 1], [], []>} : vector<8x128xbf16>, vector<128x64xbf16>, vector<8x64xf32> -> vector<8x64xf32>
    %cst_544 = arith.constant -3.000000e+00 : f32
    %cst_545 = arith.constant 3.000000e+00 : f32
    %1408 = vector.broadcast %cst_544 : f32 to vector<8x64xf32>
    %1409 = arith.maximumf %1408, %1407 : vector<8x64xf32>
    %1410 = vector.broadcast %cst_545 : f32 to vector<8x64xf32>
    %1411 = arith.minimumf %1410, %1409 : vector<8x64xf32>
    %1412 = arith.index_cast %c8_i32_531 : i32 to index
    %c0_546 = arith.constant 0 : index
    %c0_547 = arith.constant 0 : index
    %1413 = vector.load %arg3[%1412, %c0_546, %c0_547] : memref<10x8x64xf32, #tpu.memory_space<vmem>>, vector<1x8x64xf32>
    %1414 = vector.shape_cast %1413 : vector<1x8x64xf32> to vector<8x64xf32>
    %1415 = arith.index_cast %c8_i32_531 : i32 to index
    %c0_548 = arith.constant 0 : index
    %c0_549 = arith.constant 0 : index
    %1416 = vector.load %arg4[%1415, %c0_548, %c0_549] : memref<10x8x128xf32, #tpu.memory_space<vmem>>, vector<1x8x128xf32>
    %1417 = vector.shape_cast %1416 : vector<1x8x128xf32> to vector<8x128xf32>
    %1418 = arith.mulf %1414, %1411 : vector<8x64xf32>
    %1419 = vector.extract_strided_slice %1418 {offsets = [0, 0], sizes = [8, 32], strides = [1, 1]} : vector<8x64xf32> to vector<8x32xf32>
    %1420 = arith.index_cast %c8_i32_531 : i32 to index
    %c0_550 = arith.constant 0 : index
    %c0_551 = arith.constant 0 : index
    %1421 = vector.load %arg15[%1420, %c0_550, %c0_551] : memref<10x8x32xf32, #tpu.memory_space<vmem>>, vector<1x8x32xf32>
    %1422 = vector.shape_cast %1421 : vector<1x8x32xf32> to vector<8x32xf32>
    %1423 = vector.shape_cast %1419 : vector<8x32xf32> to vector<1x8x32xf32>
    tpu.vector_store %arg15[%1420, %c0_550, %c0_551], %1423 {strides = array<i32>} : memref<10x8x32xf32, #tpu.memory_space<vmem>>, vector<1x8x32xf32>,
    %1424 = vector.extract_strided_slice %1418 {offsets = [0, 32], sizes = [8, 32], strides = [1, 1]} : vector<8x64xf32> to vector<8x32xf32>
    %1425 = arith.index_cast %1366 : i32 to index
    %c0_552 = arith.constant 0 : index
    %c0_553 = arith.constant 0 : index
    %1426 = vector.load %arg16[%1425, %c0_552, %c0_553] : memref<10x8x32xf32, #tpu.memory_space<vmem>>, vector<1x8x32xf32>
    %1427 = vector.shape_cast %1426 : vector<1x8x32xf32> to vector<8x32xf32>
    %1428 = vector.shape_cast %1424 : vector<8x32xf32> to vector<1x8x32xf32>
    tpu.vector_store %arg16[%1425, %c0_552, %c0_553], %1428 {strides = array<i32>} : memref<10x8x32xf32, #tpu.memory_space<vmem>>, vector<1x8x32xf32>,
    %cst_554 = arith.constant 1.000000e+00 : f32
    %1429 = vector.broadcast %cst_554 : f32 to vector<8x64xf32>
    %1430 = arith.subf %1429, %1414 : vector<8x64xf32>
    %1431 = arith.mulf %1430, %1360 : vector<8x64xf32>
    %1432 = arith.addf %1418, %1431 : vector<8x64xf32>
    %1433 = arith.mulf %1417, %1403 : vector<8x128xf32>
    %cst_555 = arith.constant 1.000000e+00 : f32
    %1434 = vector.broadcast %cst_555 : f32 to vector<8x128xf32>
    %1435 = arith.subf %1434, %1417 : vector<8x128xf32>
    %1436 = arith.mulf %1435, %1365 : vector<8x128xf32>
    %1437 = arith.addf %1433, %1436 : vector<8x128xf32>
    %c9_i32_556 = arith.constant 9 : i32
    %c9_i32_557 = arith.constant 9 : i32
    %1438 = arith.subi %c9_i32_557, %c9_i32_556 : i32
    %1439 = arith.index_cast %c9_i32_556 : i32 to index
    %c0_558 = arith.constant 0 : index
    %c0_559 = arith.constant 0 : index
    %1440 = vector.load %arg13[%1439, %c0_558, %c0_559] : memref<10x8x512xf32, #tpu.memory_space<vmem>>, vector<1x8x512xf32>
    %1441 = vector.shape_cast %1440 : vector<1x8x512xf32> to vector<8x512xf32>
    %1442 = arith.index_cast %1438 : i32 to index
    %c0_560 = arith.constant 0 : index
    %c0_561 = arith.constant 0 : index
    %1443 = vector.load %arg14[%1442, %c0_560, %c0_561] : memref<10x8x512xf32, #tpu.memory_space<vmem>>, vector<1x8x512xf32>
    %1444 = vector.shape_cast %1443 : vector<1x8x512xf32> to vector<8x512xf32>
    %1445 = arith.addf %1441, %1444 : vector<8x512xf32>
    %1446 = arith.truncf %1432 : vector<8x64xf32> to vector<8x64xbf16>
    %cst_562 = arith.constant dense<0.000000e+00> : vector<8x512xf32>
    %1447 = tpu.matmul %1446, %769, %cst_562 {dimension_numbers = #tpu.dot_dimension_numbers<[1], [0], [0], [1], [0, 0, 1, 1], [], []>} : vector<8x64xbf16>, vector<64x512xbf16>, vector<8x512xf32> -> vector<8x512xf32>
    %1448 = arith.addf %1445, %1447 : vector<8x512xf32>
    %1449 = vector.extract_strided_slice %1448 {offsets = [0, 0], sizes = [8, 128], strides = [1, 1]} : vector<8x512xf32> to vector<8x128xf32>
    %1450 = arith.negf %1449 : vector<8x128xf32>
    %1451 = math.exp %1450 : vector<8x128xf32>
    %cst_563 = arith.constant 1.000000e+00 : f32
    %1452 = vector.broadcast %cst_563 : f32 to vector<8x128xf32>
    %1453 = arith.addf %1452, %1451 : vector<8x128xf32>
    %1454 = arith.divf %1452, %1453 : vector<8x128xf32>
    %1455 = vector.extract_strided_slice %1448 {offsets = [0, 128], sizes = [8, 128], strides = [1, 1]} : vector<8x512xf32> to vector<8x128xf32>
    %1456 = arith.negf %1455 : vector<8x128xf32>
    %1457 = math.exp %1456 : vector<8x128xf32>
    %cst_564 = arith.constant 1.000000e+00 : f32
    %1458 = vector.broadcast %cst_564 : f32 to vector<8x128xf32>
    %1459 = arith.addf %1458, %1457 : vector<8x128xf32>
    %1460 = arith.divf %1458, %1459 : vector<8x128xf32>
    %1461 = vector.extract_strided_slice %1448 {offsets = [0, 256], sizes = [8, 128], strides = [1, 1]} : vector<8x512xf32> to vector<8x128xf32>
    %1462 = math.tanh %1461 : vector<8x128xf32>
    %1463 = vector.extract_strided_slice %1448 {offsets = [0, 384], sizes = [8, 128], strides = [1, 1]} : vector<8x512xf32> to vector<8x128xf32>
    %1464 = arith.negf %1463 : vector<8x128xf32>
    %1465 = math.exp %1464 : vector<8x128xf32>
    %cst_565 = arith.constant 1.000000e+00 : f32
    %1466 = vector.broadcast %cst_565 : f32 to vector<8x128xf32>
    %1467 = arith.addf %1466, %1465 : vector<8x128xf32>
    %1468 = arith.divf %1466, %1467 : vector<8x128xf32>
    %1469 = arith.mulf %1454, %1462 : vector<8x128xf32>
    %1470 = arith.mulf %1460, %1437 : vector<8x128xf32>
    %1471 = arith.addf %1469, %1470 : vector<8x128xf32>
    %cst_566 = arith.constant -3.000000e+00 : f32
    %cst_567 = arith.constant 3.000000e+00 : f32
    %1472 = vector.broadcast %cst_566 : f32 to vector<8x128xf32>
    %1473 = arith.maximumf %1472, %1471 : vector<8x128xf32>
    %1474 = vector.broadcast %cst_567 : f32 to vector<8x128xf32>
    %1475 = arith.minimumf %1474, %1473 : vector<8x128xf32>
    %1476 = math.tanh %1475 : vector<8x128xf32>
    %1477 = arith.mulf %1468, %1476 : vector<8x128xf32>
    %1478 = arith.truncf %1477 : vector<8x128xf32> to vector<8x128xbf16>
    %cst_568 = arith.constant dense<0.000000e+00> : vector<8x64xf32>
    %1479 = tpu.matmul %1478, %771, %cst_568 {dimension_numbers = #tpu.dot_dimension_numbers<[1], [0], [0], [1], [0, 0, 1, 1], [], []>} : vector<8x128xbf16>, vector<128x64xbf16>, vector<8x64xf32> -> vector<8x64xf32>
    %cst_569 = arith.constant -3.000000e+00 : f32
    %cst_570 = arith.constant 3.000000e+00 : f32
    %1480 = vector.broadcast %cst_569 : f32 to vector<8x64xf32>
    %1481 = arith.maximumf %1480, %1479 : vector<8x64xf32>
    %1482 = vector.broadcast %cst_570 : f32 to vector<8x64xf32>
    %1483 = arith.minimumf %1482, %1481 : vector<8x64xf32>
    %1484 = arith.index_cast %c9_i32_556 : i32 to index
    %c0_571 = arith.constant 0 : index
    %c0_572 = arith.constant 0 : index
    %1485 = vector.load %arg3[%1484, %c0_571, %c0_572] : memref<10x8x64xf32, #tpu.memory_space<vmem>>, vector<1x8x64xf32>
    %1486 = vector.shape_cast %1485 : vector<1x8x64xf32> to vector<8x64xf32>
    %1487 = arith.index_cast %c9_i32_556 : i32 to index
    %c0_573 = arith.constant 0 : index
    %c0_574 = arith.constant 0 : index
    %1488 = vector.load %arg4[%1487, %c0_573, %c0_574] : memref<10x8x128xf32, #tpu.memory_space<vmem>>, vector<1x8x128xf32>
    %1489 = vector.shape_cast %1488 : vector<1x8x128xf32> to vector<8x128xf32>
    %1490 = arith.mulf %1486, %1483 : vector<8x64xf32>
    %1491 = vector.extract_strided_slice %1490 {offsets = [0, 0], sizes = [8, 32], strides = [1, 1]} : vector<8x64xf32> to vector<8x32xf32>
    %1492 = arith.index_cast %c9_i32_556 : i32 to index
    %c0_575 = arith.constant 0 : index
    %c0_576 = arith.constant 0 : index
    %1493 = vector.load %arg15[%1492, %c0_575, %c0_576] : memref<10x8x32xf32, #tpu.memory_space<vmem>>, vector<1x8x32xf32>
    %1494 = vector.shape_cast %1493 : vector<1x8x32xf32> to vector<8x32xf32>
    %1495 = vector.shape_cast %1491 : vector<8x32xf32> to vector<1x8x32xf32>
    tpu.vector_store %arg15[%1492, %c0_575, %c0_576], %1495 {strides = array<i32>} : memref<10x8x32xf32, #tpu.memory_space<vmem>>, vector<1x8x32xf32>,
    %1496 = vector.extract_strided_slice %1490 {offsets = [0, 32], sizes = [8, 32], strides = [1, 1]} : vector<8x64xf32> to vector<8x32xf32>
    %1497 = arith.index_cast %1438 : i32 to index
    %c0_577 = arith.constant 0 : index
    %c0_578 = arith.constant 0 : index
    %1498 = vector.load %arg16[%1497, %c0_577, %c0_578] : memref<10x8x32xf32, #tpu.memory_space<vmem>>, vector<1x8x32xf32>
    %1499 = vector.shape_cast %1498 : vector<1x8x32xf32> to vector<8x32xf32>
    %1500 = vector.shape_cast %1496 : vector<8x32xf32> to vector<1x8x32xf32>
    tpu.vector_store %arg16[%1497, %c0_577, %c0_578], %1500 {strides = array<i32>} : memref<10x8x32xf32, #tpu.memory_space<vmem>>, vector<1x8x32xf32>,
    %cst_579 = arith.constant 1.000000e+00 : f32
    %1501 = vector.broadcast %cst_579 : f32 to vector<8x64xf32>
    %1502 = arith.subf %1501, %1486 : vector<8x64xf32>
    %1503 = arith.mulf %1502, %1432 : vector<8x64xf32>
    %1504 = arith.addf %1490, %1503 : vector<8x64xf32>
    %1505 = arith.mulf %1489, %1475 : vector<8x128xf32>
    %cst_580 = arith.constant 1.000000e+00 : f32
    %1506 = vector.broadcast %cst_580 : f32 to vector<8x128xf32>
    %1507 = arith.subf %1506, %1489 : vector<8x128xf32>
    %1508 = arith.mulf %1507, %1437 : vector<8x128xf32>
    %1509 = arith.addf %1505, %1508 : vector<8x128xf32>
    %c10_i32_581 = arith.constant 10 : i32
    %c0_582 = arith.constant 0 : index
    %c0_583 = arith.constant 0 : index
    %c0_584 = arith.constant 0 : index
    %1510 = vector.load %arg15[%c0_582, %c0_583, %c0_584] : memref<10x8x32xf32, #tpu.memory_space<vmem>>, vector<10x8x32xf32>
    %c0_585 = arith.constant 0 : index
    %c0_586 = arith.constant 0 : index
    %c0_587 = arith.constant 0 : index
    %1511 = vector.load %arg16[%c0_585, %c0_586, %c0_587] : memref<10x8x32xf32, #tpu.memory_space<vmem>>, vector<10x8x32xf32>
    %c0_588 = arith.constant 0 : index
    %c0_589 = arith.constant 0 : index
    %c0_590 = arith.constant 0 : index
    %1512 = vector.load %arg11[%c0_588, %c0_589, %c0_590] : memref<10x8x32xf32, #tpu.memory_space<vmem>>, vector<10x8x32xf32>
    %1513 = arith.addf %1510, %1512 : vector<10x8x32xf32>
    %c0_591 = arith.constant 0 : index
    %c0_592 = arith.constant 0 : index
    %c0_593 = arith.constant 0 : index
    %1514 = vector.load %arg12[%c0_591, %c0_592, %c0_593] : memref<10x8x32xf32, #tpu.memory_space<vmem>>, vector<10x8x32xf32>
    %1515 = arith.addf %1511, %1514 : vector<10x8x32xf32>
    %1516 = tpu.concatenate %1513, %1515 in 2 : vector<10x8x32xf32>, vector<10x8x32xf32> -> vector<10x8x64xf32>
    %c2 = arith.constant 2 : index
    %c0_594 = arith.constant 0 : index
    %c0_595 = arith.constant 0 : index
    %c0_596 = arith.constant 0 : index
    %1517 = vector.load %arg10[%c2, %c0_594, %c0_595, %c0_596] : memref<3x10x8x64xf32, #tpu.memory_space<vmem>>, vector<1x10x8x64xf32>
    %1518 = vector.shape_cast %1517 : vector<1x10x8x64xf32> to vector<10x8x64xf32>
    %1519 = vector.shape_cast %1516 : vector<10x8x64xf32> to vector<1x10x8x64xf32>
    tpu.vector_store %arg10[%c2, %c0_594, %c0_595, %c0_596], %1519 {strides = array<i32>} : memref<3x10x8x64xf32, #tpu.memory_space<vmem>>, vector<1x10x8x64xf32>,
    %c0_597 = arith.constant 0 : index
    %c0_598 = arith.constant 0 : index
    %c0_599 = arith.constant 0 : index
    %1520 = vector.load %arg11[%c0_597, %c0_598, %c0_599] : memref<10x8x32xf32, #tpu.memory_space<vmem>>, vector<10x8x32xf32>
    tpu.vector_store %arg11[%c0_597, %c0_598, %c0_599], %1513 {strides = array<i32>} : memref<10x8x32xf32, #tpu.memory_space<vmem>>, vector<10x8x32xf32>,
    %c0_600 = arith.constant 0 : index
    %c0_601 = arith.constant 0 : index
    %c0_602 = arith.constant 0 : index
    %1521 = vector.load %arg12[%c0_600, %c0_601, %c0_602] : memref<10x8x32xf32, #tpu.memory_space<vmem>>, vector<10x8x32xf32>
    tpu.vector_store %arg12[%c0_600, %c0_601, %c0_602], %1515 {strides = array<i32>} : memref<10x8x32xf32, #tpu.memory_space<vmem>>, vector<10x8x32xf32>,
    return
  }
  func.func @transform_0(%arg0: i32) -> (i32, i32, i32) {
    %c0_i32 = arith.constant 0 : i32
    %c0_i32_0 = arith.constant 0 : i32
    %c0_i32_1 = arith.constant 0 : i32
    return %c0_i32, %arg0, %c0_i32_0 : i32, i32, i32
  }
  func.func @transform_1(%arg0: i32) -> (i32, i32, i32) {
    %c0_i32 = arith.constant 0 : i32
    %c0_i32_0 = arith.constant 0 : i32
    %c0_i32_1 = arith.constant 0 : i32
    return %c0_i32, %arg0, %c0_i32_0 : i32, i32, i32
  }
  func.func @transform_2(%arg0: i32) -> (i32, i32, i32) {
    %c0_i32 = arith.constant 0 : i32
    %c0_i32_0 = arith.constant 0 : i32
    %c0_i32_1 = arith.constant 0 : i32
    return %c0_i32, %arg0, %c0_i32_0 : i32, i32, i32
  }
  func.func @transform_3(%arg0: i32) -> (i32, i32, i32) {
    %c0_i32 = arith.constant 0 : i32
    %c0_i32_0 = arith.constant 0 : i32
    %c0_i32_1 = arith.constant 0 : i32
    return %c0_i32, %arg0, %c0_i32_0 : i32, i32, i32
  }
  func.func @transform_4(%arg0: i32) -> (i32, i32, i32) {
    %c0_i32 = arith.constant 0 : i32
    %c0_i32_0 = arith.constant 0 : i32
    %c0_i32_1 = arith.constant 0 : i32
    %c0_i32_2 = arith.constant 0 : i32
    return %c0_i32, %c0_i32_0, %c0_i32_1 : i32, i32, i32
  }
  func.func @transform_5(%arg0: i32) -> (i32, i32, i32) {
    %c0_i32 = arith.constant 0 : i32
    %c0_i32_0 = arith.constant 0 : i32
    %c0_i32_1 = arith.constant 0 : i32
    %c0_i32_2 = arith.constant 0 : i32
    return %c0_i32, %c0_i32_0, %c0_i32_1 : i32, i32, i32
  }
  func.func @transform_6(%arg0: i32) -> (i32, i32, i32) {
    %c0_i32 = arith.constant 0 : i32
    %c0_i32_0 = arith.constant 0 : i32
    %c0_i32_1 = arith.constant 0 : i32
    %c0_i32_2 = arith.constant 0 : i32
    return %c0_i32, %c0_i32_0, %c0_i32_1 : i32, i32, i32
  }
  func.func @transform_7(%arg0: i32) -> (i32, i32, i32) {
    %c0_i32 = arith.constant 0 : i32
    %c0_i32_0 = arith.constant 0 : i32
    %c0_i32_1 = arith.constant 0 : i32
    %c0_i32_2 = arith.constant 0 : i32
    return %c0_i32, %c0_i32_0, %c0_i32_1 : i32, i32, i32
  }
  func.func @transform_8(%arg0: i32) -> (i32, i32, i32) {
    %c0_i32 = arith.constant 0 : i32
    %c0_i32_0 = arith.constant 0 : i32
    %c0_i32_1 = arith.constant 0 : i32
    %c0_i32_2 = arith.constant 0 : i32
    return %c0_i32, %c0_i32_0, %c0_i32_1 : i32, i32, i32
  }
  func.func @transform_9(%arg0: i32) -> (i32, i32, i32, i32) {
    %c0_i32 = arith.constant 0 : i32
    %c0_i32_0 = arith.constant 0 : i32
    %c0_i32_1 = arith.constant 0 : i32
    %c0_i32_2 = arith.constant 0 : i32
    return %c0_i32, %c0_i32_0, %arg0, %c0_i32_1 : i32, i32, i32, i32
  }
}

</mosaic_0001>

<llo_original>
// kernel: elmo_forward.2
$region0: #{elmo_forward.2}
  #allocation0 [shape = 'u32[]', space=smem, size = 0x4, offset = 0x4, fixed_abs, tag = 'smem constant byte address 0x4 - core index']
  #allocation1 [shape = 'u32[144,128]{1,0:T(1,128)}', space=vmem, size = 0x12000, scoped, tag = 'internal scratch']
  %s0 = inlined_call_operand.vmem [shape: bf16[10,32,16], index: 0, kind: input, shape index: {}]
  %s1 = inlined_call_operand.vmem [shape: bf16[3,16,32], index: 1, kind: input, shape index: {}]
  %s2 = inlined_call_operand.vmem [shape: f32[1,32], index: 2, kind: input, shape index: {}]
  %s3 = inlined_call_operand.vmem [shape: f32[8,1,32], index: 3, kind: input, shape index: {}]
  %s4 = inlined_call_operand.vmem [shape: bf16[2,32,32], index: 4, kind: input, shape index: {}]
  %s5 = inlined_call_operand.vmem [shape: f32[2,1,32], index: 5, kind: input, shape index: {}]
  %s6 = inlined_call_operand.vmem [shape: bf16[2,32,32], index: 6, kind: input, shape index: {}]
  %s7 = inlined_call_operand.vmem [shape: f32[2,1,32], index: 7, kind: input, shape index: {}]
  %s8 = inlined_call_operand.vmem [shape: bf16[32,32], index: 8, kind: input, shape index: {}]
  %s9 = inlined_call_operand.vmem [shape: f32[1,32], index: 9, kind: input, shape index: {}]
  %s10 = inlined_call_operand.vmem [shape: f32[32,32], index: 10, kind: output, shape index: {}]
  %s11 = sld [smem:[#allocation0]]
  $region50: #{elmo_forward.2} parent=0
    _
  %s13 = ssub.s32 1, %s11
  %s14 = scalar_select 0, %s13, %s11
  // Predicated region
  $region2: #{elmo_forward.2} parent=0 // pred_check
    _
  $region3: #{elmo_forward.2} parent=0 // pred_check_branch
    %16 = sbr.rel (0) target = $region5
  $region4: #{elmo_forward.2} parent=0 // pred_region
    _
  $region5: #{elmo_forward.2} parent=0 // pred_fallthru
    _
  // Predicated region
  $region6: #{elmo_forward.2} parent=0 // pred_check
    _
  $region7: #{elmo_forward.2} parent=0 // pred_check_branch
    %18 = sbr.rel (0) target = $region9
  $region8: #{elmo_forward.2} parent=0 // pred_region
    _
  $region9: #{elmo_forward.2} parent=0 // pred_fallthru
    _
  // Predicated region
  $region10: #{elmo_forward.2} parent=0 // pred_check
    _
  $region11: #{elmo_forward.2} parent=0 // pred_check_branch
    %20 = sbr.rel (0) target = $region13
  $region12: #{elmo_forward.2} parent=0 // pred_region
    _
  $region13: #{elmo_forward.2} parent=0 // pred_fallthru
    _
  // Predicated region
  $region14: #{elmo_forward.2} parent=0 // pred_check
    _
  $region15: #{elmo_forward.2} parent=0 // pred_check_branch
    %22 = sbr.rel (0) target = $region17
  $region16: #{elmo_forward.2} parent=0 // pred_region
    _
  $region17: #{elmo_forward.2} parent=0 // pred_fallthru
    _
  // Predicated region
  $region18: #{elmo_forward.2} parent=0 // pred_check
    _
  $region19: #{elmo_forward.2} parent=0 // pred_check_branch
    %24 = sbr.rel (0) target = $region21
  $region20: #{elmo_forward.2} parent=0 // pred_region
    _
  $region21: #{elmo_forward.2} parent=0 // pred_fallthru
    _
  // Predicated region
  $region22: #{elmo_forward.2} parent=0 // pred_check
    _
  $region23: #{elmo_forward.2} parent=0 // pred_check_branch
    %26 = sbr.rel (0) target = $region25
  $region24: #{elmo_forward.2} parent=0 // pred_region
    _
  $region25: #{elmo_forward.2} parent=0 // pred_fallthru
    _
  // Predicated region
  $region26: #{elmo_forward.2} parent=0 // pred_check
    _
  $region27: #{elmo_forward.2} parent=0 // pred_check_branch
    %28 = sbr.rel (0) target = $region29
  $region28: #{elmo_forward.2} parent=0 // pred_region
    _
  $region29: #{elmo_forward.2} parent=0 // pred_fallthru
    _
  // Predicated region
  $region30: #{elmo_forward.2} parent=0 // pred_check
    _
  $region31: #{elmo_forward.2} parent=0 // pred_check_branch
    %30 = sbr.rel (0) target = $region33
  $region32: #{elmo_forward.2} parent=0 // pred_region
    _
  $region33: #{elmo_forward.2} parent=0 // pred_fallthru
    _
  // Predicated region
  $region34: #{elmo_forward.2} parent=0 // pred_check
    _
  $region35: #{elmo_forward.2} parent=0 // pred_check_branch
    %32 = sbr.rel (0) target = $region37
  $region36: #{elmo_forward.2} parent=0 // pred_region
    _
  $region37: #{elmo_forward.2} parent=0 // pred_fallthru
    _
  // Predicated region
  $region38: #{elmo_forward.2} parent=0 // pred_check
    _
  $region39: #{elmo_forward.2} parent=0 // pred_check_branch
    %34 = sbr.rel (0) target = $region41
  $region40: #{elmo_forward.2} parent=0 // pred_region
    _
  $region41: #{elmo_forward.2} parent=0 // pred_fallthru
    _
  %v36 = vld [vmem:[%s0] sm:$0xf]
  %v37 = vld [vmem:[%s0 + $0x4] sm:$0xf]
  %v38 = vld [vmem:[%s0 + $0x8] sm:$0xf]
  %v39 = vld [vmem:[%s0 + $0xc] sm:$0xf]
  %v40 = vld [vmem:[%s0 + $0x10] sm:$0xf]
  %v41 = vld [vmem:[%s0 + $0x14] sm:$0xf]
  %v42 = vld [vmem:[%s0 + $0x18] sm:$0xf]
  %v43 = vld [vmem:[%s0 + $0x1c] sm:$0xf]
  %v44 = vld [vmem:[%s0 + $0x20] sm:$0xf]
  %v45 = vld [vmem:[%s0 + $0x24] sm:$0xf]
  %v46 = vld [vmem:[%s0 + $0x28] sm:$0xf]
  %v47 = vld [vmem:[%s0 + $0x2c] sm:$0xf]
  %v48 = vld [vmem:[%s0 + $0x30] sm:$0xf]
  %v49 = vld [vmem:[%s0 + $0x34] sm:$0xf]
  %v50 = vld [vmem:[%s0 + $0x38] sm:$0xf]
  %v51 = vld [vmem:[%s0 + $0x3c] sm:$0xf]
  %v52 = vld [vmem:[%s0 + $0x40] sm:$0xf]
  %v53 = vld [vmem:[%s0 + $0x44] sm:$0xf]
  %v54 = vld [vmem:[%s0 + $0x48] sm:$0xf]
  %v55 = vld [vmem:[%s0 + $0x4c] sm:$0xf]
  %v56 = vld [vmem:[%s0 + $0x50] sm:$0xf]
  %v57 = vld [vmem:[%s0 + $0x54] sm:$0xf]
  %v58 = vld [vmem:[%s0 + $0x58] sm:$0xf]
  %v59 = vld [vmem:[%s0 + $0x5c] sm:$0xf]
  %v60 = vld [vmem:[%s0 + $0x60] sm:$0xf]
  %v61 = vld [vmem:[%s0 + $0x64] sm:$0xf]
  %v62 = vld [vmem:[%s0 + $0x68] sm:$0xf]
  %v63 = vld [vmem:[%s0 + $0x6c] sm:$0xf]
  %v64 = vld [vmem:[%s0 + $0x70] sm:$0xf]
  %v65 = vld [vmem:[%s0 + $0x74] sm:$0xf]
  %v66 = vld [vmem:[%s0 + $0x78] sm:$0xf]
  %v67 = vld [vmem:[%s0 + $0x7c] sm:$0xf]
  %v68 = vld [vmem:[%s0 + $0x80] sm:$0xf]
  %v69 = vld [vmem:[%s0 + $0x84] sm:$0xf]
  %v70 = vld [vmem:[%s0 + $0x88] sm:$0xf]
  %v71 = vld [vmem:[%s0 + $0x8c] sm:$0xf]
  %v72 = vld [vmem:[%s0 + $0x90] sm:$0xf]
  %v73 = vld [vmem:[%s0 + $0x94] sm:$0xf]
  %v74 = vld [vmem:[%s0 + $0x98] sm:$0xf]
  %v75 = vld [vmem:[%s0 + $0x9c] sm:$0xf]
  %v76 = vld [vmem:[%s1] sm:$0xf]
  %v77 = vld [vmem:[%s1 + $0x4] sm:$0xf]
  %v118 = vunpack.c.l.b16 %v36
  %v119 = vunpack.c.l.b16 %v37
  %v120 = vunpack.c.l.b16 %v38
  %v121 = vunpack.c.l.b16 %v39
  %v122 = vunpack.c.l.b16 %v40
  %v123 = vunpack.c.l.b16 %v41
  %v124 = vunpack.c.l.b16 %v42
  %v125 = vunpack.c.l.b16 %v43
  %v126 = vunpack.c.l.b16 %v44
  %v127 = vunpack.c.l.b16 %v45
  %v128 = vunpack.c.l.b16 %v46
  %v129 = vunpack.c.l.b16 %v47
  %v130 = vunpack.c.l.b16 %v48
  %v131 = vunpack.c.l.b16 %v49
  %v132 = vunpack.c.l.b16 %v50
  %v133 = vunpack.c.l.b16 %v51
  %v134 = vunpack.c.l.b16 %v52
  %v135 = vunpack.c.l.b16 %v53
  %v136 = vunpack.c.l.b16 %v54
  %v137 = vunpack.c.l.b16 %v55
  %v138 = vunpack.c.l.b16 %v56
  %v139 = vunpack.c.l.b16 %v57
  %v140 = vunpack.c.l.b16 %v58
  %v141 = vunpack.c.l.b16 %v59
  %v142 = vunpack.c.l.b16 %v60
  %v143 = vunpack.c.l.b16 %v61
  %v144 = vunpack.c.l.b16 %v62
  %v145 = vunpack.c.l.b16 %v63
  %v146 = vunpack.c.l.b16 %v64
  %v147 = vunpack.c.l.b16 %v65
  %v148 = vunpack.c.l.b16 %v66
  %v149 = vunpack.c.l.b16 %v67
  %v150 = vunpack.c.l.b16 %v68
  %v151 = vunpack.c.l.b16 %v69
  %v152 = vunpack.c.l.b16 %v70
  %v153 = vunpack.c.l.b16 %v71
  %v154 = vunpack.c.l.b16 %v72
  %v155 = vunpack.c.l.b16 %v73
  %v156 = vunpack.c.l.b16 %v74
  %v157 = vunpack.c.l.b16 %v75
  %v158 = vpack.c.b16 %v119, %v118
  %v159 = vpack.c.b16 %v121, %v120
  %v160 = vpack.c.b16 %v123, %v122
  %v161 = vpack.c.b16 %v125, %v124
  %v162 = vpack.c.b16 %v127, %v126
  %v163 = vpack.c.b16 %v129, %v128
  %v164 = vpack.c.b16 %v131, %v130
  %v165 = vpack.c.b16 %v133, %v132
  %v166 = vpack.c.b16 %v135, %v134
  %v167 = vpack.c.b16 %v137, %v136
  %v168 = vpack.c.b16 %v139, %v138
  %v169 = vpack.c.b16 %v141, %v140
  %v170 = vpack.c.b16 %v143, %v142
  %v171 = vpack.c.b16 %v145, %v144
  %v172 = vpack.c.b16 %v147, %v146
  %v173 = vpack.c.b16 %v149, %v148
  %v174 = vpack.c.b16 %v151, %v150
  %v175 = vpack.c.b16 %v153, %v152
  %v176 = vpack.c.b16 %v155, %v154
  %v177 = vpack.c.b16 %v157, %v156
  %v180 = vunpack.c.l.b16 %v76
  %v181 = vunpack.c.l.b16 %v77
  %v182 = vpack.c.b16 %v181, %v180
  %vm184 = vcmask 130048
  %v186 = vsel %vm184, %v158, 0
  %v189 = vsel %vm184, %v159, 0
  %v192 = vsel %vm184, %v160, 0
  %v195 = vsel %vm184, %v161, 0
  %v198 = vsel %vm184, %v162, 0
  %v201 = vsel %vm184, %v163, 0
  %v204 = vsel %vm184, %v164, 0
  %v207 = vsel %vm184, %v165, 0
  %v210 = vsel %vm184, %v166, 0
  %v213 = vsel %vm184, %v167, 0
  %v216 = vsel %vm184, %v168, 0
  %v219 = vsel %vm184, %v169, 0
  %v222 = vsel %vm184, %v170, 0
  %v225 = vsel %vm184, %v171, 0
  %v228 = vsel %vm184, %v172, 0
  %v231 = vsel %vm184, %v173, 0
  %v234 = vsel %vm184, %v174, 0
  %v237 = vsel %vm184, %v175, 0
  %v240 = vsel %vm184, %v176, 0
  %v243 = vsel %vm184, %v177, 0
  %245 = vmatprep.subr.bf16.mxu0 0
  %246 = vmatpush1.bf16.msra.mxu0 %v182
  %247 = vmatprep.subr.bf16.mxu0 0
  %248 = vmatpush1.bf16.msra.mxu0 0
  %249 = vmatprep.subr.bf16.mxu0 0
  %250 = vmatpush1.bf16.msra.mxu0 0
  %251 = vmatprep.subr.bf16.mxu0 0
  %252 = vmatpush1.bf16.msra.mxu0 0
  %253 = vmatprep.subr.bf16.mxu0 0
  %254 = vmatpush1.bf16.msra.mxu0 0
  %255 = vmatprep.subr.bf16.mxu0 0
  %256 = vmatpush1.bf16.msra.mxu0 0
  %257 = vmatprep.subr.bf16.mxu0 0
  %258 = vmatpush1.bf16.msra.mxu0 0
  %259 = vmatprep.subr.bf16.mxu0 0
  %260 = vmatpush1.bf16.msra.mxu0 0
  %261 = vmatprep.subr.bf16.mxu0 0
  %262 = vmatpush1.bf16.msra.mxu0 0
  %263 = vmatprep.subr.bf16.mxu0 0
  %264 = vmatpush1.bf16.msra.mxu0 0
  %265 = vmatprep.subr.bf16.mxu0 0
  %266 = vmatpush1.bf16.msra.mxu0 0
  %267 = vmatprep.subr.bf16.mxu0 0
  %268 = vmatpush1.bf16.msra.mxu0 0
  %269 = vmatprep.subr.bf16.mxu0 0
  %270 = vmatpush1.bf16.msra.mxu0 0
  %271 = vmatprep.subr.bf16.mxu0 0
  %272 = vmatpush1.bf16.msra.mxu0 0
  %273 = vmatprep.subr.bf16.mxu0 0
  %274 = vmatpush1.bf16.msra.mxu0 0
  %275 = vmatprep.subr.bf16.mxu0 0
  %276 = vmatpush1.bf16.msra.mxu0 0
  %277 = vmatprep.mubr.bf16.mxu0 0
  %278 = vmatmul.mubr.bf16.gmra.mrb[0].mxu0 %v186
  %v279 = vpop.f32.mrb[0].mxu0
  %v280 = vadd.f32 0.0, %v279
  %v281 = vpop.f32.mrb[0].mxu0
  %v282 = vpop.f32.mrb[0].mxu0
  %v283 = vadd.f32 0.0, %v282
  %v284 = vpop.f32.mrb[0].mxu0
  %285 = vmatprep.mubr.bf16.mxu0 0
  %286 = vmatmul.mubr.bf16.gmra.mrb[0].mxu0 %v189
  %v287 = vpop.f32.mrb[0].mxu0
  %v288 = vadd.f32 0.0, %v287
  %v289 = vpop.f32.mrb[0].mxu0
  %v290 = vpop.f32.mrb[0].mxu0
  %v291 = vadd.f32 0.0, %v290
  %v292 = vpop.f32.mrb[0].mxu0
  %293 = vmatprep.mubr.bf16.mxu0 0
  %294 = vmatmul.mubr.bf16.gmra.mrb[0].mxu0 %v192
  %v295 = vpop.f32.mrb[0].mxu0
  %v296 = vadd.f32 0.0, %v295
  %v297 = vpop.f32.mrb[0].mxu0
  %v298 = vpop.f32.mrb[0].mxu0
  %v299 = vadd.f32 0.0, %v298
  %v300 = vpop.f32.mrb[0].mxu0
  %301 = vmatprep.mubr.bf16.mxu0 0
  %302 = vmatmul.mubr.bf16.gmra.mrb[0].mxu0 %v195
  %v303 = vpop.f32.mrb[0].mxu0
  %v304 = vadd.f32 0.0, %v303
  %v305 = vpop.f32.mrb[0].mxu0
  %v306 = vpop.f32.mrb[0].mxu0
  %v307 = vadd.f32 0.0, %v306
  %v308 = vpop.f32.mrb[0].mxu0
  %309 = vmatprep.mubr.bf16.mxu0 0
  %310 = vmatmul.mubr.bf16.gmra.mrb[0].mxu0 %v198
  %v311 = vpop.f32.mrb[0].mxu0
  %v312 = vadd.f32 0.0, %v311
  %v313 = vpop.f32.mrb[0].mxu0
  %v314 = vpop.f32.mrb[0].mxu0
  %v315 = vadd.f32 0.0, %v314
  %v316 = vpop.f32.mrb[0].mxu0
  %317 = vmatprep.mubr.bf16.mxu0 0
  %318 = vmatmul.mubr.bf16.gmra.mrb[0].mxu0 %v201
  %v319 = vpop.f32.mrb[0].mxu0
  %v320 = vadd.f32 0.0, %v319
  %v321 = vpop.f32.mrb[0].mxu0
  %v322 = vpop.f32.mrb[0].mxu0
  %v323 = vadd.f32 0.0, %v322
  %v324 = vpop.f32.mrb[0].mxu0
  %325 = vmatprep.mubr.bf16.mxu0 0
  %326 = vmatmul.mubr.bf16.gmra.mrb[0].mxu0 %v204
  %v327 = vpop.f32.mrb[0].mxu0
  %v328 = vadd.f32 0.0, %v327
  %v329 = vpop.f32.mrb[0].mxu0
  %v330 = vpop.f32.mrb[0].mxu0
  %v331 = vadd.f32 0.0, %v330
  %v332 = vpop.f32.mrb[0].mxu0
  %333 = vmatprep.mubr.bf16.mxu0 0
  %334 = vmatmul.mubr.bf16.gmra.mrb[0].mxu0 %v207
  %v335 = vpop.f32.mrb[0].mxu0
  %v336 = vadd.f32 0.0, %v335
  %v337 = vpop.f32.mrb[0].mxu0
  %v338 = vpop.f32.mrb[0].mxu0
  %v339 = vadd.f32 0.0, %v338
  %v340 = vpop.f32.mrb[0].mxu0
  %341 = vmatprep.mubr.bf16.mxu0 0
  %342 = vmatmul.mubr.bf16.gmra.mrb[0].mxu0 %v210
  %v343 = vpop.f32.mrb[0].mxu0
  %v344 = vadd.f32 0.0, %v343
  %v345 = vpop.f32.mrb[0].mxu0
  %v346 = vpop.f32.mrb[0].mxu0
  %v347 = vadd.f32 0.0, %v346
  %v348 = vpop.f32.mrb[0].mxu0
  %349 = vmatprep.mubr.bf16.mxu0 0
  %350 = vmatmul.mubr.bf16.gmra.mrb[0].mxu0 %v213
  %v351 = vpop.f32.mrb[0].mxu0
  %v352 = vadd.f32 0.0, %v351
  %v353 = vpop.f32.mrb[0].mxu0
  %v354 = vpop.f32.mrb[0].mxu0
  %v355 = vadd.f32 0.0, %v354
  %v356 = vpop.f32.mrb[0].mxu0
  %357 = vmatprep.mubr.bf16.mxu0 0
  %358 = vmatmul.mubr.bf16.gmra.mrb[0].mxu0 %v216
  %v359 = vpop.f32.mrb[0].mxu0
  %v360 = vadd.f32 0.0, %v359
  %v361 = vpop.f32.mrb[0].mxu0
  %v362 = vpop.f32.mrb[0].mxu0
  %v363 = vadd.f32 0.0, %v362
  %v364 = vpop.f32.mrb[0].mxu0
  %365 = vmatprep.mubr.bf16.mxu0 0
  %366 = vmatmul.mubr.bf16.gmra.mrb[0].mxu0 %v219
  %v367 = vpop.f32.mrb[0].mxu0
  %v368 = vadd.f32 0.0, %v367
  %v369 = vpop.f32.mrb[0].mxu0
  %v370 = vpop.f32.mrb[0].mxu0
  %v371 = vadd.f32 0.0, %v370
  %v372 = vpop.f32.mrb[0].mxu0
  %373 = vmatprep.mubr.bf16.mxu0 0
  %374 = vmatmul.mubr.bf16.gmra.mrb[0].mxu0 %v222
  %v375 = vpop.f32.mrb[0].mxu0
  %v376 = vadd.f32 0.0, %v375
  %v377 = vpop.f32.mrb[0].mxu0
  %v378 = vpop.f32.mrb[0].mxu0
  %v379 = vadd.f32 0.0, %v378
  %v380 = vpop.f32.mrb[0].mxu0
  %381 = vmatprep.mubr.bf16.mxu0 0
  %382 = vmatmul.mubr.bf16.gmra.mrb[0].mxu0 %v225
  %v383 = vpop.f32.mrb[0].mxu0
  %v384 = vadd.f32 0.0, %v383
  %v385 = vpop.f32.mrb[0].mxu0
  %v386 = vpop.f32.mrb[0].mxu0
  %v387 = vadd.f32 0.0, %v386
  %v388 = vpop.f32.mrb[0].mxu0
  %389 = vmatprep.mubr.bf16.mxu0 0
  %390 = vmatmul.mubr.bf16.gmra.mrb[0].mxu0 %v228
  %v391 = vpop.f32.mrb[0].mxu0
  %v392 = vadd.f32 0.0, %v391
  %v393 = vpop.f32.mrb[0].mxu0
  %v394 = vpop.f32.mrb[0].mxu0
  %v395 = vadd.f32 0.0, %v394
  %v396 = vpop.f32.mrb[0].mxu0
  %397 = vmatprep.mubr.bf16.mxu0 0
  %398 = vmatmul.mubr.bf16.gmra.mrb[0].mxu0 %v231
  %v399 = vpop.f32.mrb[0].mxu0
  %v400 = vadd.f32 0.0, %v399
  %v401 = vpop.f32.mrb[0].mxu0
  %v402 = vpop.f32.mrb[0].mxu0
  %v403 = vadd.f32 0.0, %v402
  %v404 = vpop.f32.mrb[0].mxu0
  %405 = vmatprep.mubr.bf16.mxu0 0
  %406 = vmatmul.mubr.bf16.gmra.mrb[0].mxu0 %v234
  %v407 = vpop.f32.mrb[0].mxu0
  %v408 = vpop.f32.mrb[0].mxu0
  %v409 = vpop.f32.mrb[0].mxu0
  %v410 = vpop.f32.mrb[0].mxu0
  %411 = vmatprep.mubr.bf16.mxu0 0
  %412 = vmatmul.mubr.bf16.gmra.mrb[0].mxu0 %v237
  %v413 = vpop.f32.mrb[0].mxu0
  %v414 = vpop.f32.mrb[0].mxu0
  %v415 = vpop.f32.mrb[0].mxu0
  %v416 = vpop.f32.mrb[0].mxu0
  %417 = vmatprep.mubr.bf16.mxu0 0
  %418 = vmatmul.mubr.bf16.gmra.mrb[0].mxu0 %v240
  %v419 = vpop.f32.mrb[0].mxu0
  %v420 = vpop.f32.mrb[0].mxu0
  %v421 = vpop.f32.mrb[0].mxu0
  %v422 = vpop.f32.mrb[0].mxu0
  %423 = vmatprep.mubr.bf16.mxu0 0
  %424 = vmatmul.mubr.bf16.gmra.mrb[0].mxu0 %v243
  %v425 = vpop.f32.mrb[0].mxu0
  %v426 = vpop.f32.mrb[0].mxu0
  %v427 = vpop.f32.mrb[0].mxu0
  %v428 = vpop.f32.mrb[0].mxu0
  %429 = vdwg.mxu0
  %s430 = scalar_lea.vmem %s1, 8
  %v431 = vld [vmem:[%s430] sm:$0xf]
  %v432 = vld [vmem:[%s430 + $0x4] sm:$0xf]
  %v435 = vunpack.c.l.b16 %v431
  %v436 = vunpack.c.l.b16 %v432
  %v437 = vpack.c.b16 %v436, %v435
  %439 = vmatprep.subr.bf16.mxu0 0
  %440 = vmatpush1.bf16.msra.mxu0 %v437
  %441 = vmatprep.subr.bf16.mxu0 0
  %442 = vmatpush1.bf16.msra.mxu0 0
  %443 = vmatprep.subr.bf16.mxu0 0
  %444 = vmatpush1.bf16.msra.mxu0 0
  %445 = vmatprep.subr.bf16.mxu0 0
  %446 = vmatpush1.bf16.msra.mxu0 0
  %447 = vmatprep.subr.bf16.mxu0 0
  %448 = vmatpush1.bf16.msra.mxu0 0
  %449 = vmatprep.subr.bf16.mxu0 0
  %450 = vmatpush1.bf16.msra.mxu0 0
  %451 = vmatprep.subr.bf16.mxu0 0
  %452 = vmatpush1.bf16.msra.mxu0 0
  %453 = vmatprep.subr.bf16.mxu0 0
  %454 = vmatpush1.bf16.msra.mxu0 0
  %455 = vmatprep.subr.bf16.mxu0 0
  %456 = vmatpush1.bf16.msra.mxu0 0
  %457 = vmatprep.subr.bf16.mxu0 0
  %458 = vmatpush1.bf16.msra.mxu0 0
  %459 = vmatprep.subr.bf16.mxu0 0
  %460 = vmatpush1.bf16.msra.mxu0 0
  %461 = vmatprep.subr.bf16.mxu0 0
  %462 = vmatpush1.bf16.msra.mxu0 0
  %463 = vmatprep.subr.bf16.mxu0 0
  %464 = vmatpush1.bf16.msra.mxu0 0
  %465 = vmatprep.subr.bf16.mxu0 0
  %466 = vmatpush1.bf16.msra.mxu0 0
  %467 = vmatprep.subr.bf16.mxu0 0
  %468 = vmatpush1.bf16.msra.mxu0 0
  %469 = vmatprep.subr.bf16.mxu0 0
  %470 = vmatpush1.bf16.msra.mxu0 0
  %471 = vmatprep.mubr.bf16.mxu0 0
  %472 = vmatmul.mubr.bf16.gmra.mrb[0].mxu0 %v186
  %v473 = vpop.f32.mrb[0].mxu0
  %v474 = vpop.f32.mrb[0].mxu0
  %v475 = vpop.f32.mrb[0].mxu0
  %v476 = vpop.f32.mrb[0].mxu0
  %477 = vmatprep.mubr.bf16.mxu0 0
  %478 = vmatmul.mubr.bf16.gmra.mrb[0].mxu0 %v189
  %v479 = vpop.f32.mrb[0].mxu0
  %v480 = vpop.f32.mrb[0].mxu0
  %v481 = vpop.f32.mrb[0].mxu0
  %v482 = vpop.f32.mrb[0].mxu0
  %483 = vmatprep.mubr.bf16.mxu0 0
  %484 = vmatmul.mubr.bf16.gmra.mrb[0].mxu0 %v192
  %v485 = vpop.f32.mrb[0].mxu0
  %v486 = vadd.f32 0.0, %v485
  %v487 = vpop.f32.mrb[0].mxu0
  %v488 = vpop.f32.mrb[0].mxu0
  %v489 = vadd.f32 0.0, %v488
  %v490 = vpop.f32.mrb[0].mxu0
  %491 = vmatprep.mubr.bf16.mxu0 0
  %492 = vmatmul.mubr.bf16.gmra.mrb[0].mxu0 %v195
  %v493 = vpop.f32.mrb[0].mxu0
  %v494 = vadd.f32 0.0, %v493
  %v495 = vpop.f32.mrb[0].mxu0
  %v496 = vpop.f32.mrb[0].mxu0
  %v497 = vadd.f32 0.0, %v496
  %v498 = vpop.f32.mrb[0].mxu0
  %499 = vmatprep.mubr.bf16.mxu0 0
  %500 = vmatmul.mubr.bf16.gmra.mrb[0].mxu0 %v198
  %v501 = vpop.f32.mrb[0].mxu0
  %v502 = vadd.f32 0.0, %v501
  %v503 = vpop.f32.mrb[0].mxu0
  %v504 = vpop.f32.mrb[0].mxu0
  %v505 = vadd.f32 0.0, %v504
  %v506 = vpop.f32.mrb[0].mxu0
  %507 = vmatprep.mubr.bf16.mxu0 0
  %508 = vmatmul.mubr.bf16.gmra.mrb[0].mxu0 %v201
  %v509 = vpop.f32.mrb[0].mxu0
  %v510 = vadd.f32 0.0, %v509
  %v511 = vpop.f32.mrb[0].mxu0
  %v512 = vpop.f32.mrb[0].mxu0
  %v513 = vadd.f32 0.0, %v512
  %v514 = vpop.f32.mrb[0].mxu0
  %515 = vmatprep.mubr.bf16.mxu0 0
  %516 = vmatmul.mubr.bf16.gmra.mrb[0].mxu0 %v204
  %v517 = vpop.f32.mrb[0].mxu0
  %v518 = vadd.f32 0.0, %v517
  %v519 = vpop.f32.mrb[0].mxu0
  %v520 = vpop.f32.mrb[0].mxu0
  %v521 = vadd.f32 0.0, %v520
  %v522 = vpop.f32.mrb[0].mxu0
  %523 = vmatprep.mubr.bf16.mxu0 0
  %524 = vmatmul.mubr.bf16.gmra.mrb[0].mxu0 %v207
  %v525 = vpop.f32.mrb[0].mxu0
  %v526 = vadd.f32 0.0, %v525
  %v527 = vpop.f32.mrb[0].mxu0
  %v528 = vpop.f32.mrb[0].mxu0
  %v529 = vadd.f32 0.0, %v528
  %v530 = vpop.f32.mrb[0].mxu0
  %531 = vmatprep.mubr.bf16.mxu0 0
  %532 = vmatmul.mubr.bf16.gmra.mrb[0].mxu0 %v210
  %v533 = vpop.f32.mrb[0].mxu0
  %v534 = vadd.f32 0.0, %v533
  %v535 = vpop.f32.mrb[0].mxu0
  %v536 = vpop.f32.mrb[0].mxu0
  %v537 = vadd.f32 0.0, %v536
  %v538 = vpop.f32.mrb[0].mxu0
  %539 = vmatprep.mubr.bf16.mxu0 0
  %540 = vmatmul.mubr.bf16.gmra.mrb[0].mxu0 %v213
  %v541 = vpop.f32.mrb[0].mxu0
  %v542 = vadd.f32 0.0, %v541
  %v543 = vpop.f32.mrb[0].mxu0
  %v544 = vpop.f32.mrb[0].mxu0
  %v545 = vadd.f32 0.0, %v544
  %v546 = vpop.f32.mrb[0].mxu0
  %547 = vmatprep.mubr.bf16.mxu0 0
  %548 = vmatmul.mubr.bf16.gmra.mrb[0].mxu0 %v216
  %v549 = vpop.f32.mrb[0].mxu0
  %v550 = vadd.f32 0.0, %v549
  %v551 = vpop.f32.mrb[0].mxu0
  %v552 = vpop.f32.mrb[0].mxu0
  %v553 = vadd.f32 0.0, %v552
  %v554 = vpop.f32.mrb[0].mxu0
  %555 = vmatprep.mubr.bf16.mxu0 0
  %556 = vmatmul.mubr.bf16.gmra.mrb[0].mxu0 %v219
  %v557 = vpop.f32.mrb[0].mxu0
  %v558 = vadd.f32 0.0, %v557
  %v559 = vpop.f32.mrb[0].mxu0
  %v560 = vpop.f32.mrb[0].mxu0
  %v561 = vadd.f32 0.0, %v560
  %v562 = vpop.f32.mrb[0].mxu0
  %563 = vmatprep.mubr.bf16.mxu0 0
  %564 = vmatmul.mubr.bf16.gmra.mrb[0].mxu0 %v222
  %v565 = vpop.f32.mrb[0].mxu0
  %v566 = vadd.f32 0.0, %v565
  %v567 = vpop.f32.mrb[0].mxu0
  %v568 = vpop.f32.mrb[0].mxu0
  %v569 = vadd.f32 0.0, %v568
  %v570 = vpop.f32.mrb[0].mxu0
  %571 = vmatprep.mubr.bf16.mxu0 0
  %572 = vmatmul.mubr.bf16.gmra.mrb[0].mxu0 %v225
  %v573 = vpop.f32.mrb[0].mxu0
  %v574 = vadd.f32 0.0, %v573
  %v575 = vpop.f32.mrb[0].mxu0
  %v576 = vpop.f32.mrb[0].mxu0
  %v577 = vadd.f32 0.0, %v576
  %v578 = vpop.f32.mrb[0].mxu0
  %579 = vmatprep.mubr.bf16.mxu0 0
  %580 = vmatmul.mubr.bf16.gmra.mrb[0].mxu0 %v228
  %v581 = vpop.f32.mrb[0].mxu0
  %v582 = vadd.f32 0.0, %v581
  %v583 = vpop.f32.mrb[0].mxu0
  %v584 = vpop.f32.mrb[0].mxu0
  %v585 = vadd.f32 0.0, %v584
  %v586 = vpop.f32.mrb[0].mxu0
  %587 = vmatprep.mubr.bf16.mxu0 0
  %588 = vmatmul.mubr.bf16.gmra.mrb[0].mxu0 %v231
  %v589 = vpop.f32.mrb[0].mxu0
  %v590 = vadd.f32 0.0, %v589
  %v591 = vpop.f32.mrb[0].mxu0
  %v592 = vpop.f32.mrb[0].mxu0
  %v593 = vadd.f32 0.0, %v592
  %v594 = vpop.f32.mrb[0].mxu0
  %595 = vmatprep.mubr.bf16.mxu0 0
  %596 = vmatmul.mubr.bf16.gmra.mrb[0].mxu0 %v234
  %v597 = vpop.f32.mrb[0].mxu0
  %v598 = vadd.f32 0.0, %v597
  %v599 = vpop.f32.mrb[0].mxu0
  %v600 = vpop.f32.mrb[0].mxu0
  %v601 = vadd.f32 0.0, %v600
  %v602 = vpop.f32.mrb[0].mxu0
  %603 = vmatprep.mubr.bf16.mxu0 0
  %604 = vmatmul.mubr.bf16.gmra.mrb[0].mxu0 %v237
  %v605 = vpop.f32.mrb[0].mxu0
  %v606 = vadd.f32 0.0, %v605
  %v607 = vpop.f32.mrb[0].mxu0
  %v608 = vpop.f32.mrb[0].mxu0
  %v609 = vadd.f32 0.0, %v608
  %v610 = vpop.f32.mrb[0].mxu0
  %611 = vmatprep.mubr.bf16.mxu0 0
  %612 = vmatmul.mubr.bf16.gmra.mrb[0].mxu0 %v240
  %v613 = vpop.f32.mrb[0].mxu0
  %v614 = vpop.f32.mrb[0].mxu0
  %v615 = vpop.f32.mrb[0].mxu0
  %v616 = vpop.f32.mrb[0].mxu0
  %617 = vmatprep.mubr.bf16.mxu0 0
  %618 = vmatmul.mubr.bf16.gmra.mrb[0].mxu0 %v243
  %v619 = vpop.f32.mrb[0].mxu0
  %v620 = vpop.f32.mrb[0].mxu0
  %v621 = vpop.f32.mrb[0].mxu0
  %v622 = vpop.f32.mrb[0].mxu0
  %623 = vdwg.mxu0
  %s624 = scalar_lea.vmem %s1, 16
  %v625 = vld [vmem:[%s624] sm:$0xf]
  %v626 = vld [vmem:[%s624 + $0x4] sm:$0xf]
  %v629 = vunpack.c.l.b16 %v625
  %v630 = vunpack.c.l.b16 %v626
  %v631 = vpack.c.b16 %v630, %v629
  %633 = vmatprep.subr.bf16.mxu0 0
  %634 = vmatpush1.bf16.msra.mxu0 %v631
  %635 = vmatprep.subr.bf16.mxu0 0
  %636 = vmatpush1.bf16.msra.mxu0 0
  %637 = vmatprep.subr.bf16.mxu0 0
  %638 = vmatpush1.bf16.msra.mxu0 0
  %639 = vmatprep.subr.bf16.mxu0 0
  %640 = vmatpush1.bf16.msra.mxu0 0
  %641 = vmatprep.subr.bf16.mxu0 0
  %642 = vmatpush1.bf16.msra.mxu0 0
  %643 = vmatprep.subr.bf16.mxu0 0
  %644 = vmatpush1.bf16.msra.mxu0 0
  %645 = vmatprep.subr.bf16.mxu0 0
  %646 = vmatpush1.bf16.msra.mxu0 0
  %647 = vmatprep.subr.bf16.mxu0 0
  %648 = vmatpush1.bf16.msra.mxu0 0
  %649 = vmatprep.subr.bf16.mxu0 0
  %650 = vmatpush1.bf16.msra.mxu0 0
  %651 = vmatprep.subr.bf16.mxu0 0
  %652 = vmatpush1.bf16.msra.mxu0 0
  %653 = vmatprep.subr.bf16.mxu0 0
  %654 = vmatpush1.bf16.msra.mxu0 0
  %655 = vmatprep.subr.bf16.mxu0 0
  %656 = vmatpush1.bf16.msra.mxu0 0
  %657 = vmatprep.subr.bf16.mxu0 0
  %658 = vmatpush1.bf16.msra.mxu0 0
  %659 = vmatprep.subr.bf16.mxu0 0
  %660 = vmatpush1.bf16.msra.mxu0 0
  %661 = vmatprep.subr.bf16.mxu0 0
  %662 = vmatpush1.bf16.msra.mxu0 0
  %663 = vmatprep.subr.bf16.mxu0 0
  %664 = vmatpush1.bf16.msra.mxu0 0
  %665 = vmatprep.mubr.bf16.mxu0 0
  %666 = vmatmul.mubr.bf16.gmra.mrb[0].mxu0 %v186
  %v667 = vpop.f32.mrb[0].mxu0
  %v668 = vpop.f32.mrb[0].mxu0
  %v669 = vpop.f32.mrb[0].mxu0
  %v670 = vpop.f32.mrb[0].mxu0
  %671 = vmatprep.mubr.bf16.mxu0 0
  %672 = vmatmul.mubr.bf16.gmra.mrb[0].mxu0 %v189
  %v673 = vpop.f32.mrb[0].mxu0
  %v674 = vpop.f32.mrb[0].mxu0
  %v675 = vpop.f32.mrb[0].mxu0
  %v676 = vpop.f32.mrb[0].mxu0
  %677 = vmatprep.mubr.bf16.mxu0 0
  %678 = vmatmul.mubr.bf16.gmra.mrb[0].mxu0 %v192
  %v679 = vpop.f32.mrb[0].mxu0
  %v680 = vpop.f32.mrb[0].mxu0
  %v681 = vpop.f32.mrb[0].mxu0
  %v682 = vpop.f32.mrb[0].mxu0
  %683 = vmatprep.mubr.bf16.mxu0 0
  %684 = vmatmul.mubr.bf16.gmra.mrb[0].mxu0 %v195
  %v685 = vpop.f32.mrb[0].mxu0
  %v686 = vpop.f32.mrb[0].mxu0
  %v687 = vpop.f32.mrb[0].mxu0
  %v688 = vpop.f32.mrb[0].mxu0
  %689 = vmatprep.mubr.bf16.mxu0 0
  %690 = vmatmul.mubr.bf16.gmra.mrb[0].mxu0 %v198
  %v691 = vpop.f32.mrb[0].mxu0
  %v692 = vadd.f32 0.0, %v691
  %v693 = vpop.f32.mrb[0].mxu0
  %v694 = vpop.f32.mrb[0].mxu0
  %v695 = vadd.f32 0.0, %v694
  %v696 = vpop.f32.mrb[0].mxu0
  %697 = vmatprep.mubr.bf16.mxu0 0
  %698 = vmatmul.mubr.bf16.gmra.mrb[0].mxu0 %v201
  %v699 = vpop.f32.mrb[0].mxu0
  %v700 = vadd.f32 0.0, %v699
  %v701 = vpop.f32.mrb[0].mxu0
  %v702 = vpop.f32.mrb[0].mxu0
  %v703 = vadd.f32 0.0, %v702
  %v704 = vpop.f32.mrb[0].mxu0
  %705 = vmatprep.mubr.bf16.mxu0 0
  %706 = vmatmul.mubr.bf16.gmra.mrb[0].mxu0 %v204
  %v707 = vpop.f32.mrb[0].mxu0
  %v708 = vadd.f32 0.0, %v707
  %v709 = vpop.f32.mrb[0].mxu0
  %v710 = vpop.f32.mrb[0].mxu0
  %v711 = vadd.f32 0.0, %v710
  %v712 = vpop.f32.mrb[0].mxu0
  %713 = vmatprep.mubr.bf16.mxu0 0
  %714 = vmatmul.mubr.bf16.gmra.mrb[0].mxu0 %v207
  %v715 = vpop.f32.mrb[0].mxu0
  %v716 = vadd.f32 0.0, %v715
  %v717 = vpop.f32.mrb[0].mxu0
  %v718 = vpop.f32.mrb[0].mxu0
  %v719 = vadd.f32 0.0, %v718
  %v720 = vpop.f32.mrb[0].mxu0
  %721 = vmatprep.mubr.bf16.mxu0 0
  %722 = vmatmul.mubr.bf16.gmra.mrb[0].mxu0 %v210
  %v723 = vpop.f32.mrb[0].mxu0
  %v724 = vadd.f32 0.0, %v723
  %v725 = vpop.f32.mrb[0].mxu0
  %v726 = vpop.f32.mrb[0].mxu0
  %v727 = vadd.f32 0.0, %v726
  %v728 = vpop.f32.mrb[0].mxu0
  %729 = vmatprep.mubr.bf16.mxu0 0
  %730 = vmatmul.mubr.bf16.gmra.mrb[0].mxu0 %v213
  %v731 = vpop.f32.mrb[0].mxu0
  %v732 = vadd.f32 0.0, %v731
  %v733 = vpop.f32.mrb[0].mxu0
  %v734 = vpop.f32.mrb[0].mxu0
  %v735 = vadd.f32 0.0, %v734
  %v736 = vpop.f32.mrb[0].mxu0
  %737 = vmatprep.mubr.bf16.mxu0 0
  %738 = vmatmul.mubr.bf16.gmra.mrb[0].mxu0 %v216
  %v739 = vpop.f32.mrb[0].mxu0
  %v740 = vadd.f32 0.0, %v739
  %v741 = vpop.f32.mrb[0].mxu0
  %v742 = vpop.f32.mrb[0].mxu0
  %v743 = vadd.f32 0.0, %v742
  %v744 = vpop.f32.mrb[0].mxu0
  %745 = vmatprep.mubr.bf16.mxu0 0
  %746 = vmatmul.mubr.bf16.gmra.mrb[0].mxu0 %v219
  %v747 = vpop.f32.mrb[0].mxu0
  %v748 = vadd.f32 0.0, %v747
  %v749 = vpop.f32.mrb[0].mxu0
  %v750 = vpop.f32.mrb[0].mxu0
  %v751 = vadd.f32 0.0, %v750
  %v752 = vpop.f32.mrb[0].mxu0
  %753 = vmatprep.mubr.bf16.mxu0 0
  %754 = vmatmul.mubr.bf16.gmra.mrb[0].mxu0 %v222
  %v755 = vpop.f32.mrb[0].mxu0
  %v756 = vadd.f32 0.0, %v755
  %v757 = vpop.f32.mrb[0].mxu0
  %v758 = vpop.f32.mrb[0].mxu0
  %v759 = vadd.f32 0.0, %v758
  %v760 = vpop.f32.mrb[0].mxu0
  %761 = vmatprep.mubr.bf16.mxu0 0
  %762 = vmatmul.mubr.bf16.gmra.mrb[0].mxu0 %v225
  %v763 = vpop.f32.mrb[0].mxu0
  %v764 = vadd.f32 0.0, %v763
  %v765 = vpop.f32.mrb[0].mxu0
  %v766 = vpop.f32.mrb[0].mxu0
  %v767 = vadd.f32 0.0, %v766
  %v768 = vpop.f32.mrb[0].mxu0
  %769 = vmatprep.mubr.bf16.mxu0 0
  %770 = vmatmul.mubr.bf16.gmra.mrb[0].mxu0 %v228
  %v771 = vpop.f32.mrb[0].mxu0
  %v772 = vadd.f32 0.0, %v771
  %v773 = vpop.f32.mrb[0].mxu0
  %v774 = vpop.f32.mrb[0].mxu0
  %v775 = vadd.f32 0.0, %v774
  %v776 = vpop.f32.mrb[0].mxu0
  %777 = vmatprep.mubr.bf16.mxu0 0
  %778 = vmatmul.mubr.bf16.gmra.mrb[0].mxu0 %v231
  %v779 = vpop.f32.mrb[0].mxu0
  %v780 = vadd.f32 0.0, %v779
  %v781 = vpop.f32.mrb[0].mxu0
  %v782 = vpop.f32.mrb[0].mxu0
  %v783 = vadd.f32 0.0, %v782
  %v784 = vpop.f32.mrb[0].mxu0
  %785 = vmatprep.mubr.bf16.mxu0 0
  %786 = vmatmul.mubr.bf16.gmra.mrb[0].mxu0 %v234
  %v787 = vpop.f32.mrb[0].mxu0
  %v788 = vadd.f32 0.0, %v787
  %v789 = vpop.f32.mrb[0].mxu0
  %v790 = vpop.f32.mrb[0].mxu0
  %v791 = vadd.f32 0.0, %v790
  %v792 = vpop.f32.mrb[0].mxu0
  %793 = vmatprep.mubr.bf16.mxu0 0
  %794 = vmatmul.mubr.bf16.gmra.mrb[0].mxu0 %v237
  %v795 = vpop.f32.mrb[0].mxu0
  %v796 = vadd.f32 0.0, %v795
  %v797 = vpop.f32.mrb[0].mxu0
  %v798 = vpop.f32.mrb[0].mxu0
  %v799 = vadd.f32 0.0, %v798
  %v800 = vpop.f32.mrb[0].mxu0
  %801 = vmatprep.mubr.bf16.mxu0 0
  %802 = vmatmul.mubr.bf16.gmra.mrb[0].mxu0 %v240
  %v803 = vpop.f32.mrb[0].mxu0
  %v804 = vadd.f32 0.0, %v803
  %v805 = vpop.f32.mrb[0].mxu0
  %v806 = vpop.f32.mrb[0].mxu0
  %v807 = vadd.f32 0.0, %v806
  %v808 = vpop.f32.mrb[0].mxu0
  %809 = vmatprep.mubr.bf16.mxu0 0
  %810 = vmatmul.mubr.bf16.gmra.mrb[0].mxu0 %v243
  %v811 = vpop.f32.mrb[0].mxu0
  %v812 = vadd.f32 0.0, %v811
  %v813 = vpop.f32.mrb[0].mxu0
  %v814 = vpop.f32.mrb[0].mxu0
  %v815 = vadd.f32 0.0, %v814
  %v816 = vpop.f32.mrb[0].mxu0
  %817 = vdwg.mxu0
  %v818 = vld [vmem:[%s2] sm:$0x1]
  %v819 = vld [vmem:[%s3] sm:$0x1]
  %v820 = vadd.f32 %v818, %v819
  %v822 = vlaneseq
  %v823 = vshrl.u32 %v822, 7
  %v824 = vsub.s32 0, %v823
  %v825 = vrot.slane %v820, %v824
  %v827 = vadd.f32 %v825, %v280
  %v828 = vadd.f32 %v825, %v283
  %v829 = vadd.f32 %v825, %v288
  %v830 = vadd.f32 %v825, %v291
  %v831 = vadd.f32 %v827, %v486
  %v832 = vadd.f32 %v828, %v489
  %v833 = vadd.f32 %v829, %v494
  %v834 = vadd.f32 %v830, %v497
  %v835 = vadd.f32 %v831, %v692
  %v836 = vadd.f32 %v832, %v695
  %v837 = vadd.f32 %v833, %v700
  %v838 = vadd.f32 %v834, %v703
  %s839 = scalar_lea.vmem %s3, 1
  %v840 = vld [vmem:[%s839] sm:$0x1]
  %v841 = vadd.f32 %v818, %v840
  %v843 = vlaneseq
  %v844 = vshrl.u32 %v843, 7
  %v845 = vsub.s32 0, %v844
  %v846 = vrot.slane %v841, %v845
  %v848 = vadd.f32 %v846, %v296
  %v849 = vadd.f32 %v846, %v299
  %v850 = vadd.f32 %v846, %v304
  %v851 = vadd.f32 %v846, %v307
  %v852 = vadd.f32 %v848, %v502
  %v853 = vadd.f32 %v849, %v505
  %v854 = vadd.f32 %v850, %v510
  %v855 = vadd.f32 %v851, %v513
  %v856 = vadd.f32 %v852, %v708
  %v857 = vadd.f32 %v853, %v711
  %v858 = vadd.f32 %v854, %v716
  %v859 = vadd.f32 %v855, %v719
  %v860 = vmax.f32 %v835, %v856
  %v861 = vmax.f32 %v836, %v857
  %v862 = vmax.f32 %v837, %v858
  %v863 = vmax.f32 %v838, %v859
  %s864 = scalar_lea.vmem %s3, 2
  %v865 = vld [vmem:[%s864] sm:$0x1]
  %v866 = vadd.f32 %v818, %v865
  %v868 = vlaneseq
  %v869 = vshrl.u32 %v868, 7
  %v870 = vsub.s32 0, %v869
  %v871 = vrot.slane %v866, %v870
  %v873 = vadd.f32 %v871, %v312
  %v874 = vadd.f32 %v871, %v315
  %v875 = vadd.f32 %v871, %v320
  %v876 = vadd.f32 %v871, %v323
  %v877 = vadd.f32 %v873, %v518
  %v878 = vadd.f32 %v874, %v521
  %v879 = vadd.f32 %v875, %v526
  %v880 = vadd.f32 %v876, %v529
  %v881 = vadd.f32 %v877, %v724
  %v882 = vadd.f32 %v878, %v727
  %v883 = vadd.f32 %v879, %v732
  %v884 = vadd.f32 %v880, %v735
  %v885 = vmax.f32 %v860, %v881
  %v886 = vmax.f32 %v861, %v882
  %v887 = vmax.f32 %v862, %v883
  %v888 = vmax.f32 %v863, %v884
  %s889 = scalar_lea.vmem %s3, 3
  %v890 = vld [vmem:[%s889] sm:$0x1]
  %v891 = vadd.f32 %v818, %v890
  %v893 = vlaneseq
  %v894 = vshrl.u32 %v893, 7
  %v895 = vsub.s32 0, %v894
  %v896 = vrot.slane %v891, %v895
  %v898 = vadd.f32 %v896, %v328
  %v899 = vadd.f32 %v896, %v331
  %v900 = vadd.f32 %v896, %v336
  %v901 = vadd.f32 %v896, %v339
  %v902 = vadd.f32 %v898, %v534
  %v903 = vadd.f32 %v899, %v537
  %v904 = vadd.f32 %v900, %v542
  %v905 = vadd.f32 %v901, %v545
  %v906 = vadd.f32 %v902, %v740
  %v907 = vadd.f32 %v903, %v743
  %v908 = vadd.f32 %v904, %v748
  %v909 = vadd.f32 %v905, %v751
  %v910 = vmax.f32 %v885, %v906
  %v911 = vmax.f32 %v886, %v907
  %v912 = vmax.f32 %v887, %v908
  %v913 = vmax.f32 %v888, %v909
  %s914 = scalar_lea.vmem %s3, 4
  %v915 = vld [vmem:[%s914] sm:$0x1]
  %v916 = vadd.f32 %v818, %v915
  %v918 = vlaneseq
  %v919 = vshrl.u32 %v918, 7
  %v920 = vsub.s32 0, %v919
  %v921 = vrot.slane %v916, %v920
  %v923 = vadd.f32 %v921, %v344
  %v924 = vadd.f32 %v921, %v347
  %v925 = vadd.f32 %v921, %v352
  %v926 = vadd.f32 %v921, %v355
  %v927 = vadd.f32 %v923, %v550
  %v928 = vadd.f32 %v924, %v553
  %v929 = vadd.f32 %v925, %v558
  %v930 = vadd.f32 %v926, %v561
  %v931 = vadd.f32 %v927, %v756
  %v932 = vadd.f32 %v928, %v759
  %v933 = vadd.f32 %v929, %v764
  %v934 = vadd.f32 %v930, %v767
  %v935 = vmax.f32 %v910, %v931
  %v936 = vmax.f32 %v911, %v932
  %v937 = vmax.f32 %v912, %v933
  %v938 = vmax.f32 %v913, %v934
  %s939 = scalar_lea.vmem %s3, 5
  %v940 = vld [vmem:[%s939] sm:$0x1]
  %v941 = vadd.f32 %v818, %v940
  %v943 = vlaneseq
  %v944 = vshrl.u32 %v943, 7
  %v945 = vsub.s32 0, %v944
  %v946 = vrot.slane %v941, %v945
  %v948 = vadd.f32 %v946, %v360
  %v949 = vadd.f32 %v946, %v363
  %v950 = vadd.f32 %v946, %v368
  %v951 = vadd.f32 %v946, %v371
  %v952 = vadd.f32 %v948, %v566
  %v953 = vadd.f32 %v949, %v569
  %v954 = vadd.f32 %v950, %v574
  %v955 = vadd.f32 %v951, %v577
  %v956 = vadd.f32 %v952, %v772
  %v957 = vadd.f32 %v953, %v775
  %v958 = vadd.f32 %v954, %v780
  %v959 = vadd.f32 %v955, %v783
  %v960 = vmax.f32 %v935, %v956
  %v961 = vmax.f32 %v936, %v957
  %v962 = vmax.f32 %v937, %v958
  %v963 = vmax.f32 %v938, %v959
  %s964 = scalar_lea.vmem %s3, 6
  %v965 = vld [vmem:[%s964] sm:$0x1]
  %v966 = vadd.f32 %v818, %v965
  %v968 = vlaneseq
  %v969 = vshrl.u32 %v968, 7
  %v970 = vsub.s32 0, %v969
  %v971 = vrot.slane %v966, %v970
  %v973 = vadd.f32 %v971, %v376
  %v974 = vadd.f32 %v971, %v379
  %v975 = vadd.f32 %v971, %v384
  %v976 = vadd.f32 %v971, %v387
  %v977 = vadd.f32 %v973, %v582
  %v978 = vadd.f32 %v974, %v585
  %v979 = vadd.f32 %v975, %v590
  %v980 = vadd.f32 %v976, %v593
  %v981 = vadd.f32 %v977, %v788
  %v982 = vadd.f32 %v978, %v791
  %v983 = vadd.f32 %v979, %v796
  %v984 = vadd.f32 %v980, %v799
  %v985 = vmax.f32 %v960, %v981
  %v986 = vmax.f32 %v961, %v982
  %v987 = vmax.f32 %v962, %v983
  %v988 = vmax.f32 %v963, %v984
  %s989 = scalar_lea.vmem %s3, 7
  %v990 = vld [vmem:[%s989] sm:$0x1]
  %v991 = vadd.f32 %v818, %v990
  %v993 = vlaneseq
  %v994 = vshrl.u32 %v993, 7
  %v995 = vsub.s32 0, %v994
  %v996 = vrot.slane %v991, %v995
  %v998 = vadd.f32 %v996, %v392
  %v999 = vadd.f32 %v996, %v395
  %v1000 = vadd.f32 %v996, %v400
  %v1001 = vadd.f32 %v996, %v403
  %v1002 = vadd.f32 %v998, %v598
  %v1003 = vadd.f32 %v999, %v601
  %v1004 = vadd.f32 %v1000, %v606
  %v1005 = vadd.f32 %v1001, %v609
  %v1006 = vadd.f32 %v1002, %v804
  %v1007 = vadd.f32 %v1003, %v807
  %v1008 = vadd.f32 %v1004, %v812
  %v1009 = vadd.f32 %v1005, %v815
  %v1010 = vmax.f32 %v985, %v1006
  %v1011 = vmax.f32 %v986, %v1007
  %v1012 = vmax.f32 %v987, %v1008
  %v1013 = vmax.f32 %v988, %v1009
  %v1014 = vmax.f32 %v1010, 0.0
  %v1015 = vmax.f32 %v1011, 0.0
  %v1016 = vmax.f32 %v1012, 0.0
  %v1017 = vmax.f32 %v1013, 0.0
  %v1018 = vpack.c.bf16 %v1015, %v1014
  %v1019 = vpack.c.bf16 %v1017, %v1016
  %v1020 = vld [vmem:[%s4] sm:$0xf]
  %v1021 = vld [vmem:[%s4 + $0x4] sm:$0xf]
  %v1022 = vld [vmem:[%s4 + $0x8] sm:$0xf]
  %v1023 = vld [vmem:[%s4 + $0xc] sm:$0xf]
  %v1024 = vld [vmem:[%s5] sm:$0x1]
  %v1026 = vlaneseq
  %v1027 = vshrl.u32 %v1026, 7
  %v1028 = vsub.s32 0, %v1027
  %v1029 = vrot.slane %v1024, %v1028
  %v1035 = vunpack.c.l.b16 %v1020
  %v1036 = vunpack.c.l.b16 %v1021
  %v1037 = vunpack.c.l.b16 %v1022
  %v1038 = vunpack.c.l.b16 %v1023
  %v1039 = vpack.c.b16 %v1036, %v1035
  %v1040 = vpack.c.b16 %v1038, %v1037
  %vm1043 = vcmask 261120
  %v1045 = vsel %vm1043, %v1018, 0
  %v1048 = vsel %vm1043, %v1019, 0
  %1050 = vmatprep.subr.bf16.mxu0 0
  %1051 = vmatpush1.bf16.msra.mxu0 %v1039
  %1052 = vmatprep.subr.bf16.mxu0 0
  %1053 = vmatpush1.bf16.msra.mxu0 %v1040
  %1054 = vmatprep.subr.bf16.mxu0 0
  %1055 = vmatpush1.bf16.msra.mxu0 0
  %1056 = vmatprep.subr.bf16.mxu0 0
  %1057 = vmatpush1.bf16.msra.mxu0 0
  %1058 = vmatprep.subr.bf16.mxu0 0
  %1059 = vmatpush1.bf16.msra.mxu0 0
  %1060 = vmatprep.subr.bf16.mxu0 0
  %1061 = vmatpush1.bf16.msra.mxu0 0
  %1062 = vmatprep.subr.bf16.mxu0 0
  %1063 = vmatpush1.bf16.msra.mxu0 0
  %1064 = vmatprep.subr.bf16.mxu0 0
  %1065 = vmatpush1.bf16.msra.mxu0 0
  %1066 = vmatprep.subr.bf16.mxu0 0
  %1067 = vmatpush1.bf16.msra.mxu0 0
  %1068 = vmatprep.subr.bf16.mxu0 0
  %1069 = vmatpush1.bf16.msra.mxu0 0
  %1070 = vmatprep.subr.bf16.mxu0 0
  %1071 = vmatpush1.bf16.msra.mxu0 0
  %1072 = vmatprep.subr.bf16.mxu0 0
  %1073 = vmatpush1.bf16.msra.mxu0 0
  %1074 = vmatprep.subr.bf16.mxu0 0
  %1075 = vmatpush1.bf16.msra.mxu0 0
  %1076 = vmatprep.subr.bf16.mxu0 0
  %1077 = vmatpush1.bf16.msra.mxu0 0
  %1078 = vmatprep.subr.bf16.mxu0 0
  %1079 = vmatpush1.bf16.msra.mxu0 0
  %1080 = vmatprep.subr.bf16.mxu0 0
  %1081 = vmatpush1.bf16.msra.mxu0 0
  %1082 = vmatprep.mubr.bf16.mxu0 0
  %1083 = vmatmul.mubr.bf16.gmra.mrb[0].mxu0 %v1045
  %v1084 = vpop.f32.mrb[0].mxu0
  %v1085 = vadd.f32 %v1029, %v1084
  %v1086 = vpop.f32.mrb[0].mxu0
  %v1087 = vpop.f32.mrb[0].mxu0
  %v1088 = vadd.f32 %v1029, %v1087
  %v1089 = vpop.f32.mrb[0].mxu0
  %1090 = vmatprep.mubr.bf16.mxu0 0
  %1091 = vmatmul.mubr.bf16.gmra.mrb[0].mxu0 %v1048
  %v1092 = vpop.f32.mrb[0].mxu0
  %v1093 = vadd.f32 %v1029, %v1092
  %v1094 = vpop.f32.mrb[0].mxu0
  %v1095 = vpop.f32.mrb[0].mxu0
  %v1096 = vadd.f32 %v1029, %v1095
  %v1097 = vpop.f32.mrb[0].mxu0
  %1098 = vdwg.mxu0
  %v1099 = vmax.f32 %v1085, 0.0
  %v1100 = vmax.f32 %v1088, 0.0
  %v1101 = vmax.f32 %v1093, 0.0
  %v1102 = vmax.f32 %v1096, 0.0
  %v1103 = vld [vmem:[%s6] sm:$0xf]
  %v1104 = vld [vmem:[%s6 + $0x4] sm:$0xf]
  %v1105 = vld [vmem:[%s6 + $0x8] sm:$0xf]
  %v1106 = vld [vmem:[%s6 + $0xc] sm:$0xf]
  %v1107 = vld [vmem:[%s7] sm:$0x1]
  %v1109 = vlaneseq
  %v1110 = vshrl.u32 %v1109, 7
  %v1111 = vsub.s32 0, %v1110
  %v1112 = vrot.slane %v1107, %v1111
  %v1118 = vunpack.c.l.b16 %v1103
  %v1119 = vunpack.c.l.b16 %v1104
  %v1120 = vunpack.c.l.b16 %v1105
  %v1121 = vunpack.c.l.b16 %v1106
  %v1122 = vpack.c.b16 %v1119, %v1118
  %v1123 = vpack.c.b16 %v1121, %v1120
  %1126 = vmatprep.subr.bf16.mxu0 0
  %1127 = vmatpush1.bf16.msra.mxu0 %v1122
  %1128 = vmatprep.subr.bf16.mxu0 0
  %1129 = vmatpush1.bf16.msra.mxu0 %v1123
  %1130 = vmatprep.subr.bf16.mxu0 0
  %1131 = vmatpush1.bf16.msra.mxu0 0
  %1132 = vmatprep.subr.bf16.mxu0 0
  %1133 = vmatpush1.bf16.msra.mxu0 0
  %1134 = vmatprep.subr.bf16.mxu0 0
  %1135 = vmatpush1.bf16.msra.mxu0 0
  %1136 = vmatprep.subr.bf16.mxu0 0
  %1137 = vmatpush1.bf16.msra.mxu0 0
  %1138 = vmatprep.subr.bf16.mxu0 0
  %1139 = vmatpush1.bf16.msra.mxu0 0
  %1140 = vmatprep.subr.bf16.mxu0 0
  %1141 = vmatpush1.bf16.msra.mxu0 0
  %1142 = vmatprep.subr.bf16.mxu0 0
  %1143 = vmatpush1.bf16.msra.mxu0 0
  %1144 = vmatprep.subr.bf16.mxu0 0
  %1145 = vmatpush1.bf16.msra.mxu0 0
  %1146 = vmatprep.subr.bf16.mxu0 0
  %1147 = vmatpush1.bf16.msra.mxu0 0
  %1148 = vmatprep.subr.bf16.mxu0 0
  %1149 = vmatpush1.bf16.msra.mxu0 0
  %1150 = vmatprep.subr.bf16.mxu0 0
  %1151 = vmatpush1.bf16.msra.mxu0 0
  %1152 = vmatprep.subr.bf16.mxu0 0
  %1153 = vmatpush1.bf16.msra.mxu0 0
  %1154 = vmatprep.subr.bf16.mxu0 0
  %1155 = vmatpush1.bf16.msra.mxu0 0
  %1156 = vmatprep.subr.bf16.mxu0 0
  %1157 = vmatpush1.bf16.msra.mxu0 0
  %1158 = vmatprep.mubr.bf16.mxu0 0
  %1159 = vmatmul.mubr.bf16.gmra.mrb[0].mxu0 %v1045
  %v1160 = vpop.f32.mrb[0].mxu0
  %v1161 = vadd.f32 %v1112, %v1160
  %v1162 = vpop.f32.mrb[0].mxu0
  %v1163 = vpop.f32.mrb[0].mxu0
  %v1164 = vadd.f32 %v1112, %v1163
  %v1165 = vpop.f32.mrb[0].mxu0
  %1166 = vmatprep.mubr.bf16.mxu0 0
  %1167 = vmatmul.mubr.bf16.gmra.mrb[0].mxu0 %v1048
  %v1168 = vpop.f32.mrb[0].mxu0
  %v1169 = vadd.f32 %v1112, %v1168
  %v1170 = vpop.f32.mrb[0].mxu0
  %v1171 = vpop.f32.mrb[0].mxu0
  %v1172 = vadd.f32 %v1112, %v1171
  %v1173 = vpop.f32.mrb[0].mxu0
  %1174 = vdwg.mxu0
  %v1175 = vxor.u32 %v1161, 2147483648
  %v1176 = vxor.u32 %v1164, 2147483648
  %v1177 = vxor.u32 %v1169, 2147483648
  %v1178 = vxor.u32 %v1172, 2147483648
  %v1179 = vmul.f32 %v1175, 1.442695
  %v1180 = vpow.pop %v1179
  %v1181 = vmul.f32 %v1176, 1.442695
  %v1182 = vpow.pop %v1181
  %v1183 = vmul.f32 %v1177, 1.442695
  %v1184 = vpow.pop %v1183
  %v1185 = vmul.f32 %v1178, 1.442695
  %v1186 = vpow.pop %v1185
  %v1187 = vadd.f32 %v1180, 1.0
  %v1188 = vadd.f32 %v1182, 1.0
  %v1189 = vadd.f32 %v1184, 1.0
  %v1190 = vadd.f32 %v1186, 1.0
  %v1191 = vrcp.pop %v1187
  %v1192 = vmul.f32 1.0, %v1191
  %v1193 = vrcp.pop %v1188
  %v1194 = vmul.f32 1.0, %v1193
  %v1195 = vrcp.pop %v1189
  %v1196 = vmul.f32 1.0, %v1195
  %v1197 = vrcp.pop %v1190
  %v1198 = vmul.f32 1.0, %v1197
  %v1199 = vmul.f32 %v1192, %v1014
  %v1200 = vmul.f32 %v1194, %v1015
  %v1201 = vmul.f32 %v1196, %v1016
  %v1202 = vmul.f32 %v1198, %v1017
  %v1203 = vsub.f32 1.0, %v1192
  %v1204 = vsub.f32 1.0, %v1194
  %v1205 = vsub.f32 1.0, %v1196
  %v1206 = vsub.f32 1.0, %v1198
  %v1207 = vmul.f32 %v1203, %v1099
  %v1208 = vmul.f32 %v1204, %v1100
  %v1209 = vmul.f32 %v1205, %v1101
  %v1210 = vmul.f32 %v1206, %v1102
  %v1211 = vadd.f32 %v1199, %v1207
  %v1212 = vadd.f32 %v1200, %v1208
  %v1213 = vadd.f32 %v1201, %v1209
  %v1214 = vadd.f32 %v1202, %v1210
  %v1215 = vpack.c.bf16 %v1212, %v1211
  %v1216 = vpack.c.bf16 %v1214, %v1213
  %s1217 = scalar_lea.vmem %s4, 16
  %v1218 = vld [vmem:[%s1217] sm:$0xf]
  %v1219 = vld [vmem:[%s1217 + $0x4] sm:$0xf]
  %v1220 = vld [vmem:[%s1217 + $0x8] sm:$0xf]
  %v1221 = vld [vmem:[%s1217 + $0xc] sm:$0xf]
  %s1222 = scalar_lea.vmem %s5, 1
  %v1223 = vld [vmem:[%s1222] sm:$0x1]
  %v1225 = vlaneseq
  %v1226 = vshrl.u32 %v1225, 7
  %v1227 = vsub.s32 0, %v1226
  %v1228 = vrot.slane %v1223, %v1227
  %v1234 = vunpack.c.l.b16 %v1218
  %v1235 = vunpack.c.l.b16 %v1219
  %v1236 = vunpack.c.l.b16 %v1220
  %v1237 = vunpack.c.l.b16 %v1221
  %v1238 = vpack.c.b16 %v1235, %v1234
  %v1239 = vpack.c.b16 %v1237, %v1236
  %v1243 = vsel %vm1043, %v1215, 0
  %v1246 = vsel %vm1043, %v1216, 0
  %1248 = vmatprep.subr.bf16.mxu0 0
  %1249 = vmatpush1.bf16.msra.mxu0 %v1238
  %1250 = vmatprep.subr.bf16.mxu0 0
  %1251 = vmatpush1.bf16.msra.mxu0 %v1239
  %1252 = vmatprep.subr.bf16.mxu0 0
  %1253 = vmatpush1.bf16.msra.mxu0 0
  %1254 = vmatprep.subr.bf16.mxu0 0
  %1255 = vmatpush1.bf16.msra.mxu0 0
  %1256 = vmatprep.subr.bf16.mxu0 0
  %1257 = vmatpush1.bf16.msra.mxu0 0
  %1258 = vmatprep.subr.bf16.mxu0 0
  %1259 = vmatpush1.bf16.msra.mxu0 0
  %1260 = vmatprep.subr.bf16.mxu0 0
  %1261 = vmatpush1.bf16.msra.mxu0 0
  %1262 = vmatprep.subr.bf16.mxu0 0
  %1263 = vmatpush1.bf16.msra.mxu0 0
  %1264 = vmatprep.subr.bf16.mxu0 0
  %1265 = vmatpush1.bf16.msra.mxu0 0
  %1266 = vmatprep.subr.bf16.mxu0 0
  %1267 = vmatpush1.bf16.msra.mxu0 0
  %1268 = vmatprep.subr.bf16.mxu0 0
  %1269 = vmatpush1.bf16.msra.mxu0 0
  %1270 = vmatprep.subr.bf16.mxu0 0
  %1271 = vmatpush1.bf16.msra.mxu0 0
  %1272 = vmatprep.subr.bf16.mxu0 0
  %1273 = vmatpush1.bf16.msra.mxu0 0
  %1274 = vmatprep.subr.bf16.mxu0 0
  %1275 = vmatpush1.bf16.msra.mxu0 0
  %1276 = vmatprep.subr.bf16.mxu0 0
  %1277 = vmatpush1.bf16.msra.mxu0 0
  %1278 = vmatprep.subr.bf16.mxu0 0
  %1279 = vmatpush1.bf16.msra.mxu0 0
  %1280 = vmatprep.mubr.bf16.mxu0 0
  %1281 = vmatmul.mubr.bf16.gmra.mrb[0].mxu0 %v1243
  %v1282 = vpop.f32.mrb[0].mxu0
  %v1283 = vadd.f32 %v1228, %v1282
  %v1284 = vpop.f32.mrb[0].mxu0
  %v1285 = vpop.f32.mrb[0].mxu0
  %v1286 = vadd.f32 %v1228, %v1285
  %v1287 = vpop.f32.mrb[0].mxu0
  %1288 = vmatprep.mubr.bf16.mxu0 0
  %1289 = vmatmul.mubr.bf16.gmra.mrb[0].mxu0 %v1246
  %v1290 = vpop.f32.mrb[0].mxu0
  %v1291 = vadd.f32 %v1228, %v1290
  %v1292 = vpop.f32.mrb[0].mxu0
  %v1293 = vpop.f32.mrb[0].mxu0
  %v1294 = vadd.f32 %v1228, %v1293
  %v1295 = vpop.f32.mrb[0].mxu0
  %1296 = vdwg.mxu0
  %v1297 = vmax.f32 %v1283, 0.0
  %v1298 = vmax.f32 %v1286, 0.0
  %v1299 = vmax.f32 %v1291, 0.0
  %v1300 = vmax.f32 %v1294, 0.0
  %s1301 = scalar_lea.vmem %s6, 16
  %v1302 = vld [vmem:[%s1301] sm:$0xf]
  %v1303 = vld [vmem:[%s1301 + $0x4] sm:$0xf]
  %v1304 = vld [vmem:[%s1301 + $0x8] sm:$0xf]
  %v1305 = vld [vmem:[%s1301 + $0xc] sm:$0xf]
  %s1306 = scalar_lea.vmem %s7, 1
  %v1307 = vld [vmem:[%s1306] sm:$0x1]
  %v1309 = vlaneseq
  %v1310 = vshrl.u32 %v1309, 7
  %v1311 = vsub.s32 0, %v1310
  %v1312 = vrot.slane %v1307, %v1311
  %v1318 = vunpack.c.l.b16 %v1302
  %v1319 = vunpack.c.l.b16 %v1303
  %v1320 = vunpack.c.l.b16 %v1304
  %v1321 = vunpack.c.l.b16 %v1305
  %v1322 = vpack.c.b16 %v1319, %v1318
  %v1323 = vpack.c.b16 %v1321, %v1320
  %1326 = vmatprep.subr.bf16.mxu0 0
  %1327 = vmatpush1.bf16.msra.mxu0 %v1322
  %1328 = vmatprep.subr.bf16.mxu0 0
  %1329 = vmatpush1.bf16.msra.mxu0 %v1323
  %1330 = vmatprep.subr.bf16.mxu0 0
  %1331 = vmatpush1.bf16.msra.mxu0 0
  %1332 = vmatprep.subr.bf16.mxu0 0
  %1333 = vmatpush1.bf16.msra.mxu0 0
  %1334 = vmatprep.subr.bf16.mxu0 0
  %1335 = vmatpush1.bf16.msra.mxu0 0
  %1336 = vmatprep.subr.bf16.mxu0 0
  %1337 = vmatpush1.bf16.msra.mxu0 0
  %1338 = vmatprep.subr.bf16.mxu0 0
  %1339 = vmatpush1.bf16.msra.mxu0 0
  %1340 = vmatprep.subr.bf16.mxu0 0
  %1341 = vmatpush1.bf16.msra.mxu0 0
  %1342 = vmatprep.subr.bf16.mxu0 0
  %1343 = vmatpush1.bf16.msra.mxu0 0
  %1344 = vmatprep.subr.bf16.mxu0 0
  %1345 = vmatpush1.bf16.msra.mxu0 0
  %1346 = vmatprep.subr.bf16.mxu0 0
  %1347 = vmatpush1.bf16.msra.mxu0 0
  %1348 = vmatprep.subr.bf16.mxu0 0
  %1349 = vmatpush1.bf16.msra.mxu0 0
  %1350 = vmatprep.subr.bf16.mxu0 0
  %1351 = vmatpush1.bf16.msra.mxu0 0
  %1352 = vmatprep.subr.bf16.mxu0 0
  %1353 = vmatpush1.bf16.msra.mxu0 0
  %1354 = vmatprep.subr.bf16.mxu0 0
  %1355 = vmatpush1.bf16.msra.mxu0 0
  %1356 = vmatprep.subr.bf16.mxu0 0
  %1357 = vmatpush1.bf16.msra.mxu0 0
  %1358 = vmatprep.mubr.bf16.mxu0 0
  %1359 = vmatmul.mubr.bf16.gmra.mrb[0].mxu0 %v1243
  %v1360 = vpop.f32.mrb[0].mxu0
  %v1361 = vadd.f32 %v1312, %v1360
  %v1362 = vpop.f32.mrb[0].mxu0
  %v1363 = vpop.f32.mrb[0].mxu0
  %v1364 = vadd.f32 %v1312, %v1363
  %v1365 = vpop.f32.mrb[0].mxu0
  %1366 = vmatprep.mubr.bf16.mxu0 0
  %1367 = vmatmul.mubr.bf16.gmra.mrb[0].mxu0 %v1246
  %v1368 = vpop.f32.mrb[0].mxu0
  %v1369 = vadd.f32 %v1312, %v1368
  %v1370 = vpop.f32.mrb[0].mxu0
  %v1371 = vpop.f32.mrb[0].mxu0
  %v1372 = vadd.f32 %v1312, %v1371
  %v1373 = vpop.f32.mrb[0].mxu0
  %1374 = vdwg.mxu0
  %v1375 = vxor.u32 %v1361, 2147483648
  %v1376 = vxor.u32 %v1364, 2147483648
  %v1377 = vxor.u32 %v1369, 2147483648
  %v1378 = vxor.u32 %v1372, 2147483648
  %v1379 = vmul.f32 %v1375, 1.442695
  %v1380 = vpow.pop %v1379
  %v1381 = vmul.f32 %v1376, 1.442695
  %v1382 = vpow.pop %v1381
  %v1383 = vmul.f32 %v1377, 1.442695
  %v1384 = vpow.pop %v1383
  %v1385 = vmul.f32 %v1378, 1.442695
  %v1386 = vpow.pop %v1385
  %v1387 = vadd.f32 %v1380, 1.0
  %v1388 = vadd.f32 %v1382, 1.0
  %v1389 = vadd.f32 %v1384, 1.0
  %v1390 = vadd.f32 %v1386, 1.0
  %v1391 = vrcp.pop %v1387
  %v1392 = vmul.f32 1.0, %v1391
  %v1393 = vrcp.pop %v1388
  %v1394 = vmul.f32 1.0, %v1393
  %v1395 = vrcp.pop %v1389
  %v1396 = vmul.f32 1.0, %v1395
  %v1397 = vrcp.pop %v1390
  %v1398 = vmul.f32 1.0, %v1397
  %v1399 = vmul.f32 %v1392, %v1211
  %v1400 = vmul.f32 %v1394, %v1212
  %v1401 = vmul.f32 %v1396, %v1213
  %v1402 = vmul.f32 %v1398, %v1214
  %v1403 = vsub.f32 1.0, %v1392
  %v1404 = vsub.f32 1.0, %v1394
  %v1405 = vsub.f32 1.0, %v1396
  %v1406 = vsub.f32 1.0, %v1398
  %v1407 = vmul.f32 %v1403, %v1297
  %v1408 = vmul.f32 %v1404, %v1298
  %v1409 = vmul.f32 %v1405, %v1299
  %v1410 = vmul.f32 %v1406, %v1300
  %v1411 = vadd.f32 %v1399, %v1407
  %v1412 = vadd.f32 %v1400, %v1408
  %v1413 = vadd.f32 %v1401, %v1409
  %v1414 = vadd.f32 %v1402, %v1410
  %v1415 = vpack.c.bf16 %v1412, %v1411
  %v1416 = vpack.c.bf16 %v1414, %v1413
  %v1417 = vld [vmem:[%s8] sm:$0xf]
  %v1418 = vld [vmem:[%s8 + $0x4] sm:$0xf]
  %v1419 = vld [vmem:[%s8 + $0x8] sm:$0xf]
  %v1420 = vld [vmem:[%s8 + $0xc] sm:$0xf]
  %v1421 = vld [vmem:[%s9] sm:$0x1]
  %v1423 = vlaneseq
  %v1424 = vshrl.u32 %v1423, 7
  %v1425 = vsub.s32 0, %v1424
  %v1426 = vrot.slane %v1421, %v1425
  %v1432 = vunpack.c.l.b16 %v1417
  %v1433 = vunpack.c.l.b16 %v1418
  %v1434 = vunpack.c.l.b16 %v1419
  %v1435 = vunpack.c.l.b16 %v1420
  %v1436 = vpack.c.b16 %v1433, %v1432
  %v1437 = vpack.c.b16 %v1435, %v1434
  %v1441 = vsel %vm1043, %v1415, 0
  %v1444 = vsel %vm1043, %v1416, 0
  %1446 = vmatprep.subr.bf16.mxu0 0
  %1447 = vmatpush1.bf16.msra.mxu0 %v1436
  %1448 = vmatprep.subr.bf16.mxu0 0
  %1449 = vmatpush1.bf16.msra.mxu0 %v1437
  %1450 = vmatprep.subr.bf16.mxu0 0
  %1451 = vmatpush1.bf16.msra.mxu0 0
  %1452 = vmatprep.subr.bf16.mxu0 0
  %1453 = vmatpush1.bf16.msra.mxu0 0
  %1454 = vmatprep.subr.bf16.mxu0 0
  %1455 = vmatpush1.bf16.msra.mxu0 0
  %1456 = vmatprep.subr.bf16.mxu0 0
  %1457 = vmatpush1.bf16.msra.mxu0 0
  %1458 = vmatprep.subr.bf16.mxu0 0
  %1459 = vmatpush1.bf16.msra.mxu0 0
  %1460 = vmatprep.subr.bf16.mxu0 0
  %1461 = vmatpush1.bf16.msra.mxu0 0
  %1462 = vmatprep.subr.bf16.mxu0 0
  %1463 = vmatpush1.bf16.msra.mxu0 0
  %1464 = vmatprep.subr.bf16.mxu0 0
  %1465 = vmatpush1.bf16.msra.mxu0 0
  %1466 = vmatprep.subr.bf16.mxu0 0
  %1467 = vmatpush1.bf16.msra.mxu0 0
  %1468 = vmatprep.subr.bf16.mxu0 0
  %1469 = vmatpush1.bf16.msra.mxu0 0
  %1470 = vmatprep.subr.bf16.mxu0 0
  %1471 = vmatpush1.bf16.msra.mxu0 0
  %1472 = vmatprep.subr.bf16.mxu0 0
  %1473 = vmatpush1.bf16.msra.mxu0 0
  %1474 = vmatprep.subr.bf16.mxu0 0
  %1475 = vmatpush1.bf16.msra.mxu0 0
  %1476 = vmatprep.subr.bf16.mxu0 0
  %1477 = vmatpush1.bf16.msra.mxu0 0
  %1478 = vmatprep.mubr.bf16.mxu0 0
  %1479 = vmatmul.mubr.bf16.gmra.mrb[0].mxu0 %v1441
  %v1480 = vpop.f32.mrb[0].mxu0
  %v1481 = vadd.f32 %v1426, %v1480
  %v1482 = vpop.f32.mrb[0].mxu0
  %v1483 = vpop.f32.mrb[0].mxu0
  %v1484 = vadd.f32 %v1426, %v1483
  %v1485 = vpop.f32.mrb[0].mxu0
  %1486 = vmatprep.mubr.bf16.mxu0 0
  %1487 = vmatmul.mubr.bf16.gmra.mrb[0].mxu0 %v1444
  %v1488 = vpop.f32.mrb[0].mxu0
  %v1489 = vadd.f32 %v1426, %v1488
  %v1490 = vpop.f32.mrb[0].mxu0
  %v1491 = vpop.f32.mrb[0].mxu0
  %v1492 = vadd.f32 %v1426, %v1491
  %v1493 = vpop.f32.mrb[0].mxu0
  %1494 = vdwg.mxu0
  %1495 = vst.msk [vmem:[%s10] sm:$0xff] %vm1043, %v1481
  %1496 = vst.msk [vmem:[%s10 + $0x8] sm:$0xff] %vm1043, %v1484
  %1497 = vst.msk [vmem:[%s10 + $0x10] sm:$0xff] %vm1043, %v1489
  %1498 = vst.msk [vmem:[%s10 + $0x18] sm:$0xff] %vm1043, %v1492
  // Predicated region
  $region42: #{elmo_forward.2} parent=0 // pred_check
    _
  $region43: #{elmo_forward.2} parent=0 // pred_check_branch
    %1500 = sbr.rel (0) target = $region45
  $region44: #{elmo_forward.2} parent=0 // pred_region
    _
  $region45: #{elmo_forward.2} parent=0 // pred_fallthru
    _
  // Predicated region
  $region46: #{elmo_forward.2} parent=0 // pred_check
    _
  $region47: #{elmo_forward.2} parent=0 // pred_check_branch
    %1502 = sbr.rel (0) target = $region49
  $region48: #{elmo_forward.2} parent=0 // pred_region
    _
  $region49: #{elmo_forward.2} parent=0 // pred_fallthru
    _

// kernel: elmo_forward.3
$region0: #{elmo_forward.3}
  #allocation0 [shape = 'u32[]', space=smem, size = 0x4, offset = 0x4, fixed_abs, tag = 'smem constant byte address 0x4 - core index']
  #allocation1 [shape = 'u32[144,128]{1,0:T(1,128)}', space=vmem, size = 0x12000, scoped, tag = 'internal scratch']
  #allocation2 [shape = 'f32[10,8,32]{2,1,0:T(8,128)}', space=vmem, size = 0xa000, scoped, tag = 'scratch operand']
  #allocation3 [shape = 'f32[10,8,32]{2,1,0:T(8,128)}', space=vmem, size = 0xa000, scoped, tag = 'scratch operand']
  #allocation4 [shape = 'f32[10,8,512]{2,1,0:T(8,128)}', space=vmem, size = 0x28000, scoped, tag = 'scratch operand']
  #allocation5 [shape = 'f32[10,8,512]{2,1,0:T(8,128)}', space=vmem, size = 0x28000, scoped, tag = 'scratch operand']
  #allocation6 [shape = 'f32[10,8,32]{2,1,0:T(8,128)}', space=vmem, size = 0xa000, scoped, tag = 'scratch operand']
  #allocation7 [shape = 'f32[10,8,32]{2,1,0:T(8,128)}', space=vmem, size = 0xa000, scoped, tag = 'scratch operand']
  %s0 = inlined_call_operand.vmem [shape: f32[10,8,32], index: 0, kind: input, shape index: {}]
  %s1 = inlined_call_operand.vmem [shape: f32[10,8,1], index: 1, kind: input, shape index: {}]
  %s2 = inlined_call_operand.vmem [shape: f32[10,8,64], index: 2, kind: input, shape index: {}]
  %s3 = inlined_call_operand.vmem [shape: f32[10,8,128], index: 3, kind: input, shape index: {}]
  %s4 = inlined_call_operand.vmem [shape: bf16[2,32,512], index: 4, kind: input, shape index: {}]
  %s5 = inlined_call_operand.vmem [shape: bf16[2,32,512], index: 5, kind: input, shape index: {}]
  %s6 = inlined_call_operand.vmem [shape: bf16[2,64,512], index: 6, kind: input, shape index: {}]
  %s7 = inlined_call_operand.vmem [shape: f32[2,1,512], index: 7, kind: input, shape index: {}]
  %s8 = inlined_call_operand.vmem [shape: bf16[2,128,64], index: 8, kind: input, shape index: {}]
  %s9 = inlined_call_operand.vmem [shape: f32[3,10,8,64], index: 9, kind: output, shape index: {}]
  %s10 = sld [smem:[#allocation0]]
  $region46: #{elmo_forward.3} parent=0
    _
  %s12 = ssub.s32 1, %s10
  %s13 = scalar_select 0, %s12, %s10
  // Predicated region
  $region2: #{elmo_forward.3} parent=0 // pred_check
    _
  $region3: #{elmo_forward.3} parent=0 // pred_check_branch
    %15 = sbr.rel (0) target = $region5
  $region4: #{elmo_forward.3} parent=0 // pred_region
    _
  $region5: #{elmo_forward.3} parent=0 // pred_fallthru
    _
  // Predicated region
  $region6: #{elmo_forward.3} parent=0 // pred_check
    _
  $region7: #{elmo_forward.3} parent=0 // pred_check_branch
    %17 = sbr.rel (0) target = $region9
  $region8: #{elmo_forward.3} parent=0 // pred_region
    _
  $region9: #{elmo_forward.3} parent=0 // pred_fallthru
    _
  // Predicated region
  $region10: #{elmo_forward.3} parent=0 // pred_check
    _
  $region11: #{elmo_forward.3} parent=0 // pred_check_branch
    %19 = sbr.rel (0) target = $region13
  $region12: #{elmo_forward.3} parent=0 // pred_region
    _
  $region13: #{elmo_forward.3} parent=0 // pred_fallthru
    _
  // Predicated region
  $region14: #{elmo_forward.3} parent=0 // pred_check
    _
  $region15: #{elmo_forward.3} parent=0 // pred_check_branch
    %21 = sbr.rel (0) target = $region17
  $region16: #{elmo_forward.3} parent=0 // pred_region
    _
  $region17: #{elmo_forward.3} parent=0 // pred_fallthru
    _
  // Predicated region
  $region18: #{elmo_forward.3} parent=0 // pred_check
    _
  $region19: #{elmo_forward.3} parent=0 // pred_check_branch
    %23 = sbr.rel (0) target = $region21
  $region20: #{elmo_forward.3} parent=0 // pred_region
    _
  $region21: #{elmo_forward.3} parent=0 // pred_fallthru
    _
  // Predicated region
  $region22: #{elmo_forward.3} parent=0 // pred_check
    _
  $region23: #{elmo_forward.3} parent=0 // pred_check_branch
    %25 = sbr.rel (0) target = $region25
  $region24: #{elmo_forward.3} parent=0 // pred_region
    _
  $region25: #{elmo_forward.3} parent=0 // pred_fallthru
    _
  // Predicated region
  $region26: #{elmo_forward.3} parent=0 // pred_check
    _
  $region27: #{elmo_forward.3} parent=0 // pred_check_branch
    %27 = sbr.rel (0) target = $region29
  $region28: #{elmo_forward.3} parent=0 // pred_region
    _
  $region29: #{elmo_forward.3} parent=0 // pred_fallthru
    _
  // Predicated region
  $region30: #{elmo_forward.3} parent=0 // pred_check
    _
  $region31: #{elmo_forward.3} parent=0 // pred_check_branch
    %29 = sbr.rel (0) target = $region33
  $region32: #{elmo_forward.3} parent=0 // pred_region
    _
  $region33: #{elmo_forward.3} parent=0 // pred_fallthru
    _
  // Predicated region
  $region34: #{elmo_forward.3} parent=0 // pred_check
    _
  $region35: #{elmo_forward.3} parent=0 // pred_check_branch
    %31 = sbr.rel (0) target = $region37
  $region36: #{elmo_forward.3} parent=0 // pred_region
    _
  $region37: #{elmo_forward.3} parent=0 // pred_fallthru
    _
  %v33 = vld [vmem:[%s0] sm:$0xff]
  %v34 = vld [vmem:[%s0 + $0x8] sm:$0xff]
  %v35 = vld [vmem:[%s0 + $0x10] sm:$0xff]
  %v36 = vld [vmem:[%s0 + $0x18] sm:$0xff]
  %v37 = vld [vmem:[%s0 + $0x20] sm:$0xff]
  %v38 = vld [vmem:[%s0 + $0x28] sm:$0xff]
  %v39 = vld [vmem:[%s0 + $0x30] sm:$0xff]
  %v40 = vld [vmem:[%s0 + $0x38] sm:$0xff]
  %v41 = vld [vmem:[%s0 + $0x40] sm:$0xff]
  %v42 = vld [vmem:[%s0 + $0x48] sm:$0xff]
  %v43 = vld [vmem:[%s1] sm:$0xff]
  %v44 = vld [vmem:[%s1 + $0x8] sm:$0xff]
  %v45 = vld [vmem:[%s1 + $0x10] sm:$0xff]
  %v46 = vld [vmem:[%s1 + $0x18] sm:$0xff]
  %v47 = vld [vmem:[%s1 + $0x20] sm:$0xff]
  %v48 = vld [vmem:[%s1 + $0x28] sm:$0xff]
  %v49 = vld [vmem:[%s1 + $0x30] sm:$0xff]
  %v50 = vld [vmem:[%s1 + $0x38] sm:$0xff]
  %v51 = vld [vmem:[%s1 + $0x40] sm:$0xff]
  %v52 = vld [vmem:[%s1 + $0x48] sm:$0xff]
  %54 = vset.pattern.permute.xlu0 0
  %55 = vperm.xlu0 %54, %v43
  %v56 = vpop.permute.xlu0 %55
  %59 = vset.pattern.permute.xlu0 0
  %60 = vperm.xlu0 %59, %v44
  %v61 = vpop.permute.xlu0 %60
  %64 = vset.pattern.permute.xlu0 0
  %65 = vperm.xlu0 %64, %v45
  %v66 = vpop.permute.xlu0 %65
  %69 = vset.pattern.permute.xlu0 0
  %70 = vperm.xlu0 %69, %v46
  %v71 = vpop.permute.xlu0 %70
  %74 = vset.pattern.permute.xlu0 0
  %75 = vperm.xlu0 %74, %v47
  %v76 = vpop.permute.xlu0 %75
  %79 = vset.pattern.permute.xlu0 0
  %80 = vperm.xlu0 %79, %v48
  %v81 = vpop.permute.xlu0 %80
  %84 = vset.pattern.permute.xlu0 0
  %85 = vperm.xlu0 %84, %v49
  %v86 = vpop.permute.xlu0 %85
  %89 = vset.pattern.permute.xlu0 0
  %90 = vperm.xlu0 %89, %v50
  %v91 = vpop.permute.xlu0 %90
  %94 = vset.pattern.permute.xlu0 0
  %95 = vperm.xlu0 %94, %v51
  %v96 = vpop.permute.xlu0 %95
  %99 = vset.pattern.permute.xlu0 0
  %100 = vperm.xlu0 %99, %v52
  %v101 = vpop.permute.xlu0 %100
  %v103 = vmul.f32 %v33, %v56
  %v104 = vmul.f32 %v34, %v61
  %v105 = vmul.f32 %v35, %v66
  %v106 = vmul.f32 %v36, %v71
  %v107 = vmul.f32 %v37, %v76
  %v108 = vmul.f32 %v38, %v81
  %v109 = vmul.f32 %v39, %v86
  %v110 = vmul.f32 %v40, %v91
  %v111 = vmul.f32 %v41, %v96
  %v112 = vmul.f32 %v42, %v101
  %123 = vrot.lane.b32.xlu0 %v103, 32
  %v124 = vpop.permute.xlu0 %123
  %125 = vrot.lane.b32.xlu0 %v104, 32
  %v126 = vpop.permute.xlu0 %125
  %127 = vrot.lane.b32.xlu0 %v105, 32
  %v128 = vpop.permute.xlu0 %127
  %129 = vrot.lane.b32.xlu0 %v106, 32
  %v130 = vpop.permute.xlu0 %129
  %131 = vrot.lane.b32.xlu0 %v107, 32
  %v132 = vpop.permute.xlu0 %131
  %133 = vrot.lane.b32.xlu0 %v108, 32
  %v134 = vpop.permute.xlu0 %133
  %135 = vrot.lane.b32.xlu0 %v109, 32
  %v136 = vpop.permute.xlu0 %135
  %137 = vrot.lane.b32.xlu0 %v110, 32
  %v138 = vpop.permute.xlu0 %137
  %139 = vrot.lane.b32.xlu0 %v111, 32
  %v140 = vpop.permute.xlu0 %139
  %141 = vrot.lane.b32.xlu0 %v112, 32
  %v142 = vpop.permute.xlu0 %141
  %vm153 = vcmask 261120
  %v154 = vsel %vm153, %v103, %v124
  %v155 = vsel %vm153, %v104, %v126
  %v156 = vsel %vm153, %v105, %v128
  %v157 = vsel %vm153, %v106, %v130
  %v158 = vsel %vm153, %v107, %v132
  %v159 = vsel %vm153, %v108, %v134
  %v160 = vsel %vm153, %v109, %v136
  %v161 = vsel %vm153, %v110, %v138
  %v162 = vsel %vm153, %v111, %v140
  %v163 = vsel %vm153, %v112, %v142
  %vm164 = vcmask 523264
  %165 = vst.msk [vmem:[%s9] sm:$0xff] %vm164, %v154
  %166 = vst.msk [vmem:[%s9 + $0x8] sm:$0xff] %vm164, %v155
  %167 = vst.msk [vmem:[%s9 + $0x10] sm:$0xff] %vm164, %v156
  %168 = vst.msk [vmem:[%s9 + $0x18] sm:$0xff] %vm164, %v157
  %169 = vst.msk [vmem:[%s9 + $0x20] sm:$0xff] %vm164, %v158
  %170 = vst.msk [vmem:[%s9 + $0x28] sm:$0xff] %vm164, %v159
  %171 = vst.msk [vmem:[%s9 + $0x30] sm:$0xff] %vm164, %v160
  %172 = vst.msk [vmem:[%s9 + $0x38] sm:$0xff] %vm164, %v161
  %173 = vst.msk [vmem:[%s9 + $0x40] sm:$0xff] %vm164, %v162
  %174 = vst.msk [vmem:[%s9 + $0x48] sm:$0xff] %vm164, %v163
  %175 = vst.msk [vmem:[#allocation2] sm:$0xff] %vm153, %v33
  %176 = vst.msk [vmem:[#allocation2 + $0x8] sm:$0xff] %vm153, %v34
  %177 = vst.msk [vmem:[#allocation2 + $0x10] sm:$0xff] %vm153, %v35
  %178 = vst.msk [vmem:[#allocation2 + $0x18] sm:$0xff] %vm153, %v36
  %179 = vst.msk [vmem:[#allocation2 + $0x20] sm:$0xff] %vm153, %v37
  %180 = vst.msk [vmem:[#allocation2 + $0x28] sm:$0xff] %vm153, %v38
  %181 = vst.msk [vmem:[#allocation2 + $0x30] sm:$0xff] %vm153, %v39
  %182 = vst.msk [vmem:[#allocation2 + $0x38] sm:$0xff] %vm153, %v40
  %183 = vst.msk [vmem:[#allocation2 + $0x40] sm:$0xff] %vm153, %v41
  %184 = vst.msk [vmem:[#allocation2 + $0x48] sm:$0xff] %vm153, %v42
  %185 = vst.msk [vmem:[#allocation3] sm:$0xff] %vm153, %v33
  %186 = vst.msk [vmem:[#allocation3 + $0x8] sm:$0xff] %vm153, %v34
  %187 = vst.msk [vmem:[#allocation3 + $0x10] sm:$0xff] %vm153, %v35
  %188 = vst.msk [vmem:[#allocation3 + $0x18] sm:$0xff] %vm153, %v36
  %189 = vst.msk [vmem:[#allocation3 + $0x20] sm:$0xff] %vm153, %v37
  %190 = vst.msk [vmem:[#allocation3 + $0x28] sm:$0xff] %vm153, %v38
  %191 = vst.msk [vmem:[#allocation3 + $0x30] sm:$0xff] %vm153, %v39
  %192 = vst.msk [vmem:[#allocation3 + $0x38] sm:$0xff] %vm153, %v40
  %193 = vst.msk [vmem:[#allocation3 + $0x40] sm:$0xff] %vm153, %v41
  %194 = vst.msk [vmem:[#allocation3 + $0x48] sm:$0xff] %vm153, %v42
  %v195 = vld [vmem:[%s4] sm:$0xff]
  %v196 = vld [vmem:[%s4 + $0x8] sm:$0xff]
  %v197 = vld [vmem:[%s4 + $0x10] sm:$0xff]
  %v198 = vld [vmem:[%s4 + $0x18] sm:$0xff]
  %v199 = vld [vmem:[%s4 + $0x20] sm:$0xff]
  %v200 = vld [vmem:[%s4 + $0x28] sm:$0xff]
  %v201 = vld [vmem:[%s4 + $0x30] sm:$0xff]
  %v202 = vld [vmem:[%s4 + $0x38] sm:$0xff]
  %v203 = vld [vmem:[%s5] sm:$0xff]
  %v204 = vld [vmem:[%s5 + $0x8] sm:$0xff]
  %v205 = vld [vmem:[%s5 + $0x10] sm:$0xff]
  %v206 = vld [vmem:[%s5 + $0x18] sm:$0xff]
  %v207 = vld [vmem:[%s5 + $0x20] sm:$0xff]
  %v208 = vld [vmem:[%s5 + $0x28] sm:$0xff]
  %v209 = vld [vmem:[%s5 + $0x30] sm:$0xff]
  %v210 = vld [vmem:[%s5 + $0x38] sm:$0xff]
  %v211 = vld [vmem:[%s6] sm:$0xff]
  %v212 = vld [vmem:[%s6 + $0x8] sm:$0xff]
  %v213 = vld [vmem:[%s6 + $0x10] sm:$0xff]
  %v214 = vld [vmem:[%s6 + $0x18] sm:$0xff]
  %v215 = vld [vmem:[%s6 + $0x20] sm:$0xff]
  %v216 = vld [vmem:[%s6 + $0x28] sm:$0xff]
  %v217 = vld [vmem:[%s6 + $0x30] sm:$0xff]
  %v218 = vld [vmem:[%s6 + $0x38] sm:$0xff]
  %v219 = vld [vmem:[%s6 + $0x40] sm:$0xff]
  %v220 = vld [vmem:[%s6 + $0x48] sm:$0xff]
  %v221 = vld [vmem:[%s6 + $0x50] sm:$0xff]
  %v222 = vld [vmem:[%s6 + $0x58] sm:$0xff]
  %v223 = vld [vmem:[%s6 + $0x60] sm:$0xff]
  %v224 = vld [vmem:[%s6 + $0x68] sm:$0xff]
  %v225 = vld [vmem:[%s6 + $0x70] sm:$0xff]
  %v226 = vld [vmem:[%s6 + $0x78] sm:$0xff]
  %v227 = vld [vmem:[%s8] sm:$0xf]
  %v228 = vld [vmem:[%s8 + $0x4] sm:$0xf]
  %v229 = vld [vmem:[%s8 + $0x8] sm:$0xf]
  %v230 = vld [vmem:[%s8 + $0xc] sm:$0xf]
  %v231 = vld [vmem:[%s8 + $0x10] sm:$0xf]
  %v232 = vld [vmem:[%s8 + $0x14] sm:$0xf]
  %v233 = vld [vmem:[%s8 + $0x18] sm:$0xf]
  %v234 = vld [vmem:[%s8 + $0x1c] sm:$0xf]
  %v235 = vld [vmem:[%s8 + $0x20] sm:$0xf]
  %v236 = vld [vmem:[%s8 + $0x24] sm:$0xf]
  %v237 = vld [vmem:[%s8 + $0x28] sm:$0xf]
  %v238 = vld [vmem:[%s8 + $0x2c] sm:$0xf]
  %v239 = vld [vmem:[%s8 + $0x30] sm:$0xf]
  %v240 = vld [vmem:[%s8 + $0x34] sm:$0xf]
  %v241 = vld [vmem:[%s8 + $0x38] sm:$0xf]
  %v242 = vld [vmem:[%s8 + $0x3c] sm:$0xf]
  %v243 = vld [vmem:[%s7] sm:$0xf]
  %v244 = vld [vmem:[#allocation2] sm:$0xff]
  %v245 = vld [vmem:[#allocation2 + $0x8] sm:$0xff]
  %v246 = vld [vmem:[#allocation2 + $0x10] sm:$0xff]
  %v247 = vld [vmem:[#allocation2 + $0x18] sm:$0xff]
  %v248 = vld [vmem:[#allocation2 + $0x20] sm:$0xff]
  %v249 = vld [vmem:[#allocation2 + $0x28] sm:$0xff]
  %v250 = vld [vmem:[#allocation2 + $0x30] sm:$0xff]
  %v251 = vld [vmem:[#allocation2 + $0x38] sm:$0xff]
  %v252 = vld [vmem:[#allocation2 + $0x40] sm:$0xff]
  %v253 = vld [vmem:[#allocation2 + $0x48] sm:$0xff]
  %v254 = vpack.c.bf16 %v245, %v244
  %v255 = vpack.c.bf16 %v247, %v246
  %v256 = vpack.c.bf16 %v249, %v248
  %v257 = vpack.c.bf16 %v251, %v250
  %v258 = vpack.c.bf16 %v253, %v252
  %v259 = vld [vmem:[#allocation3] sm:$0xff]
  %v260 = vld [vmem:[#allocation3 + $0x8] sm:$0xff]
  %v261 = vld [vmem:[#allocation3 + $0x10] sm:$0xff]
  %v262 = vld [vmem:[#allocation3 + $0x18] sm:$0xff]
  %v263 = vld [vmem:[#allocation3 + $0x20] sm:$0xff]
  %v264 = vld [vmem:[#allocation3 + $0x28] sm:$0xff]
  %v265 = vld [vmem:[#allocation3 + $0x30] sm:$0xff]
  %v266 = vld [vmem:[#allocation3 + $0x38] sm:$0xff]
  %v267 = vld [vmem:[#allocation3 + $0x40] sm:$0xff]
  %v268 = vld [vmem:[#allocation3 + $0x48] sm:$0xff]
  %v269 = vpack.c.bf16 %v260, %v259
  %v270 = vpack.c.bf16 %v262, %v261
  %v271 = vpack.c.bf16 %v264, %v263
  %v272 = vpack.c.bf16 %v266, %v265
  %v273 = vpack.c.bf16 %v268, %v267
  %v275 = vlaneseq
  %v276 = vshrl.u32 %v275, 7
  %v277 = vsub.s32 0, %v276
  %v278 = vrot.slane %v243, %v277
  %v279 = vlaneseq
  %v280 = vshrl.u32 %v279, 7
  %v281 = vsub.s32 1, %v280
  %v282 = vrot.slane %v243, %v281
  %v283 = vlaneseq
  %v284 = vshrl.u32 %v283, 7
  %v285 = vsub.s32 2, %v284
  %v286 = vrot.slane %v243, %v285
  %v287 = vlaneseq
  %v288 = vshrl.u32 %v287, 7
  %v289 = vsub.s32 3, %v288
  %v290 = vrot.slane %v243, %v289
  %v303 = vunpack.c.l.b16 %v195
  %v304 = vunpack.c.h.b16 %v195
  %v305 = vunpack.c.l.b16 %v196
  %v306 = vunpack.c.h.b16 %v196
  %v307 = vunpack.c.l.b16 %v197
  %v308 = vunpack.c.h.b16 %v197
  %v309 = vunpack.c.l.b16 %v198
  %v310 = vunpack.c.h.b16 %v198
  %v311 = vunpack.c.l.b16 %v199
  %v312 = vunpack.c.h.b16 %v199
  %v313 = vunpack.c.l.b16 %v200
  %v314 = vunpack.c.h.b16 %v200
  %v315 = vunpack.c.l.b16 %v201
  %v316 = vunpack.c.h.b16 %v201
  %v317 = vunpack.c.l.b16 %v202
  %v318 = vunpack.c.h.b16 %v202
  %v319 = vpack.c.b16 %v307, %v303
  %v320 = vpack.c.b16 %v308, %v304
  %v321 = vpack.c.b16 %v309, %v305
  %v322 = vpack.c.b16 %v310, %v306
  %v323 = vpack.c.b16 %v315, %v311
  %v324 = vpack.c.b16 %v316, %v312
  %v325 = vpack.c.b16 %v317, %v313
  %v326 = vpack.c.b16 %v318, %v314
  %v336 = vsel %vm153, %v254, 0
  %v339 = vsel %vm153, %v255, 0
  %v342 = vsel %vm153, %v256, 0
  %v345 = vsel %vm153, %v257, 0
  %v348 = vsel %vm153, %v258, 0
  %350 = vmatprep.subr.bf16.mxu0 %v320
  %351 = vmatpush1.bf16.msra.mxu0 %v319
  %352 = vmatprep.subr.bf16.mxu0 %v324
  %353 = vmatpush1.bf16.msra.mxu0 %v323
  %354 = vmatprep.subr.bf16.mxu0 0
  %355 = vmatpush1.bf16.msra.mxu0 0
  %356 = vmatprep.subr.bf16.mxu0 0
  %357 = vmatpush1.bf16.msra.mxu0 0
  %358 = vmatprep.subr.bf16.mxu0 0
  %359 = vmatpush1.bf16.msra.mxu0 0
  %360 = vmatprep.subr.bf16.mxu0 0
  %361 = vmatpush1.bf16.msra.mxu0 0
  %362 = vmatprep.subr.bf16.mxu0 0
  %363 = vmatpush1.bf16.msra.mxu0 0
  %364 = vmatprep.subr.bf16.mxu0 0
  %365 = vmatpush1.bf16.msra.mxu0 0
  %366 = vmatprep.subr.bf16.mxu0 0
  %367 = vmatpush1.bf16.msra.mxu0 0
  %368 = vmatprep.subr.bf16.mxu0 0
  %369 = vmatpush1.bf16.msra.mxu0 0
  %370 = vmatprep.subr.bf16.mxu0 0
  %371 = vmatpush1.bf16.msra.mxu0 0
  %372 = vmatprep.subr.bf16.mxu0 0
  %373 = vmatpush1.bf16.msra.mxu0 0
  %374 = vmatprep.subr.bf16.mxu0 0
  %375 = vmatpush1.bf16.msra.mxu0 0
  %376 = vmatprep.subr.bf16.mxu0 0
  %377 = vmatpush1.bf16.msra.mxu0 0
  %378 = vmatprep.subr.bf16.mxu0 0
  %379 = vmatpush1.bf16.msra.mxu0 0
  %380 = vmatprep.subr.bf16.mxu0 0
  %381 = vmatpush1.bf16.msra.mxu0 0
  %382 = vmatprep.mubr.bf16.mxu0 0
  %383 = vmatmul.mubr.bf16.gmra.mrb[0].mxu0 %v336
  %v384 = vpop.f32.mrb[0].mxu0
  %v385 = vadd.f32 %v278, %v384
  %v386 = vpop.f32.mrb[0].mxu0
  %v387 = vadd.f32 %v282, %v386
  %v388 = vpop.f32.mrb[0].mxu0
  %v389 = vadd.f32 %v278, %v388
  %v390 = vpop.f32.mrb[0].mxu0
  %v391 = vadd.f32 %v282, %v390
  %392 = vmatprep.mubr.bf16.mxu0 0
  %393 = vmatmul.mubr.bf16.gmra.mrb[0].mxu0 %v339
  %v394 = vpop.f32.mrb[0].mxu0
  %v395 = vadd.f32 %v278, %v394
  %v396 = vpop.f32.mrb[0].mxu0
  %v397 = vadd.f32 %v282, %v396
  %v398 = vpop.f32.mrb[0].mxu0
  %v399 = vadd.f32 %v278, %v398
  %v400 = vpop.f32.mrb[0].mxu0
  %v401 = vadd.f32 %v282, %v400
  %402 = vmatprep.mubr.bf16.mxu0 0
  %403 = vmatmul.mubr.bf16.gmra.mrb[0].mxu0 %v342
  %v404 = vpop.f32.mrb[0].mxu0
  %v405 = vadd.f32 %v278, %v404
  %v406 = vpop.f32.mrb[0].mxu0
  %v407 = vadd.f32 %v282, %v406
  %v408 = vpop.f32.mrb[0].mxu0
  %v409 = vadd.f32 %v278, %v408
  %v410 = vpop.f32.mrb[0].mxu0
  %v411 = vadd.f32 %v282, %v410
  %412 = vmatprep.mubr.bf16.mxu0 0
  %413 = vmatmul.mubr.bf16.gmra.mrb[0].mxu0 %v345
  %v414 = vpop.f32.mrb[0].mxu0
  %v415 = vadd.f32 %v278, %v414
  %v416 = vpop.f32.mrb[0].mxu0
  %v417 = vadd.f32 %v282, %v416
  %v418 = vpop.f32.mrb[0].mxu0
  %v419 = vadd.f32 %v278, %v418
  %v420 = vpop.f32.mrb[0].mxu0
  %v421 = vadd.f32 %v282, %v420
  %422 = vmatprep.mubr.bf16.mxu0 0
  %423 = vmatmul.mubr.bf16.gmra.mrb[0].mxu0 %v348
  %v424 = vpop.f32.mrb[0].mxu0
  %v425 = vadd.f32 %v278, %v424
  %v426 = vpop.f32.mrb[0].mxu0
  %v427 = vadd.f32 %v282, %v426
  %v428 = vpop.f32.mrb[0].mxu0
  %v429 = vadd.f32 %v278, %v428
  %v430 = vpop.f32.mrb[0].mxu0
  %v431 = vadd.f32 %v282, %v430
  %432 = vdwg.mxu0
  %433 = vmatprep.subr.bf16.mxu0 %v322
  %434 = vmatpush1.bf16.msra.mxu0 %v321
  %435 = vmatprep.subr.bf16.mxu0 %v326
  %436 = vmatpush1.bf16.msra.mxu0 %v325
  %437 = vmatprep.subr.bf16.mxu0 0
  %438 = vmatpush1.bf16.msra.mxu0 0
  %439 = vmatprep.subr.bf16.mxu0 0
  %440 = vmatpush1.bf16.msra.mxu0 0
  %441 = vmatprep.subr.bf16.mxu0 0
  %442 = vmatpush1.bf16.msra.mxu0 0
  %443 = vmatprep.subr.bf16.mxu0 0
  %444 = vmatpush1.bf16.msra.mxu0 0
  %445 = vmatprep.subr.bf16.mxu0 0
  %446 = vmatpush1.bf16.msra.mxu0 0
  %447 = vmatprep.subr.bf16.mxu0 0
  %448 = vmatpush1.bf16.msra.mxu0 0
  %449 = vmatprep.subr.bf16.mxu0 0
  %450 = vmatpush1.bf16.msra.mxu0 0
  %451 = vmatprep.subr.bf16.mxu0 0
  %452 = vmatpush1.bf16.msra.mxu0 0
  %453 = vmatprep.subr.bf16.mxu0 0
  %454 = vmatpush1.bf16.msra.mxu0 0
  %455 = vmatprep.subr.bf16.mxu0 0
  %456 = vmatpush1.bf16.msra.mxu0 0
  %457 = vmatprep.subr.bf16.mxu0 0
  %458 = vmatpush1.bf16.msra.mxu0 0
  %459 = vmatprep.subr.bf16.mxu0 0
  %460 = vmatpush1.bf16.msra.mxu0 0
  %461 = vmatprep.subr.bf16.mxu0 0
  %462 = vmatpush1.bf16.msra.mxu0 0
  %463 = vmatprep.subr.bf16.mxu0 0
  %464 = vmatpush1.bf16.msra.mxu0 0
  %465 = vmatprep.mubr.bf16.mxu0 0
  %466 = vmatmul.mubr.bf16.gmra.mrb[0].mxu0 %v336
  %v467 = vpop.f32.mrb[0].mxu0
  %v468 = vadd.f32 %v286, %v467
  %v469 = vpop.f32.mrb[0].mxu0
  %v470 = vadd.f32 %v290, %v469
  %v471 = vpop.f32.mrb[0].mxu0
  %v472 = vadd.f32 %v286, %v471
  %v473 = vpop.f32.mrb[0].mxu0
  %v474 = vadd.f32 %v290, %v473
  %475 = vmatprep.mubr.bf16.mxu0 0
  %476 = vmatmul.mubr.bf16.gmra.mrb[0].mxu0 %v339
  %v477 = vpop.f32.mrb[0].mxu0
  %v478 = vadd.f32 %v286, %v477
  %v479 = vpop.f32.mrb[0].mxu0
  %v480 = vadd.f32 %v290, %v479
  %v481 = vpop.f32.mrb[0].mxu0
  %v482 = vadd.f32 %v286, %v481
  %v483 = vpop.f32.mrb[0].mxu0
  %v484 = vadd.f32 %v290, %v483
  %485 = vmatprep.mubr.bf16.mxu0 0
  %486 = vmatmul.mubr.bf16.gmra.mrb[0].mxu0 %v342
  %v487 = vpop.f32.mrb[0].mxu0
  %v488 = vadd.f32 %v286, %v487
  %v489 = vpop.f32.mrb[0].mxu0
  %v490 = vadd.f32 %v290, %v489
  %v491 = vpop.f32.mrb[0].mxu0
  %v492 = vadd.f32 %v286, %v491
  %v493 = vpop.f32.mrb[0].mxu0
  %v494 = vadd.f32 %v290, %v493
  %495 = vmatprep.mubr.bf16.mxu0 0
  %496 = vmatmul.mubr.bf16.gmra.mrb[0].mxu0 %v345
  %v497 = vpop.f32.mrb[0].mxu0
  %v498 = vadd.f32 %v286, %v497
  %v499 = vpop.f32.mrb[0].mxu0
  %v500 = vadd.f32 %v290, %v499
  %v501 = vpop.f32.mrb[0].mxu0
  %v502 = vadd.f32 %v286, %v501
  %v503 = vpop.f32.mrb[0].mxu0
  %v504 = vadd.f32 %v290, %v503
  %505 = vmatprep.mubr.bf16.mxu0 0
  %506 = vmatmul.mubr.bf16.gmra.mrb[0].mxu0 %v348
  %v507 = vpop.f32.mrb[0].mxu0
  %v508 = vadd.f32 %v286, %v507
  %v509 = vpop.f32.mrb[0].mxu0
  %v510 = vadd.f32 %v290, %v509
  %v511 = vpop.f32.mrb[0].mxu0
  %v512 = vadd.f32 %v286, %v511
  %v513 = vpop.f32.mrb[0].mxu0
  %v514 = vadd.f32 %v290, %v513
  %515 = vdwg.mxu0
  %516 = vst [vmem:[#allocation4] sm:$0xff] %v385
  %517 = vst [vmem:[#allocation4 + $0x8] sm:$0xff] %v387
  %518 = vst [vmem:[#allocation4 + $0x10] sm:$0xff] %v468
  %519 = vst [vmem:[#allocation4 + $0x18] sm:$0xff] %v470
  %520 = vst [vmem:[#allocation4 + $0x20] sm:$0xff] %v389
  %521 = vst [vmem:[#allocation4 + $0x28] sm:$0xff] %v391
  %522 = vst [vmem:[#allocation4 + $0x30] sm:$0xff] %v472
  %523 = vst [vmem:[#allocation4 + $0x38] sm:$0xff] %v474
  %524 = vst [vmem:[#allocation4 + $0x40] sm:$0xff] %v395
  %525 = vst [vmem:[#allocation4 + $0x48] sm:$0xff] %v397
  %526 = vst [vmem:[#allocation4 + $0x50] sm:$0xff] %v478
  %527 = vst [vmem:[#allocation4 + $0x58] sm:$0xff] %v480
  %528 = vst [vmem:[#allocation4 + $0x60] sm:$0xff] %v399
  %529 = vst [vmem:[#allocation4 + $0x68] sm:$0xff] %v401
  %530 = vst [vmem:[#allocation4 + $0x70] sm:$0xff] %v482
  %531 = vst [vmem:[#allocation4 + $0x78] sm:$0xff] %v484
  %532 = vst [vmem:[#allocation4 + $0x80] sm:$0xff] %v405
  %533 = vst [vmem:[#allocation4 + $0x88] sm:$0xff] %v407
  %534 = vst [vmem:[#allocation4 + $0x90] sm:$0xff] %v488
  %535 = vst [vmem:[#allocation4 + $0x98] sm:$0xff] %v490
  %536 = vst [vmem:[#allocation4 + $0xa0] sm:$0xff] %v409
  %537 = vst [vmem:[#allocation4 + $0xa8] sm:$0xff] %v411
  %538 = vst [vmem:[#allocation4 + $0xb0] sm:$0xff] %v492
  %539 = vst [vmem:[#allocation4 + $0xb8] sm:$0xff] %v494
  %540 = vst [vmem:[#allocation4 + $0xc0] sm:$0xff] %v415
  %541 = vst [vmem:[#allocation4 + $0xc8] sm:$0xff] %v417
  %542 = vst [vmem:[#allocation4 + $0xd0] sm:$0xff] %v498
  %543 = vst [vmem:[#allocation4 + $0xd8] sm:$0xff] %v500
  %544 = vst [vmem:[#allocation4 + $0xe0] sm:$0xff] %v419
  %545 = vst [vmem:[#allocation4 + $0xe8] sm:$0xff] %v421
  %546 = vst [vmem:[#allocation4 + $0xf0] sm:$0xff] %v502
  %547 = vst [vmem:[#allocation4 + $0xf8] sm:$0xff] %v504
  %548 = vst [vmem:[#allocation4 + $0x100] sm:$0xff] %v425
  %549 = vst [vmem:[#allocation4 + $0x108] sm:$0xff] %v427
  %550 = vst [vmem:[#allocation4 + $0x110] sm:$0xff] %v508
  %551 = vst [vmem:[#allocation4 + $0x118] sm:$0xff] %v510
  %552 = vst [vmem:[#allocation4 + $0x120] sm:$0xff] %v429
  %553 = vst [vmem:[#allocation4 + $0x128] sm:$0xff] %v431
  %554 = vst [vmem:[#allocation4 + $0x130] sm:$0xff] %v512
  %555 = vst [vmem:[#allocation4 + $0x138] sm:$0xff] %v514
  %v564 = vunpack.c.l.b16 %v203
  %v565 = vunpack.c.h.b16 %v203
  %v566 = vunpack.c.l.b16 %v204
  %v567 = vunpack.c.h.b16 %v204
  %v568 = vunpack.c.l.b16 %v205
  %v569 = vunpack.c.h.b16 %v205
  %v570 = vunpack.c.l.b16 %v206
  %v571 = vunpack.c.h.b16 %v206
  %v572 = vunpack.c.l.b16 %v207
  %v573 = vunpack.c.h.b16 %v207
  %v574 = vunpack.c.l.b16 %v208
  %v575 = vunpack.c.h.b16 %v208
  %v576 = vunpack.c.l.b16 %v209
  %v577 = vunpack.c.h.b16 %v209
  %v578 = vunpack.c.l.b16 %v210
  %v579 = vunpack.c.h.b16 %v210
  %v580 = vpack.c.b16 %v568, %v564
  %v581 = vpack.c.b16 %v569, %v565
  %v582 = vpack.c.b16 %v570, %v566
  %v583 = vpack.c.b16 %v571, %v567
  %v584 = vpack.c.b16 %v576, %v572
  %v585 = vpack.c.b16 %v577, %v573
  %v586 = vpack.c.b16 %v578, %v574
  %v587 = vpack.c.b16 %v579, %v575
  %v597 = vsel %vm153, %v269, 0
  %v600 = vsel %vm153, %v270, 0
  %v603 = vsel %vm153, %v271, 0
  %v606 = vsel %vm153, %v272, 0
  %v609 = vsel %vm153, %v273, 0
  %611 = vmatprep.subr.bf16.mxu0 %v581
  %612 = vmatpush1.bf16.msra.mxu0 %v580
  %613 = vmatprep.subr.bf16.mxu0 %v585
  %614 = vmatpush1.bf16.msra.mxu0 %v584
  %615 = vmatprep.subr.bf16.mxu0 0
  %616 = vmatpush1.bf16.msra.mxu0 0
  %617 = vmatprep.subr.bf16.mxu0 0
  %618 = vmatpush1.bf16.msra.mxu0 0
  %619 = vmatprep.subr.bf16.mxu0 0
  %620 = vmatpush1.bf16.msra.mxu0 0
  %621 = vmatprep.subr.bf16.mxu0 0
  %622 = vmatpush1.bf16.msra.mxu0 0
  %623 = vmatprep.subr.bf16.mxu0 0
  %624 = vmatpush1.bf16.msra.mxu0 0
  %625 = vmatprep.subr.bf16.mxu0 0
  %626 = vmatpush1.bf16.msra.mxu0 0
  %627 = vmatprep.subr.bf16.mxu0 0
  %628 = vmatpush1.bf16.msra.mxu0 0
  %629 = vmatprep.subr.bf16.mxu0 0
  %630 = vmatpush1.bf16.msra.mxu0 0
  %631 = vmatprep.subr.bf16.mxu0 0
  %632 = vmatpush1.bf16.msra.mxu0 0
  %633 = vmatprep.subr.bf16.mxu0 0
  %634 = vmatpush1.bf16.msra.mxu0 0
  %635 = vmatprep.subr.bf16.mxu0 0
  %636 = vmatpush1.bf16.msra.mxu0 0
  %637 = vmatprep.subr.bf16.mxu0 0
  %638 = vmatpush1.bf16.msra.mxu0 0
  %639 = vmatprep.subr.bf16.mxu0 0
  %640 = vmatpush1.bf16.msra.mxu0 0
  %641 = vmatprep.subr.bf16.mxu0 0
  %642 = vmatpush1.bf16.msra.mxu0 0
  %643 = vmatprep.mubr.bf16.mxu0 0
  %644 = vmatmul.mubr.bf16.gmra.mrb[0].mxu0 %v597
  %v645 = vpop.f32.mrb[0].mxu0
  %v646 = vadd.f32 0.0, %v645
  %v647 = vpop.f32.mrb[0].mxu0
  %v648 = vadd.f32 0.0, %v647
  %v649 = vpop.f32.mrb[0].mxu0
  %v650 = vadd.f32 0.0, %v649
  %v651 = vpop.f32.mrb[0].mxu0
  %v652 = vadd.f32 0.0, %v651
  %653 = vmatprep.mubr.bf16.mxu0 0
  %654 = vmatmul.mubr.bf16.gmra.mrb[0].mxu0 %v600
  %v655 = vpop.f32.mrb[0].mxu0
  %v656 = vadd.f32 0.0, %v655
  %v657 = vpop.f32.mrb[0].mxu0
  %v658 = vadd.f32 0.0, %v657
  %v659 = vpop.f32.mrb[0].mxu0
  %v660 = vadd.f32 0.0, %v659
  %v661 = vpop.f32.mrb[0].mxu0
  %v662 = vadd.f32 0.0, %v661
  %663 = vmatprep.mubr.bf16.mxu0 0
  %664 = vmatmul.mubr.bf16.gmra.mrb[0].mxu0 %v603
  %v665 = vpop.f32.mrb[0].mxu0
  %v666 = vadd.f32 0.0, %v665
  %v667 = vpop.f32.mrb[0].mxu0
  %v668 = vadd.f32 0.0, %v667
  %v669 = vpop.f32.mrb[0].mxu0
  %v670 = vadd.f32 0.0, %v669
  %v671 = vpop.f32.mrb[0].mxu0
  %v672 = vadd.f32 0.0, %v671
  %673 = vmatprep.mubr.bf16.mxu0 0
  %674 = vmatmul.mubr.bf16.gmra.mrb[0].mxu0 %v606
  %v675 = vpop.f32.mrb[0].mxu0
  %v676 = vadd.f32 0.0, %v675
  %v677 = vpop.f32.mrb[0].mxu0
  %v678 = vadd.f32 0.0, %v677
  %v679 = vpop.f32.mrb[0].mxu0
  %v680 = vadd.f32 0.0, %v679
  %v681 = vpop.f32.mrb[0].mxu0
  %v682 = vadd.f32 0.0, %v681
  %683 = vmatprep.mubr.bf16.mxu0 0
  %684 = vmatmul.mubr.bf16.gmra.mrb[0].mxu0 %v609
  %v685 = vpop.f32.mrb[0].mxu0
  %v686 = vadd.f32 0.0, %v685
  %v687 = vpop.f32.mrb[0].mxu0
  %v688 = vadd.f32 0.0, %v687
  %v689 = vpop.f32.mrb[0].mxu0
  %v690 = vadd.f32 0.0, %v689
  %v691 = vpop.f32.mrb[0].mxu0
  %v692 = vadd.f32 0.0, %v691
  %693 = vdwg.mxu0
  %694 = vmatprep.subr.bf16.mxu0 %v583
  %695 = vmatpush1.bf16.msra.mxu0 %v582
  %696 = vmatprep.subr.bf16.mxu0 %v587
  %697 = vmatpush1.bf16.msra.mxu0 %v586
  %698 = vmatprep.subr.bf16.mxu0 0
  %699 = vmatpush1.bf16.msra.mxu0 0
  %700 = vmatprep.subr.bf16.mxu0 0
  %701 = vmatpush1.bf16.msra.mxu0 0
  %702 = vmatprep.subr.bf16.mxu0 0
  %703 = vmatpush1.bf16.msra.mxu0 0
  %704 = vmatprep.subr.bf16.mxu0 0
  %705 = vmatpush1.bf16.msra.mxu0 0
  %706 = vmatprep.subr.bf16.mxu0 0
  %707 = vmatpush1.bf16.msra.mxu0 0
  %708 = vmatprep.subr.bf16.mxu0 0
  %709 = vmatpush1.bf16.msra.mxu0 0
  %710 = vmatprep.subr.bf16.mxu0 0
  %711 = vmatpush1.bf16.msra.mxu0 0
  %712 = vmatprep.subr.bf16.mxu0 0
  %713 = vmatpush1.bf16.msra.mxu0 0
  %714 = vmatprep.subr.bf16.mxu0 0
  %715 = vmatpush1.bf16.msra.mxu0 0
  %716 = vmatprep.subr.bf16.mxu0 0
  %717 = vmatpush1.bf16.msra.mxu0 0
  %718 = vmatprep.subr.bf16.mxu0 0
  %719 = vmatpush1.bf16.msra.mxu0 0
  %720 = vmatprep.subr.bf16.mxu0 0
  %721 = vmatpush1.bf16.msra.mxu0 0
  %722 = vmatprep.subr.bf16.mxu0 0
  %723 = vmatpush1.bf16.msra.mxu0 0
  %724 = vmatprep.subr.bf16.mxu0 0
  %725 = vmatpush1.bf16.msra.mxu0 0
  %726 = vmatprep.mubr.bf16.mxu0 0
  %727 = vmatmul.mubr.bf16.gmra.mrb[0].mxu0 %v597
  %v728 = vpop.f32.mrb[0].mxu0
  %v729 = vadd.f32 0.0, %v728
  %v730 = vpop.f32.mrb[0].mxu0
  %v731 = vadd.f32 0.0, %v730
  %v732 = vpop.f32.mrb[0].mxu0
  %v733 = vadd.f32 0.0, %v732
  %v734 = vpop.f32.mrb[0].mxu0
  %v735 = vadd.f32 0.0, %v734
  %736 = vmatprep.mubr.bf16.mxu0 0
  %737 = vmatmul.mubr.bf16.gmra.mrb[0].mxu0 %v600
  %v738 = vpop.f32.mrb[0].mxu0
  %v739 = vadd.f32 0.0, %v738
  %v740 = vpop.f32.mrb[0].mxu0
  %v741 = vadd.f32 0.0, %v740
  %v742 = vpop.f32.mrb[0].mxu0
  %v743 = vadd.f32 0.0, %v742
  %v744 = vpop.f32.mrb[0].mxu0
  %v745 = vadd.f32 0.0, %v744
  %746 = vmatprep.mubr.bf16.mxu0 0
  %747 = vmatmul.mubr.bf16.gmra.mrb[0].mxu0 %v603
  %v748 = vpop.f32.mrb[0].mxu0
  %v749 = vadd.f32 0.0, %v748
  %v750 = vpop.f32.mrb[0].mxu0
  %v751 = vadd.f32 0.0, %v750
  %v752 = vpop.f32.mrb[0].mxu0
  %v753 = vadd.f32 0.0, %v752
  %v754 = vpop.f32.mrb[0].mxu0
  %v755 = vadd.f32 0.0, %v754
  %756 = vmatprep.mubr.bf16.mxu0 0
  %757 = vmatmul.mubr.bf16.gmra.mrb[0].mxu0 %v606
  %v758 = vpop.f32.mrb[0].mxu0
  %v759 = vadd.f32 0.0, %v758
  %v760 = vpop.f32.mrb[0].mxu0
  %v761 = vadd.f32 0.0, %v760
  %v762 = vpop.f32.mrb[0].mxu0
  %v763 = vadd.f32 0.0, %v762
  %v764 = vpop.f32.mrb[0].mxu0
  %v765 = vadd.f32 0.0, %v764
  %766 = vmatprep.mubr.bf16.mxu0 0
  %767 = vmatmul.mubr.bf16.gmra.mrb[0].mxu0 %v609
  %v768 = vpop.f32.mrb[0].mxu0
  %v769 = vadd.f32 0.0, %v768
  %v770 = vpop.f32.mrb[0].mxu0
  %v771 = vadd.f32 0.0, %v770
  %v772 = vpop.f32.mrb[0].mxu0
  %v773 = vadd.f32 0.0, %v772
  %v774 = vpop.f32.mrb[0].mxu0
  %v775 = vadd.f32 0.0, %v774
  %776 = vdwg.mxu0
  %777 = vst [vmem:[#allocation5] sm:$0xff] %v646
  %778 = vst [vmem:[#allocation5 + $0x8] sm:$0xff] %v648
  %779 = vst [vmem:[#allocation5 + $0x10] sm:$0xff] %v729
  %780 = vst [vmem:[#allocation5 + $0x18] sm:$0xff] %v731
  %781 = vst [vmem:[#allocation5 + $0x20] sm:$0xff] %v650
  %782 = vst [vmem:[#allocation5 + $0x28] sm:$0xff] %v652
  %783 = vst [vmem:[#allocation5 + $0x30] sm:$0xff] %v733
  %784 = vst [vmem:[#allocation5 + $0x38] sm:$0xff] %v735
  %785 = vst [vmem:[#allocation5 + $0x40] sm:$0xff] %v656
  %786 = vst [vmem:[#allocation5 + $0x48] sm:$0xff] %v658
  %787 = vst [vmem:[#allocation5 + $0x50] sm:$0xff] %v739
  %788 = vst [vmem:[#allocation5 + $0x58] sm:$0xff] %v741
  %789 = vst [vmem:[#allocation5 + $0x60] sm:$0xff] %v660
  %790 = vst [vmem:[#allocation5 + $0x68] sm:$0xff] %v662
  %791 = vst [vmem:[#allocation5 + $0x70] sm:$0xff] %v743
  %792 = vst [vmem:[#allocation5 + $0x78] sm:$0xff] %v745
  %793 = vst [vmem:[#allocation5 + $0x80] sm:$0xff] %v666
  %794 = vst [vmem:[#allocation5 + $0x88] sm:$0xff] %v668
  %795 = vst [vmem:[#allocation5 + $0x90] sm:$0xff] %v749
  %796 = vst [vmem:[#allocation5 + $0x98] sm:$0xff] %v751
  %797 = vst [vmem:[#allocation5 + $0xa0] sm:$0xff] %v670
  %798 = vst [vmem:[#allocation5 + $0xa8] sm:$0xff] %v672
  %799 = vst [vmem:[#allocation5 + $0xb0] sm:$0xff] %v753
  %800 = vst [vmem:[#allocation5 + $0xb8] sm:$0xff] %v755
  %801 = vst [vmem:[#allocation5 + $0xc0] sm:$0xff] %v676
  %802 = vst [vmem:[#allocation5 + $0xc8] sm:$0xff] %v678
  %803 = vst [vmem:[#allocation5 + $0xd0] sm:$0xff] %v759
  %804 = vst [vmem:[#allocation5 + $0xd8] sm:$0xff] %v761
  %805 = vst [vmem:[#allocation5 + $0xe0] sm:$0xff] %v680
  %806 = vst [vmem:[#allocation5 + $0xe8] sm:$0xff] %v682
  %807 = vst [vmem:[#allocation5 + $0xf0] sm:$0xff] %v763
  %808 = vst [vmem:[#allocation5 + $0xf8] sm:$0xff] %v765
  %809 = vst [vmem:[#allocation5 + $0x100] sm:$0xff] %v686
  %810 = vst [vmem:[#allocation5 + $0x108] sm:$0xff] %v688
  %811 = vst [vmem:[#allocation5 + $0x110] sm:$0xff] %v769
  %812 = vst [vmem:[#allocation5 + $0x118] sm:$0xff] %v771
  %813 = vst [vmem:[#allocation5 + $0x120] sm:$0xff] %v690
  %814 = vst [vmem:[#allocation5 + $0x128] sm:$0xff] %v692
  %815 = vst [vmem:[#allocation5 + $0x130] sm:$0xff] %v773
  %816 = vst [vmem:[#allocation5 + $0x138] sm:$0xff] %v775
  %v817 = vld [vmem:[#allocation4] sm:$0xff]
  %v818 = vld [vmem:[#allocation4 + $0x8] sm:$0xff]
  %v819 = vld [vmem:[#allocation4 + $0x10] sm:$0xff]
  %v820 = vld [vmem:[#allocation4 + $0x18] sm:$0xff]
  %s821 = scalar_lea.vmem [#allocation5], 288
  %v822 = vld [vmem:[%s821] sm:$0xff]
  %v823 = vld [vmem:[%s821 + $0x8] sm:$0xff]
  %v824 = vld [vmem:[%s821 + $0x10] sm:$0xff]
  %v825 = vld [vmem:[%s821 + $0x18] sm:$0xff]
  %v826 = vadd.f32 %v817, %v822
  %v827 = vadd.f32 %v818, %v823
  %v828 = vadd.f32 %v819, %v824
  %v829 = vadd.f32 %v820, %v825
  %v846 = vunpack.c.l.b16 %v211
  %v847 = vunpack.c.h.b16 %v211
  %v848 = vunpack.c.l.b16 %v212
  %v849 = vunpack.c.h.b16 %v212
  %v850 = vunpack.c.l.b16 %v213
  %v851 = vunpack.c.h.b16 %v213
  %v852 = vunpack.c.l.b16 %v214
  %v853 = vunpack.c.h.b16 %v214
  %v854 = vunpack.c.l.b16 %v215
  %v855 = vunpack.c.h.b16 %v215
  %v856 = vunpack.c.l.b16 %v216
  %v857 = vunpack.c.h.b16 %v216
  %v858 = vunpack.c.l.b16 %v217
  %v859 = vunpack.c.h.b16 %v217
  %v860 = vunpack.c.l.b16 %v218
  %v861 = vunpack.c.h.b16 %v218
  %v862 = vunpack.c.l.b16 %v219
  %v863 = vunpack.c.h.b16 %v219
  %v864 = vunpack.c.l.b16 %v220
  %v865 = vunpack.c.h.b16 %v220
  %v866 = vunpack.c.l.b16 %v221
  %v867 = vunpack.c.h.b16 %v221
  %v868 = vunpack.c.l.b16 %v222
  %v869 = vunpack.c.h.b16 %v222
  %v870 = vunpack.c.l.b16 %v223
  %v871 = vunpack.c.h.b16 %v223
  %v872 = vunpack.c.l.b16 %v224
  %v873 = vunpack.c.h.b16 %v224
  %v874 = vunpack.c.l.b16 %v225
  %v875 = vunpack.c.h.b16 %v225
  %v876 = vunpack.c.l.b16 %v226
  %v877 = vunpack.c.h.b16 %v226
  %v878 = vpack.c.b16 %v850, %v846
  %v879 = vpack.c.b16 %v851, %v847
  %v880 = vpack.c.b16 %v852, %v848
  %v881 = vpack.c.b16 %v853, %v849
  %v882 = vpack.c.b16 %v858, %v854
  %v883 = vpack.c.b16 %v859, %v855
  %v884 = vpack.c.b16 %v860, %v856
  %v885 = vpack.c.b16 %v861, %v857
  %v886 = vpack.c.b16 %v866, %v862
  %v887 = vpack.c.b16 %v867, %v863
  %v888 = vpack.c.b16 %v868, %v864
  %v889 = vpack.c.b16 %v869, %v865
  %v890 = vpack.c.b16 %v874, %v870
  %v891 = vpack.c.b16 %v875, %v871
  %v892 = vpack.c.b16 %v876, %v872
  %v893 = vpack.c.b16 %v877, %v873
  %v911 = vsel %vm164, 0, 0
  %913 = vmatprep.subr.bf16.mxu0 %v879
  %914 = vmatpush1.bf16.msra.mxu0 %v878
  %915 = vmatprep.subr.bf16.mxu0 %v883
  %916 = vmatpush1.bf16.msra.mxu0 %v882
  %917 = vmatprep.subr.bf16.mxu0 %v887
  %918 = vmatpush1.bf16.msra.mxu0 %v886
  %919 = vmatprep.subr.bf16.mxu0 %v891
  %920 = vmatpush1.bf16.msra.mxu0 %v890
  %921 = vmatprep.subr.bf16.mxu0 0
  %922 = vmatpush1.bf16.msra.mxu0 0
  %923 = vmatprep.subr.bf16.mxu0 0
  %924 = vmatpush1.bf16.msra.mxu0 0
  %925 = vmatprep.subr.bf16.mxu0 0
  %926 = vmatpush1.bf16.msra.mxu0 0
  %927 = vmatprep.subr.bf16.mxu0 0
  %928 = vmatpush1.bf16.msra.mxu0 0
  %929 = vmatprep.subr.bf16.mxu0 0
  %930 = vmatpush1.bf16.msra.mxu0 0
  %931 = vmatprep.subr.bf16.mxu0 0
  %932 = vmatpush1.bf16.msra.mxu0 0
  %933 = vmatprep.subr.bf16.mxu0 0
  %934 = vmatpush1.bf16.msra.mxu0 0
  %935 = vmatprep.subr.bf16.mxu0 0
  %936 = vmatpush1.bf16.msra.mxu0 0
  %937 = vmatprep.subr.bf16.mxu0 0
  %938 = vmatpush1.bf16.msra.mxu0 0
  %939 = vmatprep.subr.bf16.mxu0 0
  %940 = vmatpush1.bf16.msra.mxu0 0
  %941 = vmatprep.subr.bf16.mxu0 0
  %942 = vmatpush1.bf16.msra.mxu0 0
  %943 = vmatprep.subr.bf16.mxu0 0
  %944 = vmatpush1.bf16.msra.mxu0 0
  %945 = vmatprep.mubr.bf16.mxu0 0
  %946 = vmatmul.mubr.bf16.gmra.mrb[0].mxu0 %v911
  %v947 = vpop.f32.mrb[0].mxu0
  %v948 = vadd.f32 0.0, %v947
  %v949 = vpop.f32.mrb[0].mxu0
  %v950 = vadd.f32 0.0, %v949
  %v951 = vpop.f32.mrb[0].mxu0
  %v952 = vpop.f32.mrb[0].mxu0
  %953 = vdwg.mxu0
  %954 = vmatprep.subr.bf16.mxu0 %v881
  %955 = vmatpush1.bf16.msra.mxu0 %v880
  %956 = vmatprep.subr.bf16.mxu0 %v885
  %957 = vmatpush1.bf16.msra.mxu0 %v884
  %958 = vmatprep.subr.bf16.mxu0 %v889
  %959 = vmatpush1.bf16.msra.mxu0 %v888
  %960 = vmatprep.subr.bf16.mxu0 %v893
  %961 = vmatpush1.bf16.msra.mxu0 %v892
  %962 = vmatprep.subr.bf16.mxu0 0
  %963 = vmatpush1.bf16.msra.mxu0 0
  %964 = vmatprep.subr.bf16.mxu0 0
  %965 = vmatpush1.bf16.msra.mxu0 0
  %966 = vmatprep.subr.bf16.mxu0 0
  %967 = vmatpush1.bf16.msra.mxu0 0
  %968 = vmatprep.subr.bf16.mxu0 0
  %969 = vmatpush1.bf16.msra.mxu0 0
  %970 = vmatprep.subr.bf16.mxu0 0
  %971 = vmatpush1.bf16.msra.mxu0 0
  %972 = vmatprep.subr.bf16.mxu0 0
  %973 = vmatpush1.bf16.msra.mxu0 0
  %974 = vmatprep.subr.bf16.mxu0 0
  %975 = vmatpush1.bf16.msra.mxu0 0
  %976 = vmatprep.subr.bf16.mxu0 0
  %977 = vmatpush1.bf16.msra.mxu0 0
  %978 = vmatprep.subr.bf16.mxu0 0
  %979 = vmatpush1.bf16.msra.mxu0 0
  %980 = vmatprep.subr.bf16.mxu0 0
  %981 = vmatpush1.bf16.msra.mxu0 0
  %982 = vmatprep.subr.bf16.mxu0 0
  %983 = vmatpush1.bf16.msra.mxu0 0
  %984 = vmatprep.subr.bf16.mxu0 0
  %985 = vmatpush1.bf16.msra.mxu0 0
  %986 = vmatprep.mubr.bf16.mxu0 0
  %987 = vmatmul.mubr.bf16.gmra.mrb[0].mxu0 %v911
  %v988 = vpop.f32.mrb[0].mxu0
  %v989 = vadd.f32 0.0, %v988
  %v990 = vpop.f32.mrb[0].mxu0
  %v991 = vadd.f32 0.0, %v990
  %v992 = vpop.f32.mrb[0].mxu0
  %v993 = vpop.f32.mrb[0].mxu0
  %994 = vdwg.mxu0
  %v995 = vadd.f32 %v826, %v948
  %v996 = vadd.f32 %v827, %v950
  %v997 = vadd.f32 %v828, %v989
  %v998 = vadd.f32 %v829, %v991
  %v999 = vxor.u32 %v995, 2147483648
  %v1000 = vmul.f32 %v999, 1.442695
  %v1001 = vpow.pop %v1000
  %v1002 = vadd.f32 %v1001, 1.0
  %v1003 = vrcp.pop %v1002
  %v1004 = vmul.f32 1.0, %v1003
  %v1005 = vxor.u32 %v996, 2147483648
  %v1006 = vmul.f32 %v1005, 1.442695
  %v1007 = vpow.pop %v1006
  %v1008 = vadd.f32 %v1007, 1.0
  %v1009 = vrcp.pop %v1008
  %v1010 = vmul.f32 1.0, %v1009
  %v1011 = vtanh.pop %v997
  %v1012 = vxor.u32 %v998, 2147483648
  %v1013 = vmul.f32 %v1012, 1.442695
  %v1014 = vpow.pop %v1013
  %v1015 = vadd.f32 %v1014, 1.0
  %v1016 = vrcp.pop %v1015
  %v1017 = vmul.f32 1.0, %v1016
  %v1018 = vmul.f32 %v1004, %v1011
  %v1019 = vmul.f32 %v1010, 0.0
  %v1020 = vadd.f32 %v1018, %v1019
  %v1021 = vmax.f32 %v1020, -3.0
  %v1022 = vmin.f32 %v1021, 3.0
  %v1023 = vtanh.pop %v1022
  %v1024 = vmul.f32 %v1017, %v1023
  %v1025 = vpack.c.bf16 %v1024, %v1024
  %v1042 = vunpack.c.l.b16 %v227
  %v1043 = vunpack.c.l.b16 %v228
  %v1044 = vunpack.c.l.b16 %v229
  %v1045 = vunpack.c.l.b16 %v230
  %v1046 = vunpack.c.l.b16 %v231
  %v1047 = vunpack.c.l.b16 %v232
  %v1048 = vunpack.c.l.b16 %v233
  %v1049 = vunpack.c.l.b16 %v234
  %v1050 = vunpack.c.l.b16 %v235
  %v1051 = vunpack.c.l.b16 %v236
  %v1052 = vunpack.c.l.b16 %v237
  %v1053 = vunpack.c.l.b16 %v238
  %v1054 = vunpack.c.l.b16 %v239
  %v1055 = vunpack.c.l.b16 %v240
  %v1056 = vunpack.c.l.b16 %v241
  %v1057 = vunpack.c.l.b16 %v242
  %v1058 = vpack.c.b16 %v1043, %v1042
  %v1059 = vpack.c.b16 %v1045, %v1044
  %v1060 = vpack.c.b16 %v1047, %v1046
  %v1061 = vpack.c.b16 %v1049, %v1048
  %v1062 = vpack.c.b16 %v1051, %v1050
  %v1063 = vpack.c.b16 %v1053, %v1052
  %v1064 = vpack.c.b16 %v1055, %v1054
  %v1065 = vpack.c.b16 %v1057, %v1056
  %1074 = vmatprep.subr.bf16.mxu0 0
  %1075 = vmatpush1.bf16.msra.mxu0 %v1058
  %1076 = vmatprep.subr.bf16.mxu0 0
  %1077 = vmatpush1.bf16.msra.mxu0 %v1059
  %1078 = vmatprep.subr.bf16.mxu0 0
  %1079 = vmatpush1.bf16.msra.mxu0 %v1060
  %1080 = vmatprep.subr.bf16.mxu0 0
  %1081 = vmatpush1.bf16.msra.mxu0 %v1061
  %1082 = vmatprep.subr.bf16.mxu0 0
  %1083 = vmatpush1.bf16.msra.mxu0 %v1062
  %1084 = vmatprep.subr.bf16.mxu0 0
  %1085 = vmatpush1.bf16.msra.mxu0 %v1063
  %1086 = vmatprep.subr.bf16.mxu0 0
  %1087 = vmatpush1.bf16.msra.mxu0 %v1064
  %1088 = vmatprep.subr.bf16.mxu0 0
  %1089 = vmatpush1.bf16.msra.mxu0 %v1065
  %1090 = vmatprep.subr.bf16.mxu0 0
  %1091 = vmatpush1.bf16.msra.mxu0 0
  %1092 = vmatprep.subr.bf16.mxu0 0
  %1093 = vmatpush1.bf16.msra.mxu0 0
  %1094 = vmatprep.subr.bf16.mxu0 0
  %1095 = vmatpush1.bf16.msra.mxu0 0
  %1096 = vmatprep.subr.bf16.mxu0 0
  %1097 = vmatpush1.bf16.msra.mxu0 0
  %1098 = vmatprep.subr.bf16.mxu0 0
  %1099 = vmatpush1.bf16.msra.mxu0 0
  %1100 = vmatprep.subr.bf16.mxu0 0
  %1101 = vmatpush1.bf16.msra.mxu0 0
  %1102 = vmatprep.subr.bf16.mxu0 0
  %1103 = vmatpush1.bf16.msra.mxu0 0
  %1104 = vmatprep.subr.bf16.mxu0 0
  %1105 = vmatpush1.bf16.msra.mxu0 0
  %1106 = vmatprep.mubr.bf16.mxu0 0
  %1107 = vmatmul.mubr.bf16.gmra.mrb[0].mxu0 %v1025
  %v1108 = vpop.f32.mrb[0].mxu0
  %v1109 = vadd.f32 0.0, %v1108
  %v1110 = vpop.f32.mrb[0].mxu0
  %v1111 = vpop.f32.mrb[0].mxu0
  %v1112 = vpop.f32.mrb[0].mxu0
  %1113 = vdwg.mxu0
  %v1114 = vmax.f32 %v1109, -3.0
  %v1115 = vmin.f32 %v1114, 3.0
  %v1116 = vld [vmem:[%s2] sm:$0xff]
  %v1117 = vld [vmem:[%s3] sm:$0xff]
  %v1118 = vmul.f32 %v1116, %v1115
  %1119 = vst.msk [vmem:[#allocation6] sm:$0xff] %vm153, %v1118
  %1121 = vrot.lane.b32.xlu0 %v1118, 96
  %v1122 = vpop.permute.xlu0 %1121
  %s1124 = scalar_lea.vmem [#allocation7], 72
  %1125 = vst.msk [vmem:[%s1124] sm:$0xff] %vm153, %v1122
  %v1126 = vsub.f32 1.0, %v1116
  %v1127 = vmul.f32 %v1126, 0.0
  %v1128 = vadd.f32 %v1118, %v1127
  %v1129 = vmul.f32 %v1117, %v1022
  %v1130 = vsub.f32 1.0, %v1117
  %v1131 = vmul.f32 %v1130, 0.0
  %v1132 = vadd.f32 %v1129, %v1131
  %s1133 = scalar_lea.vmem [#allocation4], 32
  %v1134 = vld [vmem:[%s1133] sm:$0xff]
  %v1135 = vld [vmem:[%s1133 + $0x8] sm:$0xff]
  %v1136 = vld [vmem:[%s1133 + $0x10] sm:$0xff]
  %v1137 = vld [vmem:[%s1133 + $0x18] sm:$0xff]
  %s1138 = scalar_lea.vmem [#allocation5], 256
  %v1139 = vld [vmem:[%s1138] sm:$0xff]
  %v1140 = vld [vmem:[%s1138 + $0x8] sm:$0xff]
  %v1141 = vld [vmem:[%s1138 + $0x10] sm:$0xff]
  %v1142 = vld [vmem:[%s1138 + $0x18] sm:$0xff]
  %v1143 = vadd.f32 %v1134, %v1139
  %v1144 = vadd.f32 %v1135, %v1140
  %v1145 = vadd.f32 %v1136, %v1141
  %v1146 = vadd.f32 %v1137, %v1142
  %v1147 = vpack.c.bf16 %v1128, %v1128
  %v1149 = vsel %vm164, %v1147, 0
  %1151 = vmatprep.subr.bf16.mxu0 %v879
  %1152 = vmatpush1.bf16.msra.mxu0 %v878
  %1153 = vmatprep.subr.bf16.mxu0 %v883
  %1154 = vmatpush1.bf16.msra.mxu0 %v882
  %1155 = vmatprep.subr.bf16.mxu0 %v887
  %1156 = vmatpush1.bf16.msra.mxu0 %v886
  %1157 = vmatprep.subr.bf16.mxu0 %v891
  %1158 = vmatpush1.bf16.msra.mxu0 %v890
  %1159 = vmatprep.subr.bf16.mxu0 0
  %1160 = vmatpush1.bf16.msra.mxu0 0
  %1161 = vmatprep.subr.bf16.mxu0 0
  %1162 = vmatpush1.bf16.msra.mxu0 0
  %1163 = vmatprep.subr.bf16.mxu0 0
  %1164 = vmatpush1.bf16.msra.mxu0 0
  %1165 = vmatprep.subr.bf16.mxu0 0
  %1166 = vmatpush1.bf16.msra.mxu0 0
  %1167 = vmatprep.subr.bf16.mxu0 0
  %1168 = vmatpush1.bf16.msra.mxu0 0
  %1169 = vmatprep.subr.bf16.mxu0 0
  %1170 = vmatpush1.bf16.msra.mxu0 0
  %1171 = vmatprep.subr.bf16.mxu0 0
  %1172 = vmatpush1.bf16.msra.mxu0 0
  %1173 = vmatprep.subr.bf16.mxu0 0
  %1174 = vmatpush1.bf16.msra.mxu0 0
  %1175 = vmatprep.subr.bf16.mxu0 0
  %1176 = vmatpush1.bf16.msra.mxu0 0
  %1177 = vmatprep.subr.bf16.mxu0 0
  %1178 = vmatpush1.bf16.msra.mxu0 0
  %1179 = vmatprep.subr.bf16.mxu0 0
  %1180 = vmatpush1.bf16.msra.mxu0 0
  %1181 = vmatprep.subr.bf16.mxu0 0
  %1182 = vmatpush1.bf16.msra.mxu0 0
  %1183 = vmatprep.mubr.bf16.mxu0 0
  %1184 = vmatmul.mubr.bf16.gmra.mrb[0].mxu0 %v1149
  %v1185 = vpop.f32.mrb[0].mxu0
  %v1186 = vadd.f32 0.0, %v1185
  %v1187 = vpop.f32.mrb[0].mxu0
  %v1188 = vadd.f32 0.0, %v1187
  %v1189 = vpop.f32.mrb[0].mxu0
  %v1190 = vpop.f32.mrb[0].mxu0
  %1191 = vdwg.mxu0
  %1192 = vmatprep.subr.bf16.mxu0 %v881
  %1193 = vmatpush1.bf16.msra.mxu0 %v880
  %1194 = vmatprep.subr.bf16.mxu0 %v885
  %1195 = vmatpush1.bf16.msra.mxu0 %v884
  %1196 = vmatprep.subr.bf16.mxu0 %v889
  %1197 = vmatpush1.bf16.msra.mxu0 %v888
  %1198 = vmatprep.subr.bf16.mxu0 %v893
  %1199 = vmatpush1.bf16.msra.mxu0 %v892
  %1200 = vmatprep.subr.bf16.mxu0 0
  %1201 = vmatpush1.bf16.msra.mxu0 0
  %1202 = vmatprep.subr.bf16.mxu0 0
  %1203 = vmatpush1.bf16.msra.mxu0 0
  %1204 = vmatprep.subr.bf16.mxu0 0
  %1205 = vmatpush1.bf16.msra.mxu0 0
  %1206 = vmatprep.subr.bf16.mxu0 0
  %1207 = vmatpush1.bf16.msra.mxu0 0
  %1208 = vmatprep.subr.bf16.mxu0 0
  %1209 = vmatpush1.bf16.msra.mxu0 0
  %1210 = vmatprep.subr.bf16.mxu0 0
  %1211 = vmatpush1.bf16.msra.mxu0 0
  %1212 = vmatprep.subr.bf16.mxu0 0
  %1213 = vmatpush1.bf16.msra.mxu0 0
  %1214 = vmatprep.subr.bf16.mxu0 0
  %1215 = vmatpush1.bf16.msra.mxu0 0
  %1216 = vmatprep.subr.bf16.mxu0 0
  %1217 = vmatpush1.bf16.msra.mxu0 0
  %1218 = vmatprep.subr.bf16.mxu0 0
  %1219 = vmatpush1.bf16.msra.mxu0 0
  %1220 = vmatprep.subr.bf16.mxu0 0
  %1221 = vmatpush1.bf16.msra.mxu0 0
  %1222 = vmatprep.subr.bf16.mxu0 0
  %1223 = vmatpush1.bf16.msra.mxu0 0
  %1224 = vmatprep.mubr.bf16.mxu0 0
  %1225 = vmatmul.mubr.bf16.gmra.mrb[0].mxu0 %v1149
  %v1226 = vpop.f32.mrb[0].mxu0
  %v1227 = vadd.f32 0.0, %v1226
  %v1228 = vpop.f32.mrb[0].mxu0
  %v1229 = vadd.f32 0.0, %v1228
  %v1230 = vpop.f32.mrb[0].mxu0
  %v1231 = vpop.f32.mrb[0].mxu0
  %1232 = vdwg.mxu0
  %v1233 = vadd.f32 %v1143, %v1186
  %v1234 = vadd.f32 %v1144, %v1188
  %v1235 = vadd.f32 %v1145, %v1227
  %v1236 = vadd.f32 %v1146, %v1229
  %v1237 = vxor.u32 %v1233, 2147483648
  %v1238 = vmul.f32 %v1237, 1.442695
  %v1239 = vpow.pop %v1238
  %v1240 = vadd.f32 %v1239, 1.0
  %v1241 = vrcp.pop %v1240
  %v1242 = vmul.f32 1.0, %v1241
  %v1243 = vxor.u32 %v1234, 2147483648
  %v1244 = vmul.f32 %v1243, 1.442695
  %v1245 = vpow.pop %v1244
  %v1246 = vadd.f32 %v1245, 1.0
  %v1247 = vrcp.pop %v1246
  %v1248 = vmul.f32 1.0, %v1247
  %v1249 = vtanh.pop %v1235
  %v1250 = vxor.u32 %v1236, 2147483648
  %v1251 = vmul.f32 %v1250, 1.442695
  %v1252 = vpow.pop %v1251
  %v1253 = vadd.f32 %v1252, 1.0
  %v1254 = vrcp.pop %v1253
  %v1255 = vmul.f32 1.0, %v1254
  %v1256 = vmul.f32 %v1242, %v1249
  %v1257 = vmul.f32 %v1248, %v1132
  %v1258 = vadd.f32 %v1256, %v1257
  %v1259 = vmax.f32 %v1258, -3.0
  %v1260 = vmin.f32 %v1259, 3.0
  %v1261 = vtanh.pop %v1260
  %v1262 = vmul.f32 %v1255, %v1261
  %v1263 = vpack.c.bf16 %v1262, %v1262
  %1264 = vmatprep.subr.bf16.mxu0 0
  %1265 = vmatpush1.bf16.msra.mxu0 %v1058
  %1266 = vmatprep.subr.bf16.mxu0 0
  %1267 = vmatpush1.bf16.msra.mxu0 %v1059
  %1268 = vmatprep.subr.bf16.mxu0 0
  %1269 = vmatpush1.bf16.msra.mxu0 %v1060
  %1270 = vmatprep.subr.bf16.mxu0 0
  %1271 = vmatpush1.bf16.msra.mxu0 %v1061
  %1272 = vmatprep.subr.bf16.mxu0 0
  %1273 = vmatpush1.bf16.msra.mxu0 %v1062
  %1274 = vmatprep.subr.bf16.mxu0 0
  %1275 = vmatpush1.bf16.msra.mxu0 %v1063
  %1276 = vmatprep.subr.bf16.mxu0 0
  %1277 = vmatpush1.bf16.msra.mxu0 %v1064
  %1278 = vmatprep.subr.bf16.mxu0 0
  %1279 = vmatpush1.bf16.msra.mxu0 %v1065
  %1280 = vmatprep.subr.bf16.mxu0 0
  %1281 = vmatpush1.bf16.msra.mxu0 0
  %1282 = vmatprep.subr.bf16.mxu0 0
  %1283 = vmatpush1.bf16.msra.mxu0 0
  %1284 = vmatprep.subr.bf16.mxu0 0
  %1285 = vmatpush1.bf16.msra.mxu0 0
  %1286 = vmatprep.subr.bf16.mxu0 0
  %1287 = vmatpush1.bf16.msra.mxu0 0
  %1288 = vmatprep.subr.bf16.mxu0 0
  %1289 = vmatpush1.bf16.msra.mxu0 0
  %1290 = vmatprep.subr.bf16.mxu0 0
  %1291 = vmatpush1.bf16.msra.mxu0 0
  %1292 = vmatprep.subr.bf16.mxu0 0
  %1293 = vmatpush1.bf16.msra.mxu0 0
  %1294 = vmatprep.subr.bf16.mxu0 0
  %1295 = vmatpush1.bf16.msra.mxu0 0
  %1296 = vmatprep.mubr.bf16.mxu0 0
  %1297 = vmatmul.mubr.bf16.gmra.mrb[0].mxu0 %v1263
  %v1298 = vpop.f32.mrb[0].mxu0
  %v1299 = vadd.f32 0.0, %v1298
  %v1300 = vpop.f32.mrb[0].mxu0
  %v1301 = vpop.f32.mrb[0].mxu0
  %v1302 = vpop.f32.mrb[0].mxu0
  %1303 = vdwg.mxu0
  %v1304 = vmax.f32 %v1299, -3.0
  %v1305 = vmin.f32 %v1304, 3.0
  %s1306 = scalar_lea.vmem %s2, 8
  %v1307 = vld [vmem:[%s1306] sm:$0xff]
  %s1308 = scalar_lea.vmem %s3, 8
  %v1309 = vld [vmem:[%s1308] sm:$0xff]
  %v1310 = vmul.f32 %v1307, %v1305
  %s1311 = scalar_lea.vmem [#allocation6], 8
  %1312 = vst.msk [vmem:[%s1311] sm:$0xff] %vm153, %v1310
  %1314 = vrot.lane.b32.xlu0 %v1310, 96
  %v1315 = vpop.permute.xlu0 %1314
  %s1317 = scalar_lea.vmem [#allocation7], 64
  %1318 = vst.msk [vmem:[%s1317] sm:$0xff] %vm153, %v1315
  %v1319 = vsub.f32 1.0, %v1307
  %v1320 = vmul.f32 %v1319, %v1128
  %v1321 = vadd.f32 %v1310, %v1320
  %v1322 = vmul.f32 %v1309, %v1260
  %v1323 = vsub.f32 1.0, %v1309
  %v1324 = vmul.f32 %v1323, %v1132
  %v1325 = vadd.f32 %v1322, %v1324
  %s1326 = scalar_lea.vmem [#allocation4], 64
  %v1327 = vld [vmem:[%s1326] sm:$0xff]
  %v1328 = vld [vmem:[%s1326 + $0x8] sm:$0xff]
  %v1329 = vld [vmem:[%s1326 + $0x10] sm:$0xff]
  %v1330 = vld [vmem:[%s1326 + $0x18] sm:$0xff]
  %s1331 = scalar_lea.vmem [#allocation5], 224
  %v1332 = vld [vmem:[%s1331] sm:$0xff]
  %v1333 = vld [vmem:[%s1331 + $0x8] sm:$0xff]
  %v1334 = vld [vmem:[%s1331 + $0x10] sm:$0xff]
  %v1335 = vld [vmem:[%s1331 + $0x18] sm:$0xff]
  %v1336 = vadd.f32 %v1327, %v1332
  %v1337 = vadd.f32 %v1328, %v1333
  %v1338 = vadd.f32 %v1329, %v1334
  %v1339 = vadd.f32 %v1330, %v1335
  %v1340 = vpack.c.bf16 %v1321, %v1321
  %v1342 = vsel %vm164, %v1340, 0
  %1344 = vmatprep.subr.bf16.mxu0 %v879
  %1345 = vmatpush1.bf16.msra.mxu0 %v878
  %1346 = vmatprep.subr.bf16.mxu0 %v883
  %1347 = vmatpush1.bf16.msra.mxu0 %v882
  %1348 = vmatprep.subr.bf16.mxu0 %v887
  %1349 = vmatpush1.bf16.msra.mxu0 %v886
  %1350 = vmatprep.subr.bf16.mxu0 %v891
  %1351 = vmatpush1.bf16.msra.mxu0 %v890
  %1352 = vmatprep.subr.bf16.mxu0 0
  %1353 = vmatpush1.bf16.msra.mxu0 0
  %1354 = vmatprep.subr.bf16.mxu0 0
  %1355 = vmatpush1.bf16.msra.mxu0 0
  %1356 = vmatprep.subr.bf16.mxu0 0
  %1357 = vmatpush1.bf16.msra.mxu0 0
  %1358 = vmatprep.subr.bf16.mxu0 0
  %1359 = vmatpush1.bf16.msra.mxu0 0
  %1360 = vmatprep.subr.bf16.mxu0 0
  %1361 = vmatpush1.bf16.msra.mxu0 0
  %1362 = vmatprep.subr.bf16.mxu0 0
  %1363 = vmatpush1.bf16.msra.mxu0 0
  %1364 = vmatprep.subr.bf16.mxu0 0
  %1365 = vmatpush1.bf16.msra.mxu0 0
  %1366 = vmatprep.subr.bf16.mxu0 0
  %1367 = vmatpush1.bf16.msra.mxu0 0
  %1368 = vmatprep.subr.bf16.mxu0 0
  %1369 = vmatpush1.bf16.msra.mxu0 0
  %1370 = vmatprep.subr.bf16.mxu0 0
  %1371 = vmatpush1.bf16.msra.mxu0 0
  %1372 = vmatprep.subr.bf16.mxu0 0
  %1373 = vmatpush1.bf16.msra.mxu0 0
  %1374 = vmatprep.subr.bf16.mxu0 0
  %1375 = vmatpush1.bf16.msra.mxu0 0
  %1376 = vmatprep.mubr.bf16.mxu0 0
  %1377 = vmatmul.mubr.bf16.gmra.mrb[0].mxu0 %v1342
  %v1378 = vpop.f32.mrb[0].mxu0
  %v1379 = vadd.f32 0.0, %v1378
  %v1380 = vpop.f32.mrb[0].mxu0
  %v1381 = vadd.f32 0.0, %v1380
  %v1382 = vpop.f32.mrb[0].mxu0
  %v1383 = vpop.f32.mrb[0].mxu0
  %1384 = vdwg.mxu0
  %1385 = vmatprep.subr.bf16.mxu0 %v881
  %1386 = vmatpush1.bf16.msra.mxu0 %v880
  %1387 = vmatprep.subr.bf16.mxu0 %v885
  %1388 = vmatpush1.bf16.msra.mxu0 %v884
  %1389 = vmatprep.subr.bf16.mxu0 %v889
  %1390 = vmatpush1.bf16.msra.mxu0 %v888
  %1391 = vmatprep.subr.bf16.mxu0 %v893
  %1392 = vmatpush1.bf16.msra.mxu0 %v892
  %1393 = vmatprep.subr.bf16.mxu0 0
  %1394 = vmatpush1.bf16.msra.mxu0 0
  %1395 = vmatprep.subr.bf16.mxu0 0
  %1396 = vmatpush1.bf16.msra.mxu0 0
  %1397 = vmatprep.subr.bf16.mxu0 0
  %1398 = vmatpush1.bf16.msra.mxu0 0
  %1399 = vmatprep.subr.bf16.mxu0 0
  %1400 = vmatpush1.bf16.msra.mxu0 0
  %1401 = vmatprep.subr.bf16.mxu0 0
  %1402 = vmatpush1.bf16.msra.mxu0 0
  %1403 = vmatprep.subr.bf16.mxu0 0
  %1404 = vmatpush1.bf16.msra.mxu0 0
  %1405 = vmatprep.subr.bf16.mxu0 0
  %1406 = vmatpush1.bf16.msra.mxu0 0
  %1407 = vmatprep.subr.bf16.mxu0 0
  %1408 = vmatpush1.bf16.msra.mxu0 0
  %1409 = vmatprep.subr.bf16.mxu0 0
  %1410 = vmatpush1.bf16.msra.mxu0 0
  %1411 = vmatprep.subr.bf16.mxu0 0
  %1412 = vmatpush1.bf16.msra.mxu0 0
  %1413 = vmatprep.subr.bf16.mxu0 0
  %1414 = vmatpush1.bf16.msra.mxu0 0
  %1415 = vmatprep.subr.bf16.mxu0 0
  %1416 = vmatpush1.bf16.msra.mxu0 0
  %1417 = vmatprep.mubr.bf16.mxu0 0
  %1418 = vmatmul.mubr.bf16.gmra.mrb[0].mxu0 %v1342
  %v1419 = vpop.f32.mrb[0].mxu0
  %v1420 = vadd.f32 0.0, %v1419
  %v1421 = vpop.f32.mrb[0].mxu0
  %v1422 = vadd.f32 0.0, %v1421
  %v1423 = vpop.f32.mrb[0].mxu0
  %v1424 = vpop.f32.mrb[0].mxu0
  %1425 = vdwg.mxu0
  %v1426 = vadd.f32 %v1336, %v1379
  %v1427 = vadd.f32 %v1337, %v1381
  %v1428 = vadd.f32 %v1338, %v1420
  %v1429 = vadd.f32 %v1339, %v1422
  %v1430 = vxor.u32 %v1426, 2147483648
  %v1431 = vmul.f32 %v1430, 1.442695
  %v1432 = vpow.pop %v1431
  %v1433 = vadd.f32 %v1432, 1.0
  %v1434 = vrcp.pop %v1433
  %v1435 = vmul.f32 1.0, %v1434
  %v1436 = vxor.u32 %v1427, 2147483648
  %v1437 = vmul.f32 %v1436, 1.442695
  %v1438 = vpow.pop %v1437
  %v1439 = vadd.f32 %v1438, 1.0
  %v1440 = vrcp.pop %v1439
  %v1441 = vmul.f32 1.0, %v1440
  %v1442 = vtanh.pop %v1428
  %v1443 = vxor.u32 %v1429, 2147483648
  %v1444 = vmul.f32 %v1443, 1.442695
  %v1445 = vpow.pop %v1444
  %v1446 = vadd.f32 %v1445, 1.0
  %v1447 = vrcp.pop %v1446
  %v1448 = vmul.f32 1.0, %v1447
  %v1449 = vmul.f32 %v1435, %v1442
  %v1450 = vmul.f32 %v1441, %v1325
  %v1451 = vadd.f32 %v1449, %v1450
  %v1452 = vmax.f32 %v1451, -3.0
  %v1453 = vmin.f32 %v1452, 3.0
  %v1454 = vtanh.pop %v1453
  %v1455 = vmul.f32 %v1448, %v1454
  %v1456 = vpack.c.bf16 %v1455, %v1455
  %1457 = vmatprep.subr.bf16.mxu0 0
  %1458 = vmatpush1.bf16.msra.mxu0 %v1058
  %1459 = vmatprep.subr.bf16.mxu0 0
  %1460 = vmatpush1.bf16.msra.mxu0 %v1059
  %1461 = vmatprep.subr.bf16.mxu0 0
  %1462 = vmatpush1.bf16.msra.mxu0 %v1060
  %1463 = vmatprep.subr.bf16.mxu0 0
  %1464 = vmatpush1.bf16.msra.mxu0 %v1061
  %1465 = vmatprep.subr.bf16.mxu0 0
  %1466 = vmatpush1.bf16.msra.mxu0 %v1062
  %1467 = vmatprep.subr.bf16.mxu0 0
  %1468 = vmatpush1.bf16.msra.mxu0 %v1063
  %1469 = vmatprep.subr.bf16.mxu0 0
  %1470 = vmatpush1.bf16.msra.mxu0 %v1064
  %1471 = vmatprep.subr.bf16.mxu0 0
  %1472 = vmatpush1.bf16.msra.mxu0 %v1065
  %1473 = vmatprep.subr.bf16.mxu0 0
  %1474 = vmatpush1.bf16.msra.mxu0 0
  %1475 = vmatprep.subr.bf16.mxu0 0
  %1476 = vmatpush1.bf16.msra.mxu0 0
  %1477 = vmatprep.subr.bf16.mxu0 0
  %1478 = vmatpush1.bf16.msra.mxu0 0
  %1479 = vmatprep.subr.bf16.mxu0 0
  %1480 = vmatpush1.bf16.msra.mxu0 0
  %1481 = vmatprep.subr.bf16.mxu0 0
  %1482 = vmatpush1.bf16.msra.mxu0 0
  %1483 = vmatprep.subr.bf16.mxu0 0
  %1484 = vmatpush1.bf16.msra.mxu0 0
  %1485 = vmatprep.subr.bf16.mxu0 0
  %1486 = vmatpush1.bf16.msra.mxu0 0
  %1487 = vmatprep.subr.bf16.mxu0 0
  %1488 = vmatpush1.bf16.msra.mxu0 0
  %1489 = vmatprep.mubr.bf16.mxu0 0
  %1490 = vmatmul.mubr.bf16.gmra.mrb[0].mxu0 %v1456
  %v1491 = vpop.f32.mrb[0].mxu0
  %v1492 = vadd.f32 0.0, %v1491
  %v1493 = vpop.f32.mrb[0].mxu0
  %v1494 = vpop.f32.mrb[0].mxu0
  %v1495 = vpop.f32.mrb[0].mxu0
  %1496 = vdwg.mxu0
  %v1497 = vmax.f32 %v1492, -3.0
  %v1498 = vmin.f32 %v1497, 3.0
  %s1499 = scalar_lea.vmem %s2, 16
  %v1500 = vld [vmem:[%s1499] sm:$0xff]
  %s1501 = scalar_lea.vmem %s3, 16
  %v1502 = vld [vmem:[%s1501] sm:$0xff]
  %v1503 = vmul.f32 %v1500, %v1498
  %s1504 = scalar_lea.vmem [#allocation6], 16
  %1505 = vst.msk [vmem:[%s1504] sm:$0xff] %vm153, %v1503
  %1507 = vrot.lane.b32.xlu0 %v1503, 96
  %v1508 = vpop.permute.xlu0 %1507
  %s1510 = scalar_lea.vmem [#allocation7], 56
  %1511 = vst.msk [vmem:[%s1510] sm:$0xff] %vm153, %v1508
  %v1512 = vsub.f32 1.0, %v1500
  %v1513 = vmul.f32 %v1512, %v1321
  %v1514 = vadd.f32 %v1503, %v1513
  %v1515 = vmul.f32 %v1502, %v1453
  %v1516 = vsub.f32 1.0, %v1502
  %v1517 = vmul.f32 %v1516, %v1325
  %v1518 = vadd.f32 %v1515, %v1517
  %s1519 = scalar_lea.vmem [#allocation4], 96
  %v1520 = vld [vmem:[%s1519] sm:$0xff]
  %v1521 = vld [vmem:[%s1519 + $0x8] sm:$0xff]
  %v1522 = vld [vmem:[%s1519 + $0x10] sm:$0xff]
  %v1523 = vld [vmem:[%s1519 + $0x18] sm:$0xff]
  %s1524 = scalar_lea.vmem [#allocation5], 192
  %v1525 = vld [vmem:[%s1524] sm:$0xff]
  %v1526 = vld [vmem:[%s1524 + $0x8] sm:$0xff]
  %v1527 = vld [vmem:[%s1524 + $0x10] sm:$0xff]
  %v1528 = vld [vmem:[%s1524 + $0x18] sm:$0xff]
  %v1529 = vadd.f32 %v1520, %v1525
  %v1530 = vadd.f32 %v1521, %v1526
  %v1531 = vadd.f32 %v1522, %v1527
  %v1532 = vadd.f32 %v1523, %v1528
  %v1533 = vpack.c.bf16 %v1514, %v1514
  %v1535 = vsel %vm164, %v1533, 0
  %1537 = vmatprep.subr.bf16.mxu0 %v879
  %1538 = vmatpush1.bf16.msra.mxu0 %v878
  %1539 = vmatprep.subr.bf16.mxu0 %v883
  %1540 = vmatpush1.bf16.msra.mxu0 %v882
  %1541 = vmatprep.subr.bf16.mxu0 %v887
  %1542 = vmatpush1.bf16.msra.mxu0 %v886
  %1543 = vmatprep.subr.bf16.mxu0 %v891
  %1544 = vmatpush1.bf16.msra.mxu0 %v890
  %1545 = vmatprep.subr.bf16.mxu0 0
  %1546 = vmatpush1.bf16.msra.mxu0 0
  %1547 = vmatprep.subr.bf16.mxu0 0
  %1548 = vmatpush1.bf16.msra.mxu0 0
  %1549 = vmatprep.subr.bf16.mxu0 0
  %1550 = vmatpush1.bf16.msra.mxu0 0
  %1551 = vmatprep.subr.bf16.mxu0 0
  %1552 = vmatpush1.bf16.msra.mxu0 0
  %1553 = vmatprep.subr.bf16.mxu0 0
  %1554 = vmatpush1.bf16.msra.mxu0 0
  %1555 = vmatprep.subr.bf16.mxu0 0
  %1556 = vmatpush1.bf16.msra.mxu0 0
  %1557 = vmatprep.subr.bf16.mxu0 0
  %1558 = vmatpush1.bf16.msra.mxu0 0
  %1559 = vmatprep.subr.bf16.mxu0 0
  %1560 = vmatpush1.bf16.msra.mxu0 0
  %1561 = vmatprep.subr.bf16.mxu0 0
  %1562 = vmatpush1.bf16.msra.mxu0 0
  %1563 = vmatprep.subr.bf16.mxu0 0
  %1564 = vmatpush1.bf16.msra.mxu0 0
  %1565 = vmatprep.subr.bf16.mxu0 0
  %1566 = vmatpush1.bf16.msra.mxu0 0
  %1567 = vmatprep.subr.bf16.mxu0 0
  %1568 = vmatpush1.bf16.msra.mxu0 0
  %1569 = vmatprep.mubr.bf16.mxu0 0
  %1570 = vmatmul.mubr.bf16.gmra.mrb[0].mxu0 %v1535
  %v1571 = vpop.f32.mrb[0].mxu0
  %v1572 = vadd.f32 0.0, %v1571
  %v1573 = vpop.f32.mrb[0].mxu0
  %v1574 = vadd.f32 0.0, %v1573
  %v1575 = vpop.f32.mrb[0].mxu0
  %v1576 = vpop.f32.mrb[0].mxu0
  %1577 = vdwg.mxu0
  %1578 = vmatprep.subr.bf16.mxu0 %v881
  %1579 = vmatpush1.bf16.msra.mxu0 %v880
  %1580 = vmatprep.subr.bf16.mxu0 %v885
  %1581 = vmatpush1.bf16.msra.mxu0 %v884
  %1582 = vmatprep.subr.bf16.mxu0 %v889
  %1583 = vmatpush1.bf16.msra.mxu0 %v888
  %1584 = vmatprep.subr.bf16.mxu0 %v893
  %1585 = vmatpush1.bf16.msra.mxu0 %v892
  %1586 = vmatprep.subr.bf16.mxu0 0
  %1587 = vmatpush1.bf16.msra.mxu0 0
  %1588 = vmatprep.subr.bf16.mxu0 0
  %1589 = vmatpush1.bf16.msra.mxu0 0
  %1590 = vmatprep.subr.bf16.mxu0 0
  %1591 = vmatpush1.bf16.msra.mxu0 0
  %1592 = vmatprep.subr.bf16.mxu0 0
  %1593 = vmatpush1.bf16.msra.mxu0 0
  %1594 = vmatprep.subr.bf16.mxu0 0
  %1595 = vmatpush1.bf16.msra.mxu0 0
  %1596 = vmatprep.subr.bf16.mxu0 0
  %1597 = vmatpush1.bf16.msra.mxu0 0
  %1598 = vmatprep.subr.bf16.mxu0 0
  %1599 = vmatpush1.bf16.msra.mxu0 0
  %1600 = vmatprep.subr.bf16.mxu0 0
  %1601 = vmatpush1.bf16.msra.mxu0 0
  %1602 = vmatprep.subr.bf16.mxu0 0
  %1603 = vmatpush1.bf16.msra.mxu0 0
  %1604 = vmatprep.subr.bf16.mxu0 0
  %1605 = vmatpush1.bf16.msra.mxu0 0
  %1606 = vmatprep.subr.bf16.mxu0 0
  %1607 = vmatpush1.bf16.msra.mxu0 0
  %1608 = vmatprep.subr.bf16.mxu0 0
  %1609 = vmatpush1.bf16.msra.mxu0 0
  %1610 = vmatprep.mubr.bf16.mxu0 0
  %1611 = vmatmul.mubr.bf16.gmra.mrb[0].mxu0 %v1535
  %v1612 = vpop.f32.mrb[0].mxu0
  %v1613 = vadd.f32 0.0, %v1612
  %v1614 = vpop.f32.mrb[0].mxu0
  %v1615 = vadd.f32 0.0, %v1614
  %v1616 = vpop.f32.mrb[0].mxu0
  %v1617 = vpop.f32.mrb[0].mxu0
  %1618 = vdwg.mxu0
  %v1619 = vadd.f32 %v1529, %v1572
  %v1620 = vadd.f32 %v1530, %v1574
  %v1621 = vadd.f32 %v1531, %v1613
  %v1622 = vadd.f32 %v1532, %v1615
  %v1623 = vxor.u32 %v1619, 2147483648
  %v1624 = vmul.f32 %v1623, 1.442695
  %v1625 = vpow.pop %v1624
  %v1626 = vadd.f32 %v1625, 1.0
  %v1627 = vrcp.pop %v1626
  %v1628 = vmul.f32 1.0, %v1627
  %v1629 = vxor.u32 %v1620, 2147483648
  %v1630 = vmul.f32 %v1629, 1.442695
  %v1631 = vpow.pop %v1630
  %v1632 = vadd.f32 %v1631, 1.0
  %v1633 = vrcp.pop %v1632
  %v1634 = vmul.f32 1.0, %v1633
  %v1635 = vtanh.pop %v1621
  %v1636 = vxor.u32 %v1622, 2147483648
  %v1637 = vmul.f32 %v1636, 1.442695
  %v1638 = vpow.pop %v1637
  %v1639 = vadd.f32 %v1638, 1.0
  %v1640 = vrcp.pop %v1639
  %v1641 = vmul.f32 1.0, %v1640
  %v1642 = vmul.f32 %v1628, %v1635
  %v1643 = vmul.f32 %v1634, %v1518
  %v1644 = vadd.f32 %v1642, %v1643
  %v1645 = vmax.f32 %v1644, -3.0
  %v1646 = vmin.f32 %v1645, 3.0
  %v1647 = vtanh.pop %v1646
  %v1648 = vmul.f32 %v1641, %v1647
  %v1649 = vpack.c.bf16 %v1648, %v1648
  %1650 = vmatprep.subr.bf16.mxu0 0
  %1651 = vmatpush1.bf16.msra.mxu0 %v1058
  %1652 = vmatprep.subr.bf16.mxu0 0
  %1653 = vmatpush1.bf16.msra.mxu0 %v1059
  %1654 = vmatprep.subr.bf16.mxu0 0
  %1655 = vmatpush1.bf16.msra.mxu0 %v1060
  %1656 = vmatprep.subr.bf16.mxu0 0
  %1657 = vmatpush1.bf16.msra.mxu0 %v1061
  %1658 = vmatprep.subr.bf16.mxu0 0
  %1659 = vmatpush1.bf16.msra.mxu0 %v1062
  %1660 = vmatprep.subr.bf16.mxu0 0
  %1661 = vmatpush1.bf16.msra.mxu0 %v1063
  %1662 = vmatprep.subr.bf16.mxu0 0
  %1663 = vmatpush1.bf16.msra.mxu0 %v1064
  %1664 = vmatprep.subr.bf16.mxu0 0
  %1665 = vmatpush1.bf16.msra.mxu0 %v1065
  %1666 = vmatprep.subr.bf16.mxu0 0
  %1667 = vmatpush1.bf16.msra.mxu0 0
  %1668 = vmatprep.subr.bf16.mxu0 0
  %1669 = vmatpush1.bf16.msra.mxu0 0
  %1670 = vmatprep.subr.bf16.mxu0 0
  %1671 = vmatpush1.bf16.msra.mxu0 0
  %1672 = vmatprep.subr.bf16.mxu0 0
  %1673 = vmatpush1.bf16.msra.mxu0 0
  %1674 = vmatprep.subr.bf16.mxu0 0
  %1675 = vmatpush1.bf16.msra.mxu0 0
  %1676 = vmatprep.subr.bf16.mxu0 0
  %1677 = vmatpush1.bf16.msra.mxu0 0
  %1678 = vmatprep.subr.bf16.mxu0 0
  %1679 = vmatpush1.bf16.msra.mxu0 0
  %1680 = vmatprep.subr.bf16.mxu0 0
  %1681 = vmatpush1.bf16.msra.mxu0 0
  %1682 = vmatprep.mubr.bf16.mxu0 0
  %1683 = vmatmul.mubr.bf16.gmra.mrb[0].mxu0 %v1649
  %v1684 = vpop.f32.mrb[0].mxu0
  %v1685 = vadd.f32 0.0, %v1684
  %v1686 = vpop.f32.mrb[0].mxu0
  %v1687 = vpop.f32.mrb[0].mxu0
  %v1688 = vpop.f32.mrb[0].mxu0
  %1689 = vdwg.mxu0
  %v1690 = vmax.f32 %v1685, -3.0
  %v1691 = vmin.f32 %v1690, 3.0
  %s1692 = scalar_lea.vmem %s2, 24
  %v1693 = vld [vmem:[%s1692] sm:$0xff]
  %s1694 = scalar_lea.vmem %s3, 24
  %v1695 = vld [vmem:[%s1694] sm:$0xff]
  %v1696 = vmul.f32 %v1693, %v1691
  %s1697 = scalar_lea.vmem [#allocation6], 24
  %1698 = vst.msk [vmem:[%s1697] sm:$0xff] %vm153, %v1696
  %1700 = vrot.lane.b32.xlu0 %v1696, 96
  %v1701 = vpop.permute.xlu0 %1700
  %s1703 = scalar_lea.vmem [#allocation7], 48
  %1704 = vst.msk [vmem:[%s1703] sm:$0xff] %vm153, %v1701
  %v1705 = vsub.f32 1.0, %v1693
  %v1706 = vmul.f32 %v1705, %v1514
  %v1707 = vadd.f32 %v1696, %v1706
  %v1708 = vmul.f32 %v1695, %v1646
  %v1709 = vsub.f32 1.0, %v1695
  %v1710 = vmul.f32 %v1709, %v1518
  %v1711 = vadd.f32 %v1708, %v1710
  %s1712 = scalar_lea.vmem [#allocation4], 128
  %v1713 = vld [vmem:[%s1712] sm:$0xff]
  %v1714 = vld [vmem:[%s1712 + $0x8] sm:$0xff]
  %v1715 = vld [vmem:[%s1712 + $0x10] sm:$0xff]
  %v1716 = vld [vmem:[%s1712 + $0x18] sm:$0xff]
  %s1717 = scalar_lea.vmem [#allocation5], 160
  %v1718 = vld [vmem:[%s1717] sm:$0xff]
  %v1719 = vld [vmem:[%s1717 + $0x8] sm:$0xff]
  %v1720 = vld [vmem:[%s1717 + $0x10] sm:$0xff]
  %v1721 = vld [vmem:[%s1717 + $0x18] sm:$0xff]
  %v1722 = vadd.f32 %v1713, %v1718
  %v1723 = vadd.f32 %v1714, %v1719
  %v1724 = vadd.f32 %v1715, %v1720
  %v1725 = vadd.f32 %v1716, %v1721
  %v1726 = vpack.c.bf16 %v1707, %v1707
  %v1728 = vsel %vm164, %v1726, 0
  %1730 = vmatprep.subr.bf16.mxu0 %v879
  %1731 = vmatpush1.bf16.msra.mxu0 %v878
  %1732 = vmatprep.subr.bf16.mxu0 %v883
  %1733 = vmatpush1.bf16.msra.mxu0 %v882
  %1734 = vmatprep.subr.bf16.mxu0 %v887
  %1735 = vmatpush1.bf16.msra.mxu0 %v886
  %1736 = vmatprep.subr.bf16.mxu0 %v891
  %1737 = vmatpush1.bf16.msra.mxu0 %v890
  %1738 = vmatprep.subr.bf16.mxu0 0
  %1739 = vmatpush1.bf16.msra.mxu0 0
  %1740 = vmatprep.subr.bf16.mxu0 0
  %1741 = vmatpush1.bf16.msra.mxu0 0
  %1742 = vmatprep.subr.bf16.mxu0 0
  %1743 = vmatpush1.bf16.msra.mxu0 0
  %1744 = vmatprep.subr.bf16.mxu0 0
  %1745 = vmatpush1.bf16.msra.mxu0 0
  %1746 = vmatprep.subr.bf16.mxu0 0
  %1747 = vmatpush1.bf16.msra.mxu0 0
  %1748 = vmatprep.subr.bf16.mxu0 0
  %1749 = vmatpush1.bf16.msra.mxu0 0
  %1750 = vmatprep.subr.bf16.mxu0 0
  %1751 = vmatpush1.bf16.msra.mxu0 0
  %1752 = vmatprep.subr.bf16.mxu0 0
  %1753 = vmatpush1.bf16.msra.mxu0 0
  %1754 = vmatprep.subr.bf16.mxu0 0
  %1755 = vmatpush1.bf16.msra.mxu0 0
  %1756 = vmatprep.subr.bf16.mxu0 0
  %1757 = vmatpush1.bf16.msra.mxu0 0
  %1758 = vmatprep.subr.bf16.mxu0 0
  %1759 = vmatpush1.bf16.msra.mxu0 0
  %1760 = vmatprep.subr.bf16.mxu0 0
  %1761 = vmatpush1.bf16.msra.mxu0 0
  %1762 = vmatprep.mubr.bf16.mxu0 0
  %1763 = vmatmul.mubr.bf16.gmra.mrb[0].mxu0 %v1728
  %v1764 = vpop.f32.mrb[0].mxu0
  %v1765 = vadd.f32 0.0, %v1764
  %v1766 = vpop.f32.mrb[0].mxu0
  %v1767 = vadd.f32 0.0, %v1766
  %v1768 = vpop.f32.mrb[0].mxu0
  %v1769 = vpop.f32.mrb[0].mxu0
  %1770 = vdwg.mxu0
  %1771 = vmatprep.subr.bf16.mxu0 %v881
  %1772 = vmatpush1.bf16.msra.mxu0 %v880
  %1773 = vmatprep.subr.bf16.mxu0 %v885
  %1774 = vmatpush1.bf16.msra.mxu0 %v884
  %1775 = vmatprep.subr.bf16.mxu0 %v889
  %1776 = vmatpush1.bf16.msra.mxu0 %v888
  %1777 = vmatprep.subr.bf16.mxu0 %v893
  %1778 = vmatpush1.bf16.msra.mxu0 %v892
  %1779 = vmatprep.subr.bf16.mxu0 0
  %1780 = vmatpush1.bf16.msra.mxu0 0
  %1781 = vmatprep.subr.bf16.mxu0 0
  %1782 = vmatpush1.bf16.msra.mxu0 0
  %1783 = vmatprep.subr.bf16.mxu0 0
  %1784 = vmatpush1.bf16.msra.mxu0 0
  %1785 = vmatprep.subr.bf16.mxu0 0
  %1786 = vmatpush1.bf16.msra.mxu0 0
  %1787 = vmatprep.subr.bf16.mxu0 0
  %1788 = vmatpush1.bf16.msra.mxu0 0
  %1789 = vmatprep.subr.bf16.mxu0 0
  %1790 = vmatpush1.bf16.msra.mxu0 0
  %1791 = vmatprep.subr.bf16.mxu0 0
  %1792 = vmatpush1.bf16.msra.mxu0 0
  %1793 = vmatprep.subr.bf16.mxu0 0
  %1794 = vmatpush1.bf16.msra.mxu0 0
  %1795 = vmatprep.subr.bf16.mxu0 0
  %1796 = vmatpush1.bf16.msra.mxu0 0
  %1797 = vmatprep.subr.bf16.mxu0 0
  %1798 = vmatpush1.bf16.msra.mxu0 0
  %1799 = vmatprep.subr.bf16.mxu0 0
  %1800 = vmatpush1.bf16.msra.mxu0 0
  %1801 = vmatprep.subr.bf16.mxu0 0
  %1802 = vmatpush1.bf16.msra.mxu0 0
  %1803 = vmatprep.mubr.bf16.mxu0 0
  %1804 = vmatmul.mubr.bf16.gmra.mrb[0].mxu0 %v1728
  %v1805 = vpop.f32.mrb[0].mxu0
  %v1806 = vadd.f32 0.0, %v1805
  %v1807 = vpop.f32.mrb[0].mxu0
  %v1808 = vadd.f32 0.0, %v1807
  %v1809 = vpop.f32.mrb[0].mxu0
  %v1810 = vpop.f32.mrb[0].mxu0
  %1811 = vdwg.mxu0
  %v1812 = vadd.f32 %v1722, %v1765
  %v1813 = vadd.f32 %v1723, %v1767
  %v1814 = vadd.f32 %v1724, %v1806
  %v1815 = vadd.f32 %v1725, %v1808
  %v1816 = vxor.u32 %v1812, 2147483648
  %v1817 = vmul.f32 %v1816, 1.442695
  %v1818 = vpow.pop %v1817
  %v1819 = vadd.f32 %v1818, 1.0
  %v1820 = vrcp.pop %v1819
  %v1821 = vmul.f32 1.0, %v1820
  %v1822 = vxor.u32 %v1813, 2147483648
  %v1823 = vmul.f32 %v1822, 1.442695
  %v1824 = vpow.pop %v1823
  %v1825 = vadd.f32 %v1824, 1.0
  %v1826 = vrcp.pop %v1825
  %v1827 = vmul.f32 1.0, %v1826
  %v1828 = vtanh.pop %v1814
  %v1829 = vxor.u32 %v1815, 2147483648
  %v1830 = vmul.f32 %v1829, 1.442695
  %v1831 = vpow.pop %v1830
  %v1832 = vadd.f32 %v1831, 1.0
  %v1833 = vrcp.pop %v1832
  %v1834 = vmul.f32 1.0, %v1833
  %v1835 = vmul.f32 %v1821, %v1828
  %v1836 = vmul.f32 %v1827, %v1711
  %v1837 = vadd.f32 %v1835, %v1836
  %v1838 = vmax.f32 %v1837, -3.0
  %v1839 = vmin.f32 %v1838, 3.0
  %v1840 = vtanh.pop %v1839
  %v1841 = vmul.f32 %v1834, %v1840
  %v1842 = vpack.c.bf16 %v1841, %v1841
  %1843 = vmatprep.subr.bf16.mxu0 0
  %1844 = vmatpush1.bf16.msra.mxu0 %v1058
  %1845 = vmatprep.subr.bf16.mxu0 0
  %1846 = vmatpush1.bf16.msra.mxu0 %v1059
  %1847 = vmatprep.subr.bf16.mxu0 0
  %1848 = vmatpush1.bf16.msra.mxu0 %v1060
  %1849 = vmatprep.subr.bf16.mxu0 0
  %1850 = vmatpush1.bf16.msra.mxu0 %v1061
  %1851 = vmatprep.subr.bf16.mxu0 0
  %1852 = vmatpush1.bf16.msra.mxu0 %v1062
  %1853 = vmatprep.subr.bf16.mxu0 0
  %1854 = vmatpush1.bf16.msra.mxu0 %v1063
  %1855 = vmatprep.subr.bf16.mxu0 0
  %1856 = vmatpush1.bf16.msra.mxu0 %v1064
  %1857 = vmatprep.subr.bf16.mxu0 0
  %1858 = vmatpush1.bf16.msra.mxu0 %v1065
  %1859 = vmatprep.subr.bf16.mxu0 0
  %1860 = vmatpush1.bf16.msra.mxu0 0
  %1861 = vmatprep.subr.bf16.mxu0 0
  %1862 = vmatpush1.bf16.msra.mxu0 0
  %1863 = vmatprep.subr.bf16.mxu0 0
  %1864 = vmatpush1.bf16.msra.mxu0 0
  %1865 = vmatprep.subr.bf16.mxu0 0
  %1866 = vmatpush1.bf16.msra.mxu0 0
  %1867 = vmatprep.subr.bf16.mxu0 0
  %1868 = vmatpush1.bf16.msra.mxu0 0
  %1869 = vmatprep.subr.bf16.mxu0 0
  %1870 = vmatpush1.bf16.msra.mxu0 0
  %1871 = vmatprep.subr.bf16.mxu0 0
  %1872 = vmatpush1.bf16.msra.mxu0 0
  %1873 = vmatprep.subr.bf16.mxu0 0
  %1874 = vmatpush1.bf16.msra.mxu0 0
  %1875 = vmatprep.mubr.bf16.mxu0 0
  %1876 = vmatmul.mubr.bf16.gmra.mrb[0].mxu0 %v1842
  %v1877 = vpop.f32.mrb[0].mxu0
  %v1878 = vadd.f32 0.0, %v1877
  %v1879 = vpop.f32.mrb[0].mxu0
  %v1880 = vpop.f32.mrb[0].mxu0
  %v1881 = vpop.f32.mrb[0].mxu0
  %1882 = vdwg.mxu0
  %v1883 = vmax.f32 %v1878, -3.0
  %v1884 = vmin.f32 %v1883, 3.0
  %s1885 = scalar_lea.vmem %s2, 32
  %v1886 = vld [vmem:[%s1885] sm:$0xff]
  %s1887 = scalar_lea.vmem %s3, 32
  %v1888 = vld [vmem:[%s1887] sm:$0xff]
  %v1889 = vmul.f32 %v1886, %v1884
  %s1890 = scalar_lea.vmem [#allocation6], 32
  %1891 = vst.msk [vmem:[%s1890] sm:$0xff] %vm153, %v1889
  %1893 = vrot.lane.b32.xlu0 %v1889, 96
  %v1894 = vpop.permute.xlu0 %1893
  %s1896 = scalar_lea.vmem [#allocation7], 40
  %1897 = vst.msk [vmem:[%s1896] sm:$0xff] %vm153, %v1894
  %v1898 = vsub.f32 1.0, %v1886
  %v1899 = vmul.f32 %v1898, %v1707
  %v1900 = vadd.f32 %v1889, %v1899
  %v1901 = vmul.f32 %v1888, %v1839
  %v1902 = vsub.f32 1.0, %v1888
  %v1903 = vmul.f32 %v1902, %v1711
  %v1904 = vadd.f32 %v1901, %v1903
  %s1905 = scalar_lea.vmem [#allocation4], 160
  %v1906 = vld [vmem:[%s1905] sm:$0xff]
  %v1907 = vld [vmem:[%s1905 + $0x8] sm:$0xff]
  %v1908 = vld [vmem:[%s1905 + $0x10] sm:$0xff]
  %v1909 = vld [vmem:[%s1905 + $0x18] sm:$0xff]
  %s1910 = scalar_lea.vmem [#allocation5], 128
  %v1911 = vld [vmem:[%s1910] sm:$0xff]
  %v1912 = vld [vmem:[%s1910 + $0x8] sm:$0xff]
  %v1913 = vld [vmem:[%s1910 + $0x10] sm:$0xff]
  %v1914 = vld [vmem:[%s1910 + $0x18] sm:$0xff]
  %v1915 = vadd.f32 %v1906, %v1911
  %v1916 = vadd.f32 %v1907, %v1912
  %v1917 = vadd.f32 %v1908, %v1913
  %v1918 = vadd.f32 %v1909, %v1914
  %v1919 = vpack.c.bf16 %v1900, %v1900
  %v1921 = vsel %vm164, %v1919, 0
  %1923 = vmatprep.subr.bf16.mxu0 %v879
  %1924 = vmatpush1.bf16.msra.mxu0 %v878
  %1925 = vmatprep.subr.bf16.mxu0 %v883
  %1926 = vmatpush1.bf16.msra.mxu0 %v882
  %1927 = vmatprep.subr.bf16.mxu0 %v887
  %1928 = vmatpush1.bf16.msra.mxu0 %v886
  %1929 = vmatprep.subr.bf16.mxu0 %v891
  %1930 = vmatpush1.bf16.msra.mxu0 %v890
  %1931 = vmatprep.subr.bf16.mxu0 0
  %1932 = vmatpush1.bf16.msra.mxu0 0
  %1933 = vmatprep.subr.bf16.mxu0 0
  %1934 = vmatpush1.bf16.msra.mxu0 0
  %1935 = vmatprep.subr.bf16.mxu0 0
  %1936 = vmatpush1.bf16.msra.mxu0 0
  %1937 = vmatprep.subr.bf16.mxu0 0
  %1938 = vmatpush1.bf16.msra.mxu0 0
  %1939 = vmatprep.subr.bf16.mxu0 0
  %1940 = vmatpush1.bf16.msra.mxu0 0
  %1941 = vmatprep.subr.bf16.mxu0 0
  %1942 = vmatpush1.bf16.msra.mxu0 0
  %1943 = vmatprep.subr.bf16.mxu0 0
  %1944 = vmatpush1.bf16.msra.mxu0 0
  %1945 = vmatprep.subr.bf16.mxu0 0
  %1946 = vmatpush1.bf16.msra.mxu0 0
  %1947 = vmatprep.subr.bf16.mxu0 0
  %1948 = vmatpush1.bf16.msra.mxu0 0
  %1949 = vmatprep.subr.bf16.mxu0 0
  %1950 = vmatpush1.bf16.msra.mxu0 0
  %1951 = vmatprep.subr.bf16.mxu0 0
  %1952 = vmatpush1.bf16.msra.mxu0 0
  %1953 = vmatprep.subr.bf16.mxu0 0
  %1954 = vmatpush1.bf16.msra.mxu0 0
  %1955 = vmatprep.mubr.bf16.mxu0 0
  %1956 = vmatmul.mubr.bf16.gmra.mrb[0].mxu0 %v1921
  %v1957 = vpop.f32.mrb[0].mxu0
  %v1958 = vadd.f32 0.0, %v1957
  %v1959 = vpop.f32.mrb[0].mxu0
  %v1960 = vadd.f32 0.0, %v1959
  %v1961 = vpop.f32.mrb[0].mxu0
  %v1962 = vpop.f32.mrb[0].mxu0
  %1963 = vdwg.mxu0
  %1964 = vmatprep.subr.bf16.mxu0 %v881
  %1965 = vmatpush1.bf16.msra.mxu0 %v880
  %1966 = vmatprep.subr.bf16.mxu0 %v885
  %1967 = vmatpush1.bf16.msra.mxu0 %v884
  %1968 = vmatprep.subr.bf16.mxu0 %v889
  %1969 = vmatpush1.bf16.msra.mxu0 %v888
  %1970 = vmatprep.subr.bf16.mxu0 %v893
  %1971 = vmatpush1.bf16.msra.mxu0 %v892
  %1972 = vmatprep.subr.bf16.mxu0 0
  %1973 = vmatpush1.bf16.msra.mxu0 0
  %1974 = vmatprep.subr.bf16.mxu0 0
  %1975 = vmatpush1.bf16.msra.mxu0 0
  %1976 = vmatprep.subr.bf16.mxu0 0
  %1977 = vmatpush1.bf16.msra.mxu0 0
  %1978 = vmatprep.subr.bf16.mxu0 0
  %1979 = vmatpush1.bf16.msra.mxu0 0
  %1980 = vmatprep.subr.bf16.mxu0 0
  %1981 = vmatpush1.bf16.msra.mxu0 0
  %1982 = vmatprep.subr.bf16.mxu0 0
  %1983 = vmatpush1.bf16.msra.mxu0 0
  %1984 = vmatprep.subr.bf16.mxu0 0
  %1985 = vmatpush1.bf16.msra.mxu0 0
  %1986 = vmatprep.subr.bf16.mxu0 0
  %1987 = vmatpush1.bf16.msra.mxu0 0
  %1988 = vmatprep.subr.bf16.mxu0 0
  %1989 = vmatpush1.bf16.msra.mxu0 0
  %1990 = vmatprep.subr.bf16.mxu0 0
  %1991 = vmatpush1.bf16.msra.mxu0 0
  %1992 = vmatprep.subr.bf16.mxu0 0
  %1993 = vmatpush1.bf16.msra.mxu0 0
  %1994 = vmatprep.subr.bf16.mxu0 0
  %1995 = vmatpush1.bf16.msra.mxu0 0
  %1996 = vmatprep.mubr.bf16.mxu0 0
  %1997 = vmatmul.mubr.bf16.gmra.mrb[0].mxu0 %v1921
  %v1998 = vpop.f32.mrb[0].mxu0
  %v1999 = vadd.f32 0.0, %v1998
  %v2000 = vpop.f32.mrb[0].mxu0
  %v2001 = vadd.f32 0.0, %v2000
  %v2002 = vpop.f32.mrb[0].mxu0
  %v2003 = vpop.f32.mrb[0].mxu0
  %2004 = vdwg.mxu0
  %v2005 = vadd.f32 %v1915, %v1958
  %v2006 = vadd.f32 %v1916, %v1960
  %v2007 = vadd.f32 %v1917, %v1999
  %v2008 = vadd.f32 %v1918, %v2001
  %v2009 = vxor.u32 %v2005, 2147483648
  %v2010 = vmul.f32 %v2009, 1.442695
  %v2011 = vpow.pop %v2010
  %v2012 = vadd.f32 %v2011, 1.0
  %v2013 = vrcp.pop %v2012
  %v2014 = vmul.f32 1.0, %v2013
  %v2015 = vxor.u32 %v2006, 2147483648
  %v2016 = vmul.f32 %v2015, 1.442695
  %v2017 = vpow.pop %v2016
  %v2018 = vadd.f32 %v2017, 1.0
  %v2019 = vrcp.pop %v2018
  %v2020 = vmul.f32 1.0, %v2019
  %v2021 = vtanh.pop %v2007
  %v2022 = vxor.u32 %v2008, 2147483648
  %v2023 = vmul.f32 %v2022, 1.442695
  %v2024 = vpow.pop %v2023
  %v2025 = vadd.f32 %v2024, 1.0
  %v2026 = vrcp.pop %v2025
  %v2027 = vmul.f32 1.0, %v2026
  %v2028 = vmul.f32 %v2014, %v2021
  %v2029 = vmul.f32 %v2020, %v1904
  %v2030 = vadd.f32 %v2028, %v2029
  %v2031 = vmax.f32 %v2030, -3.0
  %v2032 = vmin.f32 %v2031, 3.0
  %v2033 = vtanh.pop %v2032
  %v2034 = vmul.f32 %v2027, %v2033
  %v2035 = vpack.c.bf16 %v2034, %v2034
  %2036 = vmatprep.subr.bf16.mxu0 0
  %2037 = vmatpush1.bf16.msra.mxu0 %v1058
  %2038 = vmatprep.subr.bf16.mxu0 0
  %2039 = vmatpush1.bf16.msra.mxu0 %v1059
  %2040 = vmatprep.subr.bf16.mxu0 0
  %2041 = vmatpush1.bf16.msra.mxu0 %v1060
  %2042 = vmatprep.subr.bf16.mxu0 0
  %2043 = vmatpush1.bf16.msra.mxu0 %v1061
  %2044 = vmatprep.subr.bf16.mxu0 0
  %2045 = vmatpush1.bf16.msra.mxu0 %v1062
  %2046 = vmatprep.subr.bf16.mxu0 0
  %2047 = vmatpush1.bf16.msra.mxu0 %v1063
  %2048 = vmatprep.subr.bf16.mxu0 0
  %2049 = vmatpush1.bf16.msra.mxu0 %v1064
  %2050 = vmatprep.subr.bf16.mxu0 0
  %2051 = vmatpush1.bf16.msra.mxu0 %v1065
  %2052 = vmatprep.subr.bf16.mxu0 0
  %2053 = vmatpush1.bf16.msra.mxu0 0
  %2054 = vmatprep.subr.bf16.mxu0 0
  %2055 = vmatpush1.bf16.msra.mxu0 0
  %2056 = vmatprep.subr.bf16.mxu0 0
  %2057 = vmatpush1.bf16.msra.mxu0 0
  %2058 = vmatprep.subr.bf16.mxu0 0
  %2059 = vmatpush1.bf16.msra.mxu0 0
  %2060 = vmatprep.subr.bf16.mxu0 0
  %2061 = vmatpush1.bf16.msra.mxu0 0
  %2062 = vmatprep.subr.bf16.mxu0 0
  %2063 = vmatpush1.bf16.msra.mxu0 0
  %2064 = vmatprep.subr.bf16.mxu0 0
  %2065 = vmatpush1.bf16.msra.mxu0 0
  %2066 = vmatprep.subr.bf16.mxu0 0
  %2067 = vmatpush1.bf16.msra.mxu0 0
  %2068 = vmatprep.mubr.bf16.mxu0 0
  %2069 = vmatmul.mubr.bf16.gmra.mrb[0].mxu0 %v2035
  %v2070 = vpop.f32.mrb[0].mxu0
  %v2071 = vadd.f32 0.0, %v2070
  %v2072 = vpop.f32.mrb[0].mxu0
  %v2073 = vpop.f32.mrb[0].mxu0
  %v2074 = vpop.f32.mrb[0].mxu0
  %2075 = vdwg.mxu0
  %v2076 = vmax.f32 %v2071, -3.0
  %v2077 = vmin.f32 %v2076, 3.0
  %s2078 = scalar_lea.vmem %s2, 40
  %v2079 = vld [vmem:[%s2078] sm:$0xff]
  %s2080 = scalar_lea.vmem %s3, 40
  %v2081 = vld [vmem:[%s2080] sm:$0xff]
  %v2082 = vmul.f32 %v2079, %v2077
  %s2083 = scalar_lea.vmem [#allocation6], 40
  %2084 = vst.msk [vmem:[%s2083] sm:$0xff] %vm153, %v2082
  %2086 = vrot.lane.b32.xlu0 %v2082, 96
  %v2087 = vpop.permute.xlu0 %2086
  %s2089 = scalar_lea.vmem [#allocation7], 32
  %2090 = vst.msk [vmem:[%s2089] sm:$0xff] %vm153, %v2087
  %v2091 = vsub.f32 1.0, %v2079
  %v2092 = vmul.f32 %v2091, %v1900
  %v2093 = vadd.f32 %v2082, %v2092
  %v2094 = vmul.f32 %v2081, %v2032
  %v2095 = vsub.f32 1.0, %v2081
  %v2096 = vmul.f32 %v2095, %v1904
  %v2097 = vadd.f32 %v2094, %v2096
  %s2098 = scalar_lea.vmem [#allocation4], 192
  %v2099 = vld [vmem:[%s2098] sm:$0xff]
  %v2100 = vld [vmem:[%s2098 + $0x8] sm:$0xff]
  %v2101 = vld [vmem:[%s2098 + $0x10] sm:$0xff]
  %v2102 = vld [vmem:[%s2098 + $0x18] sm:$0xff]
  %s2103 = scalar_lea.vmem [#allocation5], 96
  %v2104 = vld [vmem:[%s2103] sm:$0xff]
  %v2105 = vld [vmem:[%s2103 + $0x8] sm:$0xff]
  %v2106 = vld [vmem:[%s2103 + $0x10] sm:$0xff]
  %v2107 = vld [vmem:[%s2103 + $0x18] sm:$0xff]
  %v2108 = vadd.f32 %v2099, %v2104
  %v2109 = vadd.f32 %v2100, %v2105
  %v2110 = vadd.f32 %v2101, %v2106
  %v2111 = vadd.f32 %v2102, %v2107
  %v2112 = vpack.c.bf16 %v2093, %v2093
  %v2114 = vsel %vm164, %v2112, 0
  %2116 = vmatprep.subr.bf16.mxu0 %v879
  %2117 = vmatpush1.bf16.msra.mxu0 %v878
  %2118 = vmatprep.subr.bf16.mxu0 %v883
  %2119 = vmatpush1.bf16.msra.mxu0 %v882
  %2120 = vmatprep.subr.bf16.mxu0 %v887
  %2121 = vmatpush1.bf16.msra.mxu0 %v886
  %2122 = vmatprep.subr.bf16.mxu0 %v891
  %2123 = vmatpush1.bf16.msra.mxu0 %v890
  %2124 = vmatprep.subr.bf16.mxu0 0
  %2125 = vmatpush1.bf16.msra.mxu0 0
  %2126 = vmatprep.subr.bf16.mxu0 0
  %2127 = vmatpush1.bf16.msra.mxu0 0
  %2128 = vmatprep.subr.bf16.mxu0 0
  %2129 = vmatpush1.bf16.msra.mxu0 0
  %2130 = vmatprep.subr.bf16.mxu0 0
  %2131 = vmatpush1.bf16.msra.mxu0 0
  %2132 = vmatprep.subr.bf16.mxu0 0
  %2133 = vmatpush1.bf16.msra.mxu0 0
  %2134 = vmatprep.subr.bf16.mxu0 0
  %2135 = vmatpush1.bf16.msra.mxu0 0
  %2136 = vmatprep.subr.bf16.mxu0 0
  %2137 = vmatpush1.bf16.msra.mxu0 0
  %2138 = vmatprep.subr.bf16.mxu0 0
  %2139 = vmatpush1.bf16.msra.mxu0 0
  %2140 = vmatprep.subr.bf16.mxu0 0
  %2141 = vmatpush1.bf16.msra.mxu0 0
  %2142 = vmatprep.subr.bf16.mxu0 0
  %2143 = vmatpush1.bf16.msra.mxu0 0
  %2144 = vmatprep.subr.bf16.mxu0 0
  %2145 = vmatpush1.bf16.msra.mxu0 0
  %2146 = vmatprep.subr.bf16.mxu0 0
  %2147 = vmatpush1.bf16.msra.mxu0 0
  %2148 = vmatprep.mubr.bf16.mxu0 0
  %2149 = vmatmul.mubr.bf16.gmra.mrb[0].mxu0 %v2114
  %v2150 = vpop.f32.mrb[0].mxu0
  %v2151 = vadd.f32 0.0, %v2150
  %v2152 = vpop.f32.mrb[0].mxu0
  %v2153 = vadd.f32 0.0, %v2152
  %v2154 = vpop.f32.mrb[0].mxu0
  %v2155 = vpop.f32.mrb[0].mxu0
  %2156 = vdwg.mxu0
  %2157 = vmatprep.subr.bf16.mxu0 %v881
  %2158 = vmatpush1.bf16.msra.mxu0 %v880
  %2159 = vmatprep.subr.bf16.mxu0 %v885
  %2160 = vmatpush1.bf16.msra.mxu0 %v884
  %2161 = vmatprep.subr.bf16.mxu0 %v889
  %2162 = vmatpush1.bf16.msra.mxu0 %v888
  %2163 = vmatprep.subr.bf16.mxu0 %v893
  %2164 = vmatpush1.bf16.msra.mxu0 %v892
  %2165 = vmatprep.subr.bf16.mxu0 0
  %2166 = vmatpush1.bf16.msra.mxu0 0
  %2167 = vmatprep.subr.bf16.mxu0 0
  %2168 = vmatpush1.bf16.msra.mxu0 0
  %2169 = vmatprep.subr.bf16.mxu0 0
  %2170 = vmatpush1.bf16.msra.mxu0 0
  %2171 = vmatprep.subr.bf16.mxu0 0
  %2172 = vmatpush1.bf16.msra.mxu0 0
  %2173 = vmatprep.subr.bf16.mxu0 0
  %2174 = vmatpush1.bf16.msra.mxu0 0
  %2175 = vmatprep.subr.bf16.mxu0 0
  %2176 = vmatpush1.bf16.msra.mxu0 0
  %2177 = vmatprep.subr.bf16.mxu0 0
  %2178 = vmatpush1.bf16.msra.mxu0 0
  %2179 = vmatprep.subr.bf16.mxu0 0
  %2180 = vmatpush1.bf16.msra.mxu0 0
  %2181 = vmatprep.subr.bf16.mxu0 0
  %2182 = vmatpush1.bf16.msra.mxu0 0
  %2183 = vmatprep.subr.bf16.mxu0 0
  %2184 = vmatpush1.bf16.msra.mxu0 0
  %2185 = vmatprep.subr.bf16.mxu0 0
  %2186 = vmatpush1.bf16.msra.mxu0 0
  %2187 = vmatprep.subr.bf16.mxu0 0
  %2188 = vmatpush1.bf16.msra.mxu0 0
  %2189 = vmatprep.mubr.bf16.mxu0 0
  %2190 = vmatmul.mubr.bf16.gmra.mrb[0].mxu0 %v2114
  %v2191 = vpop.f32.mrb[0].mxu0
  %v2192 = vadd.f32 0.0, %v2191
  %v2193 = vpop.f32.mrb[0].mxu0
  %v2194 = vadd.f32 0.0, %v2193
  %v2195 = vpop.f32.mrb[0].mxu0
  %v2196 = vpop.f32.mrb[0].mxu0
  %2197 = vdwg.mxu0
  %v2198 = vadd.f32 %v2108, %v2151
  %v2199 = vadd.f32 %v2109, %v2153
  %v2200 = vadd.f32 %v2110, %v2192
  %v2201 = vadd.f32 %v2111, %v2194
  %v2202 = vxor.u32 %v2198, 2147483648
  %v2203 = vmul.f32 %v2202, 1.442695
  %v2204 = vpow.pop %v2203
  %v2205 = vadd.f32 %v2204, 1.0
  %v2206 = vrcp.pop %v2205
  %v2207 = vmul.f32 1.0, %v2206
  %v2208 = vxor.u32 %v2199, 2147483648
  %v2209 = vmul.f32 %v2208, 1.442695
  %v2210 = vpow.pop %v2209
  %v2211 = vadd.f32 %v2210, 1.0
  %v2212 = vrcp.pop %v2211
  %v2213 = vmul.f32 1.0, %v2212
  %v2214 = vtanh.pop %v2200
  %v2215 = vxor.u32 %v2201, 2147483648
  %v2216 = vmul.f32 %v2215, 1.442695
  %v2217 = vpow.pop %v2216
  %v2218 = vadd.f32 %v2217, 1.0
  %v2219 = vrcp.pop %v2218
  %v2220 = vmul.f32 1.0, %v2219
  %v2221 = vmul.f32 %v2207, %v2214
  %v2222 = vmul.f32 %v2213, %v2097
  %v2223 = vadd.f32 %v2221, %v2222
  %v2224 = vmax.f32 %v2223, -3.0
  %v2225 = vmin.f32 %v2224, 3.0
  %v2226 = vtanh.pop %v2225
  %v2227 = vmul.f32 %v2220, %v2226
  %v2228 = vpack.c.bf16 %v2227, %v2227
  %2229 = vmatprep.subr.bf16.mxu0 0
  %2230 = vmatpush1.bf16.msra.mxu0 %v1058
  %2231 = vmatprep.subr.bf16.mxu0 0
  %2232 = vmatpush1.bf16.msra.mxu0 %v1059
  %2233 = vmatprep.subr.bf16.mxu0 0
  %2234 = vmatpush1.bf16.msra.mxu0 %v1060
  %2235 = vmatprep.subr.bf16.mxu0 0
  %2236 = vmatpush1.bf16.msra.mxu0 %v1061
  %2237 = vmatprep.subr.bf16.mxu0 0
  %2238 = vmatpush1.bf16.msra.mxu0 %v1062
  %2239 = vmatprep.subr.bf16.mxu0 0
  %2240 = vmatpush1.bf16.msra.mxu0 %v1063
  %2241 = vmatprep.subr.bf16.mxu0 0
  %2242 = vmatpush1.bf16.msra.mxu0 %v1064
  %2243 = vmatprep.subr.bf16.mxu0 0
  %2244 = vmatpush1.bf16.msra.mxu0 %v1065
  %2245 = vmatprep.subr.bf16.mxu0 0
  %2246 = vmatpush1.bf16.msra.mxu0 0
  %2247 = vmatprep.subr.bf16.mxu0 0
  %2248 = vmatpush1.bf16.msra.mxu0 0
  %2249 = vmatprep.subr.bf16.mxu0 0
  %2250 = vmatpush1.bf16.msra.mxu0 0
  %2251 = vmatprep.subr.bf16.mxu0 0
  %2252 = vmatpush1.bf16.msra.mxu0 0
  %2253 = vmatprep.subr.bf16.mxu0 0
  %2254 = vmatpush1.bf16.msra.mxu0 0
  %2255 = vmatprep.subr.bf16.mxu0 0
  %2256 = vmatpush1.bf16.msra.mxu0 0
  %2257 = vmatprep.subr.bf16.mxu0 0
  %2258 = vmatpush1.bf16.msra.mxu0 0
  %2259 = vmatprep.subr.bf16.mxu0 0
  %2260 = vmatpush1.bf16.msra.mxu0 0
  %2261 = vmatprep.mubr.bf16.mxu0 0
  %2262 = vmatmul.mubr.bf16.gmra.mrb[0].mxu0 %v2228
  %v2263 = vpop.f32.mrb[0].mxu0
  %v2264 = vadd.f32 0.0, %v2263
  %v2265 = vpop.f32.mrb[0].mxu0
  %v2266 = vpop.f32.mrb[0].mxu0
  %v2267 = vpop.f32.mrb[0].mxu0
  %2268 = vdwg.mxu0
  %v2269 = vmax.f32 %v2264, -3.0
  %v2270 = vmin.f32 %v2269, 3.0
  %s2271 = scalar_lea.vmem %s2, 48
  %v2272 = vld [vmem:[%s2271] sm:$0xff]
  %s2273 = scalar_lea.vmem %s3, 48
  %v2274 = vld [vmem:[%s2273] sm:$0xff]
  %v2275 = vmul.f32 %v2272, %v2270
  %s2276 = scalar_lea.vmem [#allocation6], 48
  %2277 = vst.msk [vmem:[%s2276] sm:$0xff] %vm153, %v2275
  %2279 = vrot.lane.b32.xlu0 %v2275, 96
  %v2280 = vpop.permute.xlu0 %2279
  %s2282 = scalar_lea.vmem [#allocation7], 24
  %2283 = vst.msk [vmem:[%s2282] sm:$0xff] %vm153, %v2280
  %v2284 = vsub.f32 1.0, %v2272
  %v2285 = vmul.f32 %v2284, %v2093
  %v2286 = vadd.f32 %v2275, %v2285
  %v2287 = vmul.f32 %v2274, %v2225
  %v2288 = vsub.f32 1.0, %v2274
  %v2289 = vmul.f32 %v2288, %v2097
  %v2290 = vadd.f32 %v2287, %v2289
  %s2291 = scalar_lea.vmem [#allocation4], 224
  %v2292 = vld [vmem:[%s2291] sm:$0xff]
  %v2293 = vld [vmem:[%s2291 + $0x8] sm:$0xff]
  %v2294 = vld [vmem:[%s2291 + $0x10] sm:$0xff]
  %v2295 = vld [vmem:[%s2291 + $0x18] sm:$0xff]
  %s2296 = scalar_lea.vmem [#allocation5], 64
  %v2297 = vld [vmem:[%s2296] sm:$0xff]
  %v2298 = vld [vmem:[%s2296 + $0x8] sm:$0xff]
  %v2299 = vld [vmem:[%s2296 + $0x10] sm:$0xff]
  %v2300 = vld [vmem:[%s2296 + $0x18] sm:$0xff]
  %v2301 = vadd.f32 %v2292, %v2297
  %v2302 = vadd.f32 %v2293, %v2298
  %v2303 = vadd.f32 %v2294, %v2299
  %v2304 = vadd.f32 %v2295, %v2300
  %v2305 = vpack.c.bf16 %v2286, %v2286
  %v2307 = vsel %vm164, %v2305, 0
  %2309 = vmatprep.subr.bf16.mxu0 %v879
  %2310 = vmatpush1.bf16.msra.mxu0 %v878
  %2311 = vmatprep.subr.bf16.mxu0 %v883
  %2312 = vmatpush1.bf16.msra.mxu0 %v882
  %2313 = vmatprep.subr.bf16.mxu0 %v887
  %2314 = vmatpush1.bf16.msra.mxu0 %v886
  %2315 = vmatprep.subr.bf16.mxu0 %v891
  %2316 = vmatpush1.bf16.msra.mxu0 %v890
  %2317 = vmatprep.subr.bf16.mxu0 0
  %2318 = vmatpush1.bf16.msra.mxu0 0
  %2319 = vmatprep.subr.bf16.mxu0 0
  %2320 = vmatpush1.bf16.msra.mxu0 0
  %2321 = vmatprep.subr.bf16.mxu0 0
  %2322 = vmatpush1.bf16.msra.mxu0 0
  %2323 = vmatprep.subr.bf16.mxu0 0
  %2324 = vmatpush1.bf16.msra.mxu0 0
  %2325 = vmatprep.subr.bf16.mxu0 0
  %2326 = vmatpush1.bf16.msra.mxu0 0
  %2327 = vmatprep.subr.bf16.mxu0 0
  %2328 = vmatpush1.bf16.msra.mxu0 0
  %2329 = vmatprep.subr.bf16.mxu0 0
  %2330 = vmatpush1.bf16.msra.mxu0 0
  %2331 = vmatprep.subr.bf16.mxu0 0
  %2332 = vmatpush1.bf16.msra.mxu0 0
  %2333 = vmatprep.subr.bf16.mxu0 0
  %2334 = vmatpush1.bf16.msra.mxu0 0
  %2335 = vmatprep.subr.bf16.mxu0 0
  %2336 = vmatpush1.bf16.msra.mxu0 0
  %2337 = vmatprep.subr.bf16.mxu0 0
  %2338 = vmatpush1.bf16.msra.mxu0 0
  %2339 = vmatprep.subr.bf16.mxu0 0
  %2340 = vmatpush1.bf16.msra.mxu0 0
  %2341 = vmatprep.mubr.bf16.mxu0 0
  %2342 = vmatmul.mubr.bf16.gmra.mrb[0].mxu0 %v2307
  %v2343 = vpop.f32.mrb[0].mxu0
  %v2344 = vadd.f32 0.0, %v2343
  %v2345 = vpop.f32.mrb[0].mxu0
  %v2346 = vadd.f32 0.0, %v2345
  %v2347 = vpop.f32.mrb[0].mxu0
  %v2348 = vpop.f32.mrb[0].mxu0
  %2349 = vdwg.mxu0
  %2350 = vmatprep.subr.bf16.mxu0 %v881
  %2351 = vmatpush1.bf16.msra.mxu0 %v880
  %2352 = vmatprep.subr.bf16.mxu0 %v885
  %2353 = vmatpush1.bf16.msra.mxu0 %v884
  %2354 = vmatprep.subr.bf16.mxu0 %v889
  %2355 = vmatpush1.bf16.msra.mxu0 %v888
  %2356 = vmatprep.subr.bf16.mxu0 %v893
  %2357 = vmatpush1.bf16.msra.mxu0 %v892
  %2358 = vmatprep.subr.bf16.mxu0 0
  %2359 = vmatpush1.bf16.msra.mxu0 0
  %2360 = vmatprep.subr.bf16.mxu0 0
  %2361 = vmatpush1.bf16.msra.mxu0 0
  %2362 = vmatprep.subr.bf16.mxu0 0
  %2363 = vmatpush1.bf16.msra.mxu0 0
  %2364 = vmatprep.subr.bf16.mxu0 0
  %2365 = vmatpush1.bf16.msra.mxu0 0
  %2366 = vmatprep.subr.bf16.mxu0 0
  %2367 = vmatpush1.bf16.msra.mxu0 0
  %2368 = vmatprep.subr.bf16.mxu0 0
  %2369 = vmatpush1.bf16.msra.mxu0 0
  %2370 = vmatprep.subr.bf16.mxu0 0
  %2371 = vmatpush1.bf16.msra.mxu0 0
  %2372 = vmatprep.subr.bf16.mxu0 0
  %2373 = vmatpush1.bf16.msra.mxu0 0
  %2374 = vmatprep.subr.bf16.mxu0 0
  %2375 = vmatpush1.bf16.msra.mxu0 0
  %2376 = vmatprep.subr.bf16.mxu0 0
  %2377 = vmatpush1.bf16.msra.mxu0 0
  %2378 = vmatprep.subr.bf16.mxu0 0
  %2379 = vmatpush1.bf16.msra.mxu0 0
  %2380 = vmatprep.subr.bf16.mxu0 0
  %2381 = vmatpush1.bf16.msra.mxu0 0
  %2382 = vmatprep.mubr.bf16.mxu0 0
  %2383 = vmatmul.mubr.bf16.gmra.mrb[0].mxu0 %v2307
  %v2384 = vpop.f32.mrb[0].mxu0
  %v2385 = vadd.f32 0.0, %v2384
  %v2386 = vpop.f32.mrb[0].mxu0
  %v2387 = vadd.f32 0.0, %v2386
  %v2388 = vpop.f32.mrb[0].mxu0
  %v2389 = vpop.f32.mrb[0].mxu0
  %2390 = vdwg.mxu0
  %v2391 = vadd.f32 %v2301, %v2344
  %v2392 = vadd.f32 %v2302, %v2346
  %v2393 = vadd.f32 %v2303, %v2385
  %v2394 = vadd.f32 %v2304, %v2387
  %v2395 = vxor.u32 %v2391, 2147483648
  %v2396 = vmul.f32 %v2395, 1.442695
  %v2397 = vpow.pop %v2396
  %v2398 = vadd.f32 %v2397, 1.0
  %v2399 = vrcp.pop %v2398
  %v2400 = vmul.f32 1.0, %v2399
  %v2401 = vxor.u32 %v2392, 2147483648
  %v2402 = vmul.f32 %v2401, 1.442695
  %v2403 = vpow.pop %v2402
  %v2404 = vadd.f32 %v2403, 1.0
  %v2405 = vrcp.pop %v2404
  %v2406 = vmul.f32 1.0, %v2405
  %v2407 = vtanh.pop %v2393
  %v2408 = vxor.u32 %v2394, 2147483648
  %v2409 = vmul.f32 %v2408, 1.442695
  %v2410 = vpow.pop %v2409
  %v2411 = vadd.f32 %v2410, 1.0
  %v2412 = vrcp.pop %v2411
  %v2413 = vmul.f32 1.0, %v2412
  %v2414 = vmul.f32 %v2400, %v2407
  %v2415 = vmul.f32 %v2406, %v2290
  %v2416 = vadd.f32 %v2414, %v2415
  %v2417 = vmax.f32 %v2416, -3.0
  %v2418 = vmin.f32 %v2417, 3.0
  %v2419 = vtanh.pop %v2418
  %v2420 = vmul.f32 %v2413, %v2419
  %v2421 = vpack.c.bf16 %v2420, %v2420
  %2422 = vmatprep.subr.bf16.mxu0 0
  %2423 = vmatpush1.bf16.msra.mxu0 %v1058
  %2424 = vmatprep.subr.bf16.mxu0 0
  %2425 = vmatpush1.bf16.msra.mxu0 %v1059
  %2426 = vmatprep.subr.bf16.mxu0 0
  %2427 = vmatpush1.bf16.msra.mxu0 %v1060
  %2428 = vmatprep.subr.bf16.mxu0 0
  %2429 = vmatpush1.bf16.msra.mxu0 %v1061
  %2430 = vmatprep.subr.bf16.mxu0 0
  %2431 = vmatpush1.bf16.msra.mxu0 %v1062
  %2432 = vmatprep.subr.bf16.mxu0 0
  %2433 = vmatpush1.bf16.msra.mxu0 %v1063
  %2434 = vmatprep.subr.bf16.mxu0 0
  %2435 = vmatpush1.bf16.msra.mxu0 %v1064
  %2436 = vmatprep.subr.bf16.mxu0 0
  %2437 = vmatpush1.bf16.msra.mxu0 %v1065
  %2438 = vmatprep.subr.bf16.mxu0 0
  %2439 = vmatpush1.bf16.msra.mxu0 0
  %2440 = vmatprep.subr.bf16.mxu0 0
  %2441 = vmatpush1.bf16.msra.mxu0 0
  %2442 = vmatprep.subr.bf16.mxu0 0
  %2443 = vmatpush1.bf16.msra.mxu0 0
  %2444 = vmatprep.subr.bf16.mxu0 0
  %2445 = vmatpush1.bf16.msra.mxu0 0
  %2446 = vmatprep.subr.bf16.mxu0 0
  %2447 = vmatpush1.bf16.msra.mxu0 0
  %2448 = vmatprep.subr.bf16.mxu0 0
  %2449 = vmatpush1.bf16.msra.mxu0 0
  %2450 = vmatprep.subr.bf16.mxu0 0
  %2451 = vmatpush1.bf16.msra.mxu0 0
  %2452 = vmatprep.subr.bf16.mxu0 0
  %2453 = vmatpush1.bf16.msra.mxu0 0
  %2454 = vmatprep.mubr.bf16.mxu0 0
  %2455 = vmatmul.mubr.bf16.gmra.mrb[0].mxu0 %v2421
  %v2456 = vpop.f32.mrb[0].mxu0
  %v2457 = vadd.f32 0.0, %v2456
  %v2458 = vpop.f32.mrb[0].mxu0
  %v2459 = vpop.f32.mrb[0].mxu0
  %v2460 = vpop.f32.mrb[0].mxu0
  %2461 = vdwg.mxu0
  %v2462 = vmax.f32 %v2457, -3.0
  %v2463 = vmin.f32 %v2462, 3.0
  %s2464 = scalar_lea.vmem %s2, 56
  %v2465 = vld [vmem:[%s2464] sm:$0xff]
  %s2466 = scalar_lea.vmem %s3, 56
  %v2467 = vld [vmem:[%s2466] sm:$0xff]
  %v2468 = vmul.f32 %v2465, %v2463
  %s2469 = scalar_lea.vmem [#allocation6], 56
  %2470 = vst.msk [vmem:[%s2469] sm:$0xff] %vm153, %v2468
  %2472 = vrot.lane.b32.xlu0 %v2468, 96
  %v2473 = vpop.permute.xlu0 %2472
  %s2475 = scalar_lea.vmem [#allocation7], 16
  %2476 = vst.msk [vmem:[%s2475] sm:$0xff] %vm153, %v2473
  %v2477 = vsub.f32 1.0, %v2465
  %v2478 = vmul.f32 %v2477, %v2286
  %v2479 = vadd.f32 %v2468, %v2478
  %v2480 = vmul.f32 %v2467, %v2418
  %v2481 = vsub.f32 1.0, %v2467
  %v2482 = vmul.f32 %v2481, %v2290
  %v2483 = vadd.f32 %v2480, %v2482
  %s2484 = scalar_lea.vmem [#allocation4], 256
  %v2485 = vld [vmem:[%s2484] sm:$0xff]
  %v2486 = vld [vmem:[%s2484 + $0x8] sm:$0xff]
  %v2487 = vld [vmem:[%s2484 + $0x10] sm:$0xff]
  %v2488 = vld [vmem:[%s2484 + $0x18] sm:$0xff]
  %s2489 = scalar_lea.vmem [#allocation5], 32
  %v2490 = vld [vmem:[%s2489] sm:$0xff]
  %v2491 = vld [vmem:[%s2489 + $0x8] sm:$0xff]
  %v2492 = vld [vmem:[%s2489 + $0x10] sm:$0xff]
  %v2493 = vld [vmem:[%s2489 + $0x18] sm:$0xff]
  %v2494 = vadd.f32 %v2485, %v2490
  %v2495 = vadd.f32 %v2486, %v2491
  %v2496 = vadd.f32 %v2487, %v2492
  %v2497 = vadd.f32 %v2488, %v2493
  %v2498 = vpack.c.bf16 %v2479, %v2479
  %v2500 = vsel %vm164, %v2498, 0
  %2502 = vmatprep.subr.bf16.mxu0 %v879
  %2503 = vmatpush1.bf16.msra.mxu0 %v878
  %2504 = vmatprep.subr.bf16.mxu0 %v883
  %2505 = vmatpush1.bf16.msra.mxu0 %v882
  %2506 = vmatprep.subr.bf16.mxu0 %v887
  %2507 = vmatpush1.bf16.msra.mxu0 %v886
  %2508 = vmatprep.subr.bf16.mxu0 %v891
  %2509 = vmatpush1.bf16.msra.mxu0 %v890
  %2510 = vmatprep.subr.bf16.mxu0 0
  %2511 = vmatpush1.bf16.msra.mxu0 0
  %2512 = vmatprep.subr.bf16.mxu0 0
  %2513 = vmatpush1.bf16.msra.mxu0 0
  %2514 = vmatprep.subr.bf16.mxu0 0
  %2515 = vmatpush1.bf16.msra.mxu0 0
  %2516 = vmatprep.subr.bf16.mxu0 0
  %2517 = vmatpush1.bf16.msra.mxu0 0
  %2518 = vmatprep.subr.bf16.mxu0 0
  %2519 = vmatpush1.bf16.msra.mxu0 0
  %2520 = vmatprep.subr.bf16.mxu0 0
  %2521 = vmatpush1.bf16.msra.mxu0 0
  %2522 = vmatprep.subr.bf16.mxu0 0
  %2523 = vmatpush1.bf16.msra.mxu0 0
  %2524 = vmatprep.subr.bf16.mxu0 0
  %2525 = vmatpush1.bf16.msra.mxu0 0
  %2526 = vmatprep.subr.bf16.mxu0 0
  %2527 = vmatpush1.bf16.msra.mxu0 0
  %2528 = vmatprep.subr.bf16.mxu0 0
  %2529 = vmatpush1.bf16.msra.mxu0 0
  %2530 = vmatprep.subr.bf16.mxu0 0
  %2531 = vmatpush1.bf16.msra.mxu0 0
  %2532 = vmatprep.subr.bf16.mxu0 0
  %2533 = vmatpush1.bf16.msra.mxu0 0
  %2534 = vmatprep.mubr.bf16.mxu0 0
  %2535 = vmatmul.mubr.bf16.gmra.mrb[0].mxu0 %v2500
  %v2536 = vpop.f32.mrb[0].mxu0
  %v2537 = vadd.f32 0.0, %v2536
  %v2538 = vpop.f32.mrb[0].mxu0
  %v2539 = vadd.f32 0.0, %v2538
  %v2540 = vpop.f32.mrb[0].mxu0
  %v2541 = vpop.f32.mrb[0].mxu0
  %2542 = vdwg.mxu0
  %2543 = vmatprep.subr.bf16.mxu0 %v881
  %2544 = vmatpush1.bf16.msra.mxu0 %v880
  %2545 = vmatprep.subr.bf16.mxu0 %v885
  %2546 = vmatpush1.bf16.msra.mxu0 %v884
  %2547 = vmatprep.subr.bf16.mxu0 %v889
  %2548 = vmatpush1.bf16.msra.mxu0 %v888
  %2549 = vmatprep.subr.bf16.mxu0 %v893
  %2550 = vmatpush1.bf16.msra.mxu0 %v892
  %2551 = vmatprep.subr.bf16.mxu0 0
  %2552 = vmatpush1.bf16.msra.mxu0 0
  %2553 = vmatprep.subr.bf16.mxu0 0
  %2554 = vmatpush1.bf16.msra.mxu0 0
  %2555 = vmatprep.subr.bf16.mxu0 0
  %2556 = vmatpush1.bf16.msra.mxu0 0
  %2557 = vmatprep.subr.bf16.mxu0 0
  %2558 = vmatpush1.bf16.msra.mxu0 0
  %2559 = vmatprep.subr.bf16.mxu0 0
  %2560 = vmatpush1.bf16.msra.mxu0 0
  %2561 = vmatprep.subr.bf16.mxu0 0
  %2562 = vmatpush1.bf16.msra.mxu0 0
  %2563 = vmatprep.subr.bf16.mxu0 0
  %2564 = vmatpush1.bf16.msra.mxu0 0
  %2565 = vmatprep.subr.bf16.mxu0 0
  %2566 = vmatpush1.bf16.msra.mxu0 0
  %2567 = vmatprep.subr.bf16.mxu0 0
  %2568 = vmatpush1.bf16.msra.mxu0 0
  %2569 = vmatprep.subr.bf16.mxu0 0
  %2570 = vmatpush1.bf16.msra.mxu0 0
  %2571 = vmatprep.subr.bf16.mxu0 0
  %2572 = vmatpush1.bf16.msra.mxu0 0
  %2573 = vmatprep.subr.bf16.mxu0 0
  %2574 = vmatpush1.bf16.msra.mxu0 0
  %2575 = vmatprep.mubr.bf16.mxu0 0
  %2576 = vmatmul.mubr.bf16.gmra.mrb[0].mxu0 %v2500
  %v2577 = vpop.f32.mrb[0].mxu0
  %v2578 = vadd.f32 0.0, %v2577
  %v2579 = vpop.f32.mrb[0].mxu0
  %v2580 = vadd.f32 0.0, %v2579
  %v2581 = vpop.f32.mrb[0].mxu0
  %v2582 = vpop.f32.mrb[0].mxu0
  %2583 = vdwg.mxu0
  %v2584 = vadd.f32 %v2494, %v2537
  %v2585 = vadd.f32 %v2495, %v2539
  %v2586 = vadd.f32 %v2496, %v2578
  %v2587 = vadd.f32 %v2497, %v2580
  %v2588 = vxor.u32 %v2584, 2147483648
  %v2589 = vmul.f32 %v2588, 1.442695
  %v2590 = vpow.pop %v2589
  %v2591 = vadd.f32 %v2590, 1.0
  %v2592 = vrcp.pop %v2591
  %v2593 = vmul.f32 1.0, %v2592
  %v2594 = vxor.u32 %v2585, 2147483648
  %v2595 = vmul.f32 %v2594, 1.442695
  %v2596 = vpow.pop %v2595
  %v2597 = vadd.f32 %v2596, 1.0
  %v2598 = vrcp.pop %v2597
  %v2599 = vmul.f32 1.0, %v2598
  %v2600 = vtanh.pop %v2586
  %v2601 = vxor.u32 %v2587, 2147483648
  %v2602 = vmul.f32 %v2601, 1.442695
  %v2603 = vpow.pop %v2602
  %v2604 = vadd.f32 %v2603, 1.0
  %v2605 = vrcp.pop %v2604
  %v2606 = vmul.f32 1.0, %v2605
  %v2607 = vmul.f32 %v2593, %v2600
  %v2608 = vmul.f32 %v2599, %v2483
  %v2609 = vadd.f32 %v2607, %v2608
  %v2610 = vmax.f32 %v2609, -3.0
  %v2611 = vmin.f32 %v2610, 3.0
  %v2612 = vtanh.pop %v2611
  %v2613 = vmul.f32 %v2606, %v2612
  %v2614 = vpack.c.bf16 %v2613, %v2613
  %2615 = vmatprep.subr.bf16.mxu0 0
  %2616 = vmatpush1.bf16.msra.mxu0 %v1058
  %2617 = vmatprep.subr.bf16.mxu0 0
  %2618 = vmatpush1.bf16.msra.mxu0 %v1059
  %2619 = vmatprep.subr.bf16.mxu0 0
  %2620 = vmatpush1.bf16.msra.mxu0 %v1060
  %2621 = vmatprep.subr.bf16.mxu0 0
  %2622 = vmatpush1.bf16.msra.mxu0 %v1061
  %2623 = vmatprep.subr.bf16.mxu0 0
  %2624 = vmatpush1.bf16.msra.mxu0 %v1062
  %2625 = vmatprep.subr.bf16.mxu0 0
  %2626 = vmatpush1.bf16.msra.mxu0 %v1063
  %2627 = vmatprep.subr.bf16.mxu0 0
  %2628 = vmatpush1.bf16.msra.mxu0 %v1064
  %2629 = vmatprep.subr.bf16.mxu0 0
  %2630 = vmatpush1.bf16.msra.mxu0 %v1065
  %2631 = vmatprep.subr.bf16.mxu0 0
  %2632 = vmatpush1.bf16.msra.mxu0 0
  %2633 = vmatprep.subr.bf16.mxu0 0
  %2634 = vmatpush1.bf16.msra.mxu0 0
  %2635 = vmatprep.subr.bf16.mxu0 0
  %2636 = vmatpush1.bf16.msra.mxu0 0
  %2637 = vmatprep.subr.bf16.mxu0 0
  %2638 = vmatpush1.bf16.msra.mxu0 0
  %2639 = vmatprep.subr.bf16.mxu0 0
  %2640 = vmatpush1.bf16.msra.mxu0 0
  %2641 = vmatprep.subr.bf16.mxu0 0
  %2642 = vmatpush1.bf16.msra.mxu0 0
  %2643 = vmatprep.subr.bf16.mxu0 0
  %2644 = vmatpush1.bf16.msra.mxu0 0
  %2645 = vmatprep.subr.bf16.mxu0 0
  %2646 = vmatpush1.bf16.msra.mxu0 0
  %2647 = vmatprep.mubr.bf16.mxu0 0
  %2648 = vmatmul.mubr.bf16.gmra.mrb[0].mxu0 %v2614
  %v2649 = vpop.f32.mrb[0].mxu0
  %v2650 = vadd.f32 0.0, %v2649
  %v2651 = vpop.f32.mrb[0].mxu0
  %v2652 = vpop.f32.mrb[0].mxu0
  %v2653 = vpop.f32.mrb[0].mxu0
  %2654 = vdwg.mxu0
  %v2655 = vmax.f32 %v2650, -3.0
  %v2656 = vmin.f32 %v2655, 3.0
  %s2657 = scalar_lea.vmem %s2, 64
  %v2658 = vld [vmem:[%s2657] sm:$0xff]
  %s2659 = scalar_lea.vmem %s3, 64
  %v2660 = vld [vmem:[%s2659] sm:$0xff]
  %v2661 = vmul.f32 %v2658, %v2656
  %s2662 = scalar_lea.vmem [#allocation6], 64
  %2663 = vst.msk [vmem:[%s2662] sm:$0xff] %vm153, %v2661
  %2665 = vrot.lane.b32.xlu0 %v2661, 96
  %v2666 = vpop.permute.xlu0 %2665
  %s2668 = scalar_lea.vmem [#allocation7], 8
  %2669 = vst.msk [vmem:[%s2668] sm:$0xff] %vm153, %v2666
  %v2670 = vsub.f32 1.0, %v2658
  %v2671 = vmul.f32 %v2670, %v2479
  %v2672 = vadd.f32 %v2661, %v2671
  %v2673 = vmul.f32 %v2660, %v2611
  %v2674 = vsub.f32 1.0, %v2660
  %v2675 = vmul.f32 %v2674, %v2483
  %v2676 = vadd.f32 %v2673, %v2675
  %s2677 = scalar_lea.vmem [#allocation4], 288
  %v2678 = vld [vmem:[%s2677] sm:$0xff]
  %v2679 = vld [vmem:[%s2677 + $0x8] sm:$0xff]
  %v2680 = vld [vmem:[%s2677 + $0x10] sm:$0xff]
  %v2681 = vld [vmem:[%s2677 + $0x18] sm:$0xff]
  %v2682 = vld [vmem:[#allocation5] sm:$0xff]
  %v2683 = vld [vmem:[#allocation5 + $0x8] sm:$0xff]
  %v2684 = vld [vmem:[#allocation5 + $0x10] sm:$0xff]
  %v2685 = vld [vmem:[#allocation5 + $0x18] sm:$0xff]
  %v2686 = vadd.f32 %v2678, %v2682
  %v2687 = vadd.f32 %v2679, %v2683
  %v2688 = vadd.f32 %v2680, %v2684
  %v2689 = vadd.f32 %v2681, %v2685
  %v2690 = vpack.c.bf16 %v2672, %v2672
  %v2692 = vsel %vm164, %v2690, 0
  %2694 = vmatprep.subr.bf16.mxu0 %v879
  %2695 = vmatpush1.bf16.msra.mxu0 %v878
  %2696 = vmatprep.subr.bf16.mxu0 %v883
  %2697 = vmatpush1.bf16.msra.mxu0 %v882
  %2698 = vmatprep.subr.bf16.mxu0 %v887
  %2699 = vmatpush1.bf16.msra.mxu0 %v886
  %2700 = vmatprep.subr.bf16.mxu0 %v891
  %2701 = vmatpush1.bf16.msra.mxu0 %v890
  %2702 = vmatprep.subr.bf16.mxu0 0
  %2703 = vmatpush1.bf16.msra.mxu0 0
  %2704 = vmatprep.subr.bf16.mxu0 0
  %2705 = vmatpush1.bf16.msra.mxu0 0
  %2706 = vmatprep.subr.bf16.mxu0 0
  %2707 = vmatpush1.bf16.msra.mxu0 0
  %2708 = vmatprep.subr.bf16.mxu0 0
  %2709 = vmatpush1.bf16.msra.mxu0 0
  %2710 = vmatprep.subr.bf16.mxu0 0
  %2711 = vmatpush1.bf16.msra.mxu0 0
  %2712 = vmatprep.subr.bf16.mxu0 0
  %2713 = vmatpush1.bf16.msra.mxu0 0
  %2714 = vmatprep.subr.bf16.mxu0 0
  %2715 = vmatpush1.bf16.msra.mxu0 0
  %2716 = vmatprep.subr.bf16.mxu0 0
  %2717 = vmatpush1.bf16.msra.mxu0 0
  %2718 = vmatprep.subr.bf16.mxu0 0
  %2719 = vmatpush1.bf16.msra.mxu0 0
  %2720 = vmatprep.subr.bf16.mxu0 0
  %2721 = vmatpush1.bf16.msra.mxu0 0
  %2722 = vmatprep.subr.bf16.mxu0 0
  %2723 = vmatpush1.bf16.msra.mxu0 0
  %2724 = vmatprep.subr.bf16.mxu0 0
  %2725 = vmatpush1.bf16.msra.mxu0 0
  %2726 = vmatprep.mubr.bf16.mxu0 0
  %2727 = vmatmul.mubr.bf16.gmra.mrb[0].mxu0 %v2692
  %v2728 = vpop.f32.mrb[0].mxu0
  %v2729 = vadd.f32 0.0, %v2728
  %v2730 = vpop.f32.mrb[0].mxu0
  %v2731 = vadd.f32 0.0, %v2730
  %v2732 = vpop.f32.mrb[0].mxu0
  %v2733 = vpop.f32.mrb[0].mxu0
  %2734 = vdwg.mxu0
  %2735 = vmatprep.subr.bf16.mxu0 %v881
  %2736 = vmatpush1.bf16.msra.mxu0 %v880
  %2737 = vmatprep.subr.bf16.mxu0 %v885
  %2738 = vmatpush1.bf16.msra.mxu0 %v884
  %2739 = vmatprep.subr.bf16.mxu0 %v889
  %2740 = vmatpush1.bf16.msra.mxu0 %v888
  %2741 = vmatprep.subr.bf16.mxu0 %v893
  %2742 = vmatpush1.bf16.msra.mxu0 %v892
  %2743 = vmatprep.subr.bf16.mxu0 0
  %2744 = vmatpush1.bf16.msra.mxu0 0
  %2745 = vmatprep.subr.bf16.mxu0 0
  %2746 = vmatpush1.bf16.msra.mxu0 0
  %2747 = vmatprep.subr.bf16.mxu0 0
  %2748 = vmatpush1.bf16.msra.mxu0 0
  %2749 = vmatprep.subr.bf16.mxu0 0
  %2750 = vmatpush1.bf16.msra.mxu0 0
  %2751 = vmatprep.subr.bf16.mxu0 0
  %2752 = vmatpush1.bf16.msra.mxu0 0
  %2753 = vmatprep.subr.bf16.mxu0 0
  %2754 = vmatpush1.bf16.msra.mxu0 0
  %2755 = vmatprep.subr.bf16.mxu0 0
  %2756 = vmatpush1.bf16.msra.mxu0 0
  %2757 = vmatprep.subr.bf16.mxu0 0
  %2758 = vmatpush1.bf16.msra.mxu0 0
  %2759 = vmatprep.subr.bf16.mxu0 0
  %2760 = vmatpush1.bf16.msra.mxu0 0
  %2761 = vmatprep.subr.bf16.mxu0 0
  %2762 = vmatpush1.bf16.msra.mxu0 0
  %2763 = vmatprep.subr.bf16.mxu0 0
  %2764 = vmatpush1.bf16.msra.mxu0 0
  %2765 = vmatprep.subr.bf16.mxu0 0
  %2766 = vmatpush1.bf16.msra.mxu0 0
  %2767 = vmatprep.mubr.bf16.mxu0 0
  %2768 = vmatmul.mubr.bf16.gmra.mrb[0].mxu0 %v2692
  %v2769 = vpop.f32.mrb[0].mxu0
  %v2770 = vadd.f32 0.0, %v2769
  %v2771 = vpop.f32.mrb[0].mxu0
  %v2772 = vadd.f32 0.0, %v2771
  %v2773 = vpop.f32.mrb[0].mxu0
  %v2774 = vpop.f32.mrb[0].mxu0
  %2775 = vdwg.mxu0
  %v2776 = vadd.f32 %v2686, %v2729
  %v2777 = vadd.f32 %v2687, %v2731
  %v2778 = vadd.f32 %v2688, %v2770
  %v2779 = vadd.f32 %v2689, %v2772
  %v2780 = vxor.u32 %v2776, 2147483648
  %v2781 = vmul.f32 %v2780, 1.442695
  %v2782 = vpow.pop %v2781
  %v2783 = vadd.f32 %v2782, 1.0
  %v2784 = vrcp.pop %v2783
  %v2785 = vmul.f32 1.0, %v2784
  %v2786 = vxor.u32 %v2777, 2147483648
  %v2787 = vmul.f32 %v2786, 1.442695
  %v2788 = vpow.pop %v2787
  %v2789 = vadd.f32 %v2788, 1.0
  %v2790 = vrcp.pop %v2789
  %v2791 = vmul.f32 1.0, %v2790
  %v2792 = vtanh.pop %v2778
  %v2793 = vxor.u32 %v2779, 2147483648
  %v2794 = vmul.f32 %v2793, 1.442695
  %v2795 = vpow.pop %v2794
  %v2796 = vadd.f32 %v2795, 1.0
  %v2797 = vrcp.pop %v2796
  %v2798 = vmul.f32 1.0, %v2797
  %v2799 = vmul.f32 %v2785, %v2792
  %v2800 = vmul.f32 %v2791, %v2676
  %v2801 = vadd.f32 %v2799, %v2800
  %v2802 = vmax.f32 %v2801, -3.0
  %v2803 = vmin.f32 %v2802, 3.0
  %v2804 = vtanh.pop %v2803
  %v2805 = vmul.f32 %v2798, %v2804
  %v2806 = vpack.c.bf16 %v2805, %v2805
  %2807 = vmatprep.subr.bf16.mxu0 0
  %2808 = vmatpush1.bf16.msra.mxu0 %v1058
  %2809 = vmatprep.subr.bf16.mxu0 0
  %2810 = vmatpush1.bf16.msra.mxu0 %v1059
  %2811 = vmatprep.subr.bf16.mxu0 0
  %2812 = vmatpush1.bf16.msra.mxu0 %v1060
  %2813 = vmatprep.subr.bf16.mxu0 0
  %2814 = vmatpush1.bf16.msra.mxu0 %v1061
  %2815 = vmatprep.subr.bf16.mxu0 0
  %2816 = vmatpush1.bf16.msra.mxu0 %v1062
  %2817 = vmatprep.subr.bf16.mxu0 0
  %2818 = vmatpush1.bf16.msra.mxu0 %v1063
  %2819 = vmatprep.subr.bf16.mxu0 0
  %2820 = vmatpush1.bf16.msra.mxu0 %v1064
  %2821 = vmatprep.subr.bf16.mxu0 0
  %2822 = vmatpush1.bf16.msra.mxu0 %v1065
  %2823 = vmatprep.subr.bf16.mxu0 0
  %2824 = vmatpush1.bf16.msra.mxu0 0
  %2825 = vmatprep.subr.bf16.mxu0 0
  %2826 = vmatpush1.bf16.msra.mxu0 0
  %2827 = vmatprep.subr.bf16.mxu0 0
  %2828 = vmatpush1.bf16.msra.mxu0 0
  %2829 = vmatprep.subr.bf16.mxu0 0
  %2830 = vmatpush1.bf16.msra.mxu0 0
  %2831 = vmatprep.subr.bf16.mxu0 0
  %2832 = vmatpush1.bf16.msra.mxu0 0
  %2833 = vmatprep.subr.bf16.mxu0 0
  %2834 = vmatpush1.bf16.msra.mxu0 0
  %2835 = vmatprep.subr.bf16.mxu0 0
  %2836 = vmatpush1.bf16.msra.mxu0 0
  %2837 = vmatprep.subr.bf16.mxu0 0
  %2838 = vmatpush1.bf16.msra.mxu0 0
  %2839 = vmatprep.mubr.bf16.mxu0 0
  %2840 = vmatmul.mubr.bf16.gmra.mrb[0].mxu0 %v2806
  %v2841 = vpop.f32.mrb[0].mxu0
  %v2842 = vadd.f32 0.0, %v2841
  %v2843 = vpop.f32.mrb[0].mxu0
  %v2844 = vpop.f32.mrb[0].mxu0
  %v2845 = vpop.f32.mrb[0].mxu0
  %2846 = vdwg.mxu0
  %v2847 = vmax.f32 %v2842, -3.0
  %v2848 = vmin.f32 %v2847, 3.0
  %s2849 = scalar_lea.vmem %s2, 72
  %v2850 = vld [vmem:[%s2849] sm:$0xff]
  %v2851 = vmul.f32 %v2850, %v2848
  %s2852 = scalar_lea.vmem [#allocation6], 72
  %2853 = vst.msk [vmem:[%s2852] sm:$0xff] %vm153, %v2851
  %2855 = vrot.lane.b32.xlu0 %v2851, 96
  %v2856 = vpop.permute.xlu0 %2855
  %2858 = vst.msk [vmem:[#allocation7] sm:$0xff] %vm153, %v2856
  %v2859 = vld [vmem:[#allocation6] sm:$0xff]
  %v2860 = vld [vmem:[#allocation6 + $0x8] sm:$0xff]
  %v2861 = vld [vmem:[#allocation6 + $0x10] sm:$0xff]
  %v2862 = vld [vmem:[#allocation6 + $0x18] sm:$0xff]
  %v2863 = vld [vmem:[#allocation6 + $0x20] sm:$0xff]
  %v2864 = vld [vmem:[#allocation6 + $0x28] sm:$0xff]
  %v2865 = vld [vmem:[#allocation6 + $0x30] sm:$0xff]
  %v2866 = vld [vmem:[#allocation6 + $0x38] sm:$0xff]
  %v2867 = vld [vmem:[#allocation6 + $0x40] sm:$0xff]
  %v2868 = vld [vmem:[#allocation6 + $0x48] sm:$0xff]
  %v2869 = vld [vmem:[#allocation7] sm:$0xff]
  %v2870 = vld [vmem:[#allocation7 + $0x8] sm:$0xff]
  %v2871 = vld [vmem:[#allocation7 + $0x10] sm:$0xff]
  %v2872 = vld [vmem:[#allocation7 + $0x18] sm:$0xff]
  %v2873 = vld [vmem:[#allocation7 + $0x20] sm:$0xff]
  %v2874 = vld [vmem:[#allocation7 + $0x28] sm:$0xff]
  %v2875 = vld [vmem:[#allocation7 + $0x30] sm:$0xff]
  %v2876 = vld [vmem:[#allocation7 + $0x38] sm:$0xff]
  %v2877 = vld [vmem:[#allocation7 + $0x40] sm:$0xff]
  %v2878 = vld [vmem:[#allocation7 + $0x48] sm:$0xff]
  %2889 = vrot.lane.b32.xlu0 %v2869, 32
  %v2890 = vpop.permute.xlu0 %2889
  %2891 = vrot.lane.b32.xlu0 %v2870, 32
  %v2892 = vpop.permute.xlu0 %2891
  %2893 = vrot.lane.b32.xlu0 %v2871, 32
  %v2894 = vpop.permute.xlu0 %2893
  %2895 = vrot.lane.b32.xlu0 %v2872, 32
  %v2896 = vpop.permute.xlu0 %2895
  %2897 = vrot.lane.b32.xlu0 %v2873, 32
  %v2898 = vpop.permute.xlu0 %2897
  %2899 = vrot.lane.b32.xlu0 %v2874, 32
  %v2900 = vpop.permute.xlu0 %2899
  %2901 = vrot.lane.b32.xlu0 %v2875, 32
  %v2902 = vpop.permute.xlu0 %2901
  %2903 = vrot.lane.b32.xlu0 %v2876, 32
  %v2904 = vpop.permute.xlu0 %2903
  %2905 = vrot.lane.b32.xlu0 %v2877, 32
  %v2906 = vpop.permute.xlu0 %2905
  %2907 = vrot.lane.b32.xlu0 %v2878, 32
  %v2908 = vpop.permute.xlu0 %2907
  %v2919 = vsel %vm153, %v2859, %v2890
  %v2920 = vsel %vm153, %v2860, %v2892
  %v2921 = vsel %vm153, %v2861, %v2894
  %v2922 = vsel %vm153, %v2862, %v2896
  %v2923 = vsel %vm153, %v2863, %v2898
  %v2924 = vsel %vm153, %v2864, %v2900
  %v2925 = vsel %vm153, %v2865, %v2902
  %v2926 = vsel %vm153, %v2866, %v2904
  %v2927 = vsel %vm153, %v2867, %v2906
  %v2928 = vsel %vm153, %v2868, %v2908
  %s2929 = scalar_lea.vmem %s9, 80
  %2930 = vst.msk [vmem:[%s2929] sm:$0xff] %vm164, %v2919
  %2931 = vst.msk [vmem:[%s2929 + $0x8] sm:$0xff] %vm164, %v2920
  %2932 = vst.msk [vmem:[%s2929 + $0x10] sm:$0xff] %vm164, %v2921
  %2933 = vst.msk [vmem:[%s2929 + $0x18] sm:$0xff] %vm164, %v2922
  %2934 = vst.msk [vmem:[%s2929 + $0x20] sm:$0xff] %vm164, %v2923
  %2935 = vst.msk [vmem:[%s2929 + $0x28] sm:$0xff] %vm164, %v2924
  %2936 = vst.msk [vmem:[%s2929 + $0x30] sm:$0xff] %vm164, %v2925
  %2937 = vst.msk [vmem:[%s2929 + $0x38] sm:$0xff] %vm164, %v2926
  %2938 = vst.msk [vmem:[%s2929 + $0x40] sm:$0xff] %vm164, %v2927
  %2939 = vst.msk [vmem:[%s2929 + $0x48] sm:$0xff] %vm164, %v2928
  %2940 = vst.msk [vmem:[#allocation2] sm:$0xff] %vm153, %v2859
  %2941 = vst.msk [vmem:[#allocation2 + $0x8] sm:$0xff] %vm153, %v2860
  %2942 = vst.msk [vmem:[#allocation2 + $0x10] sm:$0xff] %vm153, %v2861
  %2943 = vst.msk [vmem:[#allocation2 + $0x18] sm:$0xff] %vm153, %v2862
  %2944 = vst.msk [vmem:[#allocation2 + $0x20] sm:$0xff] %vm153, %v2863
  %2945 = vst.msk [vmem:[#allocation2 + $0x28] sm:$0xff] %vm153, %v2864
  %2946 = vst.msk [vmem:[#allocation2 + $0x30] sm:$0xff] %vm153, %v2865
  %2947 = vst.msk [vmem:[#allocation2 + $0x38] sm:$0xff] %vm153, %v2866
  %2948 = vst.msk [vmem:[#allocation2 + $0x40] sm:$0xff] %vm153, %v2867
  %2949 = vst.msk [vmem:[#allocation2 + $0x48] sm:$0xff] %vm153, %v2868
  %2950 = vst.msk [vmem:[#allocation3] sm:$0xff] %vm153, %v2869
  %2951 = vst.msk [vmem:[#allocation3 + $0x8] sm:$0xff] %vm153, %v2870
  %2952 = vst.msk [vmem:[#allocation3 + $0x10] sm:$0xff] %vm153, %v2871
  %2953 = vst.msk [vmem:[#allocation3 + $0x18] sm:$0xff] %vm153, %v2872
  %2954 = vst.msk [vmem:[#allocation3 + $0x20] sm:$0xff] %vm153, %v2873
  %2955 = vst.msk [vmem:[#allocation3 + $0x28] sm:$0xff] %vm153, %v2874
  %2956 = vst.msk [vmem:[#allocation3 + $0x30] sm:$0xff] %vm153, %v2875
  %2957 = vst.msk [vmem:[#allocation3 + $0x38] sm:$0xff] %vm153, %v2876
  %2958 = vst.msk [vmem:[#allocation3 + $0x40] sm:$0xff] %vm153, %v2877
  %2959 = vst.msk [vmem:[#allocation3 + $0x48] sm:$0xff] %vm153, %v2878
  %s2960 = scalar_lea.vmem %s4, 64
  %v2961 = vld [vmem:[%s2960] sm:$0xff]
  %v2962 = vld [vmem:[%s2960 + $0x8] sm:$0xff]
  %v2963 = vld [vmem:[%s2960 + $0x10] sm:$0xff]
  %v2964 = vld [vmem:[%s2960 + $0x18] sm:$0xff]
  %v2965 = vld [vmem:[%s2960 + $0x20] sm:$0xff]
  %v2966 = vld [vmem:[%s2960 + $0x28] sm:$0xff]
  %v2967 = vld [vmem:[%s2960 + $0x30] sm:$0xff]
  %v2968 = vld [vmem:[%s2960 + $0x38] sm:$0xff]
  %s2969 = scalar_lea.vmem %s5, 64
  %v2970 = vld [vmem:[%s2969] sm:$0xff]
  %v2971 = vld [vmem:[%s2969 + $0x8] sm:$0xff]
  %v2972 = vld [vmem:[%s2969 + $0x10] sm:$0xff]
  %v2973 = vld [vmem:[%s2969 + $0x18] sm:$0xff]
  %v2974 = vld [vmem:[%s2969 + $0x20] sm:$0xff]
  %v2975 = vld [vmem:[%s2969 + $0x28] sm:$0xff]
  %v2976 = vld [vmem:[%s2969 + $0x30] sm:$0xff]
  %v2977 = vld [vmem:[%s2969 + $0x38] sm:$0xff]
  %s2978 = scalar_lea.vmem %s6, 128
  %v2979 = vld [vmem:[%s2978] sm:$0xff]
  %v2980 = vld [vmem:[%s2978 + $0x8] sm:$0xff]
  %v2981 = vld [vmem:[%s2978 + $0x10] sm:$0xff]
  %v2982 = vld [vmem:[%s2978 + $0x18] sm:$0xff]
  %v2983 = vld [vmem:[%s2978 + $0x20] sm:$0xff]
  %v2984 = vld [vmem:[%s2978 + $0x28] sm:$0xff]
  %v2985 = vld [vmem:[%s2978 + $0x30] sm:$0xff]
  %v2986 = vld [vmem:[%s2978 + $0x38] sm:$0xff]
  %v2987 = vld [vmem:[%s2978 + $0x40] sm:$0xff]
  %v2988 = vld [vmem:[%s2978 + $0x48] sm:$0xff]
  %v2989 = vld [vmem:[%s2978 + $0x50] sm:$0xff]
  %v2990 = vld [vmem:[%s2978 + $0x58] sm:$0xff]
  %v2991 = vld [vmem:[%s2978 + $0x60] sm:$0xff]
  %v2992 = vld [vmem:[%s2978 + $0x68] sm:$0xff]
  %v2993 = vld [vmem:[%s2978 + $0x70] sm:$0xff]
  %v2994 = vld [vmem:[%s2978 + $0x78] sm:$0xff]
  %s2995 = scalar_lea.vmem %s8, 64
  %v2996 = vld [vmem:[%s2995] sm:$0xf]
  %v2997 = vld [vmem:[%s2995 + $0x4] sm:$0xf]
  %v2998 = vld [vmem:[%s2995 + $0x8] sm:$0xf]
  %v2999 = vld [vmem:[%s2995 + $0xc] sm:$0xf]
  %v3000 = vld [vmem:[%s2995 + $0x10] sm:$0xf]
  %v3001 = vld [vmem:[%s2995 + $0x14] sm:$0xf]
  %v3002 = vld [vmem:[%s2995 + $0x18] sm:$0xf]
  %v3003 = vld [vmem:[%s2995 + $0x1c] sm:$0xf]
  %v3004 = vld [vmem:[%s2995 + $0x20] sm:$0xf]
  %v3005 = vld [vmem:[%s2995 + $0x24] sm:$0xf]
  %v3006 = vld [vmem:[%s2995 + $0x28] sm:$0xf]
  %v3007 = vld [vmem:[%s2995 + $0x2c] sm:$0xf]
  %v3008 = vld [vmem:[%s2995 + $0x30] sm:$0xf]
  %v3009 = vld [vmem:[%s2995 + $0x34] sm:$0xf]
  %v3010 = vld [vmem:[%s2995 + $0x38] sm:$0xf]
  %v3011 = vld [vmem:[%s2995 + $0x3c] sm:$0xf]
  %s3012 = scalar_lea.vmem %s7, 4
  %v3013 = vld [vmem:[%s3012] sm:$0xf]
  %v3014 = vld [vmem:[#allocation2] sm:$0xff]
  %v3015 = vld [vmem:[#allocation2 + $0x8] sm:$0xff]
  %v3016 = vld [vmem:[#allocation2 + $0x10] sm:$0xff]
  %v3017 = vld [vmem:[#allocation2 + $0x18] sm:$0xff]
  %v3018 = vld [vmem:[#allocation2 + $0x20] sm:$0xff]
  %v3019 = vld [vmem:[#allocation2 + $0x28] sm:$0xff]
  %v3020 = vld [vmem:[#allocation2 + $0x30] sm:$0xff]
  %v3021 = vld [vmem:[#allocation2 + $0x38] sm:$0xff]
  %v3022 = vld [vmem:[#allocation2 + $0x40] sm:$0xff]
  %v3023 = vld [vmem:[#allocation2 + $0x48] sm:$0xff]
  %v3024 = vpack.c.bf16 %v3015, %v3014
  %v3025 = vpack.c.bf16 %v3017, %v3016
  %v3026 = vpack.c.bf16 %v3019, %v3018
  %v3027 = vpack.c.bf16 %v3021, %v3020
  %v3028 = vpack.c.bf16 %v3023, %v3022
  %v3029 = vld [vmem:[#allocation3] sm:$0xff]
  %v3030 = vld [vmem:[#allocation3 + $0x8] sm:$0xff]
  %v3031 = vld [vmem:[#allocation3 + $0x10] sm:$0xff]
  %v3032 = vld [vmem:[#allocation3 + $0x18] sm:$0xff]
  %v3033 = vld [vmem:[#allocation3 + $0x20] sm:$0xff]
  %v3034 = vld [vmem:[#allocation3 + $0x28] sm:$0xff]
  %v3035 = vld [vmem:[#allocation3 + $0x30] sm:$0xff]
  %v3036 = vld [vmem:[#allocation3 + $0x38] sm:$0xff]
  %v3037 = vld [vmem:[#allocation3 + $0x40] sm:$0xff]
  %v3038 = vld [vmem:[#allocation3 + $0x48] sm:$0xff]
  %v3039 = vpack.c.bf16 %v3030, %v3029
  %v3040 = vpack.c.bf16 %v3032, %v3031
  %v3041 = vpack.c.bf16 %v3034, %v3033
  %v3042 = vpack.c.bf16 %v3036, %v3035
  %v3043 = vpack.c.bf16 %v3038, %v3037
  %v3045 = vlaneseq
  %v3046 = vshrl.u32 %v3045, 7
  %v3047 = vsub.s32 0, %v3046
  %v3048 = vrot.slane %v3013, %v3047
  %v3049 = vlaneseq
  %v3050 = vshrl.u32 %v3049, 7
  %v3051 = vsub.s32 1, %v3050
  %v3052 = vrot.slane %v3013, %v3051
  %v3053 = vlaneseq
  %v3054 = vshrl.u32 %v3053, 7
  %v3055 = vsub.s32 2, %v3054
  %v3056 = vrot.slane %v3013, %v3055
  %v3057 = vlaneseq
  %v3058 = vshrl.u32 %v3057, 7
  %v3059 = vsub.s32 3, %v3058
  %v3060 = vrot.slane %v3013, %v3059
  %v3073 = vunpack.c.l.b16 %v2961
  %v3074 = vunpack.c.h.b16 %v2961
  %v3075 = vunpack.c.l.b16 %v2962
  %v3076 = vunpack.c.h.b16 %v2962
  %v3077 = vunpack.c.l.b16 %v2963
  %v3078 = vunpack.c.h.b16 %v2963
  %v3079 = vunpack.c.l.b16 %v2964
  %v3080 = vunpack.c.h.b16 %v2964
  %v3081 = vunpack.c.l.b16 %v2965
  %v3082 = vunpack.c.h.b16 %v2965
  %v3083 = vunpack.c.l.b16 %v2966
  %v3084 = vunpack.c.h.b16 %v2966
  %v3085 = vunpack.c.l.b16 %v2967
  %v3086 = vunpack.c.h.b16 %v2967
  %v3087 = vunpack.c.l.b16 %v2968
  %v3088 = vunpack.c.h.b16 %v2968
  %v3089 = vpack.c.b16 %v3077, %v3073
  %v3090 = vpack.c.b16 %v3078, %v3074
  %v3091 = vpack.c.b16 %v3079, %v3075
  %v3092 = vpack.c.b16 %v3080, %v3076
  %v3093 = vpack.c.b16 %v3085, %v3081
  %v3094 = vpack.c.b16 %v3086, %v3082
  %v3095 = vpack.c.b16 %v3087, %v3083
  %v3096 = vpack.c.b16 %v3088, %v3084
  %v3106 = vsel %vm153, %v3024, 0
  %v3109 = vsel %vm153, %v3025, 0
  %v3112 = vsel %vm153, %v3026, 0
  %v3115 = vsel %vm153, %v3027, 0
  %v3118 = vsel %vm153, %v3028, 0
  %3120 = vmatprep.subr.bf16.mxu0 %v3090
  %3121 = vmatpush1.bf16.msra.mxu0 %v3089
  %3122 = vmatprep.subr.bf16.mxu0 %v3094
  %3123 = vmatpush1.bf16.msra.mxu0 %v3093
  %3124 = vmatprep.subr.bf16.mxu0 0
  %3125 = vmatpush1.bf16.msra.mxu0 0
  %3126 = vmatprep.subr.bf16.mxu0 0
  %3127 = vmatpush1.bf16.msra.mxu0 0
  %3128 = vmatprep.subr.bf16.mxu0 0
  %3129 = vmatpush1.bf16.msra.mxu0 0
  %3130 = vmatprep.subr.bf16.mxu0 0
  %3131 = vmatpush1.bf16.msra.mxu0 0
  %3132 = vmatprep.subr.bf16.mxu0 0
  %3133 = vmatpush1.bf16.msra.mxu0 0
  %3134 = vmatprep.subr.bf16.mxu0 0
  %3135 = vmatpush1.bf16.msra.mxu0 0
  %3136 = vmatprep.subr.bf16.mxu0 0
  %3137 = vmatpush1.bf16.msra.mxu0 0
  %3138 = vmatprep.subr.bf16.mxu0 0
  %3139 = vmatpush1.bf16.msra.mxu0 0
  %3140 = vmatprep.subr.bf16.mxu0 0
  %3141 = vmatpush1.bf16.msra.mxu0 0
  %3142 = vmatprep.subr.bf16.mxu0 0
  %3143 = vmatpush1.bf16.msra.mxu0 0
  %3144 = vmatprep.subr.bf16.mxu0 0
  %3145 = vmatpush1.bf16.msra.mxu0 0
  %3146 = vmatprep.subr.bf16.mxu0 0
  %3147 = vmatpush1.bf16.msra.mxu0 0
  %3148 = vmatprep.subr.bf16.mxu0 0
  %3149 = vmatpush1.bf16.msra.mxu0 0
  %3150 = vmatprep.subr.bf16.mxu0 0
  %3151 = vmatpush1.bf16.msra.mxu0 0
  %3152 = vmatprep.mubr.bf16.mxu0 0
  %3153 = vmatmul.mubr.bf16.gmra.mrb[0].mxu0 %v3106
  %v3154 = vpop.f32.mrb[0].mxu0
  %v3155 = vadd.f32 %v3048, %v3154
  %v3156 = vpop.f32.mrb[0].mxu0
  %v3157 = vadd.f32 %v3052, %v3156
  %v3158 = vpop.f32.mrb[0].mxu0
  %v3159 = vadd.f32 %v3048, %v3158
  %v3160 = vpop.f32.mrb[0].mxu0
  %v3161 = vadd.f32 %v3052, %v3160
  %3162 = vmatprep.mubr.bf16.mxu0 0
  %3163 = vmatmul.mubr.bf16.gmra.mrb[0].mxu0 %v3109
  %v3164 = vpop.f32.mrb[0].mxu0
  %v3165 = vadd.f32 %v3048, %v3164
  %v3166 = vpop.f32.mrb[0].mxu0
  %v3167 = vadd.f32 %v3052, %v3166
  %v3168 = vpop.f32.mrb[0].mxu0
  %v3169 = vadd.f32 %v3048, %v3168
  %v3170 = vpop.f32.mrb[0].mxu0
  %v3171 = vadd.f32 %v3052, %v3170
  %3172 = vmatprep.mubr.bf16.mxu0 0
  %3173 = vmatmul.mubr.bf16.gmra.mrb[0].mxu0 %v3112
  %v3174 = vpop.f32.mrb[0].mxu0
  %v3175 = vadd.f32 %v3048, %v3174
  %v3176 = vpop.f32.mrb[0].mxu0
  %v3177 = vadd.f32 %v3052, %v3176
  %v3178 = vpop.f32.mrb[0].mxu0
  %v3179 = vadd.f32 %v3048, %v3178
  %v3180 = vpop.f32.mrb[0].mxu0
  %v3181 = vadd.f32 %v3052, %v3180
  %3182 = vmatprep.mubr.bf16.mxu0 0
  %3183 = vmatmul.mubr.bf16.gmra.mrb[0].mxu0 %v3115
  %v3184 = vpop.f32.mrb[0].mxu0
  %v3185 = vadd.f32 %v3048, %v3184
  %v3186 = vpop.f32.mrb[0].mxu0
  %v3187 = vadd.f32 %v3052, %v3186
  %v3188 = vpop.f32.mrb[0].mxu0
  %v3189 = vadd.f32 %v3048, %v3188
  %v3190 = vpop.f32.mrb[0].mxu0
  %v3191 = vadd.f32 %v3052, %v3190
  %3192 = vmatprep.mubr.bf16.mxu0 0
  %3193 = vmatmul.mubr.bf16.gmra.mrb[0].mxu0 %v3118
  %v3194 = vpop.f32.mrb[0].mxu0
  %v3195 = vadd.f32 %v3048, %v3194
  %v3196 = vpop.f32.mrb[0].mxu0
  %v3197 = vadd.f32 %v3052, %v3196
  %v3198 = vpop.f32.mrb[0].mxu0
  %v3199 = vadd.f32 %v3048, %v3198
  %v3200 = vpop.f32.mrb[0].mxu0
  %v3201 = vadd.f32 %v3052, %v3200
  %3202 = vdwg.mxu0
  %3203 = vmatprep.subr.bf16.mxu0 %v3092
  %3204 = vmatpush1.bf16.msra.mxu0 %v3091
  %3205 = vmatprep.subr.bf16.mxu0 %v3096
  %3206 = vmatpush1.bf16.msra.mxu0 %v3095
  %3207 = vmatprep.subr.bf16.mxu0 0
  %3208 = vmatpush1.bf16.msra.mxu0 0
  %3209 = vmatprep.subr.bf16.mxu0 0
  %3210 = vmatpush1.bf16.msra.mxu0 0
  %3211 = vmatprep.subr.bf16.mxu0 0
  %3212 = vmatpush1.bf16.msra.mxu0 0
  %3213 = vmatprep.subr.bf16.mxu0 0
  %3214 = vmatpush1.bf16.msra.mxu0 0
  %3215 = vmatprep.subr.bf16.mxu0 0
  %3216 = vmatpush1.bf16.msra.mxu0 0
  %3217 = vmatprep.subr.bf16.mxu0 0
  %3218 = vmatpush1.bf16.msra.mxu0 0
  %3219 = vmatprep.subr.bf16.mxu0 0
  %3220 = vmatpush1.bf16.msra.mxu0 0
  %3221 = vmatprep.subr.bf16.mxu0 0
  %3222 = vmatpush1.bf16.msra.mxu0 0
  %3223 = vmatprep.subr.bf16.mxu0 0
  %3224 = vmatpush1.bf16.msra.mxu0 0
  %3225 = vmatprep.subr.bf16.mxu0 0
  %3226 = vmatpush1.bf16.msra.mxu0 0
  %3227 = vmatprep.subr.bf16.mxu0 0
  %3228 = vmatpush1.bf16.msra.mxu0 0
  %3229 = vmatprep.subr.bf16.mxu0 0
  %3230 = vmatpush1.bf16.msra.mxu0 0
  %3231 = vmatprep.subr.bf16.mxu0 0
  %3232 = vmatpush1.bf16.msra.mxu0 0
  %3233 = vmatprep.subr.bf16.mxu0 0
  %3234 = vmatpush1.bf16.msra.mxu0 0
  %3235 = vmatprep.mubr.bf16.mxu0 0
  %3236 = vmatmul.mubr.bf16.gmra.mrb[0].mxu0 %v3106
  %v3237 = vpop.f32.mrb[0].mxu0
  %v3238 = vadd.f32 %v3056, %v3237
  %v3239 = vpop.f32.mrb[0].mxu0
  %v3240 = vadd.f32 %v3060, %v3239
  %v3241 = vpop.f32.mrb[0].mxu0
  %v3242 = vadd.f32 %v3056, %v3241
  %v3243 = vpop.f32.mrb[0].mxu0
  %v3244 = vadd.f32 %v3060, %v3243
  %3245 = vmatprep.mubr.bf16.mxu0 0
  %3246 = vmatmul.mubr.bf16.gmra.mrb[0].mxu0 %v3109
  %v3247 = vpop.f32.mrb[0].mxu0
  %v3248 = vadd.f32 %v3056, %v3247
  %v3249 = vpop.f32.mrb[0].mxu0
  %v3250 = vadd.f32 %v3060, %v3249
  %v3251 = vpop.f32.mrb[0].mxu0
  %v3252 = vadd.f32 %v3056, %v3251
  %v3253 = vpop.f32.mrb[0].mxu0
  %v3254 = vadd.f32 %v3060, %v3253
  %3255 = vmatprep.mubr.bf16.mxu0 0
  %3256 = vmatmul.mubr.bf16.gmra.mrb[0].mxu0 %v3112
  %v3257 = vpop.f32.mrb[0].mxu0
  %v3258 = vadd.f32 %v3056, %v3257
  %v3259 = vpop.f32.mrb[0].mxu0
  %v3260 = vadd.f32 %v3060, %v3259
  %v3261 = vpop.f32.mrb[0].mxu0
  %v3262 = vadd.f32 %v3056, %v3261
  %v3263 = vpop.f32.mrb[0].mxu0
  %v3264 = vadd.f32 %v3060, %v3263
  %3265 = vmatprep.mubr.bf16.mxu0 0
  %3266 = vmatmul.mubr.bf16.gmra.mrb[0].mxu0 %v3115
  %v3267 = vpop.f32.mrb[0].mxu0
  %v3268 = vadd.f32 %v3056, %v3267
  %v3269 = vpop.f32.mrb[0].mxu0
  %v3270 = vadd.f32 %v3060, %v3269
  %v3271 = vpop.f32.mrb[0].mxu0
  %v3272 = vadd.f32 %v3056, %v3271
  %v3273 = vpop.f32.mrb[0].mxu0
  %v3274 = vadd.f32 %v3060, %v3273
  %3275 = vmatprep.mubr.bf16.mxu0 0
  %3276 = vmatmul.mubr.bf16.gmra.mrb[0].mxu0 %v3118
  %v3277 = vpop.f32.mrb[0].mxu0
  %v3278 = vadd.f32 %v3056, %v3277
  %v3279 = vpop.f32.mrb[0].mxu0
  %v3280 = vadd.f32 %v3060, %v3279
  %v3281 = vpop.f32.mrb[0].mxu0
  %v3282 = vadd.f32 %v3056, %v3281
  %v3283 = vpop.f32.mrb[0].mxu0
  %v3284 = vadd.f32 %v3060, %v3283
  %3285 = vdwg.mxu0
  %3286 = vst [vmem:[#allocation4] sm:$0xff] %v3155
  %3287 = vst [vmem:[#allocation4 + $0x8] sm:$0xff] %v3157
  %3288 = vst [vmem:[#allocation4 + $0x10] sm:$0xff] %v3238
  %3289 = vst [vmem:[#allocation4 + $0x18] sm:$0xff] %v3240
  %3290 = vst [vmem:[#allocation4 + $0x20] sm:$0xff] %v3159
  %3291 = vst [vmem:[#allocation4 + $0x28] sm:$0xff] %v3161
  %3292 = vst [vmem:[#allocation4 + $0x30] sm:$0xff] %v3242
  %3293 = vst [vmem:[#allocation4 + $0x38] sm:$0xff] %v3244
  %3294 = vst [vmem:[#allocation4 + $0x40] sm:$0xff] %v3165
  %3295 = vst [vmem:[#allocation4 + $0x48] sm:$0xff] %v3167
  %3296 = vst [vmem:[#allocation4 + $0x50] sm:$0xff] %v3248
  %3297 = vst [vmem:[#allocation4 + $0x58] sm:$0xff] %v3250
  %3298 = vst [vmem:[#allocation4 + $0x60] sm:$0xff] %v3169
  %3299 = vst [vmem:[#allocation4 + $0x68] sm:$0xff] %v3171
  %3300 = vst [vmem:[#allocation4 + $0x70] sm:$0xff] %v3252
  %3301 = vst [vmem:[#allocation4 + $0x78] sm:$0xff] %v3254
  %3302 = vst [vmem:[#allocation4 + $0x80] sm:$0xff] %v3175
  %3303 = vst [vmem:[#allocation4 + $0x88] sm:$0xff] %v3177
  %3304 = vst [vmem:[#allocation4 + $0x90] sm:$0xff] %v3258
  %3305 = vst [vmem:[#allocation4 + $0x98] sm:$0xff] %v3260
  %3306 = vst [vmem:[#allocation4 + $0xa0] sm:$0xff] %v3179
  %3307 = vst [vmem:[#allocation4 + $0xa8] sm:$0xff] %v3181
  %3308 = vst [vmem:[#allocation4 + $0xb0] sm:$0xff] %v3262
  %3309 = vst [vmem:[#allocation4 + $0xb8] sm:$0xff] %v3264
  %3310 = vst [vmem:[#allocation4 + $0xc0] sm:$0xff] %v3185
  %3311 = vst [vmem:[#allocation4 + $0xc8] sm:$0xff] %v3187
  %3312 = vst [vmem:[#allocation4 + $0xd0] sm:$0xff] %v3268
  %3313 = vst [vmem:[#allocation4 + $0xd8] sm:$0xff] %v3270
  %3314 = vst [vmem:[#allocation4 + $0xe0] sm:$0xff] %v3189
  %3315 = vst [vmem:[#allocation4 + $0xe8] sm:$0xff] %v3191
  %3316 = vst [vmem:[#allocation4 + $0xf0] sm:$0xff] %v3272
  %3317 = vst [vmem:[#allocation4 + $0xf8] sm:$0xff] %v3274
  %3318 = vst [vmem:[#allocation4 + $0x100] sm:$0xff] %v3195
  %3319 = vst [vmem:[#allocation4 + $0x108] sm:$0xff] %v3197
  %3320 = vst [vmem:[#allocation4 + $0x110] sm:$0xff] %v3278
  %3321 = vst [vmem:[#allocation4 + $0x118] sm:$0xff] %v3280
  %3322 = vst [vmem:[#allocation4 + $0x120] sm:$0xff] %v3199
  %3323 = vst [vmem:[#allocation4 + $0x128] sm:$0xff] %v3201
  %3324 = vst [vmem:[#allocation4 + $0x130] sm:$0xff] %v3282
  %3325 = vst [vmem:[#allocation4 + $0x138] sm:$0xff] %v3284
  %v3334 = vunpack.c.l.b16 %v2970
  %v3335 = vunpack.c.h.b16 %v2970
  %v3336 = vunpack.c.l.b16 %v2971
  %v3337 = vunpack.c.h.b16 %v2971
  %v3338 = vunpack.c.l.b16 %v2972
  %v3339 = vunpack.c.h.b16 %v2972
  %v3340 = vunpack.c.l.b16 %v2973
  %v3341 = vunpack.c.h.b16 %v2973
  %v3342 = vunpack.c.l.b16 %v2974
  %v3343 = vunpack.c.h.b16 %v2974
  %v3344 = vunpack.c.l.b16 %v2975
  %v3345 = vunpack.c.h.b16 %v2975
  %v3346 = vunpack.c.l.b16 %v2976
  %v3347 = vunpack.c.h.b16 %v2976
  %v3348 = vunpack.c.l.b16 %v2977
  %v3349 = vunpack.c.h.b16 %v2977
  %v3350 = vpack.c.b16 %v3338, %v3334
  %v3351 = vpack.c.b16 %v3339, %v3335
  %v3352 = vpack.c.b16 %v3340, %v3336
  %v3353 = vpack.c.b16 %v3341, %v3337
  %v3354 = vpack.c.b16 %v3346, %v3342
  %v3355 = vpack.c.b16 %v3347, %v3343
  %v3356 = vpack.c.b16 %v3348, %v3344
  %v3357 = vpack.c.b16 %v3349, %v3345
  %v3367 = vsel %vm153, %v3039, 0
  %v3370 = vsel %vm153, %v3040, 0
  %v3373 = vsel %vm153, %v3041, 0
  %v3376 = vsel %vm153, %v3042, 0
  %v3379 = vsel %vm153, %v3043, 0
  %3381 = vmatprep.subr.bf16.mxu0 %v3351
  %3382 = vmatpush1.bf16.msra.mxu0 %v3350
  %3383 = vmatprep.subr.bf16.mxu0 %v3355
  %3384 = vmatpush1.bf16.msra.mxu0 %v3354
  %3385 = vmatprep.subr.bf16.mxu0 0
  %3386 = vmatpush1.bf16.msra.mxu0 0
  %3387 = vmatprep.subr.bf16.mxu0 0
  %3388 = vmatpush1.bf16.msra.mxu0 0
  %3389 = vmatprep.subr.bf16.mxu0 0
  %3390 = vmatpush1.bf16.msra.mxu0 0
  %3391 = vmatprep.subr.bf16.mxu0 0
  %3392 = vmatpush1.bf16.msra.mxu0 0
  %3393 = vmatprep.subr.bf16.mxu0 0
  %3394 = vmatpush1.bf16.msra.mxu0 0
  %3395 = vmatprep.subr.bf16.mxu0 0
  %3396 = vmatpush1.bf16.msra.mxu0 0
  %3397 = vmatprep.subr.bf16.mxu0 0
  %3398 = vmatpush1.bf16.msra.mxu0 0
  %3399 = vmatprep.subr.bf16.mxu0 0
  %3400 = vmatpush1.bf16.msra.mxu0 0
  %3401 = vmatprep.subr.bf16.mxu0 0
  %3402 = vmatpush1.bf16.msra.mxu0 0
  %3403 = vmatprep.subr.bf16.mxu0 0
  %3404 = vmatpush1.bf16.msra.mxu0 0
  %3405 = vmatprep.subr.bf16.mxu0 0
  %3406 = vmatpush1.bf16.msra.mxu0 0
  %3407 = vmatprep.subr.bf16.mxu0 0
  %3408 = vmatpush1.bf16.msra.mxu0 0
  %3409 = vmatprep.subr.bf16.mxu0 0
  %3410 = vmatpush1.bf16.msra.mxu0 0
  %3411 = vmatprep.subr.bf16.mxu0 0
  %3412 = vmatpush1.bf16.msra.mxu0 0
  %3413 = vmatprep.mubr.bf16.mxu0 0
  %3414 = vmatmul.mubr.bf16.gmra.mrb[0].mxu0 %v3367
  %v3415 = vpop.f32.mrb[0].mxu0
  %v3416 = vadd.f32 0.0, %v3415
  %v3417 = vpop.f32.mrb[0].mxu0
  %v3418 = vadd.f32 0.0, %v3417
  %v3419 = vpop.f32.mrb[0].mxu0
  %v3420 = vadd.f32 0.0, %v3419
  %v3421 = vpop.f32.mrb[0].mxu0
  %v3422 = vadd.f32 0.0, %v3421
  %3423 = vmatprep.mubr.bf16.mxu0 0
  %3424 = vmatmul.mubr.bf16.gmra.mrb[0].mxu0 %v3370
  %v3425 = vpop.f32.mrb[0].mxu0
  %v3426 = vadd.f32 0.0, %v3425
  %v3427 = vpop.f32.mrb[0].mxu0
  %v3428 = vadd.f32 0.0, %v3427
  %v3429 = vpop.f32.mrb[0].mxu0
  %v3430 = vadd.f32 0.0, %v3429
  %v3431 = vpop.f32.mrb[0].mxu0
  %v3432 = vadd.f32 0.0, %v3431
  %3433 = vmatprep.mubr.bf16.mxu0 0
  %3434 = vmatmul.mubr.bf16.gmra.mrb[0].mxu0 %v3373
  %v3435 = vpop.f32.mrb[0].mxu0
  %v3436 = vadd.f32 0.0, %v3435
  %v3437 = vpop.f32.mrb[0].mxu0
  %v3438 = vadd.f32 0.0, %v3437
  %v3439 = vpop.f32.mrb[0].mxu0
  %v3440 = vadd.f32 0.0, %v3439
  %v3441 = vpop.f32.mrb[0].mxu0
  %v3442 = vadd.f32 0.0, %v3441
  %3443 = vmatprep.mubr.bf16.mxu0 0
  %3444 = vmatmul.mubr.bf16.gmra.mrb[0].mxu0 %v3376
  %v3445 = vpop.f32.mrb[0].mxu0
  %v3446 = vadd.f32 0.0, %v3445
  %v3447 = vpop.f32.mrb[0].mxu0
  %v3448 = vadd.f32 0.0, %v3447
  %v3449 = vpop.f32.mrb[0].mxu0
  %v3450 = vadd.f32 0.0, %v3449
  %v3451 = vpop.f32.mrb[0].mxu0
  %v3452 = vadd.f32 0.0, %v3451
  %3453 = vmatprep.mubr.bf16.mxu0 0
  %3454 = vmatmul.mubr.bf16.gmra.mrb[0].mxu0 %v3379
  %v3455 = vpop.f32.mrb[0].mxu0
  %v3456 = vadd.f32 0.0, %v3455
  %v3457 = vpop.f32.mrb[0].mxu0
  %v3458 = vadd.f32 0.0, %v3457
  %v3459 = vpop.f32.mrb[0].mxu0
  %v3460 = vadd.f32 0.0, %v3459
  %v3461 = vpop.f32.mrb[0].mxu0
  %v3462 = vadd.f32 0.0, %v3461
  %3463 = vdwg.mxu0
  %3464 = vmatprep.subr.bf16.mxu0 %v3353
  %3465 = vmatpush1.bf16.msra.mxu0 %v3352
  %3466 = vmatprep.subr.bf16.mxu0 %v3357
  %3467 = vmatpush1.bf16.msra.mxu0 %v3356
  %3468 = vmatprep.subr.bf16.mxu0 0
  %3469 = vmatpush1.bf16.msra.mxu0 0
  %3470 = vmatprep.subr.bf16.mxu0 0
  %3471 = vmatpush1.bf16.msra.mxu0 0
  %3472 = vmatprep.subr.bf16.mxu0 0
  %3473 = vmatpush1.bf16.msra.mxu0 0
  %3474 = vmatprep.subr.bf16.mxu0 0
  %3475 = vmatpush1.bf16.msra.mxu0 0
  %3476 = vmatprep.subr.bf16.mxu0 0
  %3477 = vmatpush1.bf16.msra.mxu0 0
  %3478 = vmatprep.subr.bf16.mxu0 0
  %3479 = vmatpush1.bf16.msra.mxu0 0
  %3480 = vmatprep.subr.bf16.mxu0 0
  %3481 = vmatpush1.bf16.msra.mxu0 0
  %3482 = vmatprep.subr.bf16.mxu0 0
  %3483 = vmatpush1.bf16.msra.mxu0 0
  %3484 = vmatprep.subr.bf16.mxu0 0
  %3485 = vmatpush1.bf16.msra.mxu0 0
  %3486 = vmatprep.subr.bf16.mxu0 0
  %3487 = vmatpush1.bf16.msra.mxu0 0
  %3488 = vmatprep.subr.bf16.mxu0 0
  %3489 = vmatpush1.bf16.msra.mxu0 0
  %3490 = vmatprep.subr.bf16.mxu0 0
  %3491 = vmatpush1.bf16.msra.mxu0 0
  %3492 = vmatprep.subr.bf16.mxu0 0
  %3493 = vmatpush1.bf16.msra.mxu0 0
  %3494 = vmatprep.subr.bf16.mxu0 0
  %3495 = vmatpush1.bf16.msra.mxu0 0
  %3496 = vmatprep.mubr.bf16.mxu0 0
  %3497 = vmatmul.mubr.bf16.gmra.mrb[0].mxu0 %v3367
  %v3498 = vpop.f32.mrb[0].mxu0
  %v3499 = vadd.f32 0.0, %v3498
  %v3500 = vpop.f32.mrb[0].mxu0
  %v3501 = vadd.f32 0.0, %v3500
  %v3502 = vpop.f32.mrb[0].mxu0
  %v3503 = vadd.f32 0.0, %v3502
  %v3504 = vpop.f32.mrb[0].mxu0
  %v3505 = vadd.f32 0.0, %v3504
  %3506 = vmatprep.mubr.bf16.mxu0 0
  %3507 = vmatmul.mubr.bf16.gmra.mrb[0].mxu0 %v3370
  %v3508 = vpop.f32.mrb[0].mxu0
  %v3509 = vadd.f32 0.0, %v3508
  %v3510 = vpop.f32.mrb[0].mxu0
  %v3511 = vadd.f32 0.0, %v3510
  %v3512 = vpop.f32.mrb[0].mxu0
  %v3513 = vadd.f32 0.0, %v3512
  %v3514 = vpop.f32.mrb[0].mxu0
  %v3515 = vadd.f32 0.0, %v3514
  %3516 = vmatprep.mubr.bf16.mxu0 0
  %3517 = vmatmul.mubr.bf16.gmra.mrb[0].mxu0 %v3373
  %v3518 = vpop.f32.mrb[0].mxu0
  %v3519 = vadd.f32 0.0, %v3518
  %v3520 = vpop.f32.mrb[0].mxu0
  %v3521 = vadd.f32 0.0, %v3520
  %v3522 = vpop.f32.mrb[0].mxu0
  %v3523 = vadd.f32 0.0, %v3522
  %v3524 = vpop.f32.mrb[0].mxu0
  %v3525 = vadd.f32 0.0, %v3524
  %3526 = vmatprep.mubr.bf16.mxu0 0
  %3527 = vmatmul.mubr.bf16.gmra.mrb[0].mxu0 %v3376
  %v3528 = vpop.f32.mrb[0].mxu0
  %v3529 = vadd.f32 0.0, %v3528
  %v3530 = vpop.f32.mrb[0].mxu0
  %v3531 = vadd.f32 0.0, %v3530
  %v3532 = vpop.f32.mrb[0].mxu0
  %v3533 = vadd.f32 0.0, %v3532
  %v3534 = vpop.f32.mrb[0].mxu0
  %v3535 = vadd.f32 0.0, %v3534
  %3536 = vmatprep.mubr.bf16.mxu0 0
  %3537 = vmatmul.mubr.bf16.gmra.mrb[0].mxu0 %v3379
  %v3538 = vpop.f32.mrb[0].mxu0
  %v3539 = vadd.f32 0.0, %v3538
  %v3540 = vpop.f32.mrb[0].mxu0
  %v3541 = vadd.f32 0.0, %v3540
  %v3542 = vpop.f32.mrb[0].mxu0
  %v3543 = vadd.f32 0.0, %v3542
  %v3544 = vpop.f32.mrb[0].mxu0
  %v3545 = vadd.f32 0.0, %v3544
  %3546 = vdwg.mxu0
  %3547 = vst [vmem:[#allocation5] sm:$0xff] %v3416
  %3548 = vst [vmem:[#allocation5 + $0x8] sm:$0xff] %v3418
  %3549 = vst [vmem:[#allocation5 + $0x10] sm:$0xff] %v3499
  %3550 = vst [vmem:[#allocation5 + $0x18] sm:$0xff] %v3501
  %3551 = vst [vmem:[#allocation5 + $0x20] sm:$0xff] %v3420
  %3552 = vst [vmem:[#allocation5 + $0x28] sm:$0xff] %v3422
  %3553 = vst [vmem:[#allocation5 + $0x30] sm:$0xff] %v3503
  %3554 = vst [vmem:[#allocation5 + $0x38] sm:$0xff] %v3505
  %3555 = vst [vmem:[#allocation5 + $0x40] sm:$0xff] %v3426
  %3556 = vst [vmem:[#allocation5 + $0x48] sm:$0xff] %v3428
  %3557 = vst [vmem:[#allocation5 + $0x50] sm:$0xff] %v3509
  %3558 = vst [vmem:[#allocation5 + $0x58] sm:$0xff] %v3511
  %3559 = vst [vmem:[#allocation5 + $0x60] sm:$0xff] %v3430
  %3560 = vst [vmem:[#allocation5 + $0x68] sm:$0xff] %v3432
  %3561 = vst [vmem:[#allocation5 + $0x70] sm:$0xff] %v3513
  %3562 = vst [vmem:[#allocation5 + $0x78] sm:$0xff] %v3515
  %3563 = vst [vmem:[#allocation5 + $0x80] sm:$0xff] %v3436
  %3564 = vst [vmem:[#allocation5 + $0x88] sm:$0xff] %v3438
  %3565 = vst [vmem:[#allocation5 + $0x90] sm:$0xff] %v3519
  %3566 = vst [vmem:[#allocation5 + $0x98] sm:$0xff] %v3521
  %3567 = vst [vmem:[#allocation5 + $0xa0] sm:$0xff] %v3440
  %3568 = vst [vmem:[#allocation5 + $0xa8] sm:$0xff] %v3442
  %3569 = vst [vmem:[#allocation5 + $0xb0] sm:$0xff] %v3523
  %3570 = vst [vmem:[#allocation5 + $0xb8] sm:$0xff] %v3525
  %3571 = vst [vmem:[#allocation5 + $0xc0] sm:$0xff] %v3446
  %3572 = vst [vmem:[#allocation5 + $0xc8] sm:$0xff] %v3448
  %3573 = vst [vmem:[#allocation5 + $0xd0] sm:$0xff] %v3529
  %3574 = vst [vmem:[#allocation5 + $0xd8] sm:$0xff] %v3531
  %3575 = vst [vmem:[#allocation5 + $0xe0] sm:$0xff] %v3450
  %3576 = vst [vmem:[#allocation5 + $0xe8] sm:$0xff] %v3452
  %3577 = vst [vmem:[#allocation5 + $0xf0] sm:$0xff] %v3533
  %3578 = vst [vmem:[#allocation5 + $0xf8] sm:$0xff] %v3535
  %3579 = vst [vmem:[#allocation5 + $0x100] sm:$0xff] %v3456
  %3580 = vst [vmem:[#allocation5 + $0x108] sm:$0xff] %v3458
  %3581 = vst [vmem:[#allocation5 + $0x110] sm:$0xff] %v3539
  %3582 = vst [vmem:[#allocation5 + $0x118] sm:$0xff] %v3541
  %3583 = vst [vmem:[#allocation5 + $0x120] sm:$0xff] %v3460
  %3584 = vst [vmem:[#allocation5 + $0x128] sm:$0xff] %v3462
  %3585 = vst [vmem:[#allocation5 + $0x130] sm:$0xff] %v3543
  %3586 = vst [vmem:[#allocation5 + $0x138] sm:$0xff] %v3545
  %v3587 = vld [vmem:[#allocation4] sm:$0xff]
  %v3588 = vld [vmem:[#allocation4 + $0x8] sm:$0xff]
  %v3589 = vld [vmem:[#allocation4 + $0x10] sm:$0xff]
  %v3590 = vld [vmem:[#allocation4 + $0x18] sm:$0xff]
  %v3591 = vld [vmem:[%s821] sm:$0xff]
  %v3592 = vld [vmem:[%s821 + $0x8] sm:$0xff]
  %v3593 = vld [vmem:[%s821 + $0x10] sm:$0xff]
  %v3594 = vld [vmem:[%s821 + $0x18] sm:$0xff]
  %v3595 = vadd.f32 %v3587, %v3591
  %v3596 = vadd.f32 %v3588, %v3592
  %v3597 = vadd.f32 %v3589, %v3593
  %v3598 = vadd.f32 %v3590, %v3594
  %v3615 = vunpack.c.l.b16 %v2979
  %v3616 = vunpack.c.h.b16 %v2979
  %v3617 = vunpack.c.l.b16 %v2980
  %v3618 = vunpack.c.h.b16 %v2980
  %v3619 = vunpack.c.l.b16 %v2981
  %v3620 = vunpack.c.h.b16 %v2981
  %v3621 = vunpack.c.l.b16 %v2982
  %v3622 = vunpack.c.h.b16 %v2982
  %v3623 = vunpack.c.l.b16 %v2983
  %v3624 = vunpack.c.h.b16 %v2983
  %v3625 = vunpack.c.l.b16 %v2984
  %v3626 = vunpack.c.h.b16 %v2984
  %v3627 = vunpack.c.l.b16 %v2985
  %v3628 = vunpack.c.h.b16 %v2985
  %v3629 = vunpack.c.l.b16 %v2986
  %v3630 = vunpack.c.h.b16 %v2986
  %v3631 = vunpack.c.l.b16 %v2987
  %v3632 = vunpack.c.h.b16 %v2987
  %v3633 = vunpack.c.l.b16 %v2988
  %v3634 = vunpack.c.h.b16 %v2988
  %v3635 = vunpack.c.l.b16 %v2989
  %v3636 = vunpack.c.h.b16 %v2989
  %v3637 = vunpack.c.l.b16 %v2990
  %v3638 = vunpack.c.h.b16 %v2990
  %v3639 = vunpack.c.l.b16 %v2991
  %v3640 = vunpack.c.h.b16 %v2991
  %v3641 = vunpack.c.l.b16 %v2992
  %v3642 = vunpack.c.h.b16 %v2992
  %v3643 = vunpack.c.l.b16 %v2993
  %v3644 = vunpack.c.h.b16 %v2993
  %v3645 = vunpack.c.l.b16 %v2994
  %v3646 = vunpack.c.h.b16 %v2994
  %v3647 = vpack.c.b16 %v3619, %v3615
  %v3648 = vpack.c.b16 %v3620, %v3616
  %v3649 = vpack.c.b16 %v3621, %v3617
  %v3650 = vpack.c.b16 %v3622, %v3618
  %v3651 = vpack.c.b16 %v3627, %v3623
  %v3652 = vpack.c.b16 %v3628, %v3624
  %v3653 = vpack.c.b16 %v3629, %v3625
  %v3654 = vpack.c.b16 %v3630, %v3626
  %v3655 = vpack.c.b16 %v3635, %v3631
  %v3656 = vpack.c.b16 %v3636, %v3632
  %v3657 = vpack.c.b16 %v3637, %v3633
  %v3658 = vpack.c.b16 %v3638, %v3634
  %v3659 = vpack.c.b16 %v3643, %v3639
  %v3660 = vpack.c.b16 %v3644, %v3640
  %v3661 = vpack.c.b16 %v3645, %v3641
  %v3662 = vpack.c.b16 %v3646, %v3642
  %3679 = vmatprep.subr.bf16.mxu0 %v3648
  %3680 = vmatpush1.bf16.msra.mxu0 %v3647
  %3681 = vmatprep.subr.bf16.mxu0 %v3652
  %3682 = vmatpush1.bf16.msra.mxu0 %v3651
  %3683 = vmatprep.subr.bf16.mxu0 %v3656
  %3684 = vmatpush1.bf16.msra.mxu0 %v3655
  %3685 = vmatprep.subr.bf16.mxu0 %v3660
  %3686 = vmatpush1.bf16.msra.mxu0 %v3659
  %3687 = vmatprep.subr.bf16.mxu0 0
  %3688 = vmatpush1.bf16.msra.mxu0 0
  %3689 = vmatprep.subr.bf16.mxu0 0
  %3690 = vmatpush1.bf16.msra.mxu0 0
  %3691 = vmatprep.subr.bf16.mxu0 0
  %3692 = vmatpush1.bf16.msra.mxu0 0
  %3693 = vmatprep.subr.bf16.mxu0 0
  %3694 = vmatpush1.bf16.msra.mxu0 0
  %3695 = vmatprep.subr.bf16.mxu0 0
  %3696 = vmatpush1.bf16.msra.mxu0 0
  %3697 = vmatprep.subr.bf16.mxu0 0
  %3698 = vmatpush1.bf16.msra.mxu0 0
  %3699 = vmatprep.subr.bf16.mxu0 0
  %3700 = vmatpush1.bf16.msra.mxu0 0
  %3701 = vmatprep.subr.bf16.mxu0 0
  %3702 = vmatpush1.bf16.msra.mxu0 0
  %3703 = vmatprep.subr.bf16.mxu0 0
  %3704 = vmatpush1.bf16.msra.mxu0 0
  %3705 = vmatprep.subr.bf16.mxu0 0
  %3706 = vmatpush1.bf16.msra.mxu0 0
  %3707 = vmatprep.subr.bf16.mxu0 0
  %3708 = vmatpush1.bf16.msra.mxu0 0
  %3709 = vmatprep.subr.bf16.mxu0 0
  %3710 = vmatpush1.bf16.msra.mxu0 0
  %3711 = vmatprep.mubr.bf16.mxu0 0
  %3712 = vmatmul.mubr.bf16.gmra.mrb[0].mxu0 %v911
  %v3713 = vpop.f32.mrb[0].mxu0
  %v3714 = vadd.f32 0.0, %v3713
  %v3715 = vpop.f32.mrb[0].mxu0
  %v3716 = vadd.f32 0.0, %v3715
  %v3717 = vpop.f32.mrb[0].mxu0
  %v3718 = vpop.f32.mrb[0].mxu0
  %3719 = vdwg.mxu0
  %3720 = vmatprep.subr.bf16.mxu0 %v3650
  %3721 = vmatpush1.bf16.msra.mxu0 %v3649
  %3722 = vmatprep.subr.bf16.mxu0 %v3654
  %3723 = vmatpush1.bf16.msra.mxu0 %v3653
  %3724 = vmatprep.subr.bf16.mxu0 %v3658
  %3725 = vmatpush1.bf16.msra.mxu0 %v3657
  %3726 = vmatprep.subr.bf16.mxu0 %v3662
  %3727 = vmatpush1.bf16.msra.mxu0 %v3661
  %3728 = vmatprep.subr.bf16.mxu0 0
  %3729 = vmatpush1.bf16.msra.mxu0 0
  %3730 = vmatprep.subr.bf16.mxu0 0
  %3731 = vmatpush1.bf16.msra.mxu0 0
  %3732 = vmatprep.subr.bf16.mxu0 0
  %3733 = vmatpush1.bf16.msra.mxu0 0
  %3734 = vmatprep.subr.bf16.mxu0 0
  %3735 = vmatpush1.bf16.msra.mxu0 0
  %3736 = vmatprep.subr.bf16.mxu0 0
  %3737 = vmatpush1.bf16.msra.mxu0 0
  %3738 = vmatprep.subr.bf16.mxu0 0
  %3739 = vmatpush1.bf16.msra.mxu0 0
  %3740 = vmatprep.subr.bf16.mxu0 0
  %3741 = vmatpush1.bf16.msra.mxu0 0
  %3742 = vmatprep.subr.bf16.mxu0 0
  %3743 = vmatpush1.bf16.msra.mxu0 0
  %3744 = vmatprep.subr.bf16.mxu0 0
  %3745 = vmatpush1.bf16.msra.mxu0 0
  %3746 = vmatprep.subr.bf16.mxu0 0
  %3747 = vmatpush1.bf16.msra.mxu0 0
  %3748 = vmatprep.subr.bf16.mxu0 0
  %3749 = vmatpush1.bf16.msra.mxu0 0
  %3750 = vmatprep.subr.bf16.mxu0 0
  %3751 = vmatpush1.bf16.msra.mxu0 0
  %3752 = vmatprep.mubr.bf16.mxu0 0
  %3753 = vmatmul.mubr.bf16.gmra.mrb[0].mxu0 %v911
  %v3754 = vpop.f32.mrb[0].mxu0
  %v3755 = vadd.f32 0.0, %v3754
  %v3756 = vpop.f32.mrb[0].mxu0
  %v3757 = vadd.f32 0.0, %v3756
  %v3758 = vpop.f32.mrb[0].mxu0
  %v3759 = vpop.f32.mrb[0].mxu0
  %3760 = vdwg.mxu0
  %v3761 = vadd.f32 %v3595, %v3714
  %v3762 = vadd.f32 %v3596, %v3716
  %v3763 = vadd.f32 %v3597, %v3755
  %v3764 = vadd.f32 %v3598, %v3757
  %v3765 = vxor.u32 %v3761, 2147483648
  %v3766 = vmul.f32 %v3765, 1.442695
  %v3767 = vpow.pop %v3766
  %v3768 = vadd.f32 %v3767, 1.0
  %v3769 = vrcp.pop %v3768
  %v3770 = vmul.f32 1.0, %v3769
  %v3771 = vxor.u32 %v3762, 2147483648
  %v3772 = vmul.f32 %v3771, 1.442695
  %v3773 = vpow.pop %v3772
  %v3774 = vadd.f32 %v3773, 1.0
  %v3775 = vrcp.pop %v3774
  %v3776 = vmul.f32 1.0, %v3775
  %v3777 = vtanh.pop %v3763
  %v3778 = vxor.u32 %v3764, 2147483648
  %v3779 = vmul.f32 %v3778, 1.442695
  %v3780 = vpow.pop %v3779
  %v3781 = vadd.f32 %v3780, 1.0
  %v3782 = vrcp.pop %v3781
  %v3783 = vmul.f32 1.0, %v3782
  %v3784 = vmul.f32 %v3770, %v3777
  %v3785 = vmul.f32 %v3776, 0.0
  %v3786 = vadd.f32 %v3784, %v3785
  %v3787 = vmax.f32 %v3786, -3.0
  %v3788 = vmin.f32 %v3787, 3.0
  %v3789 = vtanh.pop %v3788
  %v3790 = vmul.f32 %v3783, %v3789
  %v3791 = vpack.c.bf16 %v3790, %v3790
  %v3808 = vunpack.c.l.b16 %v2996
  %v3809 = vunpack.c.l.b16 %v2997
  %v3810 = vunpack.c.l.b16 %v2998
  %v3811 = vunpack.c.l.b16 %v2999
  %v3812 = vunpack.c.l.b16 %v3000
  %v3813 = vunpack.c.l.b16 %v3001
  %v3814 = vunpack.c.l.b16 %v3002
  %v3815 = vunpack.c.l.b16 %v3003
  %v3816 = vunpack.c.l.b16 %v3004
  %v3817 = vunpack.c.l.b16 %v3005
  %v3818 = vunpack.c.l.b16 %v3006
  %v3819 = vunpack.c.l.b16 %v3007
  %v3820 = vunpack.c.l.b16 %v3008
  %v3821 = vunpack.c.l.b16 %v3009
  %v3822 = vunpack.c.l.b16 %v3010
  %v3823 = vunpack.c.l.b16 %v3011
  %v3824 = vpack.c.b16 %v3809, %v3808
  %v3825 = vpack.c.b16 %v3811, %v3810
  %v3826 = vpack.c.b16 %v3813, %v3812
  %v3827 = vpack.c.b16 %v3815, %v3814
  %v3828 = vpack.c.b16 %v3817, %v3816
  %v3829 = vpack.c.b16 %v3819, %v3818
  %v3830 = vpack.c.b16 %v3821, %v3820
  %v3831 = vpack.c.b16 %v3823, %v3822
  %3840 = vmatprep.subr.bf16.mxu0 0
  %3841 = vmatpush1.bf16.msra.mxu0 %v3824
  %3842 = vmatprep.subr.bf16.mxu0 0
  %3843 = vmatpush1.bf16.msra.mxu0 %v3825
  %3844 = vmatprep.subr.bf16.mxu0 0
  %3845 = vmatpush1.bf16.msra.mxu0 %v3826
  %3846 = vmatprep.subr.bf16.mxu0 0
  %3847 = vmatpush1.bf16.msra.mxu0 %v3827
  %3848 = vmatprep.subr.bf16.mxu0 0
  %3849 = vmatpush1.bf16.msra.mxu0 %v3828
  %3850 = vmatprep.subr.bf16.mxu0 0
  %3851 = vmatpush1.bf16.msra.mxu0 %v3829
  %3852 = vmatprep.subr.bf16.mxu0 0
  %3853 = vmatpush1.bf16.msra.mxu0 %v3830
  %3854 = vmatprep.subr.bf16.mxu0 0
  %3855 = vmatpush1.bf16.msra.mxu0 %v3831
  %3856 = vmatprep.subr.bf16.mxu0 0
  %3857 = vmatpush1.bf16.msra.mxu0 0
  %3858 = vmatprep.subr.bf16.mxu0 0
  %3859 = vmatpush1.bf16.msra.mxu0 0
  %3860 = vmatprep.subr.bf16.mxu0 0
  %3861 = vmatpush1.bf16.msra.mxu0 0
  %3862 = vmatprep.subr.bf16.mxu0 0
  %3863 = vmatpush1.bf16.msra.mxu0 0
  %3864 = vmatprep.subr.bf16.mxu0 0
  %3865 = vmatpush1.bf16.msra.mxu0 0
  %3866 = vmatprep.subr.bf16.mxu0 0
  %3867 = vmatpush1.bf16.msra.mxu0 0
  %3868 = vmatprep.subr.bf16.mxu0 0
  %3869 = vmatpush1.bf16.msra.mxu0 0
  %3870 = vmatprep.subr.bf16.mxu0 0
  %3871 = vmatpush1.bf16.msra.mxu0 0
  %3872 = vmatprep.mubr.bf16.mxu0 0
  %3873 = vmatmul.mubr.bf16.gmra.mrb[0].mxu0 %v3791
  %v3874 = vpop.f32.mrb[0].mxu0
  %v3875 = vadd.f32 0.0, %v3874
  %v3876 = vpop.f32.mrb[0].mxu0
  %v3877 = vpop.f32.mrb[0].mxu0
  %v3878 = vpop.f32.mrb[0].mxu0
  %3879 = vdwg.mxu0
  %v3880 = vmax.f32 %v3875, -3.0
  %v3881 = vmin.f32 %v3880, 3.0
  %v3882 = vld [vmem:[%s2] sm:$0xff]
  %v3883 = vld [vmem:[%s3] sm:$0xff]
  %v3884 = vmul.f32 %v3882, %v3881
  %3885 = vst.msk [vmem:[#allocation6] sm:$0xff] %vm153, %v3884
  %3887 = vrot.lane.b32.xlu0 %v3884, 96
  %v3888 = vpop.permute.xlu0 %3887
  %3890 = vst.msk [vmem:[%s1124] sm:$0xff] %vm153, %v3888
  %v3891 = vsub.f32 1.0, %v3882
  %v3892 = vmul.f32 %v3891, 0.0
  %v3893 = vadd.f32 %v3884, %v3892
  %v3894 = vmul.f32 %v3883, %v3788
  %v3895 = vsub.f32 1.0, %v3883
  %v3896 = vmul.f32 %v3895, 0.0
  %v3897 = vadd.f32 %v3894, %v3896
  %v3898 = vld [vmem:[%s1133] sm:$0xff]
  %v3899 = vld [vmem:[%s1133 + $0x8] sm:$0xff]
  %v3900 = vld [vmem:[%s1133 + $0x10] sm:$0xff]
  %v3901 = vld [vmem:[%s1133 + $0x18] sm:$0xff]
  %v3902 = vld [vmem:[%s1138] sm:$0xff]
  %v3903 = vld [vmem:[%s1138 + $0x8] sm:$0xff]
  %v3904 = vld [vmem:[%s1138 + $0x10] sm:$0xff]
  %v3905 = vld [vmem:[%s1138 + $0x18] sm:$0xff]
  %v3906 = vadd.f32 %v3898, %v3902
  %v3907 = vadd.f32 %v3899, %v3903
  %v3908 = vadd.f32 %v3900, %v3904
  %v3909 = vadd.f32 %v3901, %v3905
  %v3910 = vpack.c.bf16 %v3893, %v3893
  %v3912 = vsel %vm164, %v3910, 0
  %3914 = vmatprep.subr.bf16.mxu0 %v3648
  %3915 = vmatpush1.bf16.msra.mxu0 %v3647
  %3916 = vmatprep.subr.bf16.mxu0 %v3652
  %3917 = vmatpush1.bf16.msra.mxu0 %v3651
  %3918 = vmatprep.subr.bf16.mxu0 %v3656
  %3919 = vmatpush1.bf16.msra.mxu0 %v3655
  %3920 = vmatprep.subr.bf16.mxu0 %v3660
  %3921 = vmatpush1.bf16.msra.mxu0 %v3659
  %3922 = vmatprep.subr.bf16.mxu0 0
  %3923 = vmatpush1.bf16.msra.mxu0 0
  %3924 = vmatprep.subr.bf16.mxu0 0
  %3925 = vmatpush1.bf16.msra.mxu0 0
  %3926 = vmatprep.subr.bf16.mxu0 0
  %3927 = vmatpush1.bf16.msra.mxu0 0
  %3928 = vmatprep.subr.bf16.mxu0 0
  %3929 = vmatpush1.bf16.msra.mxu0 0
  %3930 = vmatprep.subr.bf16.mxu0 0
  %3931 = vmatpush1.bf16.msra.mxu0 0
  %3932 = vmatprep.subr.bf16.mxu0 0
  %3933 = vmatpush1.bf16.msra.mxu0 0
  %3934 = vmatprep.subr.bf16.mxu0 0
  %3935 = vmatpush1.bf16.msra.mxu0 0
  %3936 = vmatprep.subr.bf16.mxu0 0
  %3937 = vmatpush1.bf16.msra.mxu0 0
  %3938 = vmatprep.subr.bf16.mxu0 0
  %3939 = vmatpush1.bf16.msra.mxu0 0
  %3940 = vmatprep.subr.bf16.mxu0 0
  %3941 = vmatpush1.bf16.msra.mxu0 0
  %3942 = vmatprep.subr.bf16.mxu0 0
  %3943 = vmatpush1.bf16.msra.mxu0 0
  %3944 = vmatprep.subr.bf16.mxu0 0
  %3945 = vmatpush1.bf16.msra.mxu0 0
  %3946 = vmatprep.mubr.bf16.mxu0 0
  %3947 = vmatmul.mubr.bf16.gmra.mrb[0].mxu0 %v3912
  %v3948 = vpop.f32.mrb[0].mxu0
  %v3949 = vadd.f32 0.0, %v3948
  %v3950 = vpop.f32.mrb[0].mxu0
  %v3951 = vadd.f32 0.0, %v3950
  %v3952 = vpop.f32.mrb[0].mxu0
  %v3953 = vpop.f32.mrb[0].mxu0
  %3954 = vdwg.mxu0
  %3955 = vmatprep.subr.bf16.mxu0 %v3650
  %3956 = vmatpush1.bf16.msra.mxu0 %v3649
  %3957 = vmatprep.subr.bf16.mxu0 %v3654
  %3958 = vmatpush1.bf16.msra.mxu0 %v3653
  %3959 = vmatprep.subr.bf16.mxu0 %v3658
  %3960 = vmatpush1.bf16.msra.mxu0 %v3657
  %3961 = vmatprep.subr.bf16.mxu0 %v3662
  %3962 = vmatpush1.bf16.msra.mxu0 %v3661
  %3963 = vmatprep.subr.bf16.mxu0 0
  %3964 = vmatpush1.bf16.msra.mxu0 0
  %3965 = vmatprep.subr.bf16.mxu0 0
  %3966 = vmatpush1.bf16.msra.mxu0 0
  %3967 = vmatprep.subr.bf16.mxu0 0
  %3968 = vmatpush1.bf16.msra.mxu0 0
  %3969 = vmatprep.subr.bf16.mxu0 0
  %3970 = vmatpush1.bf16.msra.mxu0 0
  %3971 = vmatprep.subr.bf16.mxu0 0
  %3972 = vmatpush1.bf16.msra.mxu0 0
  %3973 = vmatprep.subr.bf16.mxu0 0
  %3974 = vmatpush1.bf16.msra.mxu0 0
  %3975 = vmatprep.subr.bf16.mxu0 0
  %3976 = vmatpush1.bf16.msra.mxu0 0
  %3977 = vmatprep.subr.bf16.mxu0 0
  %3978 = vmatpush1.bf16.msra.mxu0 0
  %3979 = vmatprep.subr.bf16.mxu0 0
  %3980 = vmatpush1.bf16.msra.mxu0 0
  %3981 = vmatprep.subr.bf16.mxu0 0
  %3982 = vmatpush1.bf16.msra.mxu0 0
  %3983 = vmatprep.subr.bf16.mxu0 0
  %3984 = vmatpush1.bf16.msra.mxu0 0
  %3985 = vmatprep.subr.bf16.mxu0 0
  %3986 = vmatpush1.bf16.msra.mxu0 0
  %3987 = vmatprep.mubr.bf16.mxu0 0
  %3988 = vmatmul.mubr.bf16.gmra.mrb[0].mxu0 %v3912
  %v3989 = vpop.f32.mrb[0].mxu0
  %v3990 = vadd.f32 0.0, %v3989
  %v3991 = vpop.f32.mrb[0].mxu0
  %v3992 = vadd.f32 0.0, %v3991
  %v3993 = vpop.f32.mrb[0].mxu0
  %v3994 = vpop.f32.mrb[0].mxu0
  %3995 = vdwg.mxu0
  %v3996 = vadd.f32 %v3906, %v3949
  %v3997 = vadd.f32 %v3907, %v3951
  %v3998 = vadd.f32 %v3908, %v3990
  %v3999 = vadd.f32 %v3909, %v3992
  %v4000 = vxor.u32 %v3996, 2147483648
  %v4001 = vmul.f32 %v4000, 1.442695
  %v4002 = vpow.pop %v4001
  %v4003 = vadd.f32 %v4002, 1.0
  %v4004 = vrcp.pop %v4003
  %v4005 = vmul.f32 1.0, %v4004
  %v4006 = vxor.u32 %v3997, 2147483648
  %v4007 = vmul.f32 %v4006, 1.442695
  %v4008 = vpow.pop %v4007
  %v4009 = vadd.f32 %v4008, 1.0
  %v4010 = vrcp.pop %v4009
  %v4011 = vmul.f32 1.0, %v4010
  %v4012 = vtanh.pop %v3998
  %v4013 = vxor.u32 %v3999, 2147483648
  %v4014 = vmul.f32 %v4013, 1.442695
  %v4015 = vpow.pop %v4014
  %v4016 = vadd.f32 %v4015, 1.0
  %v4017 = vrcp.pop %v4016
  %v4018 = vmul.f32 1.0, %v4017
  %v4019 = vmul.f32 %v4005, %v4012
  %v4020 = vmul.f32 %v4011, %v3897
  %v4021 = vadd.f32 %v4019, %v4020
  %v4022 = vmax.f32 %v4021, -3.0
  %v4023 = vmin.f32 %v4022, 3.0
  %v4024 = vtanh.pop %v4023
  %v4025 = vmul.f32 %v4018, %v4024
  %v4026 = vpack.c.bf16 %v4025, %v4025
  %4027 = vmatprep.subr.bf16.mxu0 0
  %4028 = vmatpush1.bf16.msra.mxu0 %v3824
  %4029 = vmatprep.subr.bf16.mxu0 0
  %4030 = vmatpush1.bf16.msra.mxu0 %v3825
  %4031 = vmatprep.subr.bf16.mxu0 0
  %4032 = vmatpush1.bf16.msra.mxu0 %v3826
  %4033 = vmatprep.subr.bf16.mxu0 0
  %4034 = vmatpush1.bf16.msra.mxu0 %v3827
  %4035 = vmatprep.subr.bf16.mxu0 0
  %4036 = vmatpush1.bf16.msra.mxu0 %v3828
  %4037 = vmatprep.subr.bf16.mxu0 0
  %4038 = vmatpush1.bf16.msra.mxu0 %v3829
  %4039 = vmatprep.subr.bf16.mxu0 0
  %4040 = vmatpush1.bf16.msra.mxu0 %v3830
  %4041 = vmatprep.subr.bf16.mxu0 0
  %4042 = vmatpush1.bf16.msra.mxu0 %v3831
  %4043 = vmatprep.subr.bf16.mxu0 0
  %4044 = vmatpush1.bf16.msra.mxu0 0
  %4045 = vmatprep.subr.bf16.mxu0 0
  %4046 = vmatpush1.bf16.msra.mxu0 0
  %4047 = vmatprep.subr.bf16.mxu0 0
  %4048 = vmatpush1.bf16.msra.mxu0 0
  %4049 = vmatprep.subr.bf16.mxu0 0
  %4050 = vmatpush1.bf16.msra.mxu0 0
  %4051 = vmatprep.subr.bf16.mxu0 0
  %4052 = vmatpush1.bf16.msra.mxu0 0
  %4053 = vmatprep.subr.bf16.mxu0 0
  %4054 = vmatpush1.bf16.msra.mxu0 0
  %4055 = vmatprep.subr.bf16.mxu0 0
  %4056 = vmatpush1.bf16.msra.mxu0 0
  %4057 = vmatprep.subr.bf16.mxu0 0
  %4058 = vmatpush1.bf16.msra.mxu0 0
  %4059 = vmatprep.mubr.bf16.mxu0 0
  %4060 = vmatmul.mubr.bf16.gmra.mrb[0].mxu0 %v4026
  %v4061 = vpop.f32.mrb[0].mxu0
  %v4062 = vadd.f32 0.0, %v4061
  %v4063 = vpop.f32.mrb[0].mxu0
  %v4064 = vpop.f32.mrb[0].mxu0
  %v4065 = vpop.f32.mrb[0].mxu0
  %4066 = vdwg.mxu0
  %v4067 = vmax.f32 %v4062, -3.0
  %v4068 = vmin.f32 %v4067, 3.0
  %v4069 = vld [vmem:[%s1306] sm:$0xff]
  %v4070 = vld [vmem:[%s1308] sm:$0xff]
  %v4071 = vmul.f32 %v4069, %v4068
  %4072 = vst.msk [vmem:[%s1311] sm:$0xff] %vm153, %v4071
  %4074 = vrot.lane.b32.xlu0 %v4071, 96
  %v4075 = vpop.permute.xlu0 %4074
  %4077 = vst.msk [vmem:[%s1317] sm:$0xff] %vm153, %v4075
  %v4078 = vsub.f32 1.0, %v4069
  %v4079 = vmul.f32 %v4078, %v3893
  %v4080 = vadd.f32 %v4071, %v4079
  %v4081 = vmul.f32 %v4070, %v4023
  %v4082 = vsub.f32 1.0, %v4070
  %v4083 = vmul.f32 %v4082, %v3897
  %v4084 = vadd.f32 %v4081, %v4083
  %v4085 = vld [vmem:[%s1326] sm:$0xff]
  %v4086 = vld [vmem:[%s1326 + $0x8] sm:$0xff]
  %v4087 = vld [vmem:[%s1326 + $0x10] sm:$0xff]
  %v4088 = vld [vmem:[%s1326 + $0x18] sm:$0xff]
  %v4089 = vld [vmem:[%s1331] sm:$0xff]
  %v4090 = vld [vmem:[%s1331 + $0x8] sm:$0xff]
  %v4091 = vld [vmem:[%s1331 + $0x10] sm:$0xff]
  %v4092 = vld [vmem:[%s1331 + $0x18] sm:$0xff]
  %v4093 = vadd.f32 %v4085, %v4089
  %v4094 = vadd.f32 %v4086, %v4090
  %v4095 = vadd.f32 %v4087, %v4091
  %v4096 = vadd.f32 %v4088, %v4092
  %v4097 = vpack.c.bf16 %v4080, %v4080
  %v4099 = vsel %vm164, %v4097, 0
  %4101 = vmatprep.subr.bf16.mxu0 %v3648
  %4102 = vmatpush1.bf16.msra.mxu0 %v3647
  %4103 = vmatprep.subr.bf16.mxu0 %v3652
  %4104 = vmatpush1.bf16.msra.mxu0 %v3651
  %4105 = vmatprep.subr.bf16.mxu0 %v3656
  %4106 = vmatpush1.bf16.msra.mxu0 %v3655
  %4107 = vmatprep.subr.bf16.mxu0 %v3660
  %4108 = vmatpush1.bf16.msra.mxu0 %v3659
  %4109 = vmatprep.subr.bf16.mxu0 0
  %4110 = vmatpush1.bf16.msra.mxu0 0
  %4111 = vmatprep.subr.bf16.mxu0 0
  %4112 = vmatpush1.bf16.msra.mxu0 0
  %4113 = vmatprep.subr.bf16.mxu0 0
  %4114 = vmatpush1.bf16.msra.mxu0 0
  %4115 = vmatprep.subr.bf16.mxu0 0
  %4116 = vmatpush1.bf16.msra.mxu0 0
  %4117 = vmatprep.subr.bf16.mxu0 0
  %4118 = vmatpush1.bf16.msra.mxu0 0
  %4119 = vmatprep.subr.bf16.mxu0 0
  %4120 = vmatpush1.bf16.msra.mxu0 0
  %4121 = vmatprep.subr.bf16.mxu0 0
  %4122 = vmatpush1.bf16.msra.mxu0 0
  %4123 = vmatprep.subr.bf16.mxu0 0
  %4124 = vmatpush1.bf16.msra.mxu0 0
  %4125 = vmatprep.subr.bf16.mxu0 0
  %4126 = vmatpush1.bf16.msra.mxu0 0
  %4127 = vmatprep.subr.bf16.mxu0 0
  %4128 = vmatpush1.bf16.msra.mxu0 0
  %4129 = vmatprep.subr.bf16.mxu0 0
  %4130 = vmatpush1.bf16.msra.mxu0 0
  %4131 = vmatprep.subr.bf16.mxu0 0
  %4132 = vmatpush1.bf16.msra.mxu0 0
  %4133 = vmatprep.mubr.bf16.mxu0 0
  %4134 = vmatmul.mubr.bf16.gmra.mrb[0].mxu0 %v4099
  %v4135 = vpop.f32.mrb[0].mxu0
  %v4136 = vadd.f32 0.0, %v4135
  %v4137 = vpop.f32.mrb[0].mxu0
  %v4138 = vadd.f32 0.0, %v4137
  %v4139 = vpop.f32.mrb[0].mxu0
  %v4140 = vpop.f32.mrb[0].mxu0
  %4141 = vdwg.mxu0
  %4142 = vmatprep.subr.bf16.mxu0 %v3650
  %4143 = vmatpush1.bf16.msra.mxu0 %v3649
  %4144 = vmatprep.subr.bf16.mxu0 %v3654
  %4145 = vmatpush1.bf16.msra.mxu0 %v3653
  %4146 = vmatprep.subr.bf16.mxu0 %v3658
  %4147 = vmatpush1.bf16.msra.mxu0 %v3657
  %4148 = vmatprep.subr.bf16.mxu0 %v3662
  %4149 = vmatpush1.bf16.msra.mxu0 %v3661
  %4150 = vmatprep.subr.bf16.mxu0 0
  %4151 = vmatpush1.bf16.msra.mxu0 0
  %4152 = vmatprep.subr.bf16.mxu0 0
  %4153 = vmatpush1.bf16.msra.mxu0 0
  %4154 = vmatprep.subr.bf16.mxu0 0
  %4155 = vmatpush1.bf16.msra.mxu0 0
  %4156 = vmatprep.subr.bf16.mxu0 0
  %4157 = vmatpush1.bf16.msra.mxu0 0
  %4158 = vmatprep.subr.bf16.mxu0 0
  %4159 = vmatpush1.bf16.msra.mxu0 0
  %4160 = vmatprep.subr.bf16.mxu0 0
  %4161 = vmatpush1.bf16.msra.mxu0 0
  %4162 = vmatprep.subr.bf16.mxu0 0
  %4163 = vmatpush1.bf16.msra.mxu0 0
  %4164 = vmatprep.subr.bf16.mxu0 0
  %4165 = vmatpush1.bf16.msra.mxu0 0
  %4166 = vmatprep.subr.bf16.mxu0 0
  %4167 = vmatpush1.bf16.msra.mxu0 0
  %4168 = vmatprep.subr.bf16.mxu0 0
  %4169 = vmatpush1.bf16.msra.mxu0 0
  %4170 = vmatprep.subr.bf16.mxu0 0
  %4171 = vmatpush1.bf16.msra.mxu0 0
  %4172 = vmatprep.subr.bf16.mxu0 0
  %4173 = vmatpush1.bf16.msra.mxu0 0
  %4174 = vmatprep.mubr.bf16.mxu0 0
  %4175 = vmatmul.mubr.bf16.gmra.mrb[0].mxu0 %v4099
  %v4176 = vpop.f32.mrb[0].mxu0
  %v4177 = vadd.f32 0.0, %v4176
  %v4178 = vpop.f32.mrb[0].mxu0
  %v4179 = vadd.f32 0.0, %v4178
  %v4180 = vpop.f32.mrb[0].mxu0
  %v4181 = vpop.f32.mrb[0].mxu0
  %4182 = vdwg.mxu0
  %v4183 = vadd.f32 %v4093, %v4136
  %v4184 = vadd.f32 %v4094, %v4138
  %v4185 = vadd.f32 %v4095, %v4177
  %v4186 = vadd.f32 %v4096, %v4179
  %v4187 = vxor.u32 %v4183, 2147483648
  %v4188 = vmul.f32 %v4187, 1.442695
  %v4189 = vpow.pop %v4188
  %v4190 = vadd.f32 %v4189, 1.0
  %v4191 = vrcp.pop %v4190
  %v4192 = vmul.f32 1.0, %v4191
  %v4193 = vxor.u32 %v4184, 2147483648
  %v4194 = vmul.f32 %v4193, 1.442695
  %v4195 = vpow.pop %v4194
  %v4196 = vadd.f32 %v4195, 1.0
  %v4197 = vrcp.pop %v4196
  %v4198 = vmul.f32 1.0, %v4197
  %v4199 = vtanh.pop %v4185
  %v4200 = vxor.u32 %v4186, 2147483648
  %v4201 = vmul.f32 %v4200, 1.442695
  %v4202 = vpow.pop %v4201
  %v4203 = vadd.f32 %v4202, 1.0
  %v4204 = vrcp.pop %v4203
  %v4205 = vmul.f32 1.0, %v4204
  %v4206 = vmul.f32 %v4192, %v4199
  %v4207 = vmul.f32 %v4198, %v4084
  %v4208 = vadd.f32 %v4206, %v4207
  %v4209 = vmax.f32 %v4208, -3.0
  %v4210 = vmin.f32 %v4209, 3.0
  %v4211 = vtanh.pop %v4210
  %v4212 = vmul.f32 %v4205, %v4211
  %v4213 = vpack.c.bf16 %v4212, %v4212
  %4214 = vmatprep.subr.bf16.mxu0 0
  %4215 = vmatpush1.bf16.msra.mxu0 %v3824
  %4216 = vmatprep.subr.bf16.mxu0 0
  %4217 = vmatpush1.bf16.msra.mxu0 %v3825
  %4218 = vmatprep.subr.bf16.mxu0 0
  %4219 = vmatpush1.bf16.msra.mxu0 %v3826
  %4220 = vmatprep.subr.bf16.mxu0 0
  %4221 = vmatpush1.bf16.msra.mxu0 %v3827
  %4222 = vmatprep.subr.bf16.mxu0 0
  %4223 = vmatpush1.bf16.msra.mxu0 %v3828
  %4224 = vmatprep.subr.bf16.mxu0 0
  %4225 = vmatpush1.bf16.msra.mxu0 %v3829
  %4226 = vmatprep.subr.bf16.mxu0 0
  %4227 = vmatpush1.bf16.msra.mxu0 %v3830
  %4228 = vmatprep.subr.bf16.mxu0 0
  %4229 = vmatpush1.bf16.msra.mxu0 %v3831
  %4230 = vmatprep.subr.bf16.mxu0 0
  %4231 = vmatpush1.bf16.msra.mxu0 0
  %4232 = vmatprep.subr.bf16.mxu0 0
  %4233 = vmatpush1.bf16.msra.mxu0 0
  %4234 = vmatprep.subr.bf16.mxu0 0
  %4235 = vmatpush1.bf16.msra.mxu0 0
  %4236 = vmatprep.subr.bf16.mxu0 0
  %4237 = vmatpush1.bf16.msra.mxu0 0
  %4238 = vmatprep.subr.bf16.mxu0 0
  %4239 = vmatpush1.bf16.msra.mxu0 0
  %4240 = vmatprep.subr.bf16.mxu0 0
  %4241 = vmatpush1.bf16.msra.mxu0 0
  %4242 = vmatprep.subr.bf16.mxu0 0
  %4243 = vmatpush1.bf16.msra.mxu0 0
  %4244 = vmatprep.subr.bf16.mxu0 0
  %4245 = vmatpush1.bf16.msra.mxu0 0
  %4246 = vmatprep.mubr.bf16.mxu0 0
  %4247 = vmatmul.mubr.bf16.gmra.mrb[0].mxu0 %v4213
  %v4248 = vpop.f32.mrb[0].mxu0
  %v4249 = vadd.f32 0.0, %v4248
  %v4250 = vpop.f32.mrb[0].mxu0
  %v4251 = vpop.f32.mrb[0].mxu0
  %v4252 = vpop.f32.mrb[0].mxu0
  %4253 = vdwg.mxu0
  %v4254 = vmax.f32 %v4249, -3.0
  %v4255 = vmin.f32 %v4254, 3.0
  %v4256 = vld [vmem:[%s1499] sm:$0xff]
  %v4257 = vld [vmem:[%s1501] sm:$0xff]
  %v4258 = vmul.f32 %v4256, %v4255
  %4259 = vst.msk [vmem:[%s1504] sm:$0xff] %vm153, %v4258
  %4261 = vrot.lane.b32.xlu0 %v4258, 96
  %v4262 = vpop.permute.xlu0 %4261
  %4264 = vst.msk [vmem:[%s1510] sm:$0xff] %vm153, %v4262
  %v4265 = vsub.f32 1.0, %v4256
  %v4266 = vmul.f32 %v4265, %v4080
  %v4267 = vadd.f32 %v4258, %v4266
  %v4268 = vmul.f32 %v4257, %v4210
  %v4269 = vsub.f32 1.0, %v4257
  %v4270 = vmul.f32 %v4269, %v4084
  %v4271 = vadd.f32 %v4268, %v4270
  %v4272 = vld [vmem:[%s1519] sm:$0xff]
  %v4273 = vld [vmem:[%s1519 + $0x8] sm:$0xff]
  %v4274 = vld [vmem:[%s1519 + $0x10] sm:$0xff]
  %v4275 = vld [vmem:[%s1519 + $0x18] sm:$0xff]
  %v4276 = vld [vmem:[%s1524] sm:$0xff]
  %v4277 = vld [vmem:[%s1524 + $0x8] sm:$0xff]
  %v4278 = vld [vmem:[%s1524 + $0x10] sm:$0xff]
  %v4279 = vld [vmem:[%s1524 + $0x18] sm:$0xff]
  %v4280 = vadd.f32 %v4272, %v4276
  %v4281 = vadd.f32 %v4273, %v4277
  %v4282 = vadd.f32 %v4274, %v4278
  %v4283 = vadd.f32 %v4275, %v4279
  %v4284 = vpack.c.bf16 %v4267, %v4267
  %v4286 = vsel %vm164, %v4284, 0
  %4288 = vmatprep.subr.bf16.mxu0 %v3648
  %4289 = vmatpush1.bf16.msra.mxu0 %v3647
  %4290 = vmatprep.subr.bf16.mxu0 %v3652
  %4291 = vmatpush1.bf16.msra.mxu0 %v3651
  %4292 = vmatprep.subr.bf16.mxu0 %v3656
  %4293 = vmatpush1.bf16.msra.mxu0 %v3655
  %4294 = vmatprep.subr.bf16.mxu0 %v3660
  %4295 = vmatpush1.bf16.msra.mxu0 %v3659
  %4296 = vmatprep.subr.bf16.mxu0 0
  %4297 = vmatpush1.bf16.msra.mxu0 0
  %4298 = vmatprep.subr.bf16.mxu0 0
  %4299 = vmatpush1.bf16.msra.mxu0 0
  %4300 = vmatprep.subr.bf16.mxu0 0
  %4301 = vmatpush1.bf16.msra.mxu0 0
  %4302 = vmatprep.subr.bf16.mxu0 0
  %4303 = vmatpush1.bf16.msra.mxu0 0
  %4304 = vmatprep.subr.bf16.mxu0 0
  %4305 = vmatpush1.bf16.msra.mxu0 0
  %4306 = vmatprep.subr.bf16.mxu0 0
  %4307 = vmatpush1.bf16.msra.mxu0 0
  %4308 = vmatprep.subr.bf16.mxu0 0
  %4309 = vmatpush1.bf16.msra.mxu0 0
  %4310 = vmatprep.subr.bf16.mxu0 0
  %4311 = vmatpush1.bf16.msra.mxu0 0
  %4312 = vmatprep.subr.bf16.mxu0 0
  %4313 = vmatpush1.bf16.msra.mxu0 0
  %4314 = vmatprep.subr.bf16.mxu0 0
  %4315 = vmatpush1.bf16.msra.mxu0 0
  %4316 = vmatprep.subr.bf16.mxu0 0
  %4317 = vmatpush1.bf16.msra.mxu0 0
  %4318 = vmatprep.subr.bf16.mxu0 0
  %4319 = vmatpush1.bf16.msra.mxu0 0
  %4320 = vmatprep.mubr.bf16.mxu0 0
  %4321 = vmatmul.mubr.bf16.gmra.mrb[0].mxu0 %v4286
  %v4322 = vpop.f32.mrb[0].mxu0
  %v4323 = vadd.f32 0.0, %v4322
  %v4324 = vpop.f32.mrb[0].mxu0
  %v4325 = vadd.f32 0.0, %v4324
  %v4326 = vpop.f32.mrb[0].mxu0
  %v4327 = vpop.f32.mrb[0].mxu0
  %4328 = vdwg.mxu0
  %4329 = vmatprep.subr.bf16.mxu0 %v3650
  %4330 = vmatpush1.bf16.msra.mxu0 %v3649
  %4331 = vmatprep.subr.bf16.mxu0 %v3654
  %4332 = vmatpush1.bf16.msra.mxu0 %v3653
  %4333 = vmatprep.subr.bf16.mxu0 %v3658
  %4334 = vmatpush1.bf16.msra.mxu0 %v3657
  %4335 = vmatprep.subr.bf16.mxu0 %v3662
  %4336 = vmatpush1.bf16.msra.mxu0 %v3661
  %4337 = vmatprep.subr.bf16.mxu0 0
  %4338 = vmatpush1.bf16.msra.mxu0 0
  %4339 = vmatprep.subr.bf16.mxu0 0
  %4340 = vmatpush1.bf16.msra.mxu0 0
  %4341 = vmatprep.subr.bf16.mxu0 0
  %4342 = vmatpush1.bf16.msra.mxu0 0
  %4343 = vmatprep.subr.bf16.mxu0 0
  %4344 = vmatpush1.bf16.msra.mxu0 0
  %4345 = vmatprep.subr.bf16.mxu0 0
  %4346 = vmatpush1.bf16.msra.mxu0 0
  %4347 = vmatprep.subr.bf16.mxu0 0
  %4348 = vmatpush1.bf16.msra.mxu0 0
  %4349 = vmatprep.subr.bf16.mxu0 0
  %4350 = vmatpush1.bf16.msra.mxu0 0
  %4351 = vmatprep.subr.bf16.mxu0 0
  %4352 = vmatpush1.bf16.msra.mxu0 0
  %4353 = vmatprep.subr.bf16.mxu0 0
  %4354 = vmatpush1.bf16.msra.mxu0 0
  %4355 = vmatprep.subr.bf16.mxu0 0
  %4356 = vmatpush1.bf16.msra.mxu0 0
  %4357 = vmatprep.subr.bf16.mxu0 0
  %4358 = vmatpush1.bf16.msra.mxu0 0
  %4359 = vmatprep.subr.bf16.mxu0 0
  %4360 = vmatpush1.bf16.msra.mxu0 0
  %4361 = vmatprep.mubr.bf16.mxu0 0
  %4362 = vmatmul.mubr.bf16.gmra.mrb[0].mxu0 %v4286
  %v4363 = vpop.f32.mrb[0].mxu0
  %v4364 = vadd.f32 0.0, %v4363
  %v4365 = vpop.f32.mrb[0].mxu0
  %v4366 = vadd.f32 0.0, %v4365
  %v4367 = vpop.f32.mrb[0].mxu0
  %v4368 = vpop.f32.mrb[0].mxu0
  %4369 = vdwg.mxu0
  %v4370 = vadd.f32 %v4280, %v4323
  %v4371 = vadd.f32 %v4281, %v4325
  %v4372 = vadd.f32 %v4282, %v4364
  %v4373 = vadd.f32 %v4283, %v4366
  %v4374 = vxor.u32 %v4370, 2147483648
  %v4375 = vmul.f32 %v4374, 1.442695
  %v4376 = vpow.pop %v4375
  %v4377 = vadd.f32 %v4376, 1.0
  %v4378 = vrcp.pop %v4377
  %v4379 = vmul.f32 1.0, %v4378
  %v4380 = vxor.u32 %v4371, 2147483648
  %v4381 = vmul.f32 %v4380, 1.442695
  %v4382 = vpow.pop %v4381
  %v4383 = vadd.f32 %v4382, 1.0
  %v4384 = vrcp.pop %v4383
  %v4385 = vmul.f32 1.0, %v4384
  %v4386 = vtanh.pop %v4372
  %v4387 = vxor.u32 %v4373, 2147483648
  %v4388 = vmul.f32 %v4387, 1.442695
  %v4389 = vpow.pop %v4388
  %v4390 = vadd.f32 %v4389, 1.0
  %v4391 = vrcp.pop %v4390
  %v4392 = vmul.f32 1.0, %v4391
  %v4393 = vmul.f32 %v4379, %v4386
  %v4394 = vmul.f32 %v4385, %v4271
  %v4395 = vadd.f32 %v4393, %v4394
  %v4396 = vmax.f32 %v4395, -3.0
  %v4397 = vmin.f32 %v4396, 3.0
  %v4398 = vtanh.pop %v4397
  %v4399 = vmul.f32 %v4392, %v4398
  %v4400 = vpack.c.bf16 %v4399, %v4399
  %4401 = vmatprep.subr.bf16.mxu0 0
  %4402 = vmatpush1.bf16.msra.mxu0 %v3824
  %4403 = vmatprep.subr.bf16.mxu0 0
  %4404 = vmatpush1.bf16.msra.mxu0 %v3825
  %4405 = vmatprep.subr.bf16.mxu0 0
  %4406 = vmatpush1.bf16.msra.mxu0 %v3826
  %4407 = vmatprep.subr.bf16.mxu0 0
  %4408 = vmatpush1.bf16.msra.mxu0 %v3827
  %4409 = vmatprep.subr.bf16.mxu0 0
  %4410 = vmatpush1.bf16.msra.mxu0 %v3828
  %4411 = vmatprep.subr.bf16.mxu0 0
  %4412 = vmatpush1.bf16.msra.mxu0 %v3829
  %4413 = vmatprep.subr.bf16.mxu0 0
  %4414 = vmatpush1.bf16.msra.mxu0 %v3830
  %4415 = vmatprep.subr.bf16.mxu0 0
  %4416 = vmatpush1.bf16.msra.mxu0 %v3831
  %4417 = vmatprep.subr.bf16.mxu0 0
  %4418 = vmatpush1.bf16.msra.mxu0 0
  %4419 = vmatprep.subr.bf16.mxu0 0
  %4420 = vmatpush1.bf16.msra.mxu0 0
  %4421 = vmatprep.subr.bf16.mxu0 0
  %4422 = vmatpush1.bf16.msra.mxu0 0
  %4423 = vmatprep.subr.bf16.mxu0 0
  %4424 = vmatpush1.bf16.msra.mxu0 0
  %4425 = vmatprep.subr.bf16.mxu0 0
  %4426 = vmatpush1.bf16.msra.mxu0 0
  %4427 = vmatprep.subr.bf16.mxu0 0
  %4428 = vmatpush1.bf16.msra.mxu0 0
  %4429 = vmatprep.subr.bf16.mxu0 0
  %4430 = vmatpush1.bf16.msra.mxu0 0
  %4431 = vmatprep.subr.bf16.mxu0 0
  %4432 = vmatpush1.bf16.msra.mxu0 0
  %4433 = vmatprep.mubr.bf16.mxu0 0
  %4434 = vmatmul.mubr.bf16.gmra.mrb[0].mxu0 %v4400
  %v4435 = vpop.f32.mrb[0].mxu0
  %v4436 = vadd.f32 0.0, %v4435
  %v4437 = vpop.f32.mrb[0].mxu0
  %v4438 = vpop.f32.mrb[0].mxu0
  %v4439 = vpop.f32.mrb[0].mxu0
  %4440 = vdwg.mxu0
  %v4441 = vmax.f32 %v4436, -3.0
  %v4442 = vmin.f32 %v4441, 3.0
  %v4443 = vld [vmem:[%s1692] sm:$0xff]
  %v4444 = vld [vmem:[%s1694] sm:$0xff]
  %v4445 = vmul.f32 %v4443, %v4442
  %4446 = vst.msk [vmem:[%s1697] sm:$0xff] %vm153, %v4445
  %4448 = vrot.lane.b32.xlu0 %v4445, 96
  %v4449 = vpop.permute.xlu0 %4448
  %4451 = vst.msk [vmem:[%s1703] sm:$0xff] %vm153, %v4449
  %v4452 = vsub.f32 1.0, %v4443
  %v4453 = vmul.f32 %v4452, %v4267
  %v4454 = vadd.f32 %v4445, %v4453
  %v4455 = vmul.f32 %v4444, %v4397
  %v4456 = vsub.f32 1.0, %v4444
  %v4457 = vmul.f32 %v4456, %v4271
  %v4458 = vadd.f32 %v4455, %v4457
  %v4459 = vld [vmem:[%s1712] sm:$0xff]
  %v4460 = vld [vmem:[%s1712 + $0x8] sm:$0xff]
  %v4461 = vld [vmem:[%s1712 + $0x10] sm:$0xff]
  %v4462 = vld [vmem:[%s1712 + $0x18] sm:$0xff]
  %v4463 = vld [vmem:[%s1717] sm:$0xff]
  %v4464 = vld [vmem:[%s1717 + $0x8] sm:$0xff]
  %v4465 = vld [vmem:[%s1717 + $0x10] sm:$0xff]
  %v4466 = vld [vmem:[%s1717 + $0x18] sm:$0xff]
  %v4467 = vadd.f32 %v4459, %v4463
  %v4468 = vadd.f32 %v4460, %v4464
  %v4469 = vadd.f32 %v4461, %v4465
  %v4470 = vadd.f32 %v4462, %v4466
  %v4471 = vpack.c.bf16 %v4454, %v4454
  %v4473 = vsel %vm164, %v4471, 0
  %4475 = vmatprep.subr.bf16.mxu0 %v3648
  %4476 = vmatpush1.bf16.msra.mxu0 %v3647
  %4477 = vmatprep.subr.bf16.mxu0 %v3652
  %4478 = vmatpush1.bf16.msra.mxu0 %v3651
  %4479 = vmatprep.subr.bf16.mxu0 %v3656
  %4480 = vmatpush1.bf16.msra.mxu0 %v3655
  %4481 = vmatprep.subr.bf16.mxu0 %v3660
  %4482 = vmatpush1.bf16.msra.mxu0 %v3659
  %4483 = vmatprep.subr.bf16.mxu0 0
  %4484 = vmatpush1.bf16.msra.mxu0 0
  %4485 = vmatprep.subr.bf16.mxu0 0
  %4486 = vmatpush1.bf16.msra.mxu0 0
  %4487 = vmatprep.subr.bf16.mxu0 0
  %4488 = vmatpush1.bf16.msra.mxu0 0
  %4489 = vmatprep.subr.bf16.mxu0 0
  %4490 = vmatpush1.bf16.msra.mxu0 0
  %4491 = vmatprep.subr.bf16.mxu0 0
  %4492 = vmatpush1.bf16.msra.mxu0 0
  %4493 = vmatprep.subr.bf16.mxu0 0
  %4494 = vmatpush1.bf16.msra.mxu0 0
  %4495 = vmatprep.subr.bf16.mxu0 0
  %4496 = vmatpush1.bf16.msra.mxu0 0
  %4497 = vmatprep.subr.bf16.mxu0 0
  %4498 = vmatpush1.bf16.msra.mxu0 0
  %4499 = vmatprep.subr.bf16.mxu0 0
  %4500 = vmatpush1.bf16.msra.mxu0 0
  %4501 = vmatprep.subr.bf16.mxu0 0
  %4502 = vmatpush1.bf16.msra.mxu0 0
  %4503 = vmatprep.subr.bf16.mxu0 0
  %4504 = vmatpush1.bf16.msra.mxu0 0
  %4505 = vmatprep.subr.bf16.mxu0 0
  %4506 = vmatpush1.bf16.msra.mxu0 0
  %4507 = vmatprep.mubr.bf16.mxu0 0
  %4508 = vmatmul.mubr.bf16.gmra.mrb[0].mxu0 %v4473
  %v4509 = vpop.f32.mrb[0].mxu0
  %v4510 = vadd.f32 0.0, %v4509
  %v4511 = vpop.f32.mrb[0].mxu0
  %v4512 = vadd.f32 0.0, %v4511
  %v4513 = vpop.f32.mrb[0].mxu0
  %v4514 = vpop.f32.mrb[0].mxu0
  %4515 = vdwg.mxu0
  %4516 = vmatprep.subr.bf16.mxu0 %v3650
  %4517 = vmatpush1.bf16.msra.mxu0 %v3649
  %4518 = vmatprep.subr.bf16.mxu0 %v3654
  %4519 = vmatpush1.bf16.msra.mxu0 %v3653
  %4520 = vmatprep.subr.bf16.mxu0 %v3658
  %4521 = vmatpush1.bf16.msra.mxu0 %v3657
  %4522 = vmatprep.subr.bf16.mxu0 %v3662
  %4523 = vmatpush1.bf16.msra.mxu0 %v3661
  %4524 = vmatprep.subr.bf16.mxu0 0
  %4525 = vmatpush1.bf16.msra.mxu0 0
  %4526 = vmatprep.subr.bf16.mxu0 0
  %4527 = vmatpush1.bf16.msra.mxu0 0
  %4528 = vmatprep.subr.bf16.mxu0 0
  %4529 = vmatpush1.bf16.msra.mxu0 0
  %4530 = vmatprep.subr.bf16.mxu0 0
  %4531 = vmatpush1.bf16.msra.mxu0 0
  %4532 = vmatprep.subr.bf16.mxu0 0
  %4533 = vmatpush1.bf16.msra.mxu0 0
  %4534 = vmatprep.subr.bf16.mxu0 0
  %4535 = vmatpush1.bf16.msra.mxu0 0
  %4536 = vmatprep.subr.bf16.mxu0 0
  %4537 = vmatpush1.bf16.msra.mxu0 0
  %4538 = vmatprep.subr.bf16.mxu0 0
  %4539 = vmatpush1.bf16.msra.mxu0 0
  %4540 = vmatprep.subr.bf16.mxu0 0
  %4541 = vmatpush1.bf16.msra.mxu0 0
  %4542 = vmatprep.subr.bf16.mxu0 0
  %4543 = vmatpush1.bf16.msra.mxu0 0
  %4544 = vmatprep.subr.bf16.mxu0 0
  %4545 = vmatpush1.bf16.msra.mxu0 0
  %4546 = vmatprep.subr.bf16.mxu0 0
  %4547 = vmatpush1.bf16.msra.mxu0 0
  %4548 = vmatprep.mubr.bf16.mxu0 0
  %4549 = vmatmul.mubr.bf16.gmra.mrb[0].mxu0 %v4473
  %v4550 = vpop.f32.mrb[0].mxu0
  %v4551 = vadd.f32 0.0, %v4550
  %v4552 = vpop.f32.mrb[0].mxu0
  %v4553 = vadd.f32 0.0, %v4552
  %v4554 = vpop.f32.mrb[0].mxu0
  %v4555 = vpop.f32.mrb[0].mxu0
  %4556 = vdwg.mxu0
  %v4557 = vadd.f32 %v4467, %v4510
  %v4558 = vadd.f32 %v4468, %v4512
  %v4559 = vadd.f32 %v4469, %v4551
  %v4560 = vadd.f32 %v4470, %v4553
  %v4561 = vxor.u32 %v4557, 2147483648
  %v4562 = vmul.f32 %v4561, 1.442695
  %v4563 = vpow.pop %v4562
  %v4564 = vadd.f32 %v4563, 1.0
  %v4565 = vrcp.pop %v4564
  %v4566 = vmul.f32 1.0, %v4565
  %v4567 = vxor.u32 %v4558, 2147483648
  %v4568 = vmul.f32 %v4567, 1.442695
  %v4569 = vpow.pop %v4568
  %v4570 = vadd.f32 %v4569, 1.0
  %v4571 = vrcp.pop %v4570
  %v4572 = vmul.f32 1.0, %v4571
  %v4573 = vtanh.pop %v4559
  %v4574 = vxor.u32 %v4560, 2147483648
  %v4575 = vmul.f32 %v4574, 1.442695
  %v4576 = vpow.pop %v4575
  %v4577 = vadd.f32 %v4576, 1.0
  %v4578 = vrcp.pop %v4577
  %v4579 = vmul.f32 1.0, %v4578
  %v4580 = vmul.f32 %v4566, %v4573
  %v4581 = vmul.f32 %v4572, %v4458
  %v4582 = vadd.f32 %v4580, %v4581
  %v4583 = vmax.f32 %v4582, -3.0
  %v4584 = vmin.f32 %v4583, 3.0
  %v4585 = vtanh.pop %v4584
  %v4586 = vmul.f32 %v4579, %v4585
  %v4587 = vpack.c.bf16 %v4586, %v4586
  %4588 = vmatprep.subr.bf16.mxu0 0
  %4589 = vmatpush1.bf16.msra.mxu0 %v3824
  %4590 = vmatprep.subr.bf16.mxu0 0
  %4591 = vmatpush1.bf16.msra.mxu0 %v3825
  %4592 = vmatprep.subr.bf16.mxu0 0
  %4593 = vmatpush1.bf16.msra.mxu0 %v3826
  %4594 = vmatprep.subr.bf16.mxu0 0
  %4595 = vmatpush1.bf16.msra.mxu0 %v3827
  %4596 = vmatprep.subr.bf16.mxu0 0
  %4597 = vmatpush1.bf16.msra.mxu0 %v3828
  %4598 = vmatprep.subr.bf16.mxu0 0
  %4599 = vmatpush1.bf16.msra.mxu0 %v3829
  %4600 = vmatprep.subr.bf16.mxu0 0
  %4601 = vmatpush1.bf16.msra.mxu0 %v3830
  %4602 = vmatprep.subr.bf16.mxu0 0
  %4603 = vmatpush1.bf16.msra.mxu0 %v3831
  %4604 = vmatprep.subr.bf16.mxu0 0
  %4605 = vmatpush1.bf16.msra.mxu0 0
  %4606 = vmatprep.subr.bf16.mxu0 0
  %4607 = vmatpush1.bf16.msra.mxu0 0
  %4608 = vmatprep.subr.bf16.mxu0 0
  %4609 = vmatpush1.bf16.msra.mxu0 0
  %4610 = vmatprep.subr.bf16.mxu0 0
  %4611 = vmatpush1.bf16.msra.mxu0 0
  %4612 = vmatprep.subr.bf16.mxu0 0
  %4613 = vmatpush1.bf16.msra.mxu0 0
  %4614 = vmatprep.subr.bf16.mxu0 0
  %4615 = vmatpush1.bf16.msra.mxu0 0
  %4616 = vmatprep.subr.bf16.mxu0 0
  %4617 = vmatpush1.bf16.msra.mxu0 0
  %4618 = vmatprep.subr.bf16.mxu0 0
  %4619 = vmatpush1.bf16.msra.mxu0 0
  %4620 = vmatprep.mubr.bf16.mxu0 0
  %4621 = vmatmul.mubr.bf16.gmra.mrb[0].mxu0 %v4587
  %v4622 = vpop.f32.mrb[0].mxu0
  %v4623 = vadd.f32 0.0, %v4622
  %v4624 = vpop.f32.mrb[0].mxu0
  %v4625 = vpop.f32.mrb[0].mxu0
  %v4626 = vpop.f32.mrb[0].mxu0
  %4627 = vdwg.mxu0
  %v4628 = vmax.f32 %v4623, -3.0
  %v4629 = vmin.f32 %v4628, 3.0
  %v4630 = vld [vmem:[%s1885] sm:$0xff]
  %v4631 = vld [vmem:[%s1887] sm:$0xff]
  %v4632 = vmul.f32 %v4630, %v4629
  %4633 = vst.msk [vmem:[%s1890] sm:$0xff] %vm153, %v4632
  %4635 = vrot.lane.b32.xlu0 %v4632, 96
  %v4636 = vpop.permute.xlu0 %4635
  %4638 = vst.msk [vmem:[%s1896] sm:$0xff] %vm153, %v4636
  %v4639 = vsub.f32 1.0, %v4630
  %v4640 = vmul.f32 %v4639, %v4454
  %v4641 = vadd.f32 %v4632, %v4640
  %v4642 = vmul.f32 %v4631, %v4584
  %v4643 = vsub.f32 1.0, %v4631
  %v4644 = vmul.f32 %v4643, %v4458
  %v4645 = vadd.f32 %v4642, %v4644
  %v4646 = vld [vmem:[%s1905] sm:$0xff]
  %v4647 = vld [vmem:[%s1905 + $0x8] sm:$0xff]
  %v4648 = vld [vmem:[%s1905 + $0x10] sm:$0xff]
  %v4649 = vld [vmem:[%s1905 + $0x18] sm:$0xff]
  %v4650 = vld [vmem:[%s1910] sm:$0xff]
  %v4651 = vld [vmem:[%s1910 + $0x8] sm:$0xff]
  %v4652 = vld [vmem:[%s1910 + $0x10] sm:$0xff]
  %v4653 = vld [vmem:[%s1910 + $0x18] sm:$0xff]
  %v4654 = vadd.f32 %v4646, %v4650
  %v4655 = vadd.f32 %v4647, %v4651
  %v4656 = vadd.f32 %v4648, %v4652
  %v4657 = vadd.f32 %v4649, %v4653
  %v4658 = vpack.c.bf16 %v4641, %v4641
  %v4660 = vsel %vm164, %v4658, 0
  %4662 = vmatprep.subr.bf16.mxu0 %v3648
  %4663 = vmatpush1.bf16.msra.mxu0 %v3647
  %4664 = vmatprep.subr.bf16.mxu0 %v3652
  %4665 = vmatpush1.bf16.msra.mxu0 %v3651
  %4666 = vmatprep.subr.bf16.mxu0 %v3656
  %4667 = vmatpush1.bf16.msra.mxu0 %v3655
  %4668 = vmatprep.subr.bf16.mxu0 %v3660
  %4669 = vmatpush1.bf16.msra.mxu0 %v3659
  %4670 = vmatprep.subr.bf16.mxu0 0
  %4671 = vmatpush1.bf16.msra.mxu0 0
  %4672 = vmatprep.subr.bf16.mxu0 0
  %4673 = vmatpush1.bf16.msra.mxu0 0
  %4674 = vmatprep.subr.bf16.mxu0 0
  %4675 = vmatpush1.bf16.msra.mxu0 0
  %4676 = vmatprep.subr.bf16.mxu0 0
  %4677 = vmatpush1.bf16.msra.mxu0 0
  %4678 = vmatprep.subr.bf16.mxu0 0
  %4679 = vmatpush1.bf16.msra.mxu0 0
  %4680 = vmatprep.subr.bf16.mxu0 0
  %4681 = vmatpush1.bf16.msra.mxu0 0
  %4682 = vmatprep.subr.bf16.mxu0 0
  %4683 = vmatpush1.bf16.msra.mxu0 0
  %4684 = vmatprep.subr.bf16.mxu0 0
  %4685 = vmatpush1.bf16.msra.mxu0 0
  %4686 = vmatprep.subr.bf16.mxu0 0
  %4687 = vmatpush1.bf16.msra.mxu0 0
  %4688 = vmatprep.subr.bf16.mxu0 0
  %4689 = vmatpush1.bf16.msra.mxu0 0
  %4690 = vmatprep.subr.bf16.mxu0 0
  %4691 = vmatpush1.bf16.msra.mxu0 0
  %4692 = vmatprep.subr.bf16.mxu0 0
  %4693 = vmatpush1.bf16.msra.mxu0 0
  %4694 = vmatprep.mubr.bf16.mxu0 0
  %4695 = vmatmul.mubr.bf16.gmra.mrb[0].mxu0 %v4660
  %v4696 = vpop.f32.mrb[0].mxu0
  %v4697 = vadd.f32 0.0, %v4696
  %v4698 = vpop.f32.mrb[0].mxu0
  %v4699 = vadd.f32 0.0, %v4698
  %v4700 = vpop.f32.mrb[0].mxu0
  %v4701 = vpop.f32.mrb[0].mxu0
  %4702 = vdwg.mxu0
  %4703 = vmatprep.subr.bf16.mxu0 %v3650
  %4704 = vmatpush1.bf16.msra.mxu0 %v3649
  %4705 = vmatprep.subr.bf16.mxu0 %v3654
  %4706 = vmatpush1.bf16.msra.mxu0 %v3653
  %4707 = vmatprep.subr.bf16.mxu0 %v3658
  %4708 = vmatpush1.bf16.msra.mxu0 %v3657
  %4709 = vmatprep.subr.bf16.mxu0 %v3662
  %4710 = vmatpush1.bf16.msra.mxu0 %v3661
  %4711 = vmatprep.subr.bf16.mxu0 0
  %4712 = vmatpush1.bf16.msra.mxu0 0
  %4713 = vmatprep.subr.bf16.mxu0 0
  %4714 = vmatpush1.bf16.msra.mxu0 0
  %4715 = vmatprep.subr.bf16.mxu0 0
  %4716 = vmatpush1.bf16.msra.mxu0 0
  %4717 = vmatprep.subr.bf16.mxu0 0
  %4718 = vmatpush1.bf16.msra.mxu0 0
  %4719 = vmatprep.subr.bf16.mxu0 0
  %4720 = vmatpush1.bf16.msra.mxu0 0
  %4721 = vmatprep.subr.bf16.mxu0 0
  %4722 = vmatpush1.bf16.msra.mxu0 0
  %4723 = vmatprep.subr.bf16.mxu0 0
  %4724 = vmatpush1.bf16.msra.mxu0 0
  %4725 = vmatprep.subr.bf16.mxu0 0
  %4726 = vmatpush1.bf16.msra.mxu0 0
  %4727 = vmatprep.subr.bf16.mxu0 0
  %4728 = vmatpush1.bf16.msra.mxu0 0
  %4729 = vmatprep.subr.bf16.mxu0 0
  %4730 = vmatpush1.bf16.msra.mxu0 0
  %4731 = vmatprep.subr.bf16.mxu0 0
  %4732 = vmatpush1.bf16.msra.mxu0 0
  %4733 = vmatprep.subr.bf16.mxu0 0
  %4734 = vmatpush1.bf16.msra.mxu0 0
  %4735 = vmatprep.mubr.bf16.mxu0 0
  %4736 = vmatmul.mubr.bf16.gmra.mrb[0].mxu0 %v4660
  %v4737 = vpop.f32.mrb[0].mxu0
  %v4738 = vadd.f32 0.0, %v4737
  %v4739 = vpop.f32.mrb[0].mxu0
  %v4740 = vadd.f32 0.0, %v4739
  %v4741 = vpop.f32.mrb[0].mxu0
  %v4742 = vpop.f32.mrb[0].mxu0
  %4743 = vdwg.mxu0
  %v4744 = vadd.f32 %v4654, %v4697
  %v4745 = vadd.f32 %v4655, %v4699
  %v4746 = vadd.f32 %v4656, %v4738
  %v4747 = vadd.f32 %v4657, %v4740
  %v4748 = vxor.u32 %v4744, 2147483648
  %v4749 = vmul.f32 %v4748, 1.442695
  %v4750 = vpow.pop %v4749
  %v4751 = vadd.f32 %v4750, 1.0
  %v4752 = vrcp.pop %v4751
  %v4753 = vmul.f32 1.0, %v4752
  %v4754 = vxor.u32 %v4745, 2147483648
  %v4755 = vmul.f32 %v4754, 1.442695
  %v4756 = vpow.pop %v4755
  %v4757 = vadd.f32 %v4756, 1.0
  %v4758 = vrcp.pop %v4757
  %v4759 = vmul.f32 1.0, %v4758
  %v4760 = vtanh.pop %v4746
  %v4761 = vxor.u32 %v4747, 2147483648
  %v4762 = vmul.f32 %v4761, 1.442695
  %v4763 = vpow.pop %v4762
  %v4764 = vadd.f32 %v4763, 1.0
  %v4765 = vrcp.pop %v4764
  %v4766 = vmul.f32 1.0, %v4765
  %v4767 = vmul.f32 %v4753, %v4760
  %v4768 = vmul.f32 %v4759, %v4645
  %v4769 = vadd.f32 %v4767, %v4768
  %v4770 = vmax.f32 %v4769, -3.0
  %v4771 = vmin.f32 %v4770, 3.0
  %v4772 = vtanh.pop %v4771
  %v4773 = vmul.f32 %v4766, %v4772
  %v4774 = vpack.c.bf16 %v4773, %v4773
  %4775 = vmatprep.subr.bf16.mxu0 0
  %4776 = vmatpush1.bf16.msra.mxu0 %v3824
  %4777 = vmatprep.subr.bf16.mxu0 0
  %4778 = vmatpush1.bf16.msra.mxu0 %v3825
  %4779 = vmatprep.subr.bf16.mxu0 0
  %4780 = vmatpush1.bf16.msra.mxu0 %v3826
  %4781 = vmatprep.subr.bf16.mxu0 0
  %4782 = vmatpush1.bf16.msra.mxu0 %v3827
  %4783 = vmatprep.subr.bf16.mxu0 0
  %4784 = vmatpush1.bf16.msra.mxu0 %v3828
  %4785 = vmatprep.subr.bf16.mxu0 0
  %4786 = vmatpush1.bf16.msra.mxu0 %v3829
  %4787 = vmatprep.subr.bf16.mxu0 0
  %4788 = vmatpush1.bf16.msra.mxu0 %v3830
  %4789 = vmatprep.subr.bf16.mxu0 0
  %4790 = vmatpush1.bf16.msra.mxu0 %v3831
  %4791 = vmatprep.subr.bf16.mxu0 0
  %4792 = vmatpush1.bf16.msra.mxu0 0
  %4793 = vmatprep.subr.bf16.mxu0 0
  %4794 = vmatpush1.bf16.msra.mxu0 0
  %4795 = vmatprep.subr.bf16.mxu0 0
  %4796 = vmatpush1.bf16.msra.mxu0 0
  %4797 = vmatprep.subr.bf16.mxu0 0
  %4798 = vmatpush1.bf16.msra.mxu0 0
  %4799 = vmatprep.subr.bf16.mxu0 0
  %4800 = vmatpush1.bf16.msra.mxu0 0
  %4801 = vmatprep.subr.bf16.mxu0 0
  %4802 = vmatpush1.bf16.msra.mxu0 0
  %4803 = vmatprep.subr.bf16.mxu0 0
  %4804 = vmatpush1.bf16.msra.mxu0 0
  %4805 = vmatprep.subr.bf16.mxu0 0
  %4806 = vmatpush1.bf16.msra.mxu0 0
  %4807 = vmatprep.mubr.bf16.mxu0 0
  %4808 = vmatmul.mubr.bf16.gmra.mrb[0].mxu0 %v4774
  %v4809 = vpop.f32.mrb[0].mxu0
  %v4810 = vadd.f32 0.0, %v4809
  %v4811 = vpop.f32.mrb[0].mxu0
  %v4812 = vpop.f32.mrb[0].mxu0
  %v4813 = vpop.f32.mrb[0].mxu0
  %4814 = vdwg.mxu0
  %v4815 = vmax.f32 %v4810, -3.0
  %v4816 = vmin.f32 %v4815, 3.0
  %v4817 = vld [vmem:[%s2078] sm:$0xff]
  %v4818 = vld [vmem:[%s2080] sm:$0xff]
  %v4819 = vmul.f32 %v4817, %v4816
  %4820 = vst.msk [vmem:[%s2083] sm:$0xff] %vm153, %v4819
  %4822 = vrot.lane.b32.xlu0 %v4819, 96
  %v4823 = vpop.permute.xlu0 %4822
  %4825 = vst.msk [vmem:[%s2089] sm:$0xff] %vm153, %v4823
  %v4826 = vsub.f32 1.0, %v4817
  %v4827 = vmul.f32 %v4826, %v4641
  %v4828 = vadd.f32 %v4819, %v4827
  %v4829 = vmul.f32 %v4818, %v4771
  %v4830 = vsub.f32 1.0, %v4818
  %v4831 = vmul.f32 %v4830, %v4645
  %v4832 = vadd.f32 %v4829, %v4831
  %v4833 = vld [vmem:[%s2098] sm:$0xff]
  %v4834 = vld [vmem:[%s2098 + $0x8] sm:$0xff]
  %v4835 = vld [vmem:[%s2098 + $0x10] sm:$0xff]
  %v4836 = vld [vmem:[%s2098 + $0x18] sm:$0xff]
  %v4837 = vld [vmem:[%s2103] sm:$0xff]
  %v4838 = vld [vmem:[%s2103 + $0x8] sm:$0xff]
  %v4839 = vld [vmem:[%s2103 + $0x10] sm:$0xff]
  %v4840 = vld [vmem:[%s2103 + $0x18] sm:$0xff]
  %v4841 = vadd.f32 %v4833, %v4837
  %v4842 = vadd.f32 %v4834, %v4838
  %v4843 = vadd.f32 %v4835, %v4839
  %v4844 = vadd.f32 %v4836, %v4840
  %v4845 = vpack.c.bf16 %v4828, %v4828
  %v4847 = vsel %vm164, %v4845, 0
  %4849 = vmatprep.subr.bf16.mxu0 %v3648
  %4850 = vmatpush1.bf16.msra.mxu0 %v3647
  %4851 = vmatprep.subr.bf16.mxu0 %v3652
  %4852 = vmatpush1.bf16.msra.mxu0 %v3651
  %4853 = vmatprep.subr.bf16.mxu0 %v3656
  %4854 = vmatpush1.bf16.msra.mxu0 %v3655
  %4855 = vmatprep.subr.bf16.mxu0 %v3660
  %4856 = vmatpush1.bf16.msra.mxu0 %v3659
  %4857 = vmatprep.subr.bf16.mxu0 0
  %4858 = vmatpush1.bf16.msra.mxu0 0
  %4859 = vmatprep.subr.bf16.mxu0 0
  %4860 = vmatpush1.bf16.msra.mxu0 0
  %4861 = vmatprep.subr.bf16.mxu0 0
  %4862 = vmatpush1.bf16.msra.mxu0 0
  %4863 = vmatprep.subr.bf16.mxu0 0
  %4864 = vmatpush1.bf16.msra.mxu0 0
  %4865 = vmatprep.subr.bf16.mxu0 0
  %4866 = vmatpush1.bf16.msra.mxu0 0
  %4867 = vmatprep.subr.bf16.mxu0 0
  %4868 = vmatpush1.bf16.msra.mxu0 0
  %4869 = vmatprep.subr.bf16.mxu0 0
  %4870 = vmatpush1.bf16.msra.mxu0 0
  %4871 = vmatprep.subr.bf16.mxu0 0
  %4872 = vmatpush1.bf16.msra.mxu0 0
  %4873 = vmatprep.subr.bf16.mxu0 0
  %4874 = vmatpush1.bf16.msra.mxu0 0
  %4875 = vmatprep.subr.bf16.mxu0 0
  %4876 = vmatpush1.bf16.msra.mxu0 0
  %4877 = vmatprep.subr.bf16.mxu0 0
  %4878 = vmatpush1.bf16.msra.mxu0 0
  %4879 = vmatprep.subr.bf16.mxu0 0
  %4880 = vmatpush1.bf16.msra.mxu0 0
  %4881 = vmatprep.mubr.bf16.mxu0 0
  %4882 = vmatmul.mubr.bf16.gmra.mrb[0].mxu0 %v4847
  %v4883 = vpop.f32.mrb[0].mxu0
  %v4884 = vadd.f32 0.0, %v4883
  %v4885 = vpop.f32.mrb[0].mxu0
  %v4886 = vadd.f32 0.0, %v4885
  %v4887 = vpop.f32.mrb[0].mxu0
  %v4888 = vpop.f32.mrb[0].mxu0
  %4889 = vdwg.mxu0
  %4890 = vmatprep.subr.bf16.mxu0 %v3650
  %4891 = vmatpush1.bf16.msra.mxu0 %v3649
  %4892 = vmatprep.subr.bf16.mxu0 %v3654
  %4893 = vmatpush1.bf16.msra.mxu0 %v3653
  %4894 = vmatprep.subr.bf16.mxu0 %v3658
  %4895 = vmatpush1.bf16.msra.mxu0 %v3657
  %4896 = vmatprep.subr.bf16.mxu0 %v3662
  %4897 = vmatpush1.bf16.msra.mxu0 %v3661
  %4898 = vmatprep.subr.bf16.mxu0 0
  %4899 = vmatpush1.bf16.msra.mxu0 0
  %4900 = vmatprep.subr.bf16.mxu0 0
  %4901 = vmatpush1.bf16.msra.mxu0 0
  %4902 = vmatprep.subr.bf16.mxu0 0
  %4903 = vmatpush1.bf16.msra.mxu0 0
  %4904 = vmatprep.subr.bf16.mxu0 0
  %4905 = vmatpush1.bf16.msra.mxu0 0
  %4906 = vmatprep.subr.bf16.mxu0 0
  %4907 = vmatpush1.bf16.msra.mxu0 0
  %4908 = vmatprep.subr.bf16.mxu0 0
  %4909 = vmatpush1.bf16.msra.mxu0 0
  %4910 = vmatprep.subr.bf16.mxu0 0
  %4911 = vmatpush1.bf16.msra.mxu0 0
  %4912 = vmatprep.subr.bf16.mxu0 0
  %4913 = vmatpush1.bf16.msra.mxu0 0
  %4914 = vmatprep.subr.bf16.mxu0 0
  %4915 = vmatpush1.bf16.msra.mxu0 0
  %4916 = vmatprep.subr.bf16.mxu0 0
  %4917 = vmatpush1.bf16.msra.mxu0 0
  %4918 = vmatprep.subr.bf16.mxu0 0
  %4919 = vmatpush1.bf16.msra.mxu0 0
  %4920 = vmatprep.subr.bf16.mxu0 0
  %4921 = vmatpush1.bf16.msra.mxu0 0
  %4922 = vmatprep.mubr.bf16.mxu0 0
  %4923 = vmatmul.mubr.bf16.gmra.mrb[0].mxu0 %v4847
  %v4924 = vpop.f32.mrb[0].mxu0
  %v4925 = vadd.f32 0.0, %v4924
  %v4926 = vpop.f32.mrb[0].mxu0
  %v4927 = vadd.f32 0.0, %v4926
  %v4928 = vpop.f32.mrb[0].mxu0
  %v4929 = vpop.f32.mrb[0].mxu0
  %4930 = vdwg.mxu0
  %v4931 = vadd.f32 %v4841, %v4884
  %v4932 = vadd.f32 %v4842, %v4886
  %v4933 = vadd.f32 %v4843, %v4925
  %v4934 = vadd.f32 %v4844, %v4927
  %v4935 = vxor.u32 %v4931, 2147483648
  %v4936 = vmul.f32 %v4935, 1.442695
  %v4937 = vpow.pop %v4936
  %v4938 = vadd.f32 %v4937, 1.0
  %v4939 = vrcp.pop %v4938
  %v4940 = vmul.f32 1.0, %v4939
  %v4941 = vxor.u32 %v4932, 2147483648
  %v4942 = vmul.f32 %v4941, 1.442695
  %v4943 = vpow.pop %v4942
  %v4944 = vadd.f32 %v4943, 1.0
  %v4945 = vrcp.pop %v4944
  %v4946 = vmul.f32 1.0, %v4945
  %v4947 = vtanh.pop %v4933
  %v4948 = vxor.u32 %v4934, 2147483648
  %v4949 = vmul.f32 %v4948, 1.442695
  %v4950 = vpow.pop %v4949
  %v4951 = vadd.f32 %v4950, 1.0
  %v4952 = vrcp.pop %v4951
  %v4953 = vmul.f32 1.0, %v4952
  %v4954 = vmul.f32 %v4940, %v4947
  %v4955 = vmul.f32 %v4946, %v4832
  %v4956 = vadd.f32 %v4954, %v4955
  %v4957 = vmax.f32 %v4956, -3.0
  %v4958 = vmin.f32 %v4957, 3.0
  %v4959 = vtanh.pop %v4958
  %v4960 = vmul.f32 %v4953, %v4959
  %v4961 = vpack.c.bf16 %v4960, %v4960
  %4962 = vmatprep.subr.bf16.mxu0 0
  %4963 = vmatpush1.bf16.msra.mxu0 %v3824
  %4964 = vmatprep.subr.bf16.mxu0 0
  %4965 = vmatpush1.bf16.msra.mxu0 %v3825
  %4966 = vmatprep.subr.bf16.mxu0 0
  %4967 = vmatpush1.bf16.msra.mxu0 %v3826
  %4968 = vmatprep.subr.bf16.mxu0 0
  %4969 = vmatpush1.bf16.msra.mxu0 %v3827
  %4970 = vmatprep.subr.bf16.mxu0 0
  %4971 = vmatpush1.bf16.msra.mxu0 %v3828
  %4972 = vmatprep.subr.bf16.mxu0 0
  %4973 = vmatpush1.bf16.msra.mxu0 %v3829
  %4974 = vmatprep.subr.bf16.mxu0 0
  %4975 = vmatpush1.bf16.msra.mxu0 %v3830
  %4976 = vmatprep.subr.bf16.mxu0 0
  %4977 = vmatpush1.bf16.msra.mxu0 %v3831
  %4978 = vmatprep.subr.bf16.mxu0 0
  %4979 = vmatpush1.bf16.msra.mxu0 0
  %4980 = vmatprep.subr.bf16.mxu0 0
  %4981 = vmatpush1.bf16.msra.mxu0 0
  %4982 = vmatprep.subr.bf16.mxu0 0
  %4983 = vmatpush1.bf16.msra.mxu0 0
  %4984 = vmatprep.subr.bf16.mxu0 0
  %4985 = vmatpush1.bf16.msra.mxu0 0
  %4986 = vmatprep.subr.bf16.mxu0 0
  %4987 = vmatpush1.bf16.msra.mxu0 0
  %4988 = vmatprep.subr.bf16.mxu0 0
  %4989 = vmatpush1.bf16.msra.mxu0 0
  %4990 = vmatprep.subr.bf16.mxu0 0
  %4991 = vmatpush1.bf16.msra.mxu0 0
  %4992 = vmatprep.subr.bf16.mxu0 0
  %4993 = vmatpush1.bf16.msra.mxu0 0
  %4994 = vmatprep.mubr.bf16.mxu0 0
  %4995 = vmatmul.mubr.bf16.gmra.mrb[0].mxu0 %v4961
  %v4996 = vpop.f32.mrb[0].mxu0
  %v4997 = vadd.f32 0.0, %v4996
  %v4998 = vpop.f32.mrb[0].mxu0
  %v4999 = vpop.f32.mrb[0].mxu0
  %v5000 = vpop.f32.mrb[0].mxu0
  %5001 = vdwg.mxu0
  %v5002 = vmax.f32 %v4997, -3.0
  %v5003 = vmin.f32 %v5002, 3.0
  %v5004 = vld [vmem:[%s2271] sm:$0xff]
  %v5005 = vld [vmem:[%s2273] sm:$0xff]
  %v5006 = vmul.f32 %v5004, %v5003
  %5007 = vst.msk [vmem:[%s2276] sm:$0xff] %vm153, %v5006
  %5009 = vrot.lane.b32.xlu0 %v5006, 96
  %v5010 = vpop.permute.xlu0 %5009
  %5012 = vst.msk [vmem:[%s2282] sm:$0xff] %vm153, %v5010
  %v5013 = vsub.f32 1.0, %v5004
  %v5014 = vmul.f32 %v5013, %v4828
  %v5015 = vadd.f32 %v5006, %v5014
  %v5016 = vmul.f32 %v5005, %v4958
  %v5017 = vsub.f32 1.0, %v5005
  %v5018 = vmul.f32 %v5017, %v4832
  %v5019 = vadd.f32 %v5016, %v5018
  %v5020 = vld [vmem:[%s2291] sm:$0xff]
  %v5021 = vld [vmem:[%s2291 + $0x8] sm:$0xff]
  %v5022 = vld [vmem:[%s2291 + $0x10] sm:$0xff]
  %v5023 = vld [vmem:[%s2291 + $0x18] sm:$0xff]
  %v5024 = vld [vmem:[%s2296] sm:$0xff]
  %v5025 = vld [vmem:[%s2296 + $0x8] sm:$0xff]
  %v5026 = vld [vmem:[%s2296 + $0x10] sm:$0xff]
  %v5027 = vld [vmem:[%s2296 + $0x18] sm:$0xff]
  %v5028 = vadd.f32 %v5020, %v5024
  %v5029 = vadd.f32 %v5021, %v5025
  %v5030 = vadd.f32 %v5022, %v5026
  %v5031 = vadd.f32 %v5023, %v5027
  %v5032 = vpack.c.bf16 %v5015, %v5015
  %v5034 = vsel %vm164, %v5032, 0
  %5036 = vmatprep.subr.bf16.mxu0 %v3648
  %5037 = vmatpush1.bf16.msra.mxu0 %v3647
  %5038 = vmatprep.subr.bf16.mxu0 %v3652
  %5039 = vmatpush1.bf16.msra.mxu0 %v3651
  %5040 = vmatprep.subr.bf16.mxu0 %v3656
  %5041 = vmatpush1.bf16.msra.mxu0 %v3655
  %5042 = vmatprep.subr.bf16.mxu0 %v3660
  %5043 = vmatpush1.bf16.msra.mxu0 %v3659
  %5044 = vmatprep.subr.bf16.mxu0 0
  %5045 = vmatpush1.bf16.msra.mxu0 0
  %5046 = vmatprep.subr.bf16.mxu0 0
  %5047 = vmatpush1.bf16.msra.mxu0 0
  %5048 = vmatprep.subr.bf16.mxu0 0
  %5049 = vmatpush1.bf16.msra.mxu0 0
  %5050 = vmatprep.subr.bf16.mxu0 0
  %5051 = vmatpush1.bf16.msra.mxu0 0
  %5052 = vmatprep.subr.bf16.mxu0 0
  %5053 = vmatpush1.bf16.msra.mxu0 0
  %5054 = vmatprep.subr.bf16.mxu0 0
  %5055 = vmatpush1.bf16.msra.mxu0 0
  %5056 = vmatprep.subr.bf16.mxu0 0
  %5057 = vmatpush1.bf16.msra.mxu0 0
  %5058 = vmatprep.subr.bf16.mxu0 0
  %5059 = vmatpush1.bf16.msra.mxu0 0
  %5060 = vmatprep.subr.bf16.mxu0 0
  %5061 = vmatpush1.bf16.msra.mxu0 0
  %5062 = vmatprep.subr.bf16.mxu0 0
  %5063 = vmatpush1.bf16.msra.mxu0 0
  %5064 = vmatprep.subr.bf16.mxu0 0
  %5065 = vmatpush1.bf16.msra.mxu0 0
  %5066 = vmatprep.subr.bf16.mxu0 0
  %5067 = vmatpush1.bf16.msra.mxu0 0
  %5068 = vmatprep.mubr.bf16.mxu0 0
  %5069 = vmatmul.mubr.bf16.gmra.mrb[0].mxu0 %v5034
  %v5070 = vpop.f32.mrb[0].mxu0
  %v5071 = vadd.f32 0.0, %v5070
  %v5072 = vpop.f32.mrb[0].mxu0
  %v5073 = vadd.f32 0.0, %v5072
  %v5074 = vpop.f32.mrb[0].mxu0
  %v5075 = vpop.f32.mrb[0].mxu0
  %5076 = vdwg.mxu0
  %5077 = vmatprep.subr.bf16.mxu0 %v3650
  %5078 = vmatpush1.bf16.msra.mxu0 %v3649
  %5079 = vmatprep.subr.bf16.mxu0 %v3654
  %5080 = vmatpush1.bf16.msra.mxu0 %v3653
  %5081 = vmatprep.subr.bf16.mxu0 %v3658
  %5082 = vmatpush1.bf16.msra.mxu0 %v3657
  %5083 = vmatprep.subr.bf16.mxu0 %v3662
  %5084 = vmatpush1.bf16.msra.mxu0 %v3661
  %5085 = vmatprep.subr.bf16.mxu0 0
  %5086 = vmatpush1.bf16.msra.mxu0 0
  %5087 = vmatprep.subr.bf16.mxu0 0
  %5088 = vmatpush1.bf16.msra.mxu0 0
  %5089 = vmatprep.subr.bf16.mxu0 0
  %5090 = vmatpush1.bf16.msra.mxu0 0
  %5091 = vmatprep.subr.bf16.mxu0 0
  %5092 = vmatpush1.bf16.msra.mxu0 0
  %5093 = vmatprep.subr.bf16.mxu0 0
  %5094 = vmatpush1.bf16.msra.mxu0 0
  %5095 = vmatprep.subr.bf16.mxu0 0
  %5096 = vmatpush1.bf16.msra.mxu0 0
  %5097 = vmatprep.subr.bf16.mxu0 0
  %5098 = vmatpush1.bf16.msra.mxu0 0
  %5099 = vmatprep.subr.bf16.mxu0 0
  %5100 = vmatpush1.bf16.msra.mxu0 0
  %5101 = vmatprep.subr.bf16.mxu0 0
  %5102 = vmatpush1.bf16.msra.mxu0 0
  %5103 = vmatprep.subr.bf16.mxu0 0
  %5104 = vmatpush1.bf16.msra.mxu0 0
  %5105 = vmatprep.subr.bf16.mxu0 0
  %5106 = vmatpush1.bf16.msra.mxu0 0
  %5107 = vmatprep.subr.bf16.mxu0 0
  %5108 = vmatpush1.bf16.msra.mxu0 0
  %5109 = vmatprep.mubr.bf16.mxu0 0
  %5110 = vmatmul.mubr.bf16.gmra.mrb[0].mxu0 %v5034
  %v5111 = vpop.f32.mrb[0].mxu0
  %v5112 = vadd.f32 0.0, %v5111
  %v5113 = vpop.f32.mrb[0].mxu0
  %v5114 = vadd.f32 0.0, %v5113
  %v5115 = vpop.f32.mrb[0].mxu0
  %v5116 = vpop.f32.mrb[0].mxu0
  %5117 = vdwg.mxu0
  %v5118 = vadd.f32 %v5028, %v5071
  %v5119 = vadd.f32 %v5029, %v5073
  %v5120 = vadd.f32 %v5030, %v5112
  %v5121 = vadd.f32 %v5031, %v5114
  %v5122 = vxor.u32 %v5118, 2147483648
  %v5123 = vmul.f32 %v5122, 1.442695
  %v5124 = vpow.pop %v5123
  %v5125 = vadd.f32 %v5124, 1.0
  %v5126 = vrcp.pop %v5125
  %v5127 = vmul.f32 1.0, %v5126
  %v5128 = vxor.u32 %v5119, 2147483648
  %v5129 = vmul.f32 %v5128, 1.442695
  %v5130 = vpow.pop %v5129
  %v5131 = vadd.f32 %v5130, 1.0
  %v5132 = vrcp.pop %v5131
  %v5133 = vmul.f32 1.0, %v5132
  %v5134 = vtanh.pop %v5120
  %v5135 = vxor.u32 %v5121, 2147483648
  %v5136 = vmul.f32 %v5135, 1.442695
  %v5137 = vpow.pop %v5136
  %v5138 = vadd.f32 %v5137, 1.0
  %v5139 = vrcp.pop %v5138
  %v5140 = vmul.f32 1.0, %v5139
  %v5141 = vmul.f32 %v5127, %v5134
  %v5142 = vmul.f32 %v5133, %v5019
  %v5143 = vadd.f32 %v5141, %v5142
  %v5144 = vmax.f32 %v5143, -3.0
  %v5145 = vmin.f32 %v5144, 3.0
  %v5146 = vtanh.pop %v5145
  %v5147 = vmul.f32 %v5140, %v5146
  %v5148 = vpack.c.bf16 %v5147, %v5147
  %5149 = vmatprep.subr.bf16.mxu0 0
  %5150 = vmatpush1.bf16.msra.mxu0 %v3824
  %5151 = vmatprep.subr.bf16.mxu0 0
  %5152 = vmatpush1.bf16.msra.mxu0 %v3825
  %5153 = vmatprep.subr.bf16.mxu0 0
  %5154 = vmatpush1.bf16.msra.mxu0 %v3826
  %5155 = vmatprep.subr.bf16.mxu0 0
  %5156 = vmatpush1.bf16.msra.mxu0 %v3827
  %5157 = vmatprep.subr.bf16.mxu0 0
  %5158 = vmatpush1.bf16.msra.mxu0 %v3828
  %5159 = vmatprep.subr.bf16.mxu0 0
  %5160 = vmatpush1.bf16.msra.mxu0 %v3829
  %5161 = vmatprep.subr.bf16.mxu0 0
  %5162 = vmatpush1.bf16.msra.mxu0 %v3830
  %5163 = vmatprep.subr.bf16.mxu0 0
  %5164 = vmatpush1.bf16.msra.mxu0 %v3831
  %5165 = vmatprep.subr.bf16.mxu0 0
  %5166 = vmatpush1.bf16.msra.mxu0 0
  %5167 = vmatprep.subr.bf16.mxu0 0
  %5168 = vmatpush1.bf16.msra.mxu0 0
  %5169 = vmatprep.subr.bf16.mxu0 0
  %5170 = vmatpush1.bf16.msra.mxu0 0
  %5171 = vmatprep.subr.bf16.mxu0 0
  %5172 = vmatpush1.bf16.msra.mxu0 0
  %5173 = vmatprep.subr.bf16.mxu0 0
  %5174 = vmatpush1.bf16.msra.mxu0 0
  %5175 = vmatprep.subr.bf16.mxu0 0
  %5176 = vmatpush1.bf16.msra.mxu0 0
  %5177 = vmatprep.subr.bf16.mxu0 0
  %5178 = vmatpush1.bf16.msra.mxu0 0
  %5179 = vmatprep.subr.bf16.mxu0 0
  %5180 = vmatpush1.bf16.msra.mxu0 0
  %5181 = vmatprep.mubr.bf16.mxu0 0
  %5182 = vmatmul.mubr.bf16.gmra.mrb[0].mxu0 %v5148
  %v5183 = vpop.f32.mrb[0].mxu0
  %v5184 = vadd.f32 0.0, %v5183
  %v5185 = vpop.f32.mrb[0].mxu0
  %v5186 = vpop.f32.mrb[0].mxu0
  %v5187 = vpop.f32.mrb[0].mxu0
  %5188 = vdwg.mxu0
  %v5189 = vmax.f32 %v5184, -3.0
  %v5190 = vmin.f32 %v5189, 3.0
  %v5191 = vld [vmem:[%s2464] sm:$0xff]
  %v5192 = vld [vmem:[%s2466] sm:$0xff]
  %v5193 = vmul.f32 %v5191, %v5190
  %5194 = vst.msk [vmem:[%s2469] sm:$0xff] %vm153, %v5193
  %5196 = vrot.lane.b32.xlu0 %v5193, 96
  %v5197 = vpop.permute.xlu0 %5196
  %5199 = vst.msk [vmem:[%s2475] sm:$0xff] %vm153, %v5197
  %v5200 = vsub.f32 1.0, %v5191
  %v5201 = vmul.f32 %v5200, %v5015
  %v5202 = vadd.f32 %v5193, %v5201
  %v5203 = vmul.f32 %v5192, %v5145
  %v5204 = vsub.f32 1.0, %v5192
  %v5205 = vmul.f32 %v5204, %v5019
  %v5206 = vadd.f32 %v5203, %v5205
  %v5207 = vld [vmem:[%s2484] sm:$0xff]
  %v5208 = vld [vmem:[%s2484 + $0x8] sm:$0xff]
  %v5209 = vld [vmem:[%s2484 + $0x10] sm:$0xff]
  %v5210 = vld [vmem:[%s2484 + $0x18] sm:$0xff]
  %v5211 = vld [vmem:[%s2489] sm:$0xff]
  %v5212 = vld [vmem:[%s2489 + $0x8] sm:$0xff]
  %v5213 = vld [vmem:[%s2489 + $0x10] sm:$0xff]
  %v5214 = vld [vmem:[%s2489 + $0x18] sm:$0xff]
  %v5215 = vadd.f32 %v5207, %v5211
  %v5216 = vadd.f32 %v5208, %v5212
  %v5217 = vadd.f32 %v5209, %v5213
  %v5218 = vadd.f32 %v5210, %v5214
  %v5219 = vpack.c.bf16 %v5202, %v5202
  %v5221 = vsel %vm164, %v5219, 0
  %5223 = vmatprep.subr.bf16.mxu0 %v3648
  %5224 = vmatpush1.bf16.msra.mxu0 %v3647
  %5225 = vmatprep.subr.bf16.mxu0 %v3652
  %5226 = vmatpush1.bf16.msra.mxu0 %v3651
  %5227 = vmatprep.subr.bf16.mxu0 %v3656
  %5228 = vmatpush1.bf16.msra.mxu0 %v3655
  %5229 = vmatprep.subr.bf16.mxu0 %v3660
  %5230 = vmatpush1.bf16.msra.mxu0 %v3659
  %5231 = vmatprep.subr.bf16.mxu0 0
  %5232 = vmatpush1.bf16.msra.mxu0 0
  %5233 = vmatprep.subr.bf16.mxu0 0
  %5234 = vmatpush1.bf16.msra.mxu0 0
  %5235 = vmatprep.subr.bf16.mxu0 0
  %5236 = vmatpush1.bf16.msra.mxu0 0
  %5237 = vmatprep.subr.bf16.mxu0 0
  %5238 = vmatpush1.bf16.msra.mxu0 0
  %5239 = vmatprep.subr.bf16.mxu0 0
  %5240 = vmatpush1.bf16.msra.mxu0 0
  %5241 = vmatprep.subr.bf16.mxu0 0
  %5242 = vmatpush1.bf16.msra.mxu0 0
  %5243 = vmatprep.subr.bf16.mxu0 0
  %5244 = vmatpush1.bf16.msra.mxu0 0
  %5245 = vmatprep.subr.bf16.mxu0 0
  %5246 = vmatpush1.bf16.msra.mxu0 0
  %5247 = vmatprep.subr.bf16.mxu0 0
  %5248 = vmatpush1.bf16.msra.mxu0 0
  %5249 = vmatprep.subr.bf16.mxu0 0
  %5250 = vmatpush1.bf16.msra.mxu0 0
  %5251 = vmatprep.subr.bf16.mxu0 0
  %5252 = vmatpush1.bf16.msra.mxu0 0
  %5253 = vmatprep.subr.bf16.mxu0 0
  %5254 = vmatpush1.bf16.msra.mxu0 0
  %5255 = vmatprep.mubr.bf16.mxu0 0
  %5256 = vmatmul.mubr.bf16.gmra.mrb[0].mxu0 %v5221
  %v5257 = vpop.f32.mrb[0].mxu0
  %v5258 = vadd.f32 0.0, %v5257
  %v5259 = vpop.f32.mrb[0].mxu0
  %v5260 = vadd.f32 0.0, %v5259
  %v5261 = vpop.f32.mrb[0].mxu0
  %v5262 = vpop.f32.mrb[0].mxu0
  %5263 = vdwg.mxu0
  %5264 = vmatprep.subr.bf16.mxu0 %v3650
  %5265 = vmatpush1.bf16.msra.mxu0 %v3649
  %5266 = vmatprep.subr.bf16.mxu0 %v3654
  %5267 = vmatpush1.bf16.msra.mxu0 %v3653
  %5268 = vmatprep.subr.bf16.mxu0 %v3658
  %5269 = vmatpush1.bf16.msra.mxu0 %v3657
  %5270 = vmatprep.subr.bf16.mxu0 %v3662
  %5271 = vmatpush1.bf16.msra.mxu0 %v3661
  %5272 = vmatprep.subr.bf16.mxu0 0
  %5273 = vmatpush1.bf16.msra.mxu0 0
  %5274 = vmatprep.subr.bf16.mxu0 0
  %5275 = vmatpush1.bf16.msra.mxu0 0
  %5276 = vmatprep.subr.bf16.mxu0 0
  %5277 = vmatpush1.bf16.msra.mxu0 0
  %5278 = vmatprep.subr.bf16.mxu0 0
  %5279 = vmatpush1.bf16.msra.mxu0 0
  %5280 = vmatprep.subr.bf16.mxu0 0
  %5281 = vmatpush1.bf16.msra.mxu0 0
  %5282 = vmatprep.subr.bf16.mxu0 0
  %5283 = vmatpush1.bf16.msra.mxu0 0
  %5284 = vmatprep.subr.bf16.mxu0 0
  %5285 = vmatpush1.bf16.msra.mxu0 0
  %5286 = vmatprep.subr.bf16.mxu0 0
  %5287 = vmatpush1.bf16.msra.mxu0 0
  %5288 = vmatprep.subr.bf16.mxu0 0
  %5289 = vmatpush1.bf16.msra.mxu0 0
  %5290 = vmatprep.subr.bf16.mxu0 0
  %5291 = vmatpush1.bf16.msra.mxu0 0
  %5292 = vmatprep.subr.bf16.mxu0 0
  %5293 = vmatpush1.bf16.msra.mxu0 0
  %5294 = vmatprep.subr.bf16.mxu0 0
  %5295 = vmatpush1.bf16.msra.mxu0 0
  %5296 = vmatprep.mubr.bf16.mxu0 0
  %5297 = vmatmul.mubr.bf16.gmra.mrb[0].mxu0 %v5221
  %v5298 = vpop.f32.mrb[0].mxu0
  %v5299 = vadd.f32 0.0, %v5298
  %v5300 = vpop.f32.mrb[0].mxu0
  %v5301 = vadd.f32 0.0, %v5300
  %v5302 = vpop.f32.mrb[0].mxu0
  %v5303 = vpop.f32.mrb[0].mxu0
  %5304 = vdwg.mxu0
  %v5305 = vadd.f32 %v5215, %v5258
  %v5306 = vadd.f32 %v5216, %v5260
  %v5307 = vadd.f32 %v5217, %v5299
  %v5308 = vadd.f32 %v5218, %v5301
  %v5309 = vxor.u32 %v5305, 2147483648
  %v5310 = vmul.f32 %v5309, 1.442695
  %v5311 = vpow.pop %v5310
  %v5312 = vadd.f32 %v5311, 1.0
  %v5313 = vrcp.pop %v5312
  %v5314 = vmul.f32 1.0, %v5313
  %v5315 = vxor.u32 %v5306, 2147483648
  %v5316 = vmul.f32 %v5315, 1.442695
  %v5317 = vpow.pop %v5316
  %v5318 = vadd.f32 %v5317, 1.0
  %v5319 = vrcp.pop %v5318
  %v5320 = vmul.f32 1.0, %v5319
  %v5321 = vtanh.pop %v5307
  %v5322 = vxor.u32 %v5308, 2147483648
  %v5323 = vmul.f32 %v5322, 1.442695
  %v5324 = vpow.pop %v5323
  %v5325 = vadd.f32 %v5324, 1.0
  %v5326 = vrcp.pop %v5325
  %v5327 = vmul.f32 1.0, %v5326
  %v5328 = vmul.f32 %v5314, %v5321
  %v5329 = vmul.f32 %v5320, %v5206
  %v5330 = vadd.f32 %v5328, %v5329
  %v5331 = vmax.f32 %v5330, -3.0
  %v5332 = vmin.f32 %v5331, 3.0
  %v5333 = vtanh.pop %v5332
  %v5334 = vmul.f32 %v5327, %v5333
  %v5335 = vpack.c.bf16 %v5334, %v5334
  %5336 = vmatprep.subr.bf16.mxu0 0
  %5337 = vmatpush1.bf16.msra.mxu0 %v3824
  %5338 = vmatprep.subr.bf16.mxu0 0
  %5339 = vmatpush1.bf16.msra.mxu0 %v3825
  %5340 = vmatprep.subr.bf16.mxu0 0
  %5341 = vmatpush1.bf16.msra.mxu0 %v3826
  %5342 = vmatprep.subr.bf16.mxu0 0
  %5343 = vmatpush1.bf16.msra.mxu0 %v3827
  %5344 = vmatprep.subr.bf16.mxu0 0
  %5345 = vmatpush1.bf16.msra.mxu0 %v3828
  %5346 = vmatprep.subr.bf16.mxu0 0
  %5347 = vmatpush1.bf16.msra.mxu0 %v3829
  %5348 = vmatprep.subr.bf16.mxu0 0
  %5349 = vmatpush1.bf16.msra.mxu0 %v3830
  %5350 = vmatprep.subr.bf16.mxu0 0
  %5351 = vmatpush1.bf16.msra.mxu0 %v3831
  %5352 = vmatprep.subr.bf16.mxu0 0
  %5353 = vmatpush1.bf16.msra.mxu0 0
  %5354 = vmatprep.subr.bf16.mxu0 0
  %5355 = vmatpush1.bf16.msra.mxu0 0
  %5356 = vmatprep.subr.bf16.mxu0 0
  %5357 = vmatpush1.bf16.msra.mxu0 0
  %5358 = vmatprep.subr.bf16.mxu0 0
  %5359 = vmatpush1.bf16.msra.mxu0 0
  %5360 = vmatprep.subr.bf16.mxu0 0
  %5361 = vmatpush1.bf16.msra.mxu0 0
  %5362 = vmatprep.subr.bf16.mxu0 0
  %5363 = vmatpush1.bf16.msra.mxu0 0
  %5364 = vmatprep.subr.bf16.mxu0 0
  %5365 = vmatpush1.bf16.msra.mxu0 0
  %5366 = vmatprep.subr.bf16.mxu0 0
  %5367 = vmatpush1.bf16.msra.mxu0 0
  %5368 = vmatprep.mubr.bf16.mxu0 0
  %5369 = vmatmul.mubr.bf16.gmra.mrb[0].mxu0 %v5335
  %v5370 = vpop.f32.mrb[0].mxu0
  %v5371 = vadd.f32 0.0, %v5370
  %v5372 = vpop.f32.mrb[0].mxu0
  %v5373 = vpop.f32.mrb[0].mxu0
  %v5374 = vpop.f32.mrb[0].mxu0
  %5375 = vdwg.mxu0
  %v5376 = vmax.f32 %v5371, -3.0
  %v5377 = vmin.f32 %v5376, 3.0
  %v5378 = vld [vmem:[%s2657] sm:$0xff]
  %v5379 = vld [vmem:[%s2659] sm:$0xff]
  %v5380 = vmul.f32 %v5378, %v5377
  %5381 = vst.msk [vmem:[%s2662] sm:$0xff] %vm153, %v5380
  %5383 = vrot.lane.b32.xlu0 %v5380, 96
  %v5384 = vpop.permute.xlu0 %5383
  %5386 = vst.msk [vmem:[%s2668] sm:$0xff] %vm153, %v5384
  %v5387 = vsub.f32 1.0, %v5378
  %v5388 = vmul.f32 %v5387, %v5202
  %v5389 = vadd.f32 %v5380, %v5388
  %v5390 = vmul.f32 %v5379, %v5332
  %v5391 = vsub.f32 1.0, %v5379
  %v5392 = vmul.f32 %v5391, %v5206
  %v5393 = vadd.f32 %v5390, %v5392
  %v5394 = vld [vmem:[%s2677] sm:$0xff]
  %v5395 = vld [vmem:[%s2677 + $0x8] sm:$0xff]
  %v5396 = vld [vmem:[%s2677 + $0x10] sm:$0xff]
  %v5397 = vld [vmem:[%s2677 + $0x18] sm:$0xff]
  %v5398 = vld [vmem:[#allocation5] sm:$0xff]
  %v5399 = vld [vmem:[#allocation5 + $0x8] sm:$0xff]
  %v5400 = vld [vmem:[#allocation5 + $0x10] sm:$0xff]
  %v5401 = vld [vmem:[#allocation5 + $0x18] sm:$0xff]
  %v5402 = vadd.f32 %v5394, %v5398
  %v5403 = vadd.f32 %v5395, %v5399
  %v5404 = vadd.f32 %v5396, %v5400
  %v5405 = vadd.f32 %v5397, %v5401
  %v5406 = vpack.c.bf16 %v5389, %v5389
  %v5408 = vsel %vm164, %v5406, 0
  %5410 = vmatprep.subr.bf16.mxu0 %v3648
  %5411 = vmatpush1.bf16.msra.mxu0 %v3647
  %5412 = vmatprep.subr.bf16.mxu0 %v3652
  %5413 = vmatpush1.bf16.msra.mxu0 %v3651
  %5414 = vmatprep.subr.bf16.mxu0 %v3656
  %5415 = vmatpush1.bf16.msra.mxu0 %v3655
  %5416 = vmatprep.subr.bf16.mxu0 %v3660
  %5417 = vmatpush1.bf16.msra.mxu0 %v3659
  %5418 = vmatprep.subr.bf16.mxu0 0
  %5419 = vmatpush1.bf16.msra.mxu0 0
  %5420 = vmatprep.subr.bf16.mxu0 0
  %5421 = vmatpush1.bf16.msra.mxu0 0
  %5422 = vmatprep.subr.bf16.mxu0 0
  %5423 = vmatpush1.bf16.msra.mxu0 0
  %5424 = vmatprep.subr.bf16.mxu0 0
  %5425 = vmatpush1.bf16.msra.mxu0 0
  %5426 = vmatprep.subr.bf16.mxu0 0
  %5427 = vmatpush1.bf16.msra.mxu0 0
  %5428 = vmatprep.subr.bf16.mxu0 0
  %5429 = vmatpush1.bf16.msra.mxu0 0
  %5430 = vmatprep.subr.bf16.mxu0 0
  %5431 = vmatpush1.bf16.msra.mxu0 0
  %5432 = vmatprep.subr.bf16.mxu0 0
  %5433 = vmatpush1.bf16.msra.mxu0 0
  %5434 = vmatprep.subr.bf16.mxu0 0
  %5435 = vmatpush1.bf16.msra.mxu0 0
  %5436 = vmatprep.subr.bf16.mxu0 0
  %5437 = vmatpush1.bf16.msra.mxu0 0
  %5438 = vmatprep.subr.bf16.mxu0 0
  %5439 = vmatpush1.bf16.msra.mxu0 0
  %5440 = vmatprep.subr.bf16.mxu0 0
  %5441 = vmatpush1.bf16.msra.mxu0 0
  %5442 = vmatprep.mubr.bf16.mxu0 0
  %5443 = vmatmul.mubr.bf16.gmra.mrb[0].mxu0 %v5408
  %v5444 = vpop.f32.mrb[0].mxu0
  %v5445 = vadd.f32 0.0, %v5444
  %v5446 = vpop.f32.mrb[0].mxu0
  %v5447 = vadd.f32 0.0, %v5446
  %v5448 = vpop.f32.mrb[0].mxu0
  %v5449 = vpop.f32.mrb[0].mxu0
  %5450 = vdwg.mxu0
  %5451 = vmatprep.subr.bf16.mxu0 %v3650
  %5452 = vmatpush1.bf16.msra.mxu0 %v3649
  %5453 = vmatprep.subr.bf16.mxu0 %v3654
  %5454 = vmatpush1.bf16.msra.mxu0 %v3653
  %5455 = vmatprep.subr.bf16.mxu0 %v3658
  %5456 = vmatpush1.bf16.msra.mxu0 %v3657
  %5457 = vmatprep.subr.bf16.mxu0 %v3662
  %5458 = vmatpush1.bf16.msra.mxu0 %v3661
  %5459 = vmatprep.subr.bf16.mxu0 0
  %5460 = vmatpush1.bf16.msra.mxu0 0
  %5461 = vmatprep.subr.bf16.mxu0 0
  %5462 = vmatpush1.bf16.msra.mxu0 0
  %5463 = vmatprep.subr.bf16.mxu0 0
  %5464 = vmatpush1.bf16.msra.mxu0 0
  %5465 = vmatprep.subr.bf16.mxu0 0
  %5466 = vmatpush1.bf16.msra.mxu0 0
  %5467 = vmatprep.subr.bf16.mxu0 0
  %5468 = vmatpush1.bf16.msra.mxu0 0
  %5469 = vmatprep.subr.bf16.mxu0 0
  %5470 = vmatpush1.bf16.msra.mxu0 0
  %5471 = vmatprep.subr.bf16.mxu0 0
  %5472 = vmatpush1.bf16.msra.mxu0 0
  %5473 = vmatprep.subr.bf16.mxu0 0
  %5474 = vmatpush1.bf16.msra.mxu0 0
  %5475 = vmatprep.subr.bf16.mxu0 0
  %5476 = vmatpush1.bf16.msra.mxu0 0
  %5477 = vmatprep.subr.bf16.mxu0 0
  %5478 = vmatpush1.bf16.msra.mxu0 0
  %5479 = vmatprep.subr.bf16.mxu0 0
  %5480 = vmatpush1.bf16.msra.mxu0 0
  %5481 = vmatprep.subr.bf16.mxu0 0
  %5482 = vmatpush1.bf16.msra.mxu0 0
  %5483 = vmatprep.mubr.bf16.mxu0 0
  %5484 = vmatmul.mubr.bf16.gmra.mrb[0].mxu0 %v5408
  %v5485 = vpop.f32.mrb[0].mxu0
  %v5486 = vadd.f32 0.0, %v5485
  %v5487 = vpop.f32.mrb[0].mxu0
  %v5488 = vadd.f32 0.0, %v5487
  %v5489 = vpop.f32.mrb[0].mxu0
  %v5490 = vpop.f32.mrb[0].mxu0
  %5491 = vdwg.mxu0
  %v5492 = vadd.f32 %v5402, %v5445
  %v5493 = vadd.f32 %v5403, %v5447
  %v5494 = vadd.f32 %v5404, %v5486
  %v5495 = vadd.f32 %v5405, %v5488
  %v5496 = vxor.u32 %v5492, 2147483648
  %v5497 = vmul.f32 %v5496, 1.442695
  %v5498 = vpow.pop %v5497
  %v5499 = vadd.f32 %v5498, 1.0
  %v5500 = vrcp.pop %v5499
  %v5501 = vmul.f32 1.0, %v5500
  %v5502 = vxor.u32 %v5493, 2147483648
  %v5503 = vmul.f32 %v5502, 1.442695
  %v5504 = vpow.pop %v5503
  %v5505 = vadd.f32 %v5504, 1.0
  %v5506 = vrcp.pop %v5505
  %v5507 = vmul.f32 1.0, %v5506
  %v5508 = vtanh.pop %v5494
  %v5509 = vxor.u32 %v5495, 2147483648
  %v5510 = vmul.f32 %v5509, 1.442695
  %v5511 = vpow.pop %v5510
  %v5512 = vadd.f32 %v5511, 1.0
  %v5513 = vrcp.pop %v5512
  %v5514 = vmul.f32 1.0, %v5513
  %v5515 = vmul.f32 %v5501, %v5508
  %v5516 = vmul.f32 %v5507, %v5393
  %v5517 = vadd.f32 %v5515, %v5516
  %v5518 = vmax.f32 %v5517, -3.0
  %v5519 = vmin.f32 %v5518, 3.0
  %v5520 = vtanh.pop %v5519
  %v5521 = vmul.f32 %v5514, %v5520
  %v5522 = vpack.c.bf16 %v5521, %v5521
  %5523 = vmatprep.subr.bf16.mxu0 0
  %5524 = vmatpush1.bf16.msra.mxu0 %v3824
  %5525 = vmatprep.subr.bf16.mxu0 0
  %5526 = vmatpush1.bf16.msra.mxu0 %v3825
  %5527 = vmatprep.subr.bf16.mxu0 0
  %5528 = vmatpush1.bf16.msra.mxu0 %v3826
  %5529 = vmatprep.subr.bf16.mxu0 0
  %5530 = vmatpush1.bf16.msra.mxu0 %v3827
  %5531 = vmatprep.subr.bf16.mxu0 0
  %5532 = vmatpush1.bf16.msra.mxu0 %v3828
  %5533 = vmatprep.subr.bf16.mxu0 0
  %5534 = vmatpush1.bf16.msra.mxu0 %v3829
  %5535 = vmatprep.subr.bf16.mxu0 0
  %5536 = vmatpush1.bf16.msra.mxu0 %v3830
  %5537 = vmatprep.subr.bf16.mxu0 0
  %5538 = vmatpush1.bf16.msra.mxu0 %v3831
  %5539 = vmatprep.subr.bf16.mxu0 0
  %5540 = vmatpush1.bf16.msra.mxu0 0
  %5541 = vmatprep.subr.bf16.mxu0 0
  %5542 = vmatpush1.bf16.msra.mxu0 0
  %5543 = vmatprep.subr.bf16.mxu0 0
  %5544 = vmatpush1.bf16.msra.mxu0 0
  %5545 = vmatprep.subr.bf16.mxu0 0
  %5546 = vmatpush1.bf16.msra.mxu0 0
  %5547 = vmatprep.subr.bf16.mxu0 0
  %5548 = vmatpush1.bf16.msra.mxu0 0
  %5549 = vmatprep.subr.bf16.mxu0 0
  %5550 = vmatpush1.bf16.msra.mxu0 0
  %5551 = vmatprep.subr.bf16.mxu0 0
  %5552 = vmatpush1.bf16.msra.mxu0 0
  %5553 = vmatprep.subr.bf16.mxu0 0
  %5554 = vmatpush1.bf16.msra.mxu0 0
  %5555 = vmatprep.mubr.bf16.mxu0 0
  %5556 = vmatmul.mubr.bf16.gmra.mrb[0].mxu0 %v5522
  %v5557 = vpop.f32.mrb[0].mxu0
  %v5558 = vadd.f32 0.0, %v5557
  %v5559 = vpop.f32.mrb[0].mxu0
  %v5560 = vpop.f32.mrb[0].mxu0
  %v5561 = vpop.f32.mrb[0].mxu0
  %5562 = vdwg.mxu0
  %v5563 = vmax.f32 %v5558, -3.0
  %v5564 = vmin.f32 %v5563, 3.0
  %v5565 = vld [vmem:[%s2849] sm:$0xff]
  %v5566 = vmul.f32 %v5565, %v5564
  %5567 = vst.msk [vmem:[%s2852] sm:$0xff] %vm153, %v5566
  %5569 = vrot.lane.b32.xlu0 %v5566, 96
  %v5570 = vpop.permute.xlu0 %5569
  %5572 = vst.msk [vmem:[#allocation7] sm:$0xff] %vm153, %v5570
  %v5573 = vld [vmem:[#allocation6] sm:$0xff]
  %v5574 = vld [vmem:[#allocation6 + $0x8] sm:$0xff]
  %v5575 = vld [vmem:[#allocation6 + $0x10] sm:$0xff]
  %v5576 = vld [vmem:[#allocation6 + $0x18] sm:$0xff]
  %v5577 = vld [vmem:[#allocation6 + $0x20] sm:$0xff]
  %v5578 = vld [vmem:[#allocation6 + $0x28] sm:$0xff]
  %v5579 = vld [vmem:[#allocation6 + $0x30] sm:$0xff]
  %v5580 = vld [vmem:[#allocation6 + $0x38] sm:$0xff]
  %v5581 = vld [vmem:[#allocation6 + $0x40] sm:$0xff]
  %v5582 = vld [vmem:[#allocation6 + $0x48] sm:$0xff]
  %v5583 = vld [vmem:[#allocation7] sm:$0xff]
  %v5584 = vld [vmem:[#allocation7 + $0x8] sm:$0xff]
  %v5585 = vld [vmem:[#allocation7 + $0x10] sm:$0xff]
  %v5586 = vld [vmem:[#allocation7 + $0x18] sm:$0xff]
  %v5587 = vld [vmem:[#allocation7 + $0x20] sm:$0xff]
  %v5588 = vld [vmem:[#allocation7 + $0x28] sm:$0xff]
  %v5589 = vld [vmem:[#allocation7 + $0x30] sm:$0xff]
  %v5590 = vld [vmem:[#allocation7 + $0x38] sm:$0xff]
  %v5591 = vld [vmem:[#allocation7 + $0x40] sm:$0xff]
  %v5592 = vld [vmem:[#allocation7 + $0x48] sm:$0xff]
  %v5593 = vld [vmem:[#allocation2] sm:$0xff]
  %v5594 = vld [vmem:[#allocation2 + $0x8] sm:$0xff]
  %v5595 = vld [vmem:[#allocation2 + $0x10] sm:$0xff]
  %v5596 = vld [vmem:[#allocation2 + $0x18] sm:$0xff]
  %v5597 = vld [vmem:[#allocation2 + $0x20] sm:$0xff]
  %v5598 = vld [vmem:[#allocation2 + $0x28] sm:$0xff]
  %v5599 = vld [vmem:[#allocation2 + $0x30] sm:$0xff]
  %v5600 = vld [vmem:[#allocation2 + $0x38] sm:$0xff]
  %v5601 = vld [vmem:[#allocation2 + $0x40] sm:$0xff]
  %v5602 = vld [vmem:[#allocation2 + $0x48] sm:$0xff]
  %v5603 = vadd.f32 %v5573, %v5593
  %v5604 = vadd.f32 %v5574, %v5594
  %v5605 = vadd.f32 %v5575, %v5595
  %v5606 = vadd.f32 %v5576, %v5596
  %v5607 = vadd.f32 %v5577, %v5597
  %v5608 = vadd.f32 %v5578, %v5598
  %v5609 = vadd.f32 %v5579, %v5599
  %v5610 = vadd.f32 %v5580, %v5600
  %v5611 = vadd.f32 %v5581, %v5601
  %v5612 = vadd.f32 %v5582, %v5602
  %v5613 = vld [vmem:[#allocation3] sm:$0xff]
  %v5614 = vld [vmem:[#allocation3 + $0x8] sm:$0xff]
  %v5615 = vld [vmem:[#allocation3 + $0x10] sm:$0xff]
  %v5616 = vld [vmem:[#allocation3 + $0x18] sm:$0xff]
  %v5617 = vld [vmem:[#allocation3 + $0x20] sm:$0xff]
  %v5618 = vld [vmem:[#allocation3 + $0x28] sm:$0xff]
  %v5619 = vld [vmem:[#allocation3 + $0x30] sm:$0xff]
  %v5620 = vld [vmem:[#allocation3 + $0x38] sm:$0xff]
  %v5621 = vld [vmem:[#allocation3 + $0x40] sm:$0xff]
  %v5622 = vld [vmem:[#allocation3 + $0x48] sm:$0xff]
  %v5623 = vadd.f32 %v5583, %v5613
  %v5624 = vadd.f32 %v5584, %v5614
  %v5625 = vadd.f32 %v5585, %v5615
  %v5626 = vadd.f32 %v5586, %v5616
  %v5627 = vadd.f32 %v5587, %v5617
  %v5628 = vadd.f32 %v5588, %v5618
  %v5629 = vadd.f32 %v5589, %v5619
  %v5630 = vadd.f32 %v5590, %v5620
  %v5631 = vadd.f32 %v5591, %v5621
  %v5632 = vadd.f32 %v5592, %v5622
  %5643 = vrot.lane.b32.xlu0 %v5623, 32
  %v5644 = vpop.permute.xlu0 %5643
  %5645 = vrot.lane.b32.xlu0 %v5624, 32
  %v5646 = vpop.permute.xlu0 %5645
  %5647 = vrot.lane.b32.xlu0 %v5625, 32
  %v5648 = vpop.permute.xlu0 %5647
  %5649 = vrot.lane.b32.xlu0 %v5626, 32
  %v5650 = vpop.permute.xlu0 %5649
  %5651 = vrot.lane.b32.xlu0 %v5627, 32
  %v5652 = vpop.permute.xlu0 %5651
  %5653 = vrot.lane.b32.xlu0 %v5628, 32
  %v5654 = vpop.permute.xlu0 %5653
  %5655 = vrot.lane.b32.xlu0 %v5629, 32
  %v5656 = vpop.permute.xlu0 %5655
  %5657 = vrot.lane.b32.xlu0 %v5630, 32
  %v5658 = vpop.permute.xlu0 %5657
  %5659 = vrot.lane.b32.xlu0 %v5631, 32
  %v5660 = vpop.permute.xlu0 %5659
  %5661 = vrot.lane.b32.xlu0 %v5632, 32
  %v5662 = vpop.permute.xlu0 %5661
  %v5673 = vsel %vm153, %v5603, %v5644
  %v5674 = vsel %vm153, %v5604, %v5646
  %v5675 = vsel %vm153, %v5605, %v5648
  %v5676 = vsel %vm153, %v5606, %v5650
  %v5677 = vsel %vm153, %v5607, %v5652
  %v5678 = vsel %vm153, %v5608, %v5654
  %v5679 = vsel %vm153, %v5609, %v5656
  %v5680 = vsel %vm153, %v5610, %v5658
  %v5681 = vsel %vm153, %v5611, %v5660
  %v5682 = vsel %vm153, %v5612, %v5662
  %s5683 = scalar_lea.vmem %s9, 160
  %5684 = vst.msk [vmem:[%s5683] sm:$0xff] %vm164, %v5673
  %5685 = vst.msk [vmem:[%s5683 + $0x8] sm:$0xff] %vm164, %v5674
  %5686 = vst.msk [vmem:[%s5683 + $0x10] sm:$0xff] %vm164, %v5675
  %5687 = vst.msk [vmem:[%s5683 + $0x18] sm:$0xff] %vm164, %v5676
  %5688 = vst.msk [vmem:[%s5683 + $0x20] sm:$0xff] %vm164, %v5677
  %5689 = vst.msk [vmem:[%s5683 + $0x28] sm:$0xff] %vm164, %v5678
  %5690 = vst.msk [vmem:[%s5683 + $0x30] sm:$0xff] %vm164, %v5679
  %5691 = vst.msk [vmem:[%s5683 + $0x38] sm:$0xff] %vm164, %v5680
  %5692 = vst.msk [vmem:[%s5683 + $0x40] sm:$0xff] %vm164, %v5681
  %5693 = vst.msk [vmem:[%s5683 + $0x48] sm:$0xff] %vm164, %v5682
  %5694 = vst.msk [vmem:[#allocation2] sm:$0xff] %vm153, %v5603
  %5695 = vst.msk [vmem:[#allocation2 + $0x8] sm:$0xff] %vm153, %v5604
  %5696 = vst.msk [vmem:[#allocation2 + $0x10] sm:$0xff] %vm153, %v5605
  %5697 = vst.msk [vmem:[#allocation2 + $0x18] sm:$0xff] %vm153, %v5606
  %5698 = vst.msk [vmem:[#allocation2 + $0x20] sm:$0xff] %vm153, %v5607
  %5699 = vst.msk [vmem:[#allocation2 + $0x28] sm:$0xff] %vm153, %v5608
  %5700 = vst.msk [vmem:[#allocation2 + $0x30] sm:$0xff] %vm153, %v5609
  %5701 = vst.msk [vmem:[#allocation2 + $0x38] sm:$0xff] %vm153, %v5610
  %5702 = vst.msk [vmem:[#allocation2 + $0x40] sm:$0xff] %vm153, %v5611
  %5703 = vst.msk [vmem:[#allocation2 + $0x48] sm:$0xff] %vm153, %v5612
  %5704 = vst.msk [vmem:[#allocation3] sm:$0xff] %vm153, %v5623
  %5705 = vst.msk [vmem:[#allocation3 + $0x8] sm:$0xff] %vm153, %v5624
  %5706 = vst.msk [vmem:[#allocation3 + $0x10] sm:$0xff] %vm153, %v5625
  %5707 = vst.msk [vmem:[#allocation3 + $0x18] sm:$0xff] %vm153, %v5626
  %5708 = vst.msk [vmem:[#allocation3 + $0x20] sm:$0xff] %vm153, %v5627
  %5709 = vst.msk [vmem:[#allocation3 + $0x28] sm:$0xff] %vm153, %v5628
  %5710 = vst.msk [vmem:[#allocation3 + $0x30] sm:$0xff] %vm153, %v5629
  %5711 = vst.msk [vmem:[#allocation3 + $0x38] sm:$0xff] %vm153, %v5630
  %5712 = vst.msk [vmem:[#allocation3 + $0x40] sm:$0xff] %vm153, %v5631
  %5713 = vst.msk [vmem:[#allocation3 + $0x48] sm:$0xff] %vm153, %v5632
  // Predicated region
  $region38: #{elmo_forward.3} parent=0 // pred_check
    _
  $region39: #{elmo_forward.3} parent=0 // pred_check_branch
    %5715 = sbr.rel (0) target = $region41
  $region40: #{elmo_forward.3} parent=0 // pred_region
    _
  $region41: #{elmo_forward.3} parent=0 // pred_fallthru
    _
  // Predicated region
  $region42: #{elmo_forward.3} parent=0 // pred_check
    _
  $region43: #{elmo_forward.3} parent=0 // pred_check_branch
    %5717 = sbr.rel (0) target = $region45
  $region44: #{elmo_forward.3} parent=0 // pred_region
    _
  $region45: #{elmo_forward.3} parent=0 // pred_fallthru
    _

</llo_original>
